<compile_context>
chip_gen: v7x
topology: tpu7x:2x2x1
jax: 0.10.0
libtpu: 0.0.40
codegen_flags: <defaults>
</compile_context>

<pallas_src>
import functools
import math

import jax
import jax.numpy as jnp
from jax.experimental import pallas as pl
from jax.experimental.pallas import tpu as pltpu

_BN_EPS = 1e-5
_LANE = 128  # lane-dense minimum for channel dims


def _round_up(x, m):
    return ((x + m - 1) // m) * m


def _phys(c):
    """Physical (lane-dense) channel count for activations/weights."""
    return c if c >= _LANE else _LANE


def _choose_tile(dim, cap):
    """Single full-dim block whenever the dim fits under `cap` (always true in
    this net); only split (and pad) for hypothetical larger problems."""
    if dim <= cap:
        return dim, dim
    return cap, _round_up(dim, cap)


# ----------------------------------------------------------------------------
# Pallas kernel: fused (P @ W_bnfolded) + bias [+ residual] [+ ReLU]
# ----------------------------------------------------------------------------
def _mm_bias_act_kernel(*refs, relu, has_res):
    if has_res:
        p_ref, w_ref, b_ref, r_ref, o_ref = refs
    else:
        p_ref, w_ref, b_ref, o_ref = refs
        r_ref = None
    # bf16 operands -> MXU, f32 accumulation; epilogue stays in f32.
    acc = jnp.dot(p_ref[...], w_ref[...], preferred_element_type=jnp.float32)
    y = acc + b_ref[...]
    if has_res:
        y = y + r_ref[...].astype(jnp.float32)
    if relu:
        y = jnp.maximum(y, 0.0)
    o_ref[...] = y.astype(o_ref.dtype)


def matmul_bias_act(p, w, bias, *, relu, residual=None, out_dtype=jnp.bfloat16):
    """p:[M,K] bf16, w:[K,N] bf16 (BN-scale folded, prepacked at init),
    bias:[1,N] f32, residual:[M,N] bf16 or None -> [M,N] out_dtype."""
    m, k = p.shape
    k_w, n = w.shape
    assert k == k_w, (k, k_w)
    has_res = residual is not None

    # Single block per call for this net (M<=512, N<=256): no M split, no
    # megacore rationale, no extra grid steps.
    tm, mp = _choose_tile(m, 512)
    tn, np_ = _choose_tile(n, 256)

    if mp != m:  # never hit for this net; kept for generality
        p = jnp.pad(p, ((0, mp - m), (0, 0)))
        if has_res:
            residual = jnp.pad(residual, ((0, mp - m), (0, 0)))
    if np_ != n:  # never hit for this net; kept for generality
        w = jnp.pad(w, ((0, 0), (0, np_ - n)))
        bias = jnp.pad(bias, ((0, 0), (0, np_ - n)))
        if has_res:
            residual = jnp.pad(residual, ((0, 0), (0, np_ - n)))

    inputs = [p, w, bias]
    in_specs = [
        pl.BlockSpec((tm, k), lambda i, j: (i, 0)),   # full, un-padded K
        pl.BlockSpec((k, tn), lambda i, j: (0, j)),
        pl.BlockSpec((1, tn), lambda i, j: (0, j)),
    ]
    if has_res:
        inputs.append(residual)
        in_specs.append(pl.BlockSpec((tm, tn), lambda i, j: (i, j)))

    # Realistic VMEM budget: double-buffered block footprint + headroom for
    # Mosaic internal scratch/spills.  A few MiB total -- leaves room inside
    # v7x's 64 MiB VMEM for the other core / surrounding fusions.
    est_db = 2 * (tm * k * 2 + k * tn * 2 + tn * 4 + tm * tn * 2
                  + (tm * tn * 2 if has_res else 0))
    vmem_limit = int(min(64 * 2 ** 20, est_db + 6 * 2 ** 20))

    flops = 2 * mp * k * np_
    bytes_accessed = (mp * k * 2 + k * np_ * 2 + np_ * 4 + mp * np_ * 2
                      + (mp * np_ * 2 if has_res else 0))

    kernel = functools.partial(_mm_bias_act_kernel, relu=relu, has_res=has_res)
    out = pl.pallas_call(
        kernel,
        out_shape=jax.ShapeDtypeStruct((mp, np_), out_dtype),
        grid_spec=pltpu.PrefetchScalarGridSpec(
            num_scalar_prefetch=0,
            grid=(mp // tm, np_ // tn),   # (1, 1) for every call in this net
            in_specs=in_specs,
            out_specs=pl.BlockSpec((tm, tn), lambda i, j: (i, j)),
        ),
        compiler_params=pltpu.CompilerParams(
            dimension_semantics=("parallel", "parallel"),
            vmem_limit_bytes=vmem_limit),
        cost_estimate=pl.CostEstimate(flops=flops, transcendentals=0,
                                      bytes_accessed=bytes_accessed),
    )(*inputs)
    if mp != m:
        out = out[:m]
    if np_ != n:
        out = out[:, :n]
    return out


# ----------------------------------------------------------------------------
# Conv / pool wrappers
# ----------------------------------------------------------------------------
def im2col(x, kh, kw, stride, padding):
    """x: NHWC bf16 -> patches [N*Ho*Wo, kh*kw*C] (tap order kh, kw, C)."""
    n, h, w, c = x.shape
    ho = (h + 2 * padding - kh) // stride + 1
    wo = (w + 2 * padding - kw) // stride + 1
    xp = jnp.pad(x, ((0, 0), (padding, padding), (padding, padding), (0, 0)))
    cols = []
    for i in range(kh):
        for j in range(kw):
            cols.append(xp[:, i:i + stride * (ho - 1) + 1:stride,
                              j:j + stride * (wo - 1) + 1:stride, :])
    patches = jnp.concatenate(cols, axis=-1)
    return patches.reshape(n * ho * wo, kh * kw * c), (n, ho, wo)


def conv_bn(x, wm, bias, *, kh, kw, stride, padding, relu, residual=None):
    """x: NHWC bf16 (physical channels), wm: [kh*kw*Cin_phys, Cout_phys] bf16
    (BN-scale folded), bias: [1, Cout_phys] f32.  Returns NHWC bf16."""
    # TODO(synk): replace im2col with an in-kernel shifted-matmul conv (and
    # per-BasicBlock fusion) to remove the patch HBM amplification entirely.
    p, (n, ho, wo) = im2col(x, kh, kw, stride, padding)
    kp, cout = wm.shape
    assert p.shape[1] == kp, (p.shape, wm.shape)
    r = residual.reshape(n * ho * wo, cout) if residual is not None else None
    out = matmul_bias_act(p, wm, bias, relu=relu, residual=r)
    return out.reshape(n, ho, wo, cout)


def maxpool_3x3_s2_p1(x):
    """nn.MaxPool2d(3, 2, 1) as a plain XLA maximum tree (fuses with the pad,
    no 9x stacked HBM copy, no lane-sparse kernel launch)."""
    n, h, w, c = x.shape
    ho = (h + 2 - 3) // 2 + 1
    wo = (w + 2 - 3) // 2 + 1
    xp = jnp.pad(x, ((0, 0), (1, 1), (1, 1), (0, 0)),
                 constant_values=-jnp.inf)
    out = None
    for i in range(3):
        for j in range(3):
            tap = xp[:, i:i + 2 * (ho - 1) + 1:2, j:j + 2 * (wo - 1) + 1:2, :]
            out = tap if out is None else jnp.maximum(out, tap)
    return out


# ----------------------------------------------------------------------------
# Parameters (deterministic, mirrors the module's __init__; hoisted/prepacked,
# BN folded into weights, channels padded to lane-dense physical widths)
# ----------------------------------------------------------------------------
def _make_conv(key, kh, kw, cin_real, cin_phys, cout_real, cout_phys):
    # PyTorch init: normal_(0, sqrt(2/n)), n = kh*kw*out_channels (real).
    std = math.sqrt(2.0 / (kh * kw * cout_real))
    w = jax.random.normal(key, (kh, kw, cin_real, cout_real), jnp.float32) * std
    # BN fold (inference): gamma=1, beta=0, mean=0, var=1, eps=1e-5
    #   scale = gamma / sqrt(var+eps), bias = beta - mean*scale
    # -> fold scale into the weight columns, keep only bias in the epilogue.
    scale = 1.0 / math.sqrt(1.0 + _BN_EPS)
    w = w * scale
    wp = jnp.zeros((kh, kw, cin_phys, cout_phys), jnp.float32)
    wp = wp.at[:, :, :cin_real, :cout_real].set(w)
    wm = wp.reshape(kh * kw * cin_phys, cout_phys).astype(jnp.bfloat16)
    bias = jnp.zeros((1, cout_phys), jnp.float32)  # beta - mean*scale = 0
    return wm, bias


def init_params(key, layers=(1, 1, 1), out_stride=8):
    if out_stride == 8:
        stride = [2, 1, 1]
    elif out_stride == 16:
        stride = [2, 2, 1]
    else:
        stride = [2, 2, 2]

    keys = iter(jax.random.split(key, 64))
    params = {"conv1": _make_conv(next(keys), 7, 7, 3, 3, 64, _phys(64))}

    inplanes = 64
    expansion = 1  # BasicBlock

    def make_layer(planes, blocks, stride_):
        nonlocal inplanes
        layer = []
        for b in range(blocks):
            s = stride_ if b == 0 else 1
            blk = {
                "conv1": _make_conv(next(keys), 3, 3, inplanes, _phys(inplanes),
                                    planes, _phys(planes)),
                "conv2": _make_conv(next(keys), 3, 3, planes, _phys(planes),
                                    planes, _phys(planes)),
                "stride": s,
            }
            if b == 0 and (stride_ != 1 or inplanes != planes * expansion):
                blk["ds"] = _make_conv(next(keys), 1, 1, inplanes,
                                       _phys(inplanes), planes * expansion,
                                       _phys(planes * expansion))
            inplanes = planes * expansion
            layer.append(blk)
        return layer

    params["layer1"] = make_layer(64, layers[0], 1)
    params["layer2"] = make_layer(128, layers[1], stride[0])
    params["layer3"] = make_layer(256, layers[2], stride[1])
    # real (un-padded) channel counts of the returned feature maps
    params["_real_out"] = {"layer1": 64, "layer2": 128, "layer3": 256}
    # layer4 / mult_grid are constructed in the PyTorch __init__ but unused.
    return params


# ----------------------------------------------------------------------------
# Forward pass
# ----------------------------------------------------------------------------
def basic_block(x, blk):
    identity = x
    s = blk["stride"]
    w1, b1 = blk["conv1"]
    y = conv_bn(x, w1, b1, kh=3, kw=3, stride=s, padding=1, relu=True)
    if "ds" in blk:
        wd, bd = blk["ds"]
        identity = conv_bn(x, wd, bd, kh=1, kw=1, stride=s, padding=0,
                           relu=False)
    # out = relu(bn2(conv2(y)) + identity)  -- fused into one kernel call
    w2, b2 = blk["conv2"]
    y = conv_bn(y, w2, b2, kh=3, kw=3, stride=1, padding=1, relu=True,
                residual=identity)
    return y


def resnet_diff_forward(params, x_nchw):
    # accept NCHW (PyTorch convention), compute in NHWC bf16 (lane-dense,
    # padded channels stay exactly 0), return NCHW f32 real channels.
    x = jnp.transpose(x_nchw, (0, 2, 3, 1)).astype(jnp.bfloat16)

    w, b = params["conv1"]
    x = conv_bn(x, w, b, kh=7, kw=7, stride=2, padding=3, relu=True)
    x = maxpool_3x3_s2_p1(x)

    blocks = []
    for name in ("layer1", "layer2", "layer3"):
        for blk in params[name]:
            x = basic_block(x, blk)
        c_real = params["_real_out"][name]
        blocks.append(jnp.transpose(x[..., :c_real], (0, 3, 1, 2))
                      .astype(jnp.float32))
    return blocks


# ----------------------------------------------------------------------------
if __name__ == "__main__":
    key = jax.random.PRNGKey(0)
    k_x, k_p = jax.random.split(key)

    # NCHW input, 3 channels as required by conv1.
    x = jax.random.normal(k_x, (2, 3, 32, 32), jnp.float32)
    params = init_params(k_p)

    fwd = jax.jit(functools.partial(resnet_diff_forward, params))
    outs = fwd(x)
    for o in outs:
        jax.block_until_ready(o)

    expected = [(2, 64, 8, 8), (2, 128, 4, 4), (2, 256, 4, 4)]
    assert [tuple(o.shape) for o in outs] == expected, \
        [tuple(o.shape) for o in outs]
    assert all(bool(jnp.all(jnp.isfinite(o))) for o in outs)

    print("KERNEL_OK")
</pallas_src>

<mosaic_0001>
module attributes {stable_mosaic.version = 11 : i64} {
  func.func @_mm_bias_act_kernel(%arg0: i32, %arg1: i32, %arg2: memref<512x147xbf16, #tpu.memory_space<vmem>>, %arg3: memref<147x128xbf16, #tpu.memory_space<vmem>>, %arg4: memref<1x128xf32, #tpu.memory_space<vmem>>, %arg5: memref<512x128xbf16, #tpu.memory_space<vmem>>) attributes {dimension_semantics = [#tpu.dimension_semantics<parallel>, #tpu.dimension_semantics<parallel>], iteration_bounds = array<i64: 1, 1>, scalar_prefetch = 0 : i64, scratch_operands = 0 : i64, tpu.core_type = #tpu.core_type<tc>, window_params = [{transform_indices = @transform_0, window_bounds = array<i64: 512, 147>}, {transform_indices = @transform_1, window_bounds = array<i64: 147, 128>}, {transform_indices = @transform_2, window_bounds = array<i64: 1, 128>}, {transform_indices = @transform_3, window_bounds = array<i64: 512, 128>}]} {
    %c0 = arith.constant 0 : index
    %c0_0 = arith.constant 0 : index
    %0 = vector.load %arg2[%c0, %c0_0] : memref<512x147xbf16, #tpu.memory_space<vmem>>, vector<512x147xbf16>
    %c0_1 = arith.constant 0 : index
    %c0_2 = arith.constant 0 : index
    %1 = vector.load %arg3[%c0_1, %c0_2] : memref<147x128xbf16, #tpu.memory_space<vmem>>, vector<147x128xbf16>
    %cst = arith.constant dense<0.000000e+00> : vector<512x128xf32>
    %2 = tpu.matmul %0, %1, %cst {dimension_numbers = #tpu.dot_dimension_numbers<[1], [0], [0], [1], [0, 0, 1, 1], [], []>} : vector<512x147xbf16>, vector<147x128xbf16>, vector<512x128xf32> -> vector<512x128xf32>
    %c0_3 = arith.constant 0 : index
    %c0_4 = arith.constant 0 : index
    %3 = vector.load %arg4[%c0_3, %c0_4] : memref<1x128xf32, #tpu.memory_space<vmem>>, vector<1x128xf32>
    %4 = vector.broadcast %3 : vector<1x128xf32> to vector<512x128xf32>
    %5 = arith.addf %2, %4 : vector<512x128xf32>
    %cst_5 = arith.constant 0.000000e+00 : f32
    %6 = vector.broadcast %cst_5 : f32 to vector<512x128xf32>
    %7 = arith.maximumf %5, %6 : vector<512x128xf32>
    %8 = arith.truncf %7 : vector<512x128xf32> to vector<512x128xbf16>
    %c0_6 = arith.constant 0 : index
    %c0_7 = arith.constant 0 : index
    %9 = vector.load %arg5[%c0_6, %c0_7] : memref<512x128xbf16, #tpu.memory_space<vmem>>, vector<512x128xbf16>
    tpu.vector_store %arg5[%c0_6, %c0_7], %8 {strides = array<i32>} : memref<512x128xbf16, #tpu.memory_space<vmem>>, vector<512x128xbf16>,
    return
  }
  func.func @transform_0(%arg0: i32, %arg1: i32) -> (i32, i32) {
    %c0_i32 = arith.constant 0 : i32
    %c0_i32_0 = arith.constant 0 : i32
    return %arg0, %c0_i32 : i32, i32
  }
  func.func @transform_1(%arg0: i32, %arg1: i32) -> (i32, i32) {
    %c0_i32 = arith.constant 0 : i32
    %c0_i32_0 = arith.constant 0 : i32
    return %c0_i32, %arg1 : i32, i32
  }
  func.func @transform_2(%arg0: i32, %arg1: i32) -> (i32, i32) {
    %c0_i32 = arith.constant 0 : i32
    %c0_i32_0 = arith.constant 0 : i32
    return %c0_i32, %arg1 : i32, i32
  }
  func.func @transform_3(%arg0: i32, %arg1: i32) -> (i32, i32) {
    %c0_i32 = arith.constant 0 : i32
    return %arg0, %arg1 : i32, i32
  }
}

module attributes {stable_mosaic.version = 11 : i64} {
  func.func @_mm_bias_act_kernel(%arg0: i32, %arg1: i32, %arg2: memref<128x1152xbf16, #tpu.memory_space<vmem>>, %arg3: memref<1152x128xbf16, #tpu.memory_space<vmem>>, %arg4: memref<1x128xf32, #tpu.memory_space<vmem>>, %arg5: memref<128x128xbf16, #tpu.memory_space<vmem>>) attributes {dimension_semantics = [#tpu.dimension_semantics<parallel>, #tpu.dimension_semantics<parallel>], iteration_bounds = array<i64: 1, 1>, scalar_prefetch = 0 : i64, scratch_operands = 0 : i64, tpu.core_type = #tpu.core_type<tc>, window_params = [{transform_indices = @transform_0, window_bounds = array<i64: 128, 1152>}, {transform_indices = @transform_1, window_bounds = array<i64: 1152, 128>}, {transform_indices = @transform_2, window_bounds = array<i64: 1, 128>}, {transform_indices = @transform_3, window_bounds = array<i64: 128, 128>}]} {
    %c0 = arith.constant 0 : index
    %c0_0 = arith.constant 0 : index
    %0 = vector.load %arg2[%c0, %c0_0] : memref<128x1152xbf16, #tpu.memory_space<vmem>>, vector<128x1152xbf16>
    %c0_1 = arith.constant 0 : index
    %c0_2 = arith.constant 0 : index
    %1 = vector.load %arg3[%c0_1, %c0_2] : memref<1152x128xbf16, #tpu.memory_space<vmem>>, vector<1152x128xbf16>
    %cst = arith.constant dense<0.000000e+00> : vector<128x128xf32>
    %2 = tpu.matmul %0, %1, %cst {dimension_numbers = #tpu.dot_dimension_numbers<[1], [0], [0], [1], [0, 0, 1, 1], [], []>} : vector<128x1152xbf16>, vector<1152x128xbf16>, vector<128x128xf32> -> vector<128x128xf32>
    %c0_3 = arith.constant 0 : index
    %c0_4 = arith.constant 0 : index
    %3 = vector.load %arg4[%c0_3, %c0_4] : memref<1x128xf32, #tpu.memory_space<vmem>>, vector<1x128xf32>
    %4 = vector.broadcast %3 : vector<1x128xf32> to vector<128x128xf32>
    %5 = arith.addf %2, %4 : vector<128x128xf32>
    %cst_5 = arith.constant 0.000000e+00 : f32
    %6 = vector.broadcast %cst_5 : f32 to vector<128x128xf32>
    %7 = arith.maximumf %5, %6 : vector<128x128xf32>
    %8 = arith.truncf %7 : vector<128x128xf32> to vector<128x128xbf16>
    %c0_6 = arith.constant 0 : index
    %c0_7 = arith.constant 0 : index
    %9 = vector.load %arg5[%c0_6, %c0_7] : memref<128x128xbf16, #tpu.memory_space<vmem>>, vector<128x128xbf16>
    tpu.vector_store %arg5[%c0_6, %c0_7], %8 {strides = array<i32>} : memref<128x128xbf16, #tpu.memory_space<vmem>>, vector<128x128xbf16>,
    return
  }
  func.func @transform_0(%arg0: i32, %arg1: i32) -> (i32, i32) {
    %c0_i32 = arith.constant 0 : i32
    %c0_i32_0 = arith.constant 0 : i32
    return %arg0, %c0_i32 : i32, i32
  }
  func.func @transform_1(%arg0: i32, %arg1: i32) -> (i32, i32) {
    %c0_i32 = arith.constant 0 : i32
    %c0_i32_0 = arith.constant 0 : i32
    return %c0_i32, %arg1 : i32, i32
  }
  func.func @transform_2(%arg0: i32, %arg1: i32) -> (i32, i32) {
    %c0_i32 = arith.constant 0 : i32
    %c0_i32_0 = arith.constant 0 : i32
    return %c0_i32, %arg1 : i32, i32
  }
  func.func @transform_3(%arg0: i32, %arg1: i32) -> (i32, i32) {
    %c0_i32 = arith.constant 0 : i32
    return %arg0, %arg1 : i32, i32
  }
}

module attributes {stable_mosaic.version = 11 : i64} {
  func.func @_mm_bias_act_kernel(%arg0: i32, %arg1: i32, %arg2: memref<128x1152xbf16, #tpu.memory_space<vmem>>, %arg3: memref<1152x128xbf16, #tpu.memory_space<vmem>>, %arg4: memref<1x128xf32, #tpu.memory_space<vmem>>, %arg5: memref<128x128xbf16, #tpu.memory_space<vmem>>, %arg6: memref<128x128xbf16, #tpu.memory_space<vmem>>) attributes {dimension_semantics = [#tpu.dimension_semantics<parallel>, #tpu.dimension_semantics<parallel>], iteration_bounds = array<i64: 1, 1>, scalar_prefetch = 0 : i64, scratch_operands = 0 : i64, tpu.core_type = #tpu.core_type<tc>, window_params = [{transform_indices = @transform_0, window_bounds = array<i64: 128, 1152>}, {transform_indices = @transform_1, window_bounds = array<i64: 1152, 128>}, {transform_indices = @transform_2, window_bounds = array<i64: 1, 128>}, {transform_indices = @transform_3, window_bounds = array<i64: 128, 128>}, {transform_indices = @transform_4, window_bounds = array<i64: 128, 128>}]} {
    %c0 = arith.constant 0 : index
    %c0_0 = arith.constant 0 : index
    %0 = vector.load %arg2[%c0, %c0_0] : memref<128x1152xbf16, #tpu.memory_space<vmem>>, vector<128x1152xbf16>
    %c0_1 = arith.constant 0 : index
    %c0_2 = arith.constant 0 : index
    %1 = vector.load %arg3[%c0_1, %c0_2] : memref<1152x128xbf16, #tpu.memory_space<vmem>>, vector<1152x128xbf16>
    %cst = arith.constant dense<0.000000e+00> : vector<128x128xf32>
    %2 = tpu.matmul %0, %1, %cst {dimension_numbers = #tpu.dot_dimension_numbers<[1], [0], [0], [1], [0, 0, 1, 1], [], []>} : vector<128x1152xbf16>, vector<1152x128xbf16>, vector<128x128xf32> -> vector<128x128xf32>
    %c0_3 = arith.constant 0 : index
    %c0_4 = arith.constant 0 : index
    %3 = vector.load %arg4[%c0_3, %c0_4] : memref<1x128xf32, #tpu.memory_space<vmem>>, vector<1x128xf32>
    %4 = vector.broadcast %3 : vector<1x128xf32> to vector<128x128xf32>
    %5 = arith.addf %2, %4 : vector<128x128xf32>
    %c0_5 = arith.constant 0 : index
    %c0_6 = arith.constant 0 : index
    %6 = vector.load %arg5[%c0_5, %c0_6] : memref<128x128xbf16, #tpu.memory_space<vmem>>, vector<128x128xbf16>
    %7 = arith.extf %6 : vector<128x128xbf16> to vector<128x128xf32>
    %8 = arith.addf %5, %7 : vector<128x128xf32>
    %cst_7 = arith.constant 0.000000e+00 : f32
    %9 = vector.broadcast %cst_7 : f32 to vector<128x128xf32>
    %10 = arith.maximumf %8, %9 : vector<128x128xf32>
    %11 = arith.truncf %10 : vector<128x128xf32> to vector<128x128xbf16>
    %c0_8 = arith.constant 0 : index
    %c0_9 = arith.constant 0 : index
    %12 = vector.load %arg6[%c0_8, %c0_9] : memref<128x128xbf16, #tpu.memory_space<vmem>>, vector<128x128xbf16>
    tpu.vector_store %arg6[%c0_8, %c0_9], %11 {strides = array<i32>} : memref<128x128xbf16, #tpu.memory_space<vmem>>, vector<128x128xbf16>,
    return
  }
  func.func @transform_0(%arg0: i32, %arg1: i32) -> (i32, i32) {
    %c0_i32 = arith.constant 0 : i32
    %c0_i32_0 = arith.constant 0 : i32
    return %arg0, %c0_i32 : i32, i32
  }
  func.func @transform_1(%arg0: i32, %arg1: i32) -> (i32, i32) {
    %c0_i32 = arith.constant 0 : i32
    %c0_i32_0 = arith.constant 0 : i32
    return %c0_i32, %arg1 : i32, i32
  }
  func.func @transform_2(%arg0: i32, %arg1: i32) -> (i32, i32) {
    %c0_i32 = arith.constant 0 : i32
    %c0_i32_0 = arith.constant 0 : i32
    return %c0_i32, %arg1 : i32, i32
  }
  func.func @transform_3(%arg0: i32, %arg1: i32) -> (i32, i32) {
    %c0_i32 = arith.constant 0 : i32
    return %arg0, %arg1 : i32, i32
  }
  func.func @transform_4(%arg0: i32, %arg1: i32) -> (i32, i32) {
    %c0_i32 = arith.constant 0 : i32
    return %arg0, %arg1 : i32, i32
  }
}

module attributes {stable_mosaic.version = 11 : i64} {
  func.func @_mm_bias_act_kernel(%arg0: i32, %arg1: i32, %arg2: memref<32x1152xbf16, #tpu.memory_space<vmem>>, %arg3: memref<1152x128xbf16, #tpu.memory_space<vmem>>, %arg4: memref<1x128xf32, #tpu.memory_space<vmem>>, %arg5: memref<32x128xbf16, #tpu.memory_space<vmem>>) attributes {dimension_semantics = [#tpu.dimension_semantics<parallel>, #tpu.dimension_semantics<parallel>], iteration_bounds = array<i64: 1, 1>, scalar_prefetch = 0 : i64, scratch_operands = 0 : i64, tpu.core_type = #tpu.core_type<tc>, window_params = [{transform_indices = @transform_0, window_bounds = array<i64: 32, 1152>}, {transform_indices = @transform_1, window_bounds = array<i64: 1152, 128>}, {transform_indices = @transform_2, window_bounds = array<i64: 1, 128>}, {transform_indices = @transform_3, window_bounds = array<i64: 32, 128>}]} {
    %c0 = arith.constant 0 : index
    %c0_0 = arith.constant 0 : index
    %0 = vector.load %arg2[%c0, %c0_0] : memref<32x1152xbf16, #tpu.memory_space<vmem>>, vector<32x1152xbf16>
    %c0_1 = arith.constant 0 : index
    %c0_2 = arith.constant 0 : index
    %1 = vector.load %arg3[%c0_1, %c0_2] : memref<1152x128xbf16, #tpu.memory_space<vmem>>, vector<1152x128xbf16>
    %cst = arith.constant dense<0.000000e+00> : vector<32x128xf32>
    %2 = tpu.matmul %0, %1, %cst {dimension_numbers = #tpu.dot_dimension_numbers<[1], [0], [0], [1], [0, 0, 1, 1], [], []>} : vector<32x1152xbf16>, vector<1152x128xbf16>, vector<32x128xf32> -> vector<32x128xf32>
    %c0_3 = arith.constant 0 : index
    %c0_4 = arith.constant 0 : index
    %3 = vector.load %arg4[%c0_3, %c0_4] : memref<1x128xf32, #tpu.memory_space<vmem>>, vector<1x128xf32>
    %4 = vector.broadcast %3 : vector<1x128xf32> to vector<32x128xf32>
    %5 = arith.addf %2, %4 : vector<32x128xf32>
    %cst_5 = arith.constant 0.000000e+00 : f32
    %6 = vector.broadcast %cst_5 : f32 to vector<32x128xf32>
    %7 = arith.maximumf %5, %6 : vector<32x128xf32>
    %8 = arith.truncf %7 : vector<32x128xf32> to vector<32x128xbf16>
    %c0_6 = arith.constant 0 : index
    %c0_7 = arith.constant 0 : index
    %9 = vector.load %arg5[%c0_6, %c0_7] : memref<32x128xbf16, #tpu.memory_space<vmem>>, vector<32x128xbf16>
    tpu.vector_store %arg5[%c0_6, %c0_7], %8 {strides = array<i32>} : memref<32x128xbf16, #tpu.memory_space<vmem>>, vector<32x128xbf16>,
    return
  }
  func.func @transform_0(%arg0: i32, %arg1: i32) -> (i32, i32) {
    %c0_i32 = arith.constant 0 : i32
    %c0_i32_0 = arith.constant 0 : i32
    return %arg0, %c0_i32 : i32, i32
  }
  func.func @transform_1(%arg0: i32, %arg1: i32) -> (i32, i32) {
    %c0_i32 = arith.constant 0 : i32
    %c0_i32_0 = arith.constant 0 : i32
    return %c0_i32, %arg1 : i32, i32
  }
  func.func @transform_2(%arg0: i32, %arg1: i32) -> (i32, i32) {
    %c0_i32 = arith.constant 0 : i32
    %c0_i32_0 = arith.constant 0 : i32
    return %c0_i32, %arg1 : i32, i32
  }
  func.func @transform_3(%arg0: i32, %arg1: i32) -> (i32, i32) {
    %c0_i32 = arith.constant 0 : i32
    return %arg0, %arg1 : i32, i32
  }
}

module attributes {stable_mosaic.version = 11 : i64} {
  func.func @_mm_bias_act_kernel(%arg0: i32, %arg1: i32, %arg2: memref<32x1152xbf16, #tpu.memory_space<vmem>>, %arg3: memref<1152x128xbf16, #tpu.memory_space<vmem>>, %arg4: memref<1x128xf32, #tpu.memory_space<vmem>>, %arg5: memref<32x128xbf16, #tpu.memory_space<vmem>>, %arg6: memref<32x128xbf16, #tpu.memory_space<vmem>>) attributes {dimension_semantics = [#tpu.dimension_semantics<parallel>, #tpu.dimension_semantics<parallel>], iteration_bounds = array<i64: 1, 1>, scalar_prefetch = 0 : i64, scratch_operands = 0 : i64, tpu.core_type = #tpu.core_type<tc>, window_params = [{transform_indices = @transform_0, window_bounds = array<i64: 32, 1152>}, {transform_indices = @transform_1, window_bounds = array<i64: 1152, 128>}, {transform_indices = @transform_2, window_bounds = array<i64: 1, 128>}, {transform_indices = @transform_3, window_bounds = array<i64: 32, 128>}, {transform_indices = @transform_4, window_bounds = array<i64: 32, 128>}]} {
    %c0 = arith.constant 0 : index
    %c0_0 = arith.constant 0 : index
    %0 = vector.load %arg2[%c0, %c0_0] : memref<32x1152xbf16, #tpu.memory_space<vmem>>, vector<32x1152xbf16>
    %c0_1 = arith.constant 0 : index
    %c0_2 = arith.constant 0 : index
    %1 = vector.load %arg3[%c0_1, %c0_2] : memref<1152x128xbf16, #tpu.memory_space<vmem>>, vector<1152x128xbf16>
    %cst = arith.constant dense<0.000000e+00> : vector<32x128xf32>
    %2 = tpu.matmul %0, %1, %cst {dimension_numbers = #tpu.dot_dimension_numbers<[1], [0], [0], [1], [0, 0, 1, 1], [], []>} : vector<32x1152xbf16>, vector<1152x128xbf16>, vector<32x128xf32> -> vector<32x128xf32>
    %c0_3 = arith.constant 0 : index
    %c0_4 = arith.constant 0 : index
    %3 = vector.load %arg4[%c0_3, %c0_4] : memref<1x128xf32, #tpu.memory_space<vmem>>, vector<1x128xf32>
    %4 = vector.broadcast %3 : vector<1x128xf32> to vector<32x128xf32>
    %5 = arith.addf %2, %4 : vector<32x128xf32>
    %c0_5 = arith.constant 0 : index
    %c0_6 = arith.constant 0 : index
    %6 = vector.load %arg5[%c0_5, %c0_6] : memref<32x128xbf16, #tpu.memory_space<vmem>>, vector<32x128xbf16>
    %7 = arith.extf %6 : vector<32x128xbf16> to vector<32x128xf32>
    %8 = arith.addf %5, %7 : vector<32x128xf32>
    %cst_7 = arith.constant 0.000000e+00 : f32
    %9 = vector.broadcast %cst_7 : f32 to vector<32x128xf32>
    %10 = arith.maximumf %8, %9 : vector<32x128xf32>
    %11 = arith.truncf %10 : vector<32x128xf32> to vector<32x128xbf16>
    %c0_8 = arith.constant 0 : index
    %c0_9 = arith.constant 0 : index
    %12 = vector.load %arg6[%c0_8, %c0_9] : memref<32x128xbf16, #tpu.memory_space<vmem>>, vector<32x128xbf16>
    tpu.vector_store %arg6[%c0_8, %c0_9], %11 {strides = array<i32>} : memref<32x128xbf16, #tpu.memory_space<vmem>>, vector<32x128xbf16>,
    return
  }
  func.func @transform_0(%arg0: i32, %arg1: i32) -> (i32, i32) {
    %c0_i32 = arith.constant 0 : i32
    %c0_i32_0 = arith.constant 0 : i32
    return %arg0, %c0_i32 : i32, i32
  }
  func.func @transform_1(%arg0: i32, %arg1: i32) -> (i32, i32) {
    %c0_i32 = arith.constant 0 : i32
    %c0_i32_0 = arith.constant 0 : i32
    return %c0_i32, %arg1 : i32, i32
  }
  func.func @transform_2(%arg0: i32, %arg1: i32) -> (i32, i32) {
    %c0_i32 = arith.constant 0 : i32
    %c0_i32_0 = arith.constant 0 : i32
    return %c0_i32, %arg1 : i32, i32
  }
  func.func @transform_3(%arg0: i32, %arg1: i32) -> (i32, i32) {
    %c0_i32 = arith.constant 0 : i32
    return %arg0, %arg1 : i32, i32
  }
  func.func @transform_4(%arg0: i32, %arg1: i32) -> (i32, i32) {
    %c0_i32 = arith.constant 0 : i32
    return %arg0, %arg1 : i32, i32
  }
}

module attributes {stable_mosaic.version = 11 : i64} {
  func.func @_mm_bias_act_kernel(%arg0: i32, %arg1: i32, %arg2: memref<32x128xbf16, #tpu.memory_space<vmem>>, %arg3: memref<128x128xbf16, #tpu.memory_space<vmem>>, %arg4: memref<1x128xf32, #tpu.memory_space<vmem>>, %arg5: memref<32x128xbf16, #tpu.memory_space<vmem>>) attributes {dimension_semantics = [#tpu.dimension_semantics<parallel>, #tpu.dimension_semantics<parallel>], iteration_bounds = array<i64: 1, 1>, scalar_prefetch = 0 : i64, scratch_operands = 0 : i64, tpu.core_type = #tpu.core_type<tc>, window_params = [{transform_indices = @transform_0, window_bounds = array<i64: 32, 128>}, {transform_indices = @transform_1, window_bounds = array<i64: 128, 128>}, {transform_indices = @transform_2, window_bounds = array<i64: 1, 128>}, {transform_indices = @transform_3, window_bounds = array<i64: 32, 128>}]} {
    %c0 = arith.constant 0 : index
    %c0_0 = arith.constant 0 : index
    %0 = vector.load %arg2[%c0, %c0_0] : memref<32x128xbf16, #tpu.memory_space<vmem>>, vector<32x128xbf16>
    %c0_1 = arith.constant 0 : index
    %c0_2 = arith.constant 0 : index
    %1 = vector.load %arg3[%c0_1, %c0_2] : memref<128x128xbf16, #tpu.memory_space<vmem>>, vector<128x128xbf16>
    %cst = arith.constant dense<0.000000e+00> : vector<32x128xf32>
    %2 = tpu.matmul %0, %1, %cst {dimension_numbers = #tpu.dot_dimension_numbers<[1], [0], [0], [1], [0, 0, 1, 1], [], []>} : vector<32x128xbf16>, vector<128x128xbf16>, vector<32x128xf32> -> vector<32x128xf32>
    %c0_3 = arith.constant 0 : index
    %c0_4 = arith.constant 0 : index
    %3 = vector.load %arg4[%c0_3, %c0_4] : memref<1x128xf32, #tpu.memory_space<vmem>>, vector<1x128xf32>
    %4 = vector.broadcast %3 : vector<1x128xf32> to vector<32x128xf32>
    %5 = arith.addf %2, %4 : vector<32x128xf32>
    %6 = arith.truncf %5 : vector<32x128xf32> to vector<32x128xbf16>
    %c0_5 = arith.constant 0 : index
    %c0_6 = arith.constant 0 : index
    %7 = vector.load %arg5[%c0_5, %c0_6] : memref<32x128xbf16, #tpu.memory_space<vmem>>, vector<32x128xbf16>
    tpu.vector_store %arg5[%c0_5, %c0_6], %6 {strides = array<i32>} : memref<32x128xbf16, #tpu.memory_space<vmem>>, vector<32x128xbf16>,
    return
  }
  func.func @transform_0(%arg0: i32, %arg1: i32) -> (i32, i32) {
    %c0_i32 = arith.constant 0 : i32
    %c0_i32_0 = arith.constant 0 : i32
    return %arg0, %c0_i32 : i32, i32
  }
  func.func @transform_1(%arg0: i32, %arg1: i32) -> (i32, i32) {
    %c0_i32 = arith.constant 0 : i32
    %c0_i32_0 = arith.constant 0 : i32
    return %c0_i32, %arg1 : i32, i32
  }
  func.func @transform_2(%arg0: i32, %arg1: i32) -> (i32, i32) {
    %c0_i32 = arith.constant 0 : i32
    %c0_i32_0 = arith.constant 0 : i32
    return %c0_i32, %arg1 : i32, i32
  }
  func.func @transform_3(%arg0: i32, %arg1: i32) -> (i32, i32) {
    %c0_i32 = arith.constant 0 : i32
    return %arg0, %arg1 : i32, i32
  }
}

module attributes {stable_mosaic.version = 11 : i64} {
  func.func @_mm_bias_act_kernel(%arg0: i32, %arg1: i32, %arg2: memref<32x1152xbf16, #tpu.memory_space<vmem>>, %arg3: memref<1152x256xbf16, #tpu.memory_space<vmem>>, %arg4: memref<1x256xf32, #tpu.memory_space<vmem>>, %arg5: memref<32x256xbf16, #tpu.memory_space<vmem>>) attributes {dimension_semantics = [#tpu.dimension_semantics<parallel>, #tpu.dimension_semantics<parallel>], iteration_bounds = array<i64: 1, 1>, scalar_prefetch = 0 : i64, scratch_operands = 0 : i64, tpu.core_type = #tpu.core_type<tc>, window_params = [{transform_indices = @transform_0, window_bounds = array<i64: 32, 1152>}, {transform_indices = @transform_1, window_bounds = array<i64: 1152, 256>}, {transform_indices = @transform_2, window_bounds = array<i64: 1, 256>}, {transform_indices = @transform_3, window_bounds = array<i64: 32, 256>}]} {
    %c0 = arith.constant 0 : index
    %c0_0 = arith.constant 0 : index
    %0 = vector.load %arg2[%c0, %c0_0] : memref<32x1152xbf16, #tpu.memory_space<vmem>>, vector<32x1152xbf16>
    %c0_1 = arith.constant 0 : index
    %c0_2 = arith.constant 0 : index
    %1 = vector.load %arg3[%c0_1, %c0_2] : memref<1152x256xbf16, #tpu.memory_space<vmem>>, vector<1152x256xbf16>
    %cst = arith.constant dense<0.000000e+00> : vector<32x256xf32>
    %2 = tpu.matmul %0, %1, %cst {dimension_numbers = #tpu.dot_dimension_numbers<[1], [0], [0], [1], [0, 0, 1, 1], [], []>} : vector<32x1152xbf16>, vector<1152x256xbf16>, vector<32x256xf32> -> vector<32x256xf32>
    %c0_3 = arith.constant 0 : index
    %c0_4 = arith.constant 0 : index
    %3 = vector.load %arg4[%c0_3, %c0_4] : memref<1x256xf32, #tpu.memory_space<vmem>>, vector<1x256xf32>
    %4 = vector.broadcast %3 : vector<1x256xf32> to vector<32x256xf32>
    %5 = arith.addf %2, %4 : vector<32x256xf32>
    %cst_5 = arith.constant 0.000000e+00 : f32
    %6 = vector.broadcast %cst_5 : f32 to vector<32x256xf32>
    %7 = arith.maximumf %5, %6 : vector<32x256xf32>
    %8 = arith.truncf %7 : vector<32x256xf32> to vector<32x256xbf16>
    %c0_6 = arith.constant 0 : index
    %c0_7 = arith.constant 0 : index
    %9 = vector.load %arg5[%c0_6, %c0_7] : memref<32x256xbf16, #tpu.memory_space<vmem>>, vector<32x256xbf16>
    tpu.vector_store %arg5[%c0_6, %c0_7], %8 {strides = array<i32>} : memref<32x256xbf16, #tpu.memory_space<vmem>>, vector<32x256xbf16>,
    return
  }
  func.func @transform_0(%arg0: i32, %arg1: i32) -> (i32, i32) {
    %c0_i32 = arith.constant 0 : i32
    %c0_i32_0 = arith.constant 0 : i32
    return %arg0, %c0_i32 : i32, i32
  }
  func.func @transform_1(%arg0: i32, %arg1: i32) -> (i32, i32) {
    %c0_i32 = arith.constant 0 : i32
    %c0_i32_0 = arith.constant 0 : i32
    return %c0_i32, %arg1 : i32, i32
  }
  func.func @transform_2(%arg0: i32, %arg1: i32) -> (i32, i32) {
    %c0_i32 = arith.constant 0 : i32
    %c0_i32_0 = arith.constant 0 : i32
    return %c0_i32, %arg1 : i32, i32
  }
  func.func @transform_3(%arg0: i32, %arg1: i32) -> (i32, i32) {
    %c0_i32 = arith.constant 0 : i32
    return %arg0, %arg1 : i32, i32
  }
}

module attributes {stable_mosaic.version = 11 : i64} {
  func.func @_mm_bias_act_kernel(%arg0: i32, %arg1: i32, %arg2: memref<32x2304xbf16, #tpu.memory_space<vmem>>, %arg3: memref<2304x256xbf16, #tpu.memory_space<vmem>>, %arg4: memref<1x256xf32, #tpu.memory_space<vmem>>, %arg5: memref<32x256xbf16, #tpu.memory_space<vmem>>, %arg6: memref<32x256xbf16, #tpu.memory_space<vmem>>) attributes {dimension_semantics = [#tpu.dimension_semantics<parallel>, #tpu.dimension_semantics<parallel>], iteration_bounds = array<i64: 1, 1>, scalar_prefetch = 0 : i64, scratch_operands = 0 : i64, tpu.core_type = #tpu.core_type<tc>, window_params = [{transform_indices = @transform_0, window_bounds = array<i64: 32, 2304>}, {transform_indices = @transform_1, window_bounds = array<i64: 2304, 256>}, {transform_indices = @transform_2, window_bounds = array<i64: 1, 256>}, {transform_indices = @transform_3, window_bounds = array<i64: 32, 256>}, {transform_indices = @transform_4, window_bounds = array<i64: 32, 256>}]} {
    %c0 = arith.constant 0 : index
    %c0_0 = arith.constant 0 : index
    %0 = vector.load %arg2[%c0, %c0_0] : memref<32x2304xbf16, #tpu.memory_space<vmem>>, vector<32x2304xbf16>
    %c0_1 = arith.constant 0 : index
    %c0_2 = arith.constant 0 : index
    %1 = vector.load %arg3[%c0_1, %c0_2] : memref<2304x256xbf16, #tpu.memory_space<vmem>>, vector<2304x256xbf16>
    %cst = arith.constant dense<0.000000e+00> : vector<32x256xf32>
    %2 = tpu.matmul %0, %1, %cst {dimension_numbers = #tpu.dot_dimension_numbers<[1], [0], [0], [1], [0, 0, 1, 1], [], []>} : vector<32x2304xbf16>, vector<2304x256xbf16>, vector<32x256xf32> -> vector<32x256xf32>
    %c0_3 = arith.constant 0 : index
    %c0_4 = arith.constant 0 : index
    %3 = vector.load %arg4[%c0_3, %c0_4] : memref<1x256xf32, #tpu.memory_space<vmem>>, vector<1x256xf32>
    %4 = vector.broadcast %3 : vector<1x256xf32> to vector<32x256xf32>
    %5 = arith.addf %2, %4 : vector<32x256xf32>
    %c0_5 = arith.constant 0 : index
    %c0_6 = arith.constant 0 : index
    %6 = vector.load %arg5[%c0_5, %c0_6] : memref<32x256xbf16, #tpu.memory_space<vmem>>, vector<32x256xbf16>
    %7 = arith.extf %6 : vector<32x256xbf16> to vector<32x256xf32>
    %8 = arith.addf %5, %7 : vector<32x256xf32>
    %cst_7 = arith.constant 0.000000e+00 : f32
    %9 = vector.broadcast %cst_7 : f32 to vector<32x256xf32>
    %10 = arith.maximumf %8, %9 : vector<32x256xf32>
    %11 = arith.truncf %10 : vector<32x256xf32> to vector<32x256xbf16>
    %c0_8 = arith.constant 0 : index
    %c0_9 = arith.constant 0 : index
    %12 = vector.load %arg6[%c0_8, %c0_9] : memref<32x256xbf16, #tpu.memory_space<vmem>>, vector<32x256xbf16>
    tpu.vector_store %arg6[%c0_8, %c0_9], %11 {strides = array<i32>} : memref<32x256xbf16, #tpu.memory_space<vmem>>, vector<32x256xbf16>,
    return
  }
  func.func @transform_0(%arg0: i32, %arg1: i32) -> (i32, i32) {
    %c0_i32 = arith.constant 0 : i32
    %c0_i32_0 = arith.constant 0 : i32
    return %arg0, %c0_i32 : i32, i32
  }
  func.func @transform_1(%arg0: i32, %arg1: i32) -> (i32, i32) {
    %c0_i32 = arith.constant 0 : i32
    %c0_i32_0 = arith.constant 0 : i32
    return %c0_i32, %arg1 : i32, i32
  }
  func.func @transform_2(%arg0: i32, %arg1: i32) -> (i32, i32) {
    %c0_i32 = arith.constant 0 : i32
    %c0_i32_0 = arith.constant 0 : i32
    return %c0_i32, %arg1 : i32, i32
  }
  func.func @transform_3(%arg0: i32, %arg1: i32) -> (i32, i32) {
    %c0_i32 = arith.constant 0 : i32
    return %arg0, %arg1 : i32, i32
  }
  func.func @transform_4(%arg0: i32, %arg1: i32) -> (i32, i32) {
    %c0_i32 = arith.constant 0 : i32
    return %arg0, %arg1 : i32, i32
  }
}

module attributes {stable_mosaic.version = 11 : i64} {
  func.func @_mm_bias_act_kernel(%arg0: i32, %arg1: i32, %arg2: memref<32x128xbf16, #tpu.memory_space<vmem>>, %arg3: memref<128x256xbf16, #tpu.memory_space<vmem>>, %arg4: memref<1x256xf32, #tpu.memory_space<vmem>>, %arg5: memref<32x256xbf16, #tpu.memory_space<vmem>>) attributes {dimension_semantics = [#tpu.dimension_semantics<parallel>, #tpu.dimension_semantics<parallel>], iteration_bounds = array<i64: 1, 1>, scalar_prefetch = 0 : i64, scratch_operands = 0 : i64, tpu.core_type = #tpu.core_type<tc>, window_params = [{transform_indices = @transform_0, window_bounds = array<i64: 32, 128>}, {transform_indices = @transform_1, window_bounds = array<i64: 128, 256>}, {transform_indices = @transform_2, window_bounds = array<i64: 1, 256>}, {transform_indices = @transform_3, window_bounds = array<i64: 32, 256>}]} {
    %c0 = arith.constant 0 : index
    %c0_0 = arith.constant 0 : index
    %0 = vector.load %arg2[%c0, %c0_0] : memref<32x128xbf16, #tpu.memory_space<vmem>>, vector<32x128xbf16>
    %c0_1 = arith.constant 0 : index
    %c0_2 = arith.constant 0 : index
    %1 = vector.load %arg3[%c0_1, %c0_2] : memref<128x256xbf16, #tpu.memory_space<vmem>>, vector<128x256xbf16>
    %cst = arith.constant dense<0.000000e+00> : vector<32x256xf32>
    %2 = tpu.matmul %0, %1, %cst {dimension_numbers = #tpu.dot_dimension_numbers<[1], [0], [0], [1], [0, 0, 1, 1], [], []>} : vector<32x128xbf16>, vector<128x256xbf16>, vector<32x256xf32> -> vector<32x256xf32>
    %c0_3 = arith.constant 0 : index
    %c0_4 = arith.constant 0 : index
    %3 = vector.load %arg4[%c0_3, %c0_4] : memref<1x256xf32, #tpu.memory_space<vmem>>, vector<1x256xf32>
    %4 = vector.broadcast %3 : vector<1x256xf32> to vector<32x256xf32>
    %5 = arith.addf %2, %4 : vector<32x256xf32>
    %6 = arith.truncf %5 : vector<32x256xf32> to vector<32x256xbf16>
    %c0_5 = arith.constant 0 : index
    %c0_6 = arith.constant 0 : index
    %7 = vector.load %arg5[%c0_5, %c0_6] : memref<32x256xbf16, #tpu.memory_space<vmem>>, vector<32x256xbf16>
    tpu.vector_store %arg5[%c0_5, %c0_6], %6 {strides = array<i32>} : memref<32x256xbf16, #tpu.memory_space<vmem>>, vector<32x256xbf16>,
    return
  }
  func.func @transform_0(%arg0: i32, %arg1: i32) -> (i32, i32) {
    %c0_i32 = arith.constant 0 : i32
    %c0_i32_0 = arith.constant 0 : i32
    return %arg0, %c0_i32 : i32, i32
  }
  func.func @transform_1(%arg0: i32, %arg1: i32) -> (i32, i32) {
    %c0_i32 = arith.constant 0 : i32
    %c0_i32_0 = arith.constant 0 : i32
    return %c0_i32, %arg1 : i32, i32
  }
  func.func @transform_2(%arg0: i32, %arg1: i32) -> (i32, i32) {
    %c0_i32 = arith.constant 0 : i32
    %c0_i32_0 = arith.constant 0 : i32
    return %c0_i32, %arg1 : i32, i32
  }
  func.func @transform_3(%arg0: i32, %arg1: i32) -> (i32, i32) {
    %c0_i32 = arith.constant 0 : i32
    return %arg0, %arg1 : i32, i32
  }
}

</mosaic_0001>

<llo_original>
// kernel: resnet_diff_forward.9
$region0: #{resnet_diff_forward.9}
  #allocation0 [shape = 'u32[]', space=smem, size = 0x4, offset = 0x4, fixed_abs, tag = 'smem constant byte address 0x4 - core index']
  #allocation1 [shape = 'u32[144,128]{1,0:T(1,128)}', space=vmem, size = 0x12000, scoped, tag = 'internal scratch']
  %s0 = inlined_call_operand.vmem [shape: bf16[512,147], index: 0, kind: input, shape index: {}]
  %s1 = inlined_call_operand.vmem [shape: bf16[147,128], index: 1, kind: input, shape index: {}]
  %s2 = inlined_call_operand.vmem [shape: f32[1,128], index: 2, kind: input, shape index: {}]
  %s3 = inlined_call_operand.vmem [shape: bf16[512,128], index: 3, kind: output, shape index: {}]
  %s4 = sld [smem:[#allocation0]]
  $region22: #{resnet_diff_forward.9} parent=0
    _
  %s6 = ssub.s32 1, %s4
  %s7 = scalar_select 0, %s6, %s4
  // Predicated region
  $region2: #{resnet_diff_forward.9} parent=0 // pred_check
    _
  $region3: #{resnet_diff_forward.9} parent=0 // pred_check_branch
    %9 = sbr.rel (0) target = $region5
  $region4: #{resnet_diff_forward.9} parent=0 // pred_region
    _
  $region5: #{resnet_diff_forward.9} parent=0 // pred_fallthru
    _
  // Predicated region
  $region6: #{resnet_diff_forward.9} parent=0 // pred_check
    _
  $region7: #{resnet_diff_forward.9} parent=0 // pred_check_branch
    %11 = sbr.rel (0) target = $region9
  $region8: #{resnet_diff_forward.9} parent=0 // pred_region
    _
  $region9: #{resnet_diff_forward.9} parent=0 // pred_fallthru
    _
  // Predicated region
  $region10: #{resnet_diff_forward.9} parent=0 // pred_check
    _
  $region11: #{resnet_diff_forward.9} parent=0 // pred_check_branch
    %13 = sbr.rel (0) target = $region13
  $region12: #{resnet_diff_forward.9} parent=0 // pred_region
    _
  $region13: #{resnet_diff_forward.9} parent=0 // pred_fallthru
    _
  %v15 = vld [vmem:[%s0] sm:$0xff]
  %v16 = vld [vmem:[%s0 + $0x8] sm:$0xff]
  %v17 = vld [vmem:[%s0 + $0x10] sm:$0xff]
  %v18 = vld [vmem:[%s0 + $0x18] sm:$0xff]
  %v19 = vld [vmem:[%s0 + $0x20] sm:$0xff]
  %v20 = vld [vmem:[%s0 + $0x28] sm:$0xff]
  %v21 = vld [vmem:[%s0 + $0x30] sm:$0xff]
  %v22 = vld [vmem:[%s0 + $0x38] sm:$0xff]
  %v23 = vld [vmem:[%s0 + $0x40] sm:$0xff]
  %v24 = vld [vmem:[%s0 + $0x48] sm:$0xff]
  %v25 = vld [vmem:[%s0 + $0x50] sm:$0xff]
  %v26 = vld [vmem:[%s0 + $0x58] sm:$0xff]
  %v27 = vld [vmem:[%s0 + $0x60] sm:$0xff]
  %v28 = vld [vmem:[%s0 + $0x68] sm:$0xff]
  %v29 = vld [vmem:[%s0 + $0x70] sm:$0xff]
  %v30 = vld [vmem:[%s0 + $0x78] sm:$0xff]
  %v31 = vld [vmem:[%s0 + $0x80] sm:$0xff]
  %v32 = vld [vmem:[%s0 + $0x88] sm:$0xff]
  %v33 = vld [vmem:[%s0 + $0x90] sm:$0xff]
  %v34 = vld [vmem:[%s0 + $0x98] sm:$0xff]
  %v35 = vld [vmem:[%s0 + $0xa0] sm:$0xff]
  %v36 = vld [vmem:[%s0 + $0xa8] sm:$0xff]
  %v37 = vld [vmem:[%s0 + $0xb0] sm:$0xff]
  %v38 = vld [vmem:[%s0 + $0xb8] sm:$0xff]
  %v39 = vld [vmem:[%s0 + $0xc0] sm:$0xff]
  %v40 = vld [vmem:[%s0 + $0xc8] sm:$0xff]
  %v41 = vld [vmem:[%s0 + $0xd0] sm:$0xff]
  %v42 = vld [vmem:[%s0 + $0xd8] sm:$0xff]
  %v43 = vld [vmem:[%s0 + $0xe0] sm:$0xff]
  %v44 = vld [vmem:[%s0 + $0xe8] sm:$0xff]
  %v45 = vld [vmem:[%s0 + $0xf0] sm:$0xff]
  %v46 = vld [vmem:[%s0 + $0xf8] sm:$0xff]
  %v47 = vld [vmem:[%s0 + $0x100] sm:$0xff]
  %v48 = vld [vmem:[%s0 + $0x108] sm:$0xff]
  %v49 = vld [vmem:[%s0 + $0x110] sm:$0xff]
  %v50 = vld [vmem:[%s0 + $0x118] sm:$0xff]
  %v51 = vld [vmem:[%s0 + $0x120] sm:$0xff]
  %v52 = vld [vmem:[%s0 + $0x128] sm:$0xff]
  %v53 = vld [vmem:[%s0 + $0x130] sm:$0xff]
  %v54 = vld [vmem:[%s0 + $0x138] sm:$0xff]
  %v55 = vld [vmem:[%s0 + $0x140] sm:$0xff]
  %v56 = vld [vmem:[%s0 + $0x148] sm:$0xff]
  %v57 = vld [vmem:[%s0 + $0x150] sm:$0xff]
  %v58 = vld [vmem:[%s0 + $0x158] sm:$0xff]
  %v59 = vld [vmem:[%s0 + $0x160] sm:$0xff]
  %v60 = vld [vmem:[%s0 + $0x168] sm:$0xff]
  %v61 = vld [vmem:[%s0 + $0x170] sm:$0xff]
  %v62 = vld [vmem:[%s0 + $0x178] sm:$0xff]
  %v63 = vld [vmem:[%s0 + $0x180] sm:$0xff]
  %v64 = vld [vmem:[%s0 + $0x188] sm:$0xff]
  %v65 = vld [vmem:[%s0 + $0x190] sm:$0xff]
  %v66 = vld [vmem:[%s0 + $0x198] sm:$0xff]
  %v67 = vld [vmem:[%s0 + $0x1a0] sm:$0xff]
  %v68 = vld [vmem:[%s0 + $0x1a8] sm:$0xff]
  %v69 = vld [vmem:[%s0 + $0x1b0] sm:$0xff]
  %v70 = vld [vmem:[%s0 + $0x1b8] sm:$0xff]
  %v71 = vld [vmem:[%s0 + $0x1c0] sm:$0xff]
  %v72 = vld [vmem:[%s0 + $0x1c8] sm:$0xff]
  %v73 = vld [vmem:[%s0 + $0x1d0] sm:$0xff]
  %v74 = vld [vmem:[%s0 + $0x1d8] sm:$0xff]
  %v75 = vld [vmem:[%s0 + $0x1e0] sm:$0xff]
  %v76 = vld [vmem:[%s0 + $0x1e8] sm:$0xff]
  %v77 = vld [vmem:[%s0 + $0x1f0] sm:$0xff]
  %v78 = vld [vmem:[%s0 + $0x1f8] sm:$0xff]
  %v79 = vld [vmem:[%s1] sm:$0xf]
  %v80 = vld [vmem:[%s1 + $0x4] sm:$0xf]
  %v81 = vld [vmem:[%s1 + $0x8] sm:$0xf]
  %v82 = vld [vmem:[%s1 + $0xc] sm:$0xf]
  %v83 = vld [vmem:[%s1 + $0x10] sm:$0xf]
  %v84 = vld [vmem:[%s1 + $0x14] sm:$0xf]
  %v85 = vld [vmem:[%s1 + $0x18] sm:$0xf]
  %v86 = vld [vmem:[%s1 + $0x1c] sm:$0xf]
  %v87 = vld [vmem:[%s1 + $0x20] sm:$0xf]
  %v88 = vld [vmem:[%s1 + $0x24] sm:$0xf]
  %v89 = vld [vmem:[%s1 + $0x28] sm:$0xf]
  %v90 = vld [vmem:[%s1 + $0x2c] sm:$0xf]
  %v91 = vld [vmem:[%s1 + $0x30] sm:$0xf]
  %v92 = vld [vmem:[%s1 + $0x34] sm:$0xf]
  %v93 = vld [vmem:[%s1 + $0x38] sm:$0xf]
  %v94 = vld [vmem:[%s1 + $0x3c] sm:$0xf]
  %v95 = vld [vmem:[%s1 + $0x40] sm:$0xf]
  %v96 = vld [vmem:[%s1 + $0x44] sm:$0xf]
  %v97 = vld [vmem:[%s1 + $0x48] sm:$0x3]
  %v98 = vld [vmem:[%s2] sm:$0x1]
  %v100 = vlaneseq
  %v101 = vshrl.u32 %v100, 7
  %v102 = vsub.s32 0, %v101
  %v103 = vrot.slane %v98, %v102
  %v169 = vunpack.c.l.b16 %v15
  %v170 = vunpack.c.h.b16 %v15
  %v171 = vunpack.c.l.b16 %v16
  %v172 = vunpack.c.h.b16 %v16
  %v173 = vunpack.c.l.b16 %v17
  %v174 = vunpack.c.h.b16 %v17
  %v175 = vunpack.c.l.b16 %v18
  %v176 = vunpack.c.h.b16 %v18
  %v177 = vunpack.c.l.b16 %v19
  %v178 = vunpack.c.h.b16 %v19
  %v179 = vunpack.c.l.b16 %v20
  %v180 = vunpack.c.h.b16 %v20
  %v181 = vunpack.c.l.b16 %v21
  %v182 = vunpack.c.h.b16 %v21
  %v183 = vunpack.c.l.b16 %v22
  %v184 = vunpack.c.h.b16 %v22
  %v185 = vunpack.c.l.b16 %v23
  %v186 = vunpack.c.h.b16 %v23
  %v187 = vunpack.c.l.b16 %v24
  %v188 = vunpack.c.h.b16 %v24
  %v189 = vunpack.c.l.b16 %v25
  %v190 = vunpack.c.h.b16 %v25
  %v191 = vunpack.c.l.b16 %v26
  %v192 = vunpack.c.h.b16 %v26
  %v193 = vunpack.c.l.b16 %v27
  %v194 = vunpack.c.h.b16 %v27
  %v195 = vunpack.c.l.b16 %v28
  %v196 = vunpack.c.h.b16 %v28
  %v197 = vunpack.c.l.b16 %v29
  %v198 = vunpack.c.h.b16 %v29
  %v199 = vunpack.c.l.b16 %v30
  %v200 = vunpack.c.h.b16 %v30
  %v201 = vunpack.c.l.b16 %v31
  %v202 = vunpack.c.h.b16 %v31
  %v203 = vunpack.c.l.b16 %v32
  %v204 = vunpack.c.h.b16 %v32
  %v205 = vunpack.c.l.b16 %v33
  %v206 = vunpack.c.h.b16 %v33
  %v207 = vunpack.c.l.b16 %v34
  %v208 = vunpack.c.h.b16 %v34
  %v209 = vunpack.c.l.b16 %v35
  %v210 = vunpack.c.h.b16 %v35
  %v211 = vunpack.c.l.b16 %v36
  %v212 = vunpack.c.h.b16 %v36
  %v213 = vunpack.c.l.b16 %v37
  %v214 = vunpack.c.h.b16 %v37
  %v215 = vunpack.c.l.b16 %v38
  %v216 = vunpack.c.h.b16 %v38
  %v217 = vunpack.c.l.b16 %v39
  %v218 = vunpack.c.h.b16 %v39
  %v219 = vunpack.c.l.b16 %v40
  %v220 = vunpack.c.h.b16 %v40
  %v221 = vunpack.c.l.b16 %v41
  %v222 = vunpack.c.h.b16 %v41
  %v223 = vunpack.c.l.b16 %v42
  %v224 = vunpack.c.h.b16 %v42
  %v225 = vunpack.c.l.b16 %v43
  %v226 = vunpack.c.h.b16 %v43
  %v227 = vunpack.c.l.b16 %v44
  %v228 = vunpack.c.h.b16 %v44
  %v229 = vunpack.c.l.b16 %v45
  %v230 = vunpack.c.h.b16 %v45
  %v231 = vunpack.c.l.b16 %v46
  %v232 = vunpack.c.h.b16 %v46
  %v233 = vunpack.c.l.b16 %v47
  %v234 = vunpack.c.h.b16 %v47
  %v235 = vunpack.c.l.b16 %v48
  %v236 = vunpack.c.h.b16 %v48
  %v237 = vunpack.c.l.b16 %v49
  %v238 = vunpack.c.h.b16 %v49
  %v239 = vunpack.c.l.b16 %v50
  %v240 = vunpack.c.h.b16 %v50
  %v241 = vunpack.c.l.b16 %v51
  %v242 = vunpack.c.h.b16 %v51
  %v243 = vunpack.c.l.b16 %v52
  %v244 = vunpack.c.h.b16 %v52
  %v245 = vunpack.c.l.b16 %v53
  %v246 = vunpack.c.h.b16 %v53
  %v247 = vunpack.c.l.b16 %v54
  %v248 = vunpack.c.h.b16 %v54
  %v249 = vunpack.c.l.b16 %v55
  %v250 = vunpack.c.h.b16 %v55
  %v251 = vunpack.c.l.b16 %v56
  %v252 = vunpack.c.h.b16 %v56
  %v253 = vunpack.c.l.b16 %v57
  %v254 = vunpack.c.h.b16 %v57
  %v255 = vunpack.c.l.b16 %v58
  %v256 = vunpack.c.h.b16 %v58
  %v257 = vunpack.c.l.b16 %v59
  %v258 = vunpack.c.h.b16 %v59
  %v259 = vunpack.c.l.b16 %v60
  %v260 = vunpack.c.h.b16 %v60
  %v261 = vunpack.c.l.b16 %v61
  %v262 = vunpack.c.h.b16 %v61
  %v263 = vunpack.c.l.b16 %v62
  %v264 = vunpack.c.h.b16 %v62
  %v265 = vunpack.c.l.b16 %v63
  %v266 = vunpack.c.h.b16 %v63
  %v267 = vunpack.c.l.b16 %v64
  %v268 = vunpack.c.h.b16 %v64
  %v269 = vunpack.c.l.b16 %v65
  %v270 = vunpack.c.h.b16 %v65
  %v271 = vunpack.c.l.b16 %v66
  %v272 = vunpack.c.h.b16 %v66
  %v273 = vunpack.c.l.b16 %v67
  %v274 = vunpack.c.h.b16 %v67
  %v275 = vunpack.c.l.b16 %v68
  %v276 = vunpack.c.h.b16 %v68
  %v277 = vunpack.c.l.b16 %v69
  %v278 = vunpack.c.h.b16 %v69
  %v279 = vunpack.c.l.b16 %v70
  %v280 = vunpack.c.h.b16 %v70
  %v281 = vunpack.c.l.b16 %v71
  %v282 = vunpack.c.h.b16 %v71
  %v283 = vunpack.c.l.b16 %v72
  %v284 = vunpack.c.h.b16 %v72
  %v285 = vunpack.c.l.b16 %v73
  %v286 = vunpack.c.h.b16 %v73
  %v287 = vunpack.c.l.b16 %v74
  %v288 = vunpack.c.h.b16 %v74
  %v289 = vunpack.c.l.b16 %v75
  %v290 = vunpack.c.h.b16 %v75
  %v291 = vunpack.c.l.b16 %v76
  %v292 = vunpack.c.h.b16 %v76
  %v293 = vunpack.c.l.b16 %v77
  %v294 = vunpack.c.h.b16 %v77
  %v295 = vunpack.c.l.b16 %v78
  %v296 = vunpack.c.h.b16 %v78
  %v297 = vpack.c.b16 %v171, %v169
  %v298 = vpack.c.b16 %v172, %v170
  %v299 = vpack.c.b16 %v175, %v173
  %v300 = vpack.c.b16 %v176, %v174
  %v301 = vpack.c.b16 %v179, %v177
  %v302 = vpack.c.b16 %v180, %v178
  %v303 = vpack.c.b16 %v183, %v181
  %v304 = vpack.c.b16 %v184, %v182
  %v305 = vpack.c.b16 %v187, %v185
  %v306 = vpack.c.b16 %v188, %v186
  %v307 = vpack.c.b16 %v191, %v189
  %v308 = vpack.c.b16 %v192, %v190
  %v309 = vpack.c.b16 %v195, %v193
  %v310 = vpack.c.b16 %v196, %v194
  %v311 = vpack.c.b16 %v199, %v197
  %v312 = vpack.c.b16 %v200, %v198
  %v313 = vpack.c.b16 %v203, %v201
  %v314 = vpack.c.b16 %v204, %v202
  %v315 = vpack.c.b16 %v207, %v205
  %v316 = vpack.c.b16 %v208, %v206
  %v317 = vpack.c.b16 %v211, %v209
  %v318 = vpack.c.b16 %v212, %v210
  %v319 = vpack.c.b16 %v215, %v213
  %v320 = vpack.c.b16 %v216, %v214
  %v321 = vpack.c.b16 %v219, %v217
  %v322 = vpack.c.b16 %v220, %v218
  %v323 = vpack.c.b16 %v223, %v221
  %v324 = vpack.c.b16 %v224, %v222
  %v325 = vpack.c.b16 %v227, %v225
  %v326 = vpack.c.b16 %v228, %v226
  %v327 = vpack.c.b16 %v231, %v229
  %v328 = vpack.c.b16 %v232, %v230
  %v329 = vpack.c.b16 %v235, %v233
  %v330 = vpack.c.b16 %v236, %v234
  %v331 = vpack.c.b16 %v239, %v237
  %v332 = vpack.c.b16 %v240, %v238
  %v333 = vpack.c.b16 %v243, %v241
  %v334 = vpack.c.b16 %v244, %v242
  %v335 = vpack.c.b16 %v247, %v245
  %v336 = vpack.c.b16 %v248, %v246
  %v337 = vpack.c.b16 %v251, %v249
  %v338 = vpack.c.b16 %v252, %v250
  %v339 = vpack.c.b16 %v255, %v253
  %v340 = vpack.c.b16 %v256, %v254
  %v341 = vpack.c.b16 %v259, %v257
  %v342 = vpack.c.b16 %v260, %v258
  %v343 = vpack.c.b16 %v263, %v261
  %v344 = vpack.c.b16 %v264, %v262
  %v345 = vpack.c.b16 %v267, %v265
  %v346 = vpack.c.b16 %v268, %v266
  %v347 = vpack.c.b16 %v271, %v269
  %v348 = vpack.c.b16 %v272, %v270
  %v349 = vpack.c.b16 %v275, %v273
  %v350 = vpack.c.b16 %v276, %v274
  %v351 = vpack.c.b16 %v279, %v277
  %v352 = vpack.c.b16 %v280, %v278
  %v353 = vpack.c.b16 %v283, %v281
  %v354 = vpack.c.b16 %v284, %v282
  %v355 = vpack.c.b16 %v287, %v285
  %v356 = vpack.c.b16 %v288, %v286
  %v357 = vpack.c.b16 %v291, %v289
  %v358 = vpack.c.b16 %v292, %v290
  %v359 = vpack.c.b16 %v295, %v293
  %v360 = vpack.c.b16 %v296, %v294
  %v412 = vunpack.c.l.b16 %v79
  %v413 = vunpack.c.l.b16 %v80
  %v414 = vunpack.c.l.b16 %v81
  %v415 = vunpack.c.l.b16 %v82
  %v416 = vunpack.c.l.b16 %v83
  %v417 = vunpack.c.l.b16 %v84
  %v418 = vunpack.c.l.b16 %v85
  %v419 = vunpack.c.l.b16 %v86
  %v420 = vunpack.c.l.b16 %v87
  %v421 = vunpack.c.l.b16 %v88
  %v422 = vunpack.c.l.b16 %v89
  %v423 = vunpack.c.l.b16 %v90
  %v424 = vunpack.c.l.b16 %v91
  %v425 = vunpack.c.l.b16 %v92
  %v426 = vunpack.c.l.b16 %v93
  %v427 = vunpack.c.l.b16 %v94
  %v428 = vunpack.c.l.b16 %v95
  %v429 = vunpack.c.l.b16 %v96
  %v430 = vunpack.c.l.b16 %v97
  %v431 = vpack.c.b16 %v413, %v412
  %v432 = vpack.c.b16 %v415, %v414
  %v433 = vpack.c.b16 %v417, %v416
  %v434 = vpack.c.b16 %v419, %v418
  %v435 = vpack.c.b16 %v421, %v420
  %v436 = vpack.c.b16 %v423, %v422
  %v437 = vpack.c.b16 %v425, %v424
  %v438 = vpack.c.b16 %v427, %v426
  %v439 = vpack.c.b16 %v429, %v428
  %v440 = vpack.c.b16 %v430, %v430
  %vm450 = vcmask 154624
  %v452 = vsel %vm450, %v298, 0
  %v455 = vsel %vm450, %v300, 0
  %v458 = vsel %vm450, %v302, 0
  %v461 = vsel %vm450, %v304, 0
  %v464 = vsel %vm450, %v306, 0
  %v467 = vsel %vm450, %v308, 0
  %v470 = vsel %vm450, %v310, 0
  %v473 = vsel %vm450, %v312, 0
  %v476 = vsel %vm450, %v314, 0
  %v479 = vsel %vm450, %v316, 0
  %v482 = vsel %vm450, %v318, 0
  %v485 = vsel %vm450, %v320, 0
  %v488 = vsel %vm450, %v322, 0
  %v491 = vsel %vm450, %v324, 0
  %v494 = vsel %vm450, %v326, 0
  %v497 = vsel %vm450, %v328, 0
  %v500 = vsel %vm450, %v330, 0
  %v503 = vsel %vm450, %v332, 0
  %v506 = vsel %vm450, %v334, 0
  %v509 = vsel %vm450, %v336, 0
  %v512 = vsel %vm450, %v338, 0
  %v515 = vsel %vm450, %v340, 0
  %v518 = vsel %vm450, %v342, 0
  %v521 = vsel %vm450, %v344, 0
  %v524 = vsel %vm450, %v346, 0
  %v527 = vsel %vm450, %v348, 0
  %v530 = vsel %vm450, %v350, 0
  %v533 = vsel %vm450, %v352, 0
  %v536 = vsel %vm450, %v354, 0
  %v539 = vsel %vm450, %v356, 0
  %v542 = vsel %vm450, %v358, 0
  %v545 = vsel %vm450, %v360, 0
  %vm547 = vcmask 1040384
  %vm548 = vcmask 1041408
  %v549 = vsel %vm547, 4294967295, 65535
  %v550 = vsel %vm548, %v549, 0
  %v552 = vand.u32 %v440, %v550
  %554 = vmatprep.subr.bf16.mxu0 0
  %555 = vmatpush1.bf16.msra.mxu0 %v431
  %556 = vmatprep.subr.bf16.mxu0 0
  %557 = vmatpush1.bf16.msra.mxu0 %v432
  %558 = vmatprep.subr.bf16.mxu0 0
  %559 = vmatpush1.bf16.msra.mxu0 %v433
  %560 = vmatprep.subr.bf16.mxu0 0
  %561 = vmatpush1.bf16.msra.mxu0 %v434
  %562 = vmatprep.subr.bf16.mxu0 0
  %563 = vmatpush1.bf16.msra.mxu0 %v435
  %564 = vmatprep.subr.bf16.mxu0 0
  %565 = vmatpush1.bf16.msra.mxu0 %v436
  %566 = vmatprep.subr.bf16.mxu0 0
  %567 = vmatpush1.bf16.msra.mxu0 %v437
  %568 = vmatprep.subr.bf16.mxu0 0
  %569 = vmatpush1.bf16.msra.mxu0 %v438
  %570 = vmatprep.subr.bf16.mxu0 0
  %571 = vmatpush1.bf16.msra.mxu0 %v439
  %572 = vmatprep.subr.bf16.mxu0 0
  %573 = vmatpush1.bf16.msra.mxu0 %v552
  %574 = vmatprep.subr.bf16.mxu0 0
  %575 = vmatpush1.bf16.msra.mxu0 0
  %576 = vmatprep.subr.bf16.mxu0 0
  %577 = vmatpush1.bf16.msra.mxu0 0
  %578 = vmatprep.subr.bf16.mxu0 0
  %579 = vmatpush1.bf16.msra.mxu0 0
  %580 = vmatprep.subr.bf16.mxu0 0
  %581 = vmatpush1.bf16.msra.mxu0 0
  %582 = vmatprep.subr.bf16.mxu0 0
  %583 = vmatpush1.bf16.msra.mxu0 0
  %584 = vmatprep.subr.bf16.mxu0 0
  %585 = vmatpush1.bf16.msra.mxu0 0
  %586 = vmatprep.mubr.bf16.mxu0 %v452
  %587 = vmatmul.mubr.bf16.gmra.mrb[0].mxu0 %v297
  %v588 = vpop.f32.mrb[0].mxu0
  %v589 = vadd.f32 %v103, %v588
  %v590 = vpop.f32.mrb[0].mxu0
  %v591 = vpop.f32.mrb[0].mxu0
  %v592 = vadd.f32 %v103, %v591
  %v593 = vpop.f32.mrb[0].mxu0
  %594 = vmatprep.mubr.bf16.mxu0 %v455
  %595 = vmatmul.mubr.bf16.gmra.mrb[0].mxu0 %v299
  %v596 = vpop.f32.mrb[0].mxu0
  %v597 = vadd.f32 %v103, %v596
  %v598 = vpop.f32.mrb[0].mxu0
  %v599 = vpop.f32.mrb[0].mxu0
  %v600 = vadd.f32 %v103, %v599
  %v601 = vpop.f32.mrb[0].mxu0
  %602 = vmatprep.mubr.bf16.mxu0 %v458
  %603 = vmatmul.mubr.bf16.gmra.mrb[0].mxu0 %v301
  %v604 = vpop.f32.mrb[0].mxu0
  %v605 = vadd.f32 %v103, %v604
  %v606 = vpop.f32.mrb[0].mxu0
  %v607 = vpop.f32.mrb[0].mxu0
  %v608 = vadd.f32 %v103, %v607
  %v609 = vpop.f32.mrb[0].mxu0
  %610 = vmatprep.mubr.bf16.mxu0 %v461
  %611 = vmatmul.mubr.bf16.gmra.mrb[0].mxu0 %v303
  %v612 = vpop.f32.mrb[0].mxu0
  %v613 = vadd.f32 %v103, %v612
  %v614 = vpop.f32.mrb[0].mxu0
  %v615 = vpop.f32.mrb[0].mxu0
  %v616 = vadd.f32 %v103, %v615
  %v617 = vpop.f32.mrb[0].mxu0
  %618 = vmatprep.mubr.bf16.mxu0 %v464
  %619 = vmatmul.mubr.bf16.gmra.mrb[0].mxu0 %v305
  %v620 = vpop.f32.mrb[0].mxu0
  %v621 = vadd.f32 %v103, %v620
  %v622 = vpop.f32.mrb[0].mxu0
  %v623 = vpop.f32.mrb[0].mxu0
  %v624 = vadd.f32 %v103, %v623
  %v625 = vpop.f32.mrb[0].mxu0
  %626 = vmatprep.mubr.bf16.mxu0 %v467
  %627 = vmatmul.mubr.bf16.gmra.mrb[0].mxu0 %v307
  %v628 = vpop.f32.mrb[0].mxu0
  %v629 = vadd.f32 %v103, %v628
  %v630 = vpop.f32.mrb[0].mxu0
  %v631 = vpop.f32.mrb[0].mxu0
  %v632 = vadd.f32 %v103, %v631
  %v633 = vpop.f32.mrb[0].mxu0
  %634 = vmatprep.mubr.bf16.mxu0 %v470
  %635 = vmatmul.mubr.bf16.gmra.mrb[0].mxu0 %v309
  %v636 = vpop.f32.mrb[0].mxu0
  %v637 = vadd.f32 %v103, %v636
  %v638 = vpop.f32.mrb[0].mxu0
  %v639 = vpop.f32.mrb[0].mxu0
  %v640 = vadd.f32 %v103, %v639
  %v641 = vpop.f32.mrb[0].mxu0
  %642 = vmatprep.mubr.bf16.mxu0 %v473
  %643 = vmatmul.mubr.bf16.gmra.mrb[0].mxu0 %v311
  %v644 = vpop.f32.mrb[0].mxu0
  %v645 = vadd.f32 %v103, %v644
  %v646 = vpop.f32.mrb[0].mxu0
  %v647 = vpop.f32.mrb[0].mxu0
  %v648 = vadd.f32 %v103, %v647
  %v649 = vpop.f32.mrb[0].mxu0
  %650 = vmatprep.mubr.bf16.mxu0 %v476
  %651 = vmatmul.mubr.bf16.gmra.mrb[0].mxu0 %v313
  %v652 = vpop.f32.mrb[0].mxu0
  %v653 = vadd.f32 %v103, %v652
  %v654 = vpop.f32.mrb[0].mxu0
  %v655 = vpop.f32.mrb[0].mxu0
  %v656 = vadd.f32 %v103, %v655
  %v657 = vpop.f32.mrb[0].mxu0
  %658 = vmatprep.mubr.bf16.mxu0 %v479
  %659 = vmatmul.mubr.bf16.gmra.mrb[0].mxu0 %v315
  %v660 = vpop.f32.mrb[0].mxu0
  %v661 = vadd.f32 %v103, %v660
  %v662 = vpop.f32.mrb[0].mxu0
  %v663 = vpop.f32.mrb[0].mxu0
  %v664 = vadd.f32 %v103, %v663
  %v665 = vpop.f32.mrb[0].mxu0
  %666 = vmatprep.mubr.bf16.mxu0 %v482
  %667 = vmatmul.mubr.bf16.gmra.mrb[0].mxu0 %v317
  %v668 = vpop.f32.mrb[0].mxu0
  %v669 = vadd.f32 %v103, %v668
  %v670 = vpop.f32.mrb[0].mxu0
  %v671 = vpop.f32.mrb[0].mxu0
  %v672 = vadd.f32 %v103, %v671
  %v673 = vpop.f32.mrb[0].mxu0
  %674 = vmatprep.mubr.bf16.mxu0 %v485
  %675 = vmatmul.mubr.bf16.gmra.mrb[0].mxu0 %v319
  %v676 = vpop.f32.mrb[0].mxu0
  %v677 = vadd.f32 %v103, %v676
  %v678 = vpop.f32.mrb[0].mxu0
  %v679 = vpop.f32.mrb[0].mxu0
  %v680 = vadd.f32 %v103, %v679
  %v681 = vpop.f32.mrb[0].mxu0
  %682 = vmatprep.mubr.bf16.mxu0 %v488
  %683 = vmatmul.mubr.bf16.gmra.mrb[0].mxu0 %v321
  %v684 = vpop.f32.mrb[0].mxu0
  %v685 = vadd.f32 %v103, %v684
  %v686 = vpop.f32.mrb[0].mxu0
  %v687 = vpop.f32.mrb[0].mxu0
  %v688 = vadd.f32 %v103, %v687
  %v689 = vpop.f32.mrb[0].mxu0
  %690 = vmatprep.mubr.bf16.mxu0 %v491
  %691 = vmatmul.mubr.bf16.gmra.mrb[0].mxu0 %v323
  %v692 = vpop.f32.mrb[0].mxu0
  %v693 = vadd.f32 %v103, %v692
  %v694 = vpop.f32.mrb[0].mxu0
  %v695 = vpop.f32.mrb[0].mxu0
  %v696 = vadd.f32 %v103, %v695
  %v697 = vpop.f32.mrb[0].mxu0
  %698 = vmatprep.mubr.bf16.mxu0 %v494
  %699 = vmatmul.mubr.bf16.gmra.mrb[0].mxu0 %v325
  %v700 = vpop.f32.mrb[0].mxu0
  %v701 = vadd.f32 %v103, %v700
  %v702 = vpop.f32.mrb[0].mxu0
  %v703 = vpop.f32.mrb[0].mxu0
  %v704 = vadd.f32 %v103, %v703
  %v705 = vpop.f32.mrb[0].mxu0
  %706 = vmatprep.mubr.bf16.mxu0 %v497
  %707 = vmatmul.mubr.bf16.gmra.mrb[0].mxu0 %v327
  %v708 = vpop.f32.mrb[0].mxu0
  %v709 = vadd.f32 %v103, %v708
  %v710 = vpop.f32.mrb[0].mxu0
  %v711 = vpop.f32.mrb[0].mxu0
  %v712 = vadd.f32 %v103, %v711
  %v713 = vpop.f32.mrb[0].mxu0
  %714 = vmatprep.mubr.bf16.mxu0 %v500
  %715 = vmatmul.mubr.bf16.gmra.mrb[0].mxu0 %v329
  %v716 = vpop.f32.mrb[0].mxu0
  %v717 = vadd.f32 %v103, %v716
  %v718 = vpop.f32.mrb[0].mxu0
  %v719 = vpop.f32.mrb[0].mxu0
  %v720 = vadd.f32 %v103, %v719
  %v721 = vpop.f32.mrb[0].mxu0
  %722 = vmatprep.mubr.bf16.mxu0 %v503
  %723 = vmatmul.mubr.bf16.gmra.mrb[0].mxu0 %v331
  %v724 = vpop.f32.mrb[0].mxu0
  %v725 = vadd.f32 %v103, %v724
  %v726 = vpop.f32.mrb[0].mxu0
  %v727 = vpop.f32.mrb[0].mxu0
  %v728 = vadd.f32 %v103, %v727
  %v729 = vpop.f32.mrb[0].mxu0
  %730 = vmatprep.mubr.bf16.mxu0 %v506
  %731 = vmatmul.mubr.bf16.gmra.mrb[0].mxu0 %v333
  %v732 = vpop.f32.mrb[0].mxu0
  %v733 = vadd.f32 %v103, %v732
  %v734 = vpop.f32.mrb[0].mxu0
  %v735 = vpop.f32.mrb[0].mxu0
  %v736 = vadd.f32 %v103, %v735
  %v737 = vpop.f32.mrb[0].mxu0
  %738 = vmatprep.mubr.bf16.mxu0 %v509
  %739 = vmatmul.mubr.bf16.gmra.mrb[0].mxu0 %v335
  %v740 = vpop.f32.mrb[0].mxu0
  %v741 = vadd.f32 %v103, %v740
  %v742 = vpop.f32.mrb[0].mxu0
  %v743 = vpop.f32.mrb[0].mxu0
  %v744 = vadd.f32 %v103, %v743
  %v745 = vpop.f32.mrb[0].mxu0
  %746 = vmatprep.mubr.bf16.mxu0 %v512
  %747 = vmatmul.mubr.bf16.gmra.mrb[0].mxu0 %v337
  %v748 = vpop.f32.mrb[0].mxu0
  %v749 = vadd.f32 %v103, %v748
  %v750 = vpop.f32.mrb[0].mxu0
  %v751 = vpop.f32.mrb[0].mxu0
  %v752 = vadd.f32 %v103, %v751
  %v753 = vpop.f32.mrb[0].mxu0
  %754 = vmatprep.mubr.bf16.mxu0 %v515
  %755 = vmatmul.mubr.bf16.gmra.mrb[0].mxu0 %v339
  %v756 = vpop.f32.mrb[0].mxu0
  %v757 = vadd.f32 %v103, %v756
  %v758 = vpop.f32.mrb[0].mxu0
  %v759 = vpop.f32.mrb[0].mxu0
  %v760 = vadd.f32 %v103, %v759
  %v761 = vpop.f32.mrb[0].mxu0
  %762 = vmatprep.mubr.bf16.mxu0 %v518
  %763 = vmatmul.mubr.bf16.gmra.mrb[0].mxu0 %v341
  %v764 = vpop.f32.mrb[0].mxu0
  %v765 = vadd.f32 %v103, %v764
  %v766 = vpop.f32.mrb[0].mxu0
  %v767 = vpop.f32.mrb[0].mxu0
  %v768 = vadd.f32 %v103, %v767
  %v769 = vpop.f32.mrb[0].mxu0
  %770 = vmatprep.mubr.bf16.mxu0 %v521
  %771 = vmatmul.mubr.bf16.gmra.mrb[0].mxu0 %v343
  %v772 = vpop.f32.mrb[0].mxu0
  %v773 = vadd.f32 %v103, %v772
  %v774 = vpop.f32.mrb[0].mxu0
  %v775 = vpop.f32.mrb[0].mxu0
  %v776 = vadd.f32 %v103, %v775
  %v777 = vpop.f32.mrb[0].mxu0
  %778 = vmatprep.mubr.bf16.mxu0 %v524
  %779 = vmatmul.mubr.bf16.gmra.mrb[0].mxu0 %v345
  %v780 = vpop.f32.mrb[0].mxu0
  %v781 = vadd.f32 %v103, %v780
  %v782 = vpop.f32.mrb[0].mxu0
  %v783 = vpop.f32.mrb[0].mxu0
  %v784 = vadd.f32 %v103, %v783
  %v785 = vpop.f32.mrb[0].mxu0
  %786 = vmatprep.mubr.bf16.mxu0 %v527
  %787 = vmatmul.mubr.bf16.gmra.mrb[0].mxu0 %v347
  %v788 = vpop.f32.mrb[0].mxu0
  %v789 = vadd.f32 %v103, %v788
  %v790 = vpop.f32.mrb[0].mxu0
  %v791 = vpop.f32.mrb[0].mxu0
  %v792 = vadd.f32 %v103, %v791
  %v793 = vpop.f32.mrb[0].mxu0
  %794 = vmatprep.mubr.bf16.mxu0 %v530
  %795 = vmatmul.mubr.bf16.gmra.mrb[0].mxu0 %v349
  %v796 = vpop.f32.mrb[0].mxu0
  %v797 = vadd.f32 %v103, %v796
  %v798 = vpop.f32.mrb[0].mxu0
  %v799 = vpop.f32.mrb[0].mxu0
  %v800 = vadd.f32 %v103, %v799
  %v801 = vpop.f32.mrb[0].mxu0
  %802 = vmatprep.mubr.bf16.mxu0 %v533
  %803 = vmatmul.mubr.bf16.gmra.mrb[0].mxu0 %v351
  %v804 = vpop.f32.mrb[0].mxu0
  %v805 = vadd.f32 %v103, %v804
  %v806 = vpop.f32.mrb[0].mxu0
  %v807 = vpop.f32.mrb[0].mxu0
  %v808 = vadd.f32 %v103, %v807
  %v809 = vpop.f32.mrb[0].mxu0
  %810 = vmatprep.mubr.bf16.mxu0 %v536
  %811 = vmatmul.mubr.bf16.gmra.mrb[0].mxu0 %v353
  %v812 = vpop.f32.mrb[0].mxu0
  %v813 = vadd.f32 %v103, %v812
  %v814 = vpop.f32.mrb[0].mxu0
  %v815 = vpop.f32.mrb[0].mxu0
  %v816 = vadd.f32 %v103, %v815
  %v817 = vpop.f32.mrb[0].mxu0
  %818 = vmatprep.mubr.bf16.mxu0 %v539
  %819 = vmatmul.mubr.bf16.gmra.mrb[0].mxu0 %v355
  %v820 = vpop.f32.mrb[0].mxu0
  %v821 = vadd.f32 %v103, %v820
  %v822 = vpop.f32.mrb[0].mxu0
  %v823 = vpop.f32.mrb[0].mxu0
  %v824 = vadd.f32 %v103, %v823
  %v825 = vpop.f32.mrb[0].mxu0
  %826 = vmatprep.mubr.bf16.mxu0 %v542
  %827 = vmatmul.mubr.bf16.gmra.mrb[0].mxu0 %v357
  %v828 = vpop.f32.mrb[0].mxu0
  %v829 = vadd.f32 %v103, %v828
  %v830 = vpop.f32.mrb[0].mxu0
  %v831 = vpop.f32.mrb[0].mxu0
  %v832 = vadd.f32 %v103, %v831
  %v833 = vpop.f32.mrb[0].mxu0
  %834 = vmatprep.mubr.bf16.mxu0 %v545
  %835 = vmatmul.mubr.bf16.gmra.mrb[0].mxu0 %v359
  %v836 = vpop.f32.mrb[0].mxu0
  %v837 = vadd.f32 %v103, %v836
  %v838 = vpop.f32.mrb[0].mxu0
  %v839 = vpop.f32.mrb[0].mxu0
  %v840 = vadd.f32 %v103, %v839
  %v841 = vpop.f32.mrb[0].mxu0
  %842 = vdwg.mxu0
  %v843 = vmax.f32 %v589, 0.0
  %v844 = vmax.f32 %v592, 0.0
  %v845 = vmax.f32 %v597, 0.0
  %v846 = vmax.f32 %v600, 0.0
  %v847 = vmax.f32 %v605, 0.0
  %v848 = vmax.f32 %v608, 0.0
  %v849 = vmax.f32 %v613, 0.0
  %v850 = vmax.f32 %v616, 0.0
  %v851 = vmax.f32 %v621, 0.0
  %v852 = vmax.f32 %v624, 0.0
  %v853 = vmax.f32 %v629, 0.0
  %v854 = vmax.f32 %v632, 0.0
  %v855 = vmax.f32 %v637, 0.0
  %v856 = vmax.f32 %v640, 0.0
  %v857 = vmax.f32 %v645, 0.0
  %v858 = vmax.f32 %v648, 0.0
  %v859 = vmax.f32 %v653, 0.0
  %v860 = vmax.f32 %v656, 0.0
  %v861 = vmax.f32 %v661, 0.0
  %v862 = vmax.f32 %v664, 0.0
  %v863 = vmax.f32 %v669, 0.0
  %v864 = vmax.f32 %v672, 0.0
  %v865 = vmax.f32 %v677, 0.0
  %v866 = vmax.f32 %v680, 0.0
  %v867 = vmax.f32 %v685, 0.0
  %v868 = vmax.f32 %v688, 0.0
  %v869 = vmax.f32 %v693, 0.0
  %v870 = vmax.f32 %v696, 0.0
  %v871 = vmax.f32 %v701, 0.0
  %v872 = vmax.f32 %v704, 0.0
  %v873 = vmax.f32 %v709, 0.0
  %v874 = vmax.f32 %v712, 0.0
  %v875 = vmax.f32 %v717, 0.0
  %v876 = vmax.f32 %v720, 0.0
  %v877 = vmax.f32 %v725, 0.0
  %v878 = vmax.f32 %v728, 0.0
  %v879 = vmax.f32 %v733, 0.0
  %v880 = vmax.f32 %v736, 0.0
  %v881 = vmax.f32 %v741, 0.0
  %v882 = vmax.f32 %v744, 0.0
  %v883 = vmax.f32 %v749, 0.0
  %v884 = vmax.f32 %v752, 0.0
  %v885 = vmax.f32 %v757, 0.0
  %v886 = vmax.f32 %v760, 0.0
  %v887 = vmax.f32 %v765, 0.0
  %v888 = vmax.f32 %v768, 0.0
  %v889 = vmax.f32 %v773, 0.0
  %v890 = vmax.f32 %v776, 0.0
  %v891 = vmax.f32 %v781, 0.0
  %v892 = vmax.f32 %v784, 0.0
  %v893 = vmax.f32 %v789, 0.0
  %v894 = vmax.f32 %v792, 0.0
  %v895 = vmax.f32 %v797, 0.0
  %v896 = vmax.f32 %v800, 0.0
  %v897 = vmax.f32 %v805, 0.0
  %v898 = vmax.f32 %v808, 0.0
  %v899 = vmax.f32 %v813, 0.0
  %v900 = vmax.f32 %v816, 0.0
  %v901 = vmax.f32 %v821, 0.0
  %v902 = vmax.f32 %v824, 0.0
  %v903 = vmax.f32 %v829, 0.0
  %v904 = vmax.f32 %v832, 0.0
  %v905 = vmax.f32 %v837, 0.0
  %v906 = vmax.f32 %v840, 0.0
  %v907 = vpack.c.bf16 %v844, %v843
  %v908 = vpack.c.bf16 %v846, %v845
  %v909 = vpack.c.bf16 %v848, %v847
  %v910 = vpack.c.bf16 %v850, %v849
  %v911 = vpack.c.bf16 %v852, %v851
  %v912 = vpack.c.bf16 %v854, %v853
  %v913 = vpack.c.bf16 %v856, %v855
  %v914 = vpack.c.bf16 %v858, %v857
  %v915 = vpack.c.bf16 %v860, %v859
  %v916 = vpack.c.bf16 %v862, %v861
  %v917 = vpack.c.bf16 %v864, %v863
  %v918 = vpack.c.bf16 %v866, %v865
  %v919 = vpack.c.bf16 %v868, %v867
  %v920 = vpack.c.bf16 %v870, %v869
  %v921 = vpack.c.bf16 %v872, %v871
  %v922 = vpack.c.bf16 %v874, %v873
  %v923 = vpack.c.bf16 %v876, %v875
  %v924 = vpack.c.bf16 %v878, %v877
  %v925 = vpack.c.bf16 %v880, %v879
  %v926 = vpack.c.bf16 %v882, %v881
  %v927 = vpack.c.bf16 %v884, %v883
  %v928 = vpack.c.bf16 %v886, %v885
  %v929 = vpack.c.bf16 %v888, %v887
  %v930 = vpack.c.bf16 %v890, %v889
  %v931 = vpack.c.bf16 %v892, %v891
  %v932 = vpack.c.bf16 %v894, %v893
  %v933 = vpack.c.bf16 %v896, %v895
  %v934 = vpack.c.bf16 %v898, %v897
  %v935 = vpack.c.bf16 %v900, %v899
  %v936 = vpack.c.bf16 %v902, %v901
  %v937 = vpack.c.bf16 %v904, %v903
  %v938 = vpack.c.bf16 %v906, %v905
  %v971 = vunpack.c.l.b16 %v907
  %v972 = vunpack.c.h.b16 %v907
  %v973 = vunpack.c.l.b16 %v908
  %v974 = vunpack.c.h.b16 %v908
  %v975 = vunpack.c.l.b16 %v909
  %v976 = vunpack.c.h.b16 %v909
  %v977 = vunpack.c.l.b16 %v910
  %v978 = vunpack.c.h.b16 %v910
  %v979 = vunpack.c.l.b16 %v911
  %v980 = vunpack.c.h.b16 %v911
  %v981 = vunpack.c.l.b16 %v912
  %v982 = vunpack.c.h.b16 %v912
  %v983 = vunpack.c.l.b16 %v913
  %v984 = vunpack.c.h.b16 %v913
  %v985 = vunpack.c.l.b16 %v914
  %v986 = vunpack.c.h.b16 %v914
  %v987 = vunpack.c.l.b16 %v915
  %v988 = vunpack.c.h.b16 %v915
  %v989 = vunpack.c.l.b16 %v916
  %v990 = vunpack.c.h.b16 %v916
  %v991 = vunpack.c.l.b16 %v917
  %v992 = vunpack.c.h.b16 %v917
  %v993 = vunpack.c.l.b16 %v918
  %v994 = vunpack.c.h.b16 %v918
  %v995 = vunpack.c.l.b16 %v919
  %v996 = vunpack.c.h.b16 %v919
  %v997 = vunpack.c.l.b16 %v920
  %v998 = vunpack.c.h.b16 %v920
  %v999 = vunpack.c.l.b16 %v921
  %v1000 = vunpack.c.h.b16 %v921
  %v1001 = vunpack.c.l.b16 %v922
  %v1002 = vunpack.c.h.b16 %v922
  %v1003 = vunpack.c.l.b16 %v923
  %v1004 = vunpack.c.h.b16 %v923
  %v1005 = vunpack.c.l.b16 %v924
  %v1006 = vunpack.c.h.b16 %v924
  %v1007 = vunpack.c.l.b16 %v925
  %v1008 = vunpack.c.h.b16 %v925
  %v1009 = vunpack.c.l.b16 %v926
  %v1010 = vunpack.c.h.b16 %v926
  %v1011 = vunpack.c.l.b16 %v927
  %v1012 = vunpack.c.h.b16 %v927
  %v1013 = vunpack.c.l.b16 %v928
  %v1014 = vunpack.c.h.b16 %v928
  %v1015 = vunpack.c.l.b16 %v929
  %v1016 = vunpack.c.h.b16 %v929
  %v1017 = vunpack.c.l.b16 %v930
  %v1018 = vunpack.c.h.b16 %v930
  %v1019 = vunpack.c.l.b16 %v931
  %v1020 = vunpack.c.h.b16 %v931
  %v1021 = vunpack.c.l.b16 %v932
  %v1022 = vunpack.c.h.b16 %v932
  %v1023 = vunpack.c.l.b16 %v933
  %v1024 = vunpack.c.h.b16 %v933
  %v1025 = vunpack.c.l.b16 %v934
  %v1026 = vunpack.c.h.b16 %v934
  %v1027 = vunpack.c.l.b16 %v935
  %v1028 = vunpack.c.h.b16 %v935
  %v1029 = vunpack.c.l.b16 %v936
  %v1030 = vunpack.c.h.b16 %v936
  %v1031 = vunpack.c.l.b16 %v937
  %v1032 = vunpack.c.h.b16 %v937
  %v1033 = vunpack.c.l.b16 %v938
  %v1034 = vunpack.c.h.b16 %v938
  %v1035 = vpack.c.b16 %v971, %v971
  %v1036 = vpack.c.b16 %v972, %v972
  %v1037 = vpack.c.b16 %v973, %v973
  %v1038 = vpack.c.b16 %v974, %v974
  %v1039 = vpack.c.b16 %v975, %v975
  %v1040 = vpack.c.b16 %v976, %v976
  %v1041 = vpack.c.b16 %v977, %v977
  %v1042 = vpack.c.b16 %v978, %v978
  %v1043 = vpack.c.b16 %v979, %v979
  %v1044 = vpack.c.b16 %v980, %v980
  %v1045 = vpack.c.b16 %v981, %v981
  %v1046 = vpack.c.b16 %v982, %v982
  %v1047 = vpack.c.b16 %v983, %v983
  %v1048 = vpack.c.b16 %v984, %v984
  %v1049 = vpack.c.b16 %v985, %v985
  %v1050 = vpack.c.b16 %v986, %v986
  %v1051 = vpack.c.b16 %v987, %v987
  %v1052 = vpack.c.b16 %v988, %v988
  %v1053 = vpack.c.b16 %v989, %v989
  %v1054 = vpack.c.b16 %v990, %v990
  %v1055 = vpack.c.b16 %v991, %v991
  %v1056 = vpack.c.b16 %v992, %v992
  %v1057 = vpack.c.b16 %v993, %v993
  %v1058 = vpack.c.b16 %v994, %v994
  %v1059 = vpack.c.b16 %v995, %v995
  %v1060 = vpack.c.b16 %v996, %v996
  %v1061 = vpack.c.b16 %v997, %v997
  %v1062 = vpack.c.b16 %v998, %v998
  %v1063 = vpack.c.b16 %v999, %v999
  %v1064 = vpack.c.b16 %v1000, %v1000
  %v1065 = vpack.c.b16 %v1001, %v1001
  %v1066 = vpack.c.b16 %v1002, %v1002
  %v1067 = vpack.c.b16 %v1003, %v1003
  %v1068 = vpack.c.b16 %v1004, %v1004
  %v1069 = vpack.c.b16 %v1005, %v1005
  %v1070 = vpack.c.b16 %v1006, %v1006
  %v1071 = vpack.c.b16 %v1007, %v1007
  %v1072 = vpack.c.b16 %v1008, %v1008
  %v1073 = vpack.c.b16 %v1009, %v1009
  %v1074 = vpack.c.b16 %v1010, %v1010
  %v1075 = vpack.c.b16 %v1011, %v1011
  %v1076 = vpack.c.b16 %v1012, %v1012
  %v1077 = vpack.c.b16 %v1013, %v1013
  %v1078 = vpack.c.b16 %v1014, %v1014
  %v1079 = vpack.c.b16 %v1015, %v1015
  %v1080 = vpack.c.b16 %v1016, %v1016
  %v1081 = vpack.c.b16 %v1017, %v1017
  %v1082 = vpack.c.b16 %v1018, %v1018
  %v1083 = vpack.c.b16 %v1019, %v1019
  %v1084 = vpack.c.b16 %v1020, %v1020
  %v1085 = vpack.c.b16 %v1021, %v1021
  %v1086 = vpack.c.b16 %v1022, %v1022
  %v1087 = vpack.c.b16 %v1023, %v1023
  %v1088 = vpack.c.b16 %v1024, %v1024
  %v1089 = vpack.c.b16 %v1025, %v1025
  %v1090 = vpack.c.b16 %v1026, %v1026
  %v1091 = vpack.c.b16 %v1027, %v1027
  %v1092 = vpack.c.b16 %v1028, %v1028
  %v1093 = vpack.c.b16 %v1029, %v1029
  %v1094 = vpack.c.b16 %v1030, %v1030
  %v1095 = vpack.c.b16 %v1031, %v1031
  %v1096 = vpack.c.b16 %v1032, %v1032
  %v1097 = vpack.c.b16 %v1033, %v1033
  %v1098 = vpack.c.b16 %v1034, %v1034
  %1163 = vst [vmem:[%s3] sm:$0xf] %v1035
  %1164 = vst [vmem:[%s3 + $0x4] sm:$0xf] %v1036
  %1165 = vst [vmem:[%s3 + $0x8] sm:$0xf] %v1037
  %1166 = vst [vmem:[%s3 + $0xc] sm:$0xf] %v1038
  %1167 = vst [vmem:[%s3 + $0x10] sm:$0xf] %v1039
  %1168 = vst [vmem:[%s3 + $0x14] sm:$0xf] %v1040
  %1169 = vst [vmem:[%s3 + $0x18] sm:$0xf] %v1041
  %1170 = vst [vmem:[%s3 + $0x1c] sm:$0xf] %v1042
  %1171 = vst [vmem:[%s3 + $0x20] sm:$0xf] %v1043
  %1172 = vst [vmem:[%s3 + $0x24] sm:$0xf] %v1044
  %1173 = vst [vmem:[%s3 + $0x28] sm:$0xf] %v1045
  %1174 = vst [vmem:[%s3 + $0x2c] sm:$0xf] %v1046
  %1175 = vst [vmem:[%s3 + $0x30] sm:$0xf] %v1047
  %1176 = vst [vmem:[%s3 + $0x34] sm:$0xf] %v1048
  %1177 = vst [vmem:[%s3 + $0x38] sm:$0xf] %v1049
  %1178 = vst [vmem:[%s3 + $0x3c] sm:$0xf] %v1050
  %1179 = vst [vmem:[%s3 + $0x40] sm:$0xf] %v1051
  %1180 = vst [vmem:[%s3 + $0x44] sm:$0xf] %v1052
  %1181 = vst [vmem:[%s3 + $0x48] sm:$0xf] %v1053
  %1182 = vst [vmem:[%s3 + $0x4c] sm:$0xf] %v1054
  %1183 = vst [vmem:[%s3 + $0x50] sm:$0xf] %v1055
  %1184 = vst [vmem:[%s3 + $0x54] sm:$0xf] %v1056
  %1185 = vst [vmem:[%s3 + $0x58] sm:$0xf] %v1057
  %1186 = vst [vmem:[%s3 + $0x5c] sm:$0xf] %v1058
  %1187 = vst [vmem:[%s3 + $0x60] sm:$0xf] %v1059
  %1188 = vst [vmem:[%s3 + $0x64] sm:$0xf] %v1060
  %1189 = vst [vmem:[%s3 + $0x68] sm:$0xf] %v1061
  %1190 = vst [vmem:[%s3 + $0x6c] sm:$0xf] %v1062
  %1191 = vst [vmem:[%s3 + $0x70] sm:$0xf] %v1063
  %1192 = vst [vmem:[%s3 + $0x74] sm:$0xf] %v1064
  %1193 = vst [vmem:[%s3 + $0x78] sm:$0xf] %v1065
  %1194 = vst [vmem:[%s3 + $0x7c] sm:$0xf] %v1066
  %1195 = vst [vmem:[%s3 + $0x80] sm:$0xf] %v1067
  %1196 = vst [vmem:[%s3 + $0x84] sm:$0xf] %v1068
  %1197 = vst [vmem:[%s3 + $0x88] sm:$0xf] %v1069
  %1198 = vst [vmem:[%s3 + $0x8c] sm:$0xf] %v1070
  %1199 = vst [vmem:[%s3 + $0x90] sm:$0xf] %v1071
  %1200 = vst [vmem:[%s3 + $0x94] sm:$0xf] %v1072
  %1201 = vst [vmem:[%s3 + $0x98] sm:$0xf] %v1073
  %1202 = vst [vmem:[%s3 + $0x9c] sm:$0xf] %v1074
  %1203 = vst [vmem:[%s3 + $0xa0] sm:$0xf] %v1075
  %1204 = vst [vmem:[%s3 + $0xa4] sm:$0xf] %v1076
  %1205 = vst [vmem:[%s3 + $0xa8] sm:$0xf] %v1077
  %1206 = vst [vmem:[%s3 + $0xac] sm:$0xf] %v1078
  %1207 = vst [vmem:[%s3 + $0xb0] sm:$0xf] %v1079
  %1208 = vst [vmem:[%s3 + $0xb4] sm:$0xf] %v1080
  %1209 = vst [vmem:[%s3 + $0xb8] sm:$0xf] %v1081
  %1210 = vst [vmem:[%s3 + $0xbc] sm:$0xf] %v1082
  %1211 = vst [vmem:[%s3 + $0xc0] sm:$0xf] %v1083
  %1212 = vst [vmem:[%s3 + $0xc4] sm:$0xf] %v1084
  %1213 = vst [vmem:[%s3 + $0xc8] sm:$0xf] %v1085
  %1214 = vst [vmem:[%s3 + $0xcc] sm:$0xf] %v1086
  %1215 = vst [vmem:[%s3 + $0xd0] sm:$0xf] %v1087
  %1216 = vst [vmem:[%s3 + $0xd4] sm:$0xf] %v1088
  %1217 = vst [vmem:[%s3 + $0xd8] sm:$0xf] %v1089
  %1218 = vst [vmem:[%s3 + $0xdc] sm:$0xf] %v1090
  %1219 = vst [vmem:[%s3 + $0xe0] sm:$0xf] %v1091
  %1220 = vst [vmem:[%s3 + $0xe4] sm:$0xf] %v1092
  %1221 = vst [vmem:[%s3 + $0xe8] sm:$0xf] %v1093
  %1222 = vst [vmem:[%s3 + $0xec] sm:$0xf] %v1094
  %1223 = vst [vmem:[%s3 + $0xf0] sm:$0xf] %v1095
  %1224 = vst [vmem:[%s3 + $0xf4] sm:$0xf] %v1096
  %1225 = vst [vmem:[%s3 + $0xf8] sm:$0xf] %v1097
  %1226 = vst [vmem:[%s3 + $0xfc] sm:$0xf] %v1098
  // Predicated region
  $region14: #{resnet_diff_forward.9} parent=0 // pred_check
    _
  $region15: #{resnet_diff_forward.9} parent=0 // pred_check_branch
    %1228 = sbr.rel (0) target = $region17
  $region16: #{resnet_diff_forward.9} parent=0 // pred_region
    _
  $region17: #{resnet_diff_forward.9} parent=0 // pred_fallthru
    _
  // Predicated region
  $region18: #{resnet_diff_forward.9} parent=0 // pred_check
    _
  $region19: #{resnet_diff_forward.9} parent=0 // pred_check_branch
    %1230 = sbr.rel (0) target = $region21
  $region20: #{resnet_diff_forward.9} parent=0 // pred_region
    _
  $region21: #{resnet_diff_forward.9} parent=0 // pred_fallthru
    _

// kernel: resnet_diff_forward.10
$region0: #{resnet_diff_forward.10}
  #allocation0 [shape = 'u32[]', space=smem, size = 0x4, offset = 0x4, fixed_abs, tag = 'smem constant byte address 0x4 - core index']
  #allocation1 [shape = 'u32[144,128]{1,0:T(1,128)}', space=vmem, size = 0x12000, scoped, tag = 'internal scratch']
  %s0 = inlined_call_operand.vmem [shape: bf16[128,1152], index: 0, kind: input, shape index: {}]
  %s1 = inlined_call_operand.vmem [shape: bf16[1152,128], index: 1, kind: input, shape index: {}]
  %s2 = inlined_call_operand.vmem [shape: f32[1,128], index: 2, kind: input, shape index: {}]
  %s3 = inlined_call_operand.vmem [shape: bf16[128,128], index: 3, kind: output, shape index: {}]
  %s4 = sld [smem:[#allocation0]]
  $region22: #{resnet_diff_forward.10} parent=0
    _
  %s6 = ssub.s32 1, %s4
  %s7 = scalar_select 0, %s6, %s4
  // Predicated region
  $region2: #{resnet_diff_forward.10} parent=0 // pred_check
    _
  $region3: #{resnet_diff_forward.10} parent=0 // pred_check_branch
    %9 = sbr.rel (0) target = $region5
  $region4: #{resnet_diff_forward.10} parent=0 // pred_region
    _
  $region5: #{resnet_diff_forward.10} parent=0 // pred_fallthru
    _
  // Predicated region
  $region6: #{resnet_diff_forward.10} parent=0 // pred_check
    _
  $region7: #{resnet_diff_forward.10} parent=0 // pred_check_branch
    %11 = sbr.rel (0) target = $region9
  $region8: #{resnet_diff_forward.10} parent=0 // pred_region
    _
  $region9: #{resnet_diff_forward.10} parent=0 // pred_fallthru
    _
  // Predicated region
  $region10: #{resnet_diff_forward.10} parent=0 // pred_check
    _
  $region11: #{resnet_diff_forward.10} parent=0 // pred_check_branch
    %13 = sbr.rel (0) target = $region13
  $region12: #{resnet_diff_forward.10} parent=0 // pred_region
    _
  $region13: #{resnet_diff_forward.10} parent=0 // pred_fallthru
    _
  %v15 = vld [vmem:[%s0] sm:$0xff]
  %v16 = vld [vmem:[%s0 + $0x8] sm:$0xff]
  %v17 = vld [vmem:[%s0 + $0x10] sm:$0xff]
  %v18 = vld [vmem:[%s0 + $0x18] sm:$0xff]
  %v19 = vld [vmem:[%s0 + $0x20] sm:$0xf]
  %v20 = vld [vmem:[%s0 + $0x24] sm:$0xff]
  %v21 = vld [vmem:[%s0 + $0x2c] sm:$0xff]
  %v22 = vld [vmem:[%s0 + $0x34] sm:$0xff]
  %v23 = vld [vmem:[%s0 + $0x3c] sm:$0xff]
  %v24 = vld [vmem:[%s0 + $0x44] sm:$0xf]
  %v25 = vld [vmem:[%s0 + $0x48] sm:$0xff]
  %v26 = vld [vmem:[%s0 + $0x50] sm:$0xff]
  %v27 = vld [vmem:[%s0 + $0x58] sm:$0xff]
  %v28 = vld [vmem:[%s0 + $0x60] sm:$0xff]
  %v29 = vld [vmem:[%s0 + $0x68] sm:$0xf]
  %v30 = vld [vmem:[%s0 + $0x6c] sm:$0xff]
  %v31 = vld [vmem:[%s0 + $0x74] sm:$0xff]
  %v32 = vld [vmem:[%s0 + $0x7c] sm:$0xff]
  %v33 = vld [vmem:[%s0 + $0x84] sm:$0xff]
  %v34 = vld [vmem:[%s0 + $0x8c] sm:$0xf]
  %v35 = vld [vmem:[%s0 + $0x90] sm:$0xff]
  %v36 = vld [vmem:[%s0 + $0x98] sm:$0xff]
  %v37 = vld [vmem:[%s0 + $0xa0] sm:$0xff]
  %v38 = vld [vmem:[%s0 + $0xa8] sm:$0xff]
  %v39 = vld [vmem:[%s0 + $0xb0] sm:$0xf]
  %v40 = vld [vmem:[%s0 + $0xb4] sm:$0xff]
  %v41 = vld [vmem:[%s0 + $0xbc] sm:$0xff]
  %v42 = vld [vmem:[%s0 + $0xc4] sm:$0xff]
  %v43 = vld [vmem:[%s0 + $0xcc] sm:$0xff]
  %v44 = vld [vmem:[%s0 + $0xd4] sm:$0xf]
  %v45 = vld [vmem:[%s0 + $0xd8] sm:$0xff]
  %v46 = vld [vmem:[%s0 + $0xe0] sm:$0xff]
  %v47 = vld [vmem:[%s0 + $0xe8] sm:$0xff]
  %v48 = vld [vmem:[%s0 + $0xf0] sm:$0xff]
  %v49 = vld [vmem:[%s0 + $0xf8] sm:$0xf]
  %v50 = vld [vmem:[%s0 + $0xfc] sm:$0xff]
  %v51 = vld [vmem:[%s0 + $0x104] sm:$0xff]
  %v52 = vld [vmem:[%s0 + $0x10c] sm:$0xff]
  %v53 = vld [vmem:[%s0 + $0x114] sm:$0xff]
  %v54 = vld [vmem:[%s0 + $0x11c] sm:$0xf]
  %v55 = vld [vmem:[%s0 + $0x120] sm:$0xff]
  %v56 = vld [vmem:[%s0 + $0x128] sm:$0xff]
  %v57 = vld [vmem:[%s0 + $0x130] sm:$0xff]
  %v58 = vld [vmem:[%s0 + $0x138] sm:$0xff]
  %v59 = vld [vmem:[%s0 + $0x140] sm:$0xf]
  %v60 = vld [vmem:[%s0 + $0x144] sm:$0xff]
  %v61 = vld [vmem:[%s0 + $0x14c] sm:$0xff]
  %v62 = vld [vmem:[%s0 + $0x154] sm:$0xff]
  %v63 = vld [vmem:[%s0 + $0x15c] sm:$0xff]
  %v64 = vld [vmem:[%s0 + $0x164] sm:$0xf]
  %v65 = vld [vmem:[%s0 + $0x168] sm:$0xff]
  %v66 = vld [vmem:[%s0 + $0x170] sm:$0xff]
  %v67 = vld [vmem:[%s0 + $0x178] sm:$0xff]
  %v68 = vld [vmem:[%s0 + $0x180] sm:$0xff]
  %v69 = vld [vmem:[%s0 + $0x188] sm:$0xf]
  %v70 = vld [vmem:[%s0 + $0x18c] sm:$0xff]
  %v71 = vld [vmem:[%s0 + $0x194] sm:$0xff]
  %v72 = vld [vmem:[%s0 + $0x19c] sm:$0xff]
  %v73 = vld [vmem:[%s0 + $0x1a4] sm:$0xff]
  %v74 = vld [vmem:[%s0 + $0x1ac] sm:$0xf]
  %v75 = vld [vmem:[%s0 + $0x1b0] sm:$0xff]
  %v76 = vld [vmem:[%s0 + $0x1b8] sm:$0xff]
  %v77 = vld [vmem:[%s0 + $0x1c0] sm:$0xff]
  %v78 = vld [vmem:[%s0 + $0x1c8] sm:$0xff]
  %v79 = vld [vmem:[%s0 + $0x1d0] sm:$0xf]
  %v80 = vld [vmem:[%s0 + $0x1d4] sm:$0xff]
  %v81 = vld [vmem:[%s0 + $0x1dc] sm:$0xff]
  %v82 = vld [vmem:[%s0 + $0x1e4] sm:$0xff]
  %v83 = vld [vmem:[%s0 + $0x1ec] sm:$0xff]
  %v84 = vld [vmem:[%s0 + $0x1f4] sm:$0xf]
  %v85 = vld [vmem:[%s0 + $0x1f8] sm:$0xff]
  %v86 = vld [vmem:[%s0 + $0x200] sm:$0xff]
  %v87 = vld [vmem:[%s0 + $0x208] sm:$0xff]
  %v88 = vld [vmem:[%s0 + $0x210] sm:$0xff]
  %v89 = vld [vmem:[%s0 + $0x218] sm:$0xf]
  %v90 = vld [vmem:[%s0 + $0x21c] sm:$0xff]
  %v91 = vld [vmem:[%s0 + $0x224] sm:$0xff]
  %v92 = vld [vmem:[%s0 + $0x22c] sm:$0xff]
  %v93 = vld [vmem:[%s0 + $0x234] sm:$0xff]
  %v94 = vld [vmem:[%s0 + $0x23c] sm:$0xf]
  %v95 = vld [vmem:[%s1] sm:$0xf]
  %v96 = vld [vmem:[%s1 + $0x4] sm:$0xf]
  %v97 = vld [vmem:[%s1 + $0x8] sm:$0xf]
  %v98 = vld [vmem:[%s1 + $0xc] sm:$0xf]
  %v99 = vld [vmem:[%s1 + $0x10] sm:$0xf]
  %v100 = vld [vmem:[%s1 + $0x14] sm:$0xf]
  %v101 = vld [vmem:[%s1 + $0x18] sm:$0xf]
  %v102 = vld [vmem:[%s1 + $0x1c] sm:$0xf]
  %v103 = vld [vmem:[%s1 + $0x20] sm:$0xf]
  %v104 = vld [vmem:[%s1 + $0x24] sm:$0xf]
  %v105 = vld [vmem:[%s1 + $0x28] sm:$0xf]
  %v106 = vld [vmem:[%s1 + $0x2c] sm:$0xf]
  %v107 = vld [vmem:[%s1 + $0x30] sm:$0xf]
  %v108 = vld [vmem:[%s1 + $0x34] sm:$0xf]
  %v109 = vld [vmem:[%s1 + $0x38] sm:$0xf]
  %v110 = vld [vmem:[%s1 + $0x3c] sm:$0xf]
  %v111 = vld [vmem:[%s1 + $0x40] sm:$0xf]
  %v112 = vld [vmem:[%s1 + $0x44] sm:$0xf]
  %v113 = vld [vmem:[%s1 + $0x48] sm:$0xf]
  %v114 = vld [vmem:[%s1 + $0x4c] sm:$0xf]
  %v115 = vld [vmem:[%s1 + $0x50] sm:$0xf]
  %v116 = vld [vmem:[%s1 + $0x54] sm:$0xf]
  %v117 = vld [vmem:[%s1 + $0x58] sm:$0xf]
  %v118 = vld [vmem:[%s1 + $0x5c] sm:$0xf]
  %v119 = vld [vmem:[%s1 + $0x60] sm:$0xf]
  %v120 = vld [vmem:[%s1 + $0x64] sm:$0xf]
  %v121 = vld [vmem:[%s1 + $0x68] sm:$0xf]
  %v122 = vld [vmem:[%s1 + $0x6c] sm:$0xf]
  %v123 = vld [vmem:[%s1 + $0x70] sm:$0xf]
  %v124 = vld [vmem:[%s1 + $0x74] sm:$0xf]
  %v125 = vld [vmem:[%s1 + $0x78] sm:$0xf]
  %v126 = vld [vmem:[%s1 + $0x7c] sm:$0xf]
  %v127 = vld [vmem:[%s1 + $0x80] sm:$0xf]
  %v128 = vld [vmem:[%s1 + $0x84] sm:$0xf]
  %v129 = vld [vmem:[%s1 + $0x88] sm:$0xf]
  %v130 = vld [vmem:[%s1 + $0x8c] sm:$0xf]
  %v131 = vld [vmem:[%s1 + $0x90] sm:$0xf]
  %v132 = vld [vmem:[%s1 + $0x94] sm:$0xf]
  %v133 = vld [vmem:[%s1 + $0x98] sm:$0xf]
  %v134 = vld [vmem:[%s1 + $0x9c] sm:$0xf]
  %v135 = vld [vmem:[%s1 + $0xa0] sm:$0xf]
  %v136 = vld [vmem:[%s1 + $0xa4] sm:$0xf]
  %v137 = vld [vmem:[%s1 + $0xa8] sm:$0xf]
  %v138 = vld [vmem:[%s1 + $0xac] sm:$0xf]
  %v139 = vld [vmem:[%s1 + $0xb0] sm:$0xf]
  %v140 = vld [vmem:[%s1 + $0xb4] sm:$0xf]
  %v141 = vld [vmem:[%s1 + $0xb8] sm:$0xf]
  %v142 = vld [vmem:[%s1 + $0xbc] sm:$0xf]
  %v143 = vld [vmem:[%s1 + $0xc0] sm:$0xf]
  %v144 = vld [vmem:[%s1 + $0xc4] sm:$0xf]
  %v145 = vld [vmem:[%s1 + $0xc8] sm:$0xf]
  %v146 = vld [vmem:[%s1 + $0xcc] sm:$0xf]
  %v147 = vld [vmem:[%s1 + $0xd0] sm:$0xf]
  %v148 = vld [vmem:[%s1 + $0xd4] sm:$0xf]
  %v149 = vld [vmem:[%s1 + $0xd8] sm:$0xf]
  %v150 = vld [vmem:[%s1 + $0xdc] sm:$0xf]
  %v151 = vld [vmem:[%s1 + $0xe0] sm:$0xf]
  %v152 = vld [vmem:[%s1 + $0xe4] sm:$0xf]
  %v153 = vld [vmem:[%s1 + $0xe8] sm:$0xf]
  %v154 = vld [vmem:[%s1 + $0xec] sm:$0xf]
  %v155 = vld [vmem:[%s1 + $0xf0] sm:$0xf]
  %v156 = vld [vmem:[%s1 + $0xf4] sm:$0xf]
  %v157 = vld [vmem:[%s1 + $0xf8] sm:$0xf]
  %v158 = vld [vmem:[%s1 + $0xfc] sm:$0xf]
  %v159 = vld [vmem:[%s1 + $0x100] sm:$0xf]
  %v160 = vld [vmem:[%s1 + $0x104] sm:$0xf]
  %v161 = vld [vmem:[%s1 + $0x108] sm:$0xf]
  %v162 = vld [vmem:[%s1 + $0x10c] sm:$0xf]
  %v163 = vld [vmem:[%s1 + $0x110] sm:$0xf]
  %v164 = vld [vmem:[%s1 + $0x114] sm:$0xf]
  %v165 = vld [vmem:[%s1 + $0x118] sm:$0xf]
  %v166 = vld [vmem:[%s1 + $0x11c] sm:$0xf]
  %v167 = vld [vmem:[%s1 + $0x120] sm:$0xf]
  %v168 = vld [vmem:[%s1 + $0x124] sm:$0xf]
  %v169 = vld [vmem:[%s1 + $0x128] sm:$0xf]
  %v170 = vld [vmem:[%s1 + $0x12c] sm:$0xf]
  %v171 = vld [vmem:[%s1 + $0x130] sm:$0xf]
  %v172 = vld [vmem:[%s1 + $0x134] sm:$0xf]
  %v173 = vld [vmem:[%s1 + $0x138] sm:$0xf]
  %v174 = vld [vmem:[%s1 + $0x13c] sm:$0xf]
  %v175 = vld [vmem:[%s1 + $0x140] sm:$0xf]
  %v176 = vld [vmem:[%s1 + $0x144] sm:$0xf]
  %v177 = vld [vmem:[%s1 + $0x148] sm:$0xf]
  %v178 = vld [vmem:[%s1 + $0x14c] sm:$0xf]
  %v179 = vld [vmem:[%s1 + $0x150] sm:$0xf]
  %v180 = vld [vmem:[%s1 + $0x154] sm:$0xf]
  %v181 = vld [vmem:[%s1 + $0x158] sm:$0xf]
  %v182 = vld [vmem:[%s1 + $0x15c] sm:$0xf]
  %v183 = vld [vmem:[%s1 + $0x160] sm:$0xf]
  %v184 = vld [vmem:[%s1 + $0x164] sm:$0xf]
  %v185 = vld [vmem:[%s1 + $0x168] sm:$0xf]
  %v186 = vld [vmem:[%s1 + $0x16c] sm:$0xf]
  %v187 = vld [vmem:[%s1 + $0x170] sm:$0xf]
  %v188 = vld [vmem:[%s1 + $0x174] sm:$0xf]
  %v189 = vld [vmem:[%s1 + $0x178] sm:$0xf]
  %v190 = vld [vmem:[%s1 + $0x17c] sm:$0xf]
  %v191 = vld [vmem:[%s1 + $0x180] sm:$0xf]
  %v192 = vld [vmem:[%s1 + $0x184] sm:$0xf]
  %v193 = vld [vmem:[%s1 + $0x188] sm:$0xf]
  %v194 = vld [vmem:[%s1 + $0x18c] sm:$0xf]
  %v195 = vld [vmem:[%s1 + $0x190] sm:$0xf]
  %v196 = vld [vmem:[%s1 + $0x194] sm:$0xf]
  %v197 = vld [vmem:[%s1 + $0x198] sm:$0xf]
  %v198 = vld [vmem:[%s1 + $0x19c] sm:$0xf]
  %v199 = vld [vmem:[%s1 + $0x1a0] sm:$0xf]
  %v200 = vld [vmem:[%s1 + $0x1a4] sm:$0xf]
  %v201 = vld [vmem:[%s1 + $0x1a8] sm:$0xf]
  %v202 = vld [vmem:[%s1 + $0x1ac] sm:$0xf]
  %v203 = vld [vmem:[%s1 + $0x1b0] sm:$0xf]
  %v204 = vld [vmem:[%s1 + $0x1b4] sm:$0xf]
  %v205 = vld [vmem:[%s1 + $0x1b8] sm:$0xf]
  %v206 = vld [vmem:[%s1 + $0x1bc] sm:$0xf]
  %v207 = vld [vmem:[%s1 + $0x1c0] sm:$0xf]
  %v208 = vld [vmem:[%s1 + $0x1c4] sm:$0xf]
  %v209 = vld [vmem:[%s1 + $0x1c8] sm:$0xf]
  %v210 = vld [vmem:[%s1 + $0x1cc] sm:$0xf]
  %v211 = vld [vmem:[%s1 + $0x1d0] sm:$0xf]
  %v212 = vld [vmem:[%s1 + $0x1d4] sm:$0xf]
  %v213 = vld [vmem:[%s1 + $0x1d8] sm:$0xf]
  %v214 = vld [vmem:[%s1 + $0x1dc] sm:$0xf]
  %v215 = vld [vmem:[%s1 + $0x1e0] sm:$0xf]
  %v216 = vld [vmem:[%s1 + $0x1e4] sm:$0xf]
  %v217 = vld [vmem:[%s1 + $0x1e8] sm:$0xf]
  %v218 = vld [vmem:[%s1 + $0x1ec] sm:$0xf]
  %v219 = vld [vmem:[%s1 + $0x1f0] sm:$0xf]
  %v220 = vld [vmem:[%s1 + $0x1f4] sm:$0xf]
  %v221 = vld [vmem:[%s1 + $0x1f8] sm:$0xf]
  %v222 = vld [vmem:[%s1 + $0x1fc] sm:$0xf]
  %v223 = vld [vmem:[%s1 + $0x200] sm:$0xf]
  %v224 = vld [vmem:[%s1 + $0x204] sm:$0xf]
  %v225 = vld [vmem:[%s1 + $0x208] sm:$0xf]
  %v226 = vld [vmem:[%s1 + $0x20c] sm:$0xf]
  %v227 = vld [vmem:[%s1 + $0x210] sm:$0xf]
  %v228 = vld [vmem:[%s1 + $0x214] sm:$0xf]
  %v229 = vld [vmem:[%s1 + $0x218] sm:$0xf]
  %v230 = vld [vmem:[%s1 + $0x21c] sm:$0xf]
  %v231 = vld [vmem:[%s1 + $0x220] sm:$0xf]
  %v232 = vld [vmem:[%s1 + $0x224] sm:$0xf]
  %v233 = vld [vmem:[%s1 + $0x228] sm:$0xf]
  %v234 = vld [vmem:[%s1 + $0x22c] sm:$0xf]
  %v235 = vld [vmem:[%s1 + $0x230] sm:$0xf]
  %v236 = vld [vmem:[%s1 + $0x234] sm:$0xf]
  %v237 = vld [vmem:[%s1 + $0x238] sm:$0xf]
  %v238 = vld [vmem:[%s1 + $0x23c] sm:$0xf]
  %v239 = vld [vmem:[%s2] sm:$0x1]
  %v241 = vlaneseq
  %v242 = vshrl.u32 %v241, 7
  %v243 = vsub.s32 0, %v242
  %v244 = vrot.slane %v239, %v243
  %v326 = vunpack.c.l.b16 %v15
  %v327 = vunpack.c.h.b16 %v15
  %v328 = vunpack.c.l.b16 %v16
  %v329 = vunpack.c.h.b16 %v16
  %v330 = vunpack.c.l.b16 %v17
  %v331 = vunpack.c.h.b16 %v17
  %v332 = vunpack.c.l.b16 %v18
  %v333 = vunpack.c.h.b16 %v18
  %v334 = vunpack.c.l.b16 %v19
  %v335 = vunpack.c.l.b16 %v20
  %v336 = vunpack.c.h.b16 %v20
  %v337 = vunpack.c.l.b16 %v21
  %v338 = vunpack.c.h.b16 %v21
  %v339 = vunpack.c.l.b16 %v22
  %v340 = vunpack.c.h.b16 %v22
  %v341 = vunpack.c.l.b16 %v23
  %v342 = vunpack.c.h.b16 %v23
  %v343 = vunpack.c.l.b16 %v24
  %v344 = vunpack.c.l.b16 %v25
  %v345 = vunpack.c.h.b16 %v25
  %v346 = vunpack.c.l.b16 %v26
  %v347 = vunpack.c.h.b16 %v26
  %v348 = vunpack.c.l.b16 %v27
  %v349 = vunpack.c.h.b16 %v27
  %v350 = vunpack.c.l.b16 %v28
  %v351 = vunpack.c.h.b16 %v28
  %v352 = vunpack.c.l.b16 %v29
  %v353 = vunpack.c.l.b16 %v30
  %v354 = vunpack.c.h.b16 %v30
  %v355 = vunpack.c.l.b16 %v31
  %v356 = vunpack.c.h.b16 %v31
  %v357 = vunpack.c.l.b16 %v32
  %v358 = vunpack.c.h.b16 %v32
  %v359 = vunpack.c.l.b16 %v33
  %v360 = vunpack.c.h.b16 %v33
  %v361 = vunpack.c.l.b16 %v34
  %v362 = vunpack.c.l.b16 %v35
  %v363 = vunpack.c.h.b16 %v35
  %v364 = vunpack.c.l.b16 %v36
  %v365 = vunpack.c.h.b16 %v36
  %v366 = vunpack.c.l.b16 %v37
  %v367 = vunpack.c.h.b16 %v37
  %v368 = vunpack.c.l.b16 %v38
  %v369 = vunpack.c.h.b16 %v38
  %v370 = vunpack.c.l.b16 %v39
  %v371 = vunpack.c.l.b16 %v40
  %v372 = vunpack.c.h.b16 %v40
  %v373 = vunpack.c.l.b16 %v41
  %v374 = vunpack.c.h.b16 %v41
  %v375 = vunpack.c.l.b16 %v42
  %v376 = vunpack.c.h.b16 %v42
  %v377 = vunpack.c.l.b16 %v43
  %v378 = vunpack.c.h.b16 %v43
  %v379 = vunpack.c.l.b16 %v44
  %v380 = vunpack.c.l.b16 %v45
  %v381 = vunpack.c.h.b16 %v45
  %v382 = vunpack.c.l.b16 %v46
  %v383 = vunpack.c.h.b16 %v46
  %v384 = vunpack.c.l.b16 %v47
  %v385 = vunpack.c.h.b16 %v47
  %v386 = vunpack.c.l.b16 %v48
  %v387 = vunpack.c.h.b16 %v48
  %v388 = vunpack.c.l.b16 %v49
  %v389 = vunpack.c.l.b16 %v50
  %v390 = vunpack.c.h.b16 %v50
  %v391 = vunpack.c.l.b16 %v51
  %v392 = vunpack.c.h.b16 %v51
  %v393 = vunpack.c.l.b16 %v52
  %v394 = vunpack.c.h.b16 %v52
  %v395 = vunpack.c.l.b16 %v53
  %v396 = vunpack.c.h.b16 %v53
  %v397 = vunpack.c.l.b16 %v54
  %v398 = vunpack.c.l.b16 %v55
  %v399 = vunpack.c.h.b16 %v55
  %v400 = vunpack.c.l.b16 %v56
  %v401 = vunpack.c.h.b16 %v56
  %v402 = vunpack.c.l.b16 %v57
  %v403 = vunpack.c.h.b16 %v57
  %v404 = vunpack.c.l.b16 %v58
  %v405 = vunpack.c.h.b16 %v58
  %v406 = vunpack.c.l.b16 %v59
  %v407 = vunpack.c.l.b16 %v60
  %v408 = vunpack.c.h.b16 %v60
  %v409 = vunpack.c.l.b16 %v61
  %v410 = vunpack.c.h.b16 %v61
  %v411 = vunpack.c.l.b16 %v62
  %v412 = vunpack.c.h.b16 %v62
  %v413 = vunpack.c.l.b16 %v63
  %v414 = vunpack.c.h.b16 %v63
  %v415 = vunpack.c.l.b16 %v64
  %v416 = vunpack.c.l.b16 %v65
  %v417 = vunpack.c.h.b16 %v65
  %v418 = vunpack.c.l.b16 %v66
  %v419 = vunpack.c.h.b16 %v66
  %v420 = vunpack.c.l.b16 %v67
  %v421 = vunpack.c.h.b16 %v67
  %v422 = vunpack.c.l.b16 %v68
  %v423 = vunpack.c.h.b16 %v68
  %v424 = vunpack.c.l.b16 %v69
  %v425 = vunpack.c.l.b16 %v70
  %v426 = vunpack.c.h.b16 %v70
  %v427 = vunpack.c.l.b16 %v71
  %v428 = vunpack.c.h.b16 %v71
  %v429 = vunpack.c.l.b16 %v72
  %v430 = vunpack.c.h.b16 %v72
  %v431 = vunpack.c.l.b16 %v73
  %v432 = vunpack.c.h.b16 %v73
  %v433 = vunpack.c.l.b16 %v74
  %v434 = vunpack.c.l.b16 %v75
  %v435 = vunpack.c.h.b16 %v75
  %v436 = vunpack.c.l.b16 %v76
  %v437 = vunpack.c.h.b16 %v76
  %v438 = vunpack.c.l.b16 %v77
  %v439 = vunpack.c.h.b16 %v77
  %v440 = vunpack.c.l.b16 %v78
  %v441 = vunpack.c.h.b16 %v78
  %v442 = vunpack.c.l.b16 %v79
  %v443 = vunpack.c.l.b16 %v80
  %v444 = vunpack.c.h.b16 %v80
  %v445 = vunpack.c.l.b16 %v81
  %v446 = vunpack.c.h.b16 %v81
  %v447 = vunpack.c.l.b16 %v82
  %v448 = vunpack.c.h.b16 %v82
  %v449 = vunpack.c.l.b16 %v83
  %v450 = vunpack.c.h.b16 %v83
  %v451 = vunpack.c.l.b16 %v84
  %v452 = vunpack.c.l.b16 %v85
  %v453 = vunpack.c.h.b16 %v85
  %v454 = vunpack.c.l.b16 %v86
  %v455 = vunpack.c.h.b16 %v86
  %v456 = vunpack.c.l.b16 %v87
  %v457 = vunpack.c.h.b16 %v87
  %v458 = vunpack.c.l.b16 %v88
  %v459 = vunpack.c.h.b16 %v88
  %v460 = vunpack.c.l.b16 %v89
  %v461 = vunpack.c.l.b16 %v90
  %v462 = vunpack.c.h.b16 %v90
  %v463 = vunpack.c.l.b16 %v91
  %v464 = vunpack.c.h.b16 %v91
  %v465 = vunpack.c.l.b16 %v92
  %v466 = vunpack.c.h.b16 %v92
  %v467 = vunpack.c.l.b16 %v93
  %v468 = vunpack.c.h.b16 %v93
  %v469 = vunpack.c.l.b16 %v94
  %v470 = vpack.c.b16 %v335, %v326
  %v471 = vpack.c.b16 %v336, %v327
  %v472 = vpack.c.b16 %v337, %v328
  %v473 = vpack.c.b16 %v338, %v329
  %v474 = vpack.c.b16 %v339, %v330
  %v475 = vpack.c.b16 %v340, %v331
  %v476 = vpack.c.b16 %v341, %v332
  %v477 = vpack.c.b16 %v342, %v333
  %v478 = vpack.c.b16 %v343, %v334
  %v479 = vpack.c.b16 %v353, %v344
  %v480 = vpack.c.b16 %v354, %v345
  %v481 = vpack.c.b16 %v355, %v346
  %v482 = vpack.c.b16 %v356, %v347
  %v483 = vpack.c.b16 %v357, %v348
  %v484 = vpack.c.b16 %v358, %v349
  %v485 = vpack.c.b16 %v359, %v350
  %v486 = vpack.c.b16 %v360, %v351
  %v487 = vpack.c.b16 %v361, %v352
  %v488 = vpack.c.b16 %v371, %v362
  %v489 = vpack.c.b16 %v372, %v363
  %v490 = vpack.c.b16 %v373, %v364
  %v491 = vpack.c.b16 %v374, %v365
  %v492 = vpack.c.b16 %v375, %v366
  %v493 = vpack.c.b16 %v376, %v367
  %v494 = vpack.c.b16 %v377, %v368
  %v495 = vpack.c.b16 %v378, %v369
  %v496 = vpack.c.b16 %v379, %v370
  %v497 = vpack.c.b16 %v389, %v380
  %v498 = vpack.c.b16 %v390, %v381
  %v499 = vpack.c.b16 %v391, %v382
  %v500 = vpack.c.b16 %v392, %v383
  %v501 = vpack.c.b16 %v393, %v384
  %v502 = vpack.c.b16 %v394, %v385
  %v503 = vpack.c.b16 %v395, %v386
  %v504 = vpack.c.b16 %v396, %v387
  %v505 = vpack.c.b16 %v397, %v388
  %v506 = vpack.c.b16 %v407, %v398
  %v507 = vpack.c.b16 %v408, %v399
  %v508 = vpack.c.b16 %v409, %v400
  %v509 = vpack.c.b16 %v410, %v401
  %v510 = vpack.c.b16 %v411, %v402
  %v511 = vpack.c.b16 %v412, %v403
  %v512 = vpack.c.b16 %v413, %v404
  %v513 = vpack.c.b16 %v414, %v405
  %v514 = vpack.c.b16 %v415, %v406
  %v515 = vpack.c.b16 %v425, %v416
  %v516 = vpack.c.b16 %v426, %v417
  %v517 = vpack.c.b16 %v427, %v418
  %v518 = vpack.c.b16 %v428, %v419
  %v519 = vpack.c.b16 %v429, %v420
  %v520 = vpack.c.b16 %v430, %v421
  %v521 = vpack.c.b16 %v431, %v422
  %v522 = vpack.c.b16 %v432, %v423
  %v523 = vpack.c.b16 %v433, %v424
  %v524 = vpack.c.b16 %v443, %v434
  %v525 = vpack.c.b16 %v444, %v435
  %v526 = vpack.c.b16 %v445, %v436
  %v527 = vpack.c.b16 %v446, %v437
  %v528 = vpack.c.b16 %v447, %v438
  %v529 = vpack.c.b16 %v448, %v439
  %v530 = vpack.c.b16 %v449, %v440
  %v531 = vpack.c.b16 %v450, %v441
  %v532 = vpack.c.b16 %v451, %v442
  %v533 = vpack.c.b16 %v461, %v452
  %v534 = vpack.c.b16 %v462, %v453
  %v535 = vpack.c.b16 %v463, %v454
  %v536 = vpack.c.b16 %v464, %v455
  %v537 = vpack.c.b16 %v465, %v456
  %v538 = vpack.c.b16 %v466, %v457
  %v539 = vpack.c.b16 %v467, %v458
  %v540 = vpack.c.b16 %v468, %v459
  %v541 = vpack.c.b16 %v469, %v460
  %v758 = vunpack.c.l.b16 %v95
  %v759 = vunpack.c.l.b16 %v96
  %v760 = vunpack.c.l.b16 %v97
  %v761 = vunpack.c.l.b16 %v98
  %v762 = vunpack.c.l.b16 %v99
  %v763 = vunpack.c.l.b16 %v100
  %v764 = vunpack.c.l.b16 %v101
  %v765 = vunpack.c.l.b16 %v102
  %v766 = vunpack.c.l.b16 %v103
  %v767 = vunpack.c.l.b16 %v104
  %v768 = vunpack.c.l.b16 %v105
  %v769 = vunpack.c.l.b16 %v106
  %v770 = vunpack.c.l.b16 %v107
  %v771 = vunpack.c.l.b16 %v108
  %v772 = vunpack.c.l.b16 %v109
  %v773 = vunpack.c.l.b16 %v110
  %v774 = vunpack.c.l.b16 %v111
  %v775 = vunpack.c.l.b16 %v112
  %v776 = vunpack.c.l.b16 %v113
  %v777 = vunpack.c.l.b16 %v114
  %v778 = vunpack.c.l.b16 %v115
  %v779 = vunpack.c.l.b16 %v116
  %v780 = vunpack.c.l.b16 %v117
  %v781 = vunpack.c.l.b16 %v118
  %v782 = vunpack.c.l.b16 %v119
  %v783 = vunpack.c.l.b16 %v120
  %v784 = vunpack.c.l.b16 %v121
  %v785 = vunpack.c.l.b16 %v122
  %v786 = vunpack.c.l.b16 %v123
  %v787 = vunpack.c.l.b16 %v124
  %v788 = vunpack.c.l.b16 %v125
  %v789 = vunpack.c.l.b16 %v126
  %v790 = vunpack.c.l.b16 %v127
  %v791 = vunpack.c.l.b16 %v128
  %v792 = vunpack.c.l.b16 %v129
  %v793 = vunpack.c.l.b16 %v130
  %v794 = vunpack.c.l.b16 %v131
  %v795 = vunpack.c.l.b16 %v132
  %v796 = vunpack.c.l.b16 %v133
  %v797 = vunpack.c.l.b16 %v134
  %v798 = vunpack.c.l.b16 %v135
  %v799 = vunpack.c.l.b16 %v136
  %v800 = vunpack.c.l.b16 %v137
  %v801 = vunpack.c.l.b16 %v138
  %v802 = vunpack.c.l.b16 %v139
  %v803 = vunpack.c.l.b16 %v140
  %v804 = vunpack.c.l.b16 %v141
  %v805 = vunpack.c.l.b16 %v142
  %v806 = vunpack.c.l.b16 %v143
  %v807 = vunpack.c.l.b16 %v144
  %v808 = vunpack.c.l.b16 %v145
  %v809 = vunpack.c.l.b16 %v146
  %v810 = vunpack.c.l.b16 %v147
  %v811 = vunpack.c.l.b16 %v148
  %v812 = vunpack.c.l.b16 %v149
  %v813 = vunpack.c.l.b16 %v150
  %v814 = vunpack.c.l.b16 %v151
  %v815 = vunpack.c.l.b16 %v152
  %v816 = vunpack.c.l.b16 %v153
  %v817 = vunpack.c.l.b16 %v154
  %v818 = vunpack.c.l.b16 %v155
  %v819 = vunpack.c.l.b16 %v156
  %v820 = vunpack.c.l.b16 %v157
  %v821 = vunpack.c.l.b16 %v158
  %v822 = vunpack.c.l.b16 %v159
  %v823 = vunpack.c.l.b16 %v160
  %v824 = vunpack.c.l.b16 %v161
  %v825 = vunpack.c.l.b16 %v162
  %v826 = vunpack.c.l.b16 %v163
  %v827 = vunpack.c.l.b16 %v164
  %v828 = vunpack.c.l.b16 %v165
  %v829 = vunpack.c.l.b16 %v166
  %v830 = vunpack.c.l.b16 %v167
  %v831 = vunpack.c.l.b16 %v168
  %v832 = vunpack.c.l.b16 %v169
  %v833 = vunpack.c.l.b16 %v170
  %v834 = vunpack.c.l.b16 %v171
  %v835 = vunpack.c.l.b16 %v172
  %v836 = vunpack.c.l.b16 %v173
  %v837 = vunpack.c.l.b16 %v174
  %v838 = vunpack.c.l.b16 %v175
  %v839 = vunpack.c.l.b16 %v176
  %v840 = vunpack.c.l.b16 %v177
  %v841 = vunpack.c.l.b16 %v178
  %v842 = vunpack.c.l.b16 %v179
  %v843 = vunpack.c.l.b16 %v180
  %v844 = vunpack.c.l.b16 %v181
  %v845 = vunpack.c.l.b16 %v182
  %v846 = vunpack.c.l.b16 %v183
  %v847 = vunpack.c.l.b16 %v184
  %v848 = vunpack.c.l.b16 %v185
  %v849 = vunpack.c.l.b16 %v186
  %v850 = vunpack.c.l.b16 %v187
  %v851 = vunpack.c.l.b16 %v188
  %v852 = vunpack.c.l.b16 %v189
  %v853 = vunpack.c.l.b16 %v190
  %v854 = vunpack.c.l.b16 %v191
  %v855 = vunpack.c.l.b16 %v192
  %v856 = vunpack.c.l.b16 %v193
  %v857 = vunpack.c.l.b16 %v194
  %v858 = vunpack.c.l.b16 %v195
  %v859 = vunpack.c.l.b16 %v196
  %v860 = vunpack.c.l.b16 %v197
  %v861 = vunpack.c.l.b16 %v198
  %v862 = vunpack.c.l.b16 %v199
  %v863 = vunpack.c.l.b16 %v200
  %v864 = vunpack.c.l.b16 %v201
  %v865 = vunpack.c.l.b16 %v202
  %v866 = vunpack.c.l.b16 %v203
  %v867 = vunpack.c.l.b16 %v204
  %v868 = vunpack.c.l.b16 %v205
  %v869 = vunpack.c.l.b16 %v206
  %v870 = vunpack.c.l.b16 %v207
  %v871 = vunpack.c.l.b16 %v208
  %v872 = vunpack.c.l.b16 %v209
  %v873 = vunpack.c.l.b16 %v210
  %v874 = vunpack.c.l.b16 %v211
  %v875 = vunpack.c.l.b16 %v212
  %v876 = vunpack.c.l.b16 %v213
  %v877 = vunpack.c.l.b16 %v214
  %v878 = vunpack.c.l.b16 %v215
  %v879 = vunpack.c.l.b16 %v216
  %v880 = vunpack.c.l.b16 %v217
  %v881 = vunpack.c.l.b16 %v218
  %v882 = vunpack.c.l.b16 %v219
  %v883 = vunpack.c.l.b16 %v220
  %v884 = vunpack.c.l.b16 %v221
  %v885 = vunpack.c.l.b16 %v222
  %v886 = vunpack.c.l.b16 %v223
  %v887 = vunpack.c.l.b16 %v224
  %v888 = vunpack.c.l.b16 %v225
  %v889 = vunpack.c.l.b16 %v226
  %v890 = vunpack.c.l.b16 %v227
  %v891 = vunpack.c.l.b16 %v228
  %v892 = vunpack.c.l.b16 %v229
  %v893 = vunpack.c.l.b16 %v230
  %v894 = vunpack.c.l.b16 %v231
  %v895 = vunpack.c.l.b16 %v232
  %v896 = vunpack.c.l.b16 %v233
  %v897 = vunpack.c.l.b16 %v234
  %v898 = vunpack.c.l.b16 %v235
  %v899 = vunpack.c.l.b16 %v236
  %v900 = vunpack.c.l.b16 %v237
  %v901 = vunpack.c.l.b16 %v238
  %v902 = vpack.c.b16 %v759, %v758
  %v903 = vpack.c.b16 %v761, %v760
  %v904 = vpack.c.b16 %v763, %v762
  %v905 = vpack.c.b16 %v765, %v764
  %v906 = vpack.c.b16 %v767, %v766
  %v907 = vpack.c.b16 %v769, %v768
  %v908 = vpack.c.b16 %v771, %v770
  %v909 = vpack.c.b16 %v773, %v772
  %v910 = vpack.c.b16 %v775, %v774
  %v911 = vpack.c.b16 %v777, %v776
  %v912 = vpack.c.b16 %v779, %v778
  %v913 = vpack.c.b16 %v781, %v780
  %v914 = vpack.c.b16 %v783, %v782
  %v915 = vpack.c.b16 %v785, %v784
  %v916 = vpack.c.b16 %v787, %v786
  %v917 = vpack.c.b16 %v789, %v788
  %v918 = vpack.c.b16 %v791, %v790
  %v919 = vpack.c.b16 %v793, %v792
  %v920 = vpack.c.b16 %v795, %v794
  %v921 = vpack.c.b16 %v797, %v796
  %v922 = vpack.c.b16 %v799, %v798
  %v923 = vpack.c.b16 %v801, %v800
  %v924 = vpack.c.b16 %v803, %v802
  %v925 = vpack.c.b16 %v805, %v804
  %v926 = vpack.c.b16 %v807, %v806
  %v927 = vpack.c.b16 %v809, %v808
  %v928 = vpack.c.b16 %v811, %v810
  %v929 = vpack.c.b16 %v813, %v812
  %v930 = vpack.c.b16 %v815, %v814
  %v931 = vpack.c.b16 %v817, %v816
  %v932 = vpack.c.b16 %v819, %v818
  %v933 = vpack.c.b16 %v821, %v820
  %v934 = vpack.c.b16 %v823, %v822
  %v935 = vpack.c.b16 %v825, %v824
  %v936 = vpack.c.b16 %v827, %v826
  %v937 = vpack.c.b16 %v829, %v828
  %v938 = vpack.c.b16 %v831, %v830
  %v939 = vpack.c.b16 %v833, %v832
  %v940 = vpack.c.b16 %v835, %v834
  %v941 = vpack.c.b16 %v837, %v836
  %v942 = vpack.c.b16 %v839, %v838
  %v943 = vpack.c.b16 %v841, %v840
  %v944 = vpack.c.b16 %v843, %v842
  %v945 = vpack.c.b16 %v845, %v844
  %v946 = vpack.c.b16 %v847, %v846
  %v947 = vpack.c.b16 %v849, %v848
  %v948 = vpack.c.b16 %v851, %v850
  %v949 = vpack.c.b16 %v853, %v852
  %v950 = vpack.c.b16 %v855, %v854
  %v951 = vpack.c.b16 %v857, %v856
  %v952 = vpack.c.b16 %v859, %v858
  %v953 = vpack.c.b16 %v861, %v860
  %v954 = vpack.c.b16 %v863, %v862
  %v955 = vpack.c.b16 %v865, %v864
  %v956 = vpack.c.b16 %v867, %v866
  %v957 = vpack.c.b16 %v869, %v868
  %v958 = vpack.c.b16 %v871, %v870
  %v959 = vpack.c.b16 %v873, %v872
  %v960 = vpack.c.b16 %v875, %v874
  %v961 = vpack.c.b16 %v877, %v876
  %v962 = vpack.c.b16 %v879, %v878
  %v963 = vpack.c.b16 %v881, %v880
  %v964 = vpack.c.b16 %v883, %v882
  %v965 = vpack.c.b16 %v885, %v884
  %v966 = vpack.c.b16 %v887, %v886
  %v967 = vpack.c.b16 %v889, %v888
  %v968 = vpack.c.b16 %v891, %v890
  %v969 = vpack.c.b16 %v893, %v892
  %v970 = vpack.c.b16 %v895, %v894
  %v971 = vpack.c.b16 %v897, %v896
  %v972 = vpack.c.b16 %v899, %v898
  %v973 = vpack.c.b16 %v901, %v900
  %1046 = vmatprep.subr.bf16.mxu0 0
  %1047 = vmatpush1.bf16.msra.mxu0 %v902
  %1048 = vmatprep.subr.bf16.mxu0 0
  %1049 = vmatpush1.bf16.msra.mxu0 %v903
  %1050 = vmatprep.subr.bf16.mxu0 0
  %1051 = vmatpush1.bf16.msra.mxu0 %v904
  %1052 = vmatprep.subr.bf16.mxu0 0
  %1053 = vmatpush1.bf16.msra.mxu0 %v905
  %1054 = vmatprep.subr.bf16.mxu0 0
  %1055 = vmatpush1.bf16.msra.mxu0 %v906
  %1056 = vmatprep.subr.bf16.mxu0 0
  %1057 = vmatpush1.bf16.msra.mxu0 %v907
  %1058 = vmatprep.subr.bf16.mxu0 0
  %1059 = vmatpush1.bf16.msra.mxu0 %v908
  %1060 = vmatprep.subr.bf16.mxu0 0
  %1061 = vmatpush1.bf16.msra.mxu0 %v909
  %1062 = vmatprep.subr.bf16.mxu0 0
  %1063 = vmatpush1.bf16.msra.mxu0 %v910
  %1064 = vmatprep.subr.bf16.mxu0 0
  %1065 = vmatpush1.bf16.msra.mxu0 %v911
  %1066 = vmatprep.subr.bf16.mxu0 0
  %1067 = vmatpush1.bf16.msra.mxu0 %v912
  %1068 = vmatprep.subr.bf16.mxu0 0
  %1069 = vmatpush1.bf16.msra.mxu0 %v913
  %1070 = vmatprep.subr.bf16.mxu0 0
  %1071 = vmatpush1.bf16.msra.mxu0 %v914
  %1072 = vmatprep.subr.bf16.mxu0 0
  %1073 = vmatpush1.bf16.msra.mxu0 %v915
  %1074 = vmatprep.subr.bf16.mxu0 0
  %1075 = vmatpush1.bf16.msra.mxu0 %v916
  %1076 = vmatprep.subr.bf16.mxu0 0
  %1077 = vmatpush1.bf16.msra.mxu0 %v917
  %1078 = vmatprep.mubr.bf16.mxu0 %v471
  %1079 = vmatmul.mubr.bf16.gmra.mrb[0].mxu0 %v470
  %v1080 = vpop.f32.mrb[0].mxu0
  %v1081 = vadd.f32 %v244, %v1080
  %v1082 = vpop.f32.mrb[0].mxu0
  %v1083 = vpop.f32.mrb[0].mxu0
  %v1084 = vadd.f32 %v244, %v1083
  %v1085 = vpop.f32.mrb[0].mxu0
  %1086 = vmatprep.mubr.bf16.mxu0 %v480
  %1087 = vmatmul.mubr.bf16.gmra.mrb[0].mxu0 %v479
  %v1088 = vpop.f32.mrb[0].mxu0
  %v1089 = vadd.f32 %v244, %v1088
  %v1090 = vpop.f32.mrb[0].mxu0
  %v1091 = vpop.f32.mrb[0].mxu0
  %v1092 = vadd.f32 %v244, %v1091
  %v1093 = vpop.f32.mrb[0].mxu0
  %1094 = vmatprep.mubr.bf16.mxu0 %v489
  %1095 = vmatmul.mubr.bf16.gmra.mrb[0].mxu0 %v488
  %v1096 = vpop.f32.mrb[0].mxu0
  %v1097 = vadd.f32 %v244, %v1096
  %v1098 = vpop.f32.mrb[0].mxu0
  %v1099 = vpop.f32.mrb[0].mxu0
  %v1100 = vadd.f32 %v244, %v1099
  %v1101 = vpop.f32.mrb[0].mxu0
  %1102 = vmatprep.mubr.bf16.mxu0 %v498
  %1103 = vmatmul.mubr.bf16.gmra.mrb[0].mxu0 %v497
  %v1104 = vpop.f32.mrb[0].mxu0
  %v1105 = vadd.f32 %v244, %v1104
  %v1106 = vpop.f32.mrb[0].mxu0
  %v1107 = vpop.f32.mrb[0].mxu0
  %v1108 = vadd.f32 %v244, %v1107
  %v1109 = vpop.f32.mrb[0].mxu0
  %1110 = vmatprep.mubr.bf16.mxu0 %v507
  %1111 = vmatmul.mubr.bf16.gmra.mrb[0].mxu0 %v506
  %v1112 = vpop.f32.mrb[0].mxu0
  %v1113 = vadd.f32 %v244, %v1112
  %v1114 = vpop.f32.mrb[0].mxu0
  %v1115 = vpop.f32.mrb[0].mxu0
  %v1116 = vadd.f32 %v244, %v1115
  %v1117 = vpop.f32.mrb[0].mxu0
  %1118 = vmatprep.mubr.bf16.mxu0 %v516
  %1119 = vmatmul.mubr.bf16.gmra.mrb[0].mxu0 %v515
  %v1120 = vpop.f32.mrb[0].mxu0
  %v1121 = vadd.f32 %v244, %v1120
  %v1122 = vpop.f32.mrb[0].mxu0
  %v1123 = vpop.f32.mrb[0].mxu0
  %v1124 = vadd.f32 %v244, %v1123
  %v1125 = vpop.f32.mrb[0].mxu0
  %1126 = vmatprep.mubr.bf16.mxu0 %v525
  %1127 = vmatmul.mubr.bf16.gmra.mrb[0].mxu0 %v524
  %v1128 = vpop.f32.mrb[0].mxu0
  %v1129 = vadd.f32 %v244, %v1128
  %v1130 = vpop.f32.mrb[0].mxu0
  %v1131 = vpop.f32.mrb[0].mxu0
  %v1132 = vadd.f32 %v244, %v1131
  %v1133 = vpop.f32.mrb[0].mxu0
  %1134 = vmatprep.mubr.bf16.mxu0 %v534
  %1135 = vmatmul.mubr.bf16.gmra.mrb[0].mxu0 %v533
  %v1136 = vpop.f32.mrb[0].mxu0
  %v1137 = vadd.f32 %v244, %v1136
  %v1138 = vpop.f32.mrb[0].mxu0
  %v1139 = vpop.f32.mrb[0].mxu0
  %v1140 = vadd.f32 %v244, %v1139
  %v1141 = vpop.f32.mrb[0].mxu0
  %1142 = vdwg.mxu0
  %1143 = vmatprep.subr.bf16.mxu0 0
  %1144 = vmatpush1.bf16.msra.mxu0 %v918
  %1145 = vmatprep.subr.bf16.mxu0 0
  %1146 = vmatpush1.bf16.msra.mxu0 %v919
  %1147 = vmatprep.subr.bf16.mxu0 0
  %1148 = vmatpush1.bf16.msra.mxu0 %v920
  %1149 = vmatprep.subr.bf16.mxu0 0
  %1150 = vmatpush1.bf16.msra.mxu0 %v921
  %1151 = vmatprep.subr.bf16.mxu0 0
  %1152 = vmatpush1.bf16.msra.mxu0 %v922
  %1153 = vmatprep.subr.bf16.mxu0 0
  %1154 = vmatpush1.bf16.msra.mxu0 %v923
  %1155 = vmatprep.subr.bf16.mxu0 0
  %1156 = vmatpush1.bf16.msra.mxu0 %v924
  %1157 = vmatprep.subr.bf16.mxu0 0
  %1158 = vmatpush1.bf16.msra.mxu0 %v925
  %1159 = vmatprep.subr.bf16.mxu0 0
  %1160 = vmatpush1.bf16.msra.mxu0 %v926
  %1161 = vmatprep.subr.bf16.mxu0 0
  %1162 = vmatpush1.bf16.msra.mxu0 %v927
  %1163 = vmatprep.subr.bf16.mxu0 0
  %1164 = vmatpush1.bf16.msra.mxu0 %v928
  %1165 = vmatprep.subr.bf16.mxu0 0
  %1166 = vmatpush1.bf16.msra.mxu0 %v929
  %1167 = vmatprep.subr.bf16.mxu0 0
  %1168 = vmatpush1.bf16.msra.mxu0 %v930
  %1169 = vmatprep.subr.bf16.mxu0 0
  %1170 = vmatpush1.bf16.msra.mxu0 %v931
  %1171 = vmatprep.subr.bf16.mxu0 0
  %1172 = vmatpush1.bf16.msra.mxu0 %v932
  %1173 = vmatprep.subr.bf16.mxu0 0
  %1174 = vmatpush1.bf16.msra.mxu0 %v933
  %1175 = vmatprep.mubr.bf16.mxu0 %v473
  %1176 = vmatmul.mubr.bf16.gmra.mrb[0].mxu0 %v472
  %v1177 = vpop.f32.mrb[0].mxu0
  %v1178 = vadd.f32 %v1081, %v1177
  %v1179 = vpop.f32.mrb[0].mxu0
  %v1180 = vpop.f32.mrb[0].mxu0
  %v1181 = vadd.f32 %v1084, %v1180
  %v1182 = vpop.f32.mrb[0].mxu0
  %1183 = vmatprep.mubr.bf16.mxu0 %v482
  %1184 = vmatmul.mubr.bf16.gmra.mrb[0].mxu0 %v481
  %v1185 = vpop.f32.mrb[0].mxu0
  %v1186 = vadd.f32 %v1089, %v1185
  %v1187 = vpop.f32.mrb[0].mxu0
  %v1188 = vpop.f32.mrb[0].mxu0
  %v1189 = vadd.f32 %v1092, %v1188
  %v1190 = vpop.f32.mrb[0].mxu0
  %1191 = vmatprep.mubr.bf16.mxu0 %v491
  %1192 = vmatmul.mubr.bf16.gmra.mrb[0].mxu0 %v490
  %v1193 = vpop.f32.mrb[0].mxu0
  %v1194 = vadd.f32 %v1097, %v1193
  %v1195 = vpop.f32.mrb[0].mxu0
  %v1196 = vpop.f32.mrb[0].mxu0
  %v1197 = vadd.f32 %v1100, %v1196
  %v1198 = vpop.f32.mrb[0].mxu0
  %1199 = vmatprep.mubr.bf16.mxu0 %v500
  %1200 = vmatmul.mubr.bf16.gmra.mrb[0].mxu0 %v499
  %v1201 = vpop.f32.mrb[0].mxu0
  %v1202 = vadd.f32 %v1105, %v1201
  %v1203 = vpop.f32.mrb[0].mxu0
  %v1204 = vpop.f32.mrb[0].mxu0
  %v1205 = vadd.f32 %v1108, %v1204
  %v1206 = vpop.f32.mrb[0].mxu0
  %1207 = vmatprep.mubr.bf16.mxu0 %v509
  %1208 = vmatmul.mubr.bf16.gmra.mrb[0].mxu0 %v508
  %v1209 = vpop.f32.mrb[0].mxu0
  %v1210 = vadd.f32 %v1113, %v1209
  %v1211 = vpop.f32.mrb[0].mxu0
  %v1212 = vpop.f32.mrb[0].mxu0
  %v1213 = vadd.f32 %v1116, %v1212
  %v1214 = vpop.f32.mrb[0].mxu0
  %1215 = vmatprep.mubr.bf16.mxu0 %v518
  %1216 = vmatmul.mubr.bf16.gmra.mrb[0].mxu0 %v517
  %v1217 = vpop.f32.mrb[0].mxu0
  %v1218 = vadd.f32 %v1121, %v1217
  %v1219 = vpop.f32.mrb[0].mxu0
  %v1220 = vpop.f32.mrb[0].mxu0
  %v1221 = vadd.f32 %v1124, %v1220
  %v1222 = vpop.f32.mrb[0].mxu0
  %1223 = vmatprep.mubr.bf16.mxu0 %v527
  %1224 = vmatmul.mubr.bf16.gmra.mrb[0].mxu0 %v526
  %v1225 = vpop.f32.mrb[0].mxu0
  %v1226 = vadd.f32 %v1129, %v1225
  %v1227 = vpop.f32.mrb[0].mxu0
  %v1228 = vpop.f32.mrb[0].mxu0
  %v1229 = vadd.f32 %v1132, %v1228
  %v1230 = vpop.f32.mrb[0].mxu0
  %1231 = vmatprep.mubr.bf16.mxu0 %v536
  %1232 = vmatmul.mubr.bf16.gmra.mrb[0].mxu0 %v535
  %v1233 = vpop.f32.mrb[0].mxu0
  %v1234 = vadd.f32 %v1137, %v1233
  %v1235 = vpop.f32.mrb[0].mxu0
  %v1236 = vpop.f32.mrb[0].mxu0
  %v1237 = vadd.f32 %v1140, %v1236
  %v1238 = vpop.f32.mrb[0].mxu0
  %1239 = vdwg.mxu0
  %1240 = vmatprep.subr.bf16.mxu0 0
  %1241 = vmatpush1.bf16.msra.mxu0 %v934
  %1242 = vmatprep.subr.bf16.mxu0 0
  %1243 = vmatpush1.bf16.msra.mxu0 %v935
  %1244 = vmatprep.subr.bf16.mxu0 0
  %1245 = vmatpush1.bf16.msra.mxu0 %v936
  %1246 = vmatprep.subr.bf16.mxu0 0
  %1247 = vmatpush1.bf16.msra.mxu0 %v937
  %1248 = vmatprep.subr.bf16.mxu0 0
  %1249 = vmatpush1.bf16.msra.mxu0 %v938
  %1250 = vmatprep.subr.bf16.mxu0 0
  %1251 = vmatpush1.bf16.msra.mxu0 %v939
  %1252 = vmatprep.subr.bf16.mxu0 0
  %1253 = vmatpush1.bf16.msra.mxu0 %v940
  %1254 = vmatprep.subr.bf16.mxu0 0
  %1255 = vmatpush1.bf16.msra.mxu0 %v941
  %1256 = vmatprep.subr.bf16.mxu0 0
  %1257 = vmatpush1.bf16.msra.mxu0 %v942
  %1258 = vmatprep.subr.bf16.mxu0 0
  %1259 = vmatpush1.bf16.msra.mxu0 %v943
  %1260 = vmatprep.subr.bf16.mxu0 0
  %1261 = vmatpush1.bf16.msra.mxu0 %v944
  %1262 = vmatprep.subr.bf16.mxu0 0
  %1263 = vmatpush1.bf16.msra.mxu0 %v945
  %1264 = vmatprep.subr.bf16.mxu0 0
  %1265 = vmatpush1.bf16.msra.mxu0 %v946
  %1266 = vmatprep.subr.bf16.mxu0 0
  %1267 = vmatpush1.bf16.msra.mxu0 %v947
  %1268 = vmatprep.subr.bf16.mxu0 0
  %1269 = vmatpush1.bf16.msra.mxu0 %v948
  %1270 = vmatprep.subr.bf16.mxu0 0
  %1271 = vmatpush1.bf16.msra.mxu0 %v949
  %1272 = vmatprep.mubr.bf16.mxu0 %v475
  %1273 = vmatmul.mubr.bf16.gmra.mrb[0].mxu0 %v474
  %v1274 = vpop.f32.mrb[0].mxu0
  %v1275 = vadd.f32 %v1178, %v1274
  %v1276 = vpop.f32.mrb[0].mxu0
  %v1277 = vpop.f32.mrb[0].mxu0
  %v1278 = vadd.f32 %v1181, %v1277
  %v1279 = vpop.f32.mrb[0].mxu0
  %1280 = vmatprep.mubr.bf16.mxu0 %v484
  %1281 = vmatmul.mubr.bf16.gmra.mrb[0].mxu0 %v483
  %v1282 = vpop.f32.mrb[0].mxu0
  %v1283 = vadd.f32 %v1186, %v1282
  %v1284 = vpop.f32.mrb[0].mxu0
  %v1285 = vpop.f32.mrb[0].mxu0
  %v1286 = vadd.f32 %v1189, %v1285
  %v1287 = vpop.f32.mrb[0].mxu0
  %1288 = vmatprep.mubr.bf16.mxu0 %v493
  %1289 = vmatmul.mubr.bf16.gmra.mrb[0].mxu0 %v492
  %v1290 = vpop.f32.mrb[0].mxu0
  %v1291 = vadd.f32 %v1194, %v1290
  %v1292 = vpop.f32.mrb[0].mxu0
  %v1293 = vpop.f32.mrb[0].mxu0
  %v1294 = vadd.f32 %v1197, %v1293
  %v1295 = vpop.f32.mrb[0].mxu0
  %1296 = vmatprep.mubr.bf16.mxu0 %v502
  %1297 = vmatmul.mubr.bf16.gmra.mrb[0].mxu0 %v501
  %v1298 = vpop.f32.mrb[0].mxu0
  %v1299 = vadd.f32 %v1202, %v1298
  %v1300 = vpop.f32.mrb[0].mxu0
  %v1301 = vpop.f32.mrb[0].mxu0
  %v1302 = vadd.f32 %v1205, %v1301
  %v1303 = vpop.f32.mrb[0].mxu0
  %1304 = vmatprep.mubr.bf16.mxu0 %v511
  %1305 = vmatmul.mubr.bf16.gmra.mrb[0].mxu0 %v510
  %v1306 = vpop.f32.mrb[0].mxu0
  %v1307 = vadd.f32 %v1210, %v1306
  %v1308 = vpop.f32.mrb[0].mxu0
  %v1309 = vpop.f32.mrb[0].mxu0
  %v1310 = vadd.f32 %v1213, %v1309
  %v1311 = vpop.f32.mrb[0].mxu0
  %1312 = vmatprep.mubr.bf16.mxu0 %v520
  %1313 = vmatmul.mubr.bf16.gmra.mrb[0].mxu0 %v519
  %v1314 = vpop.f32.mrb[0].mxu0
  %v1315 = vadd.f32 %v1218, %v1314
  %v1316 = vpop.f32.mrb[0].mxu0
  %v1317 = vpop.f32.mrb[0].mxu0
  %v1318 = vadd.f32 %v1221, %v1317
  %v1319 = vpop.f32.mrb[0].mxu0
  %1320 = vmatprep.mubr.bf16.mxu0 %v529
  %1321 = vmatmul.mubr.bf16.gmra.mrb[0].mxu0 %v528
  %v1322 = vpop.f32.mrb[0].mxu0
  %v1323 = vadd.f32 %v1226, %v1322
  %v1324 = vpop.f32.mrb[0].mxu0
  %v1325 = vpop.f32.mrb[0].mxu0
  %v1326 = vadd.f32 %v1229, %v1325
  %v1327 = vpop.f32.mrb[0].mxu0
  %1328 = vmatprep.mubr.bf16.mxu0 %v538
  %1329 = vmatmul.mubr.bf16.gmra.mrb[0].mxu0 %v537
  %v1330 = vpop.f32.mrb[0].mxu0
  %v1331 = vadd.f32 %v1234, %v1330
  %v1332 = vpop.f32.mrb[0].mxu0
  %v1333 = vpop.f32.mrb[0].mxu0
  %v1334 = vadd.f32 %v1237, %v1333
  %v1335 = vpop.f32.mrb[0].mxu0
  %1336 = vdwg.mxu0
  %1337 = vmatprep.subr.bf16.mxu0 0
  %1338 = vmatpush1.bf16.msra.mxu0 %v950
  %1339 = vmatprep.subr.bf16.mxu0 0
  %1340 = vmatpush1.bf16.msra.mxu0 %v951
  %1341 = vmatprep.subr.bf16.mxu0 0
  %1342 = vmatpush1.bf16.msra.mxu0 %v952
  %1343 = vmatprep.subr.bf16.mxu0 0
  %1344 = vmatpush1.bf16.msra.mxu0 %v953
  %1345 = vmatprep.subr.bf16.mxu0 0
  %1346 = vmatpush1.bf16.msra.mxu0 %v954
  %1347 = vmatprep.subr.bf16.mxu0 0
  %1348 = vmatpush1.bf16.msra.mxu0 %v955
  %1349 = vmatprep.subr.bf16.mxu0 0
  %1350 = vmatpush1.bf16.msra.mxu0 %v956
  %1351 = vmatprep.subr.bf16.mxu0 0
  %1352 = vmatpush1.bf16.msra.mxu0 %v957
  %1353 = vmatprep.subr.bf16.mxu0 0
  %1354 = vmatpush1.bf16.msra.mxu0 %v958
  %1355 = vmatprep.subr.bf16.mxu0 0
  %1356 = vmatpush1.bf16.msra.mxu0 %v959
  %1357 = vmatprep.subr.bf16.mxu0 0
  %1358 = vmatpush1.bf16.msra.mxu0 %v960
  %1359 = vmatprep.subr.bf16.mxu0 0
  %1360 = vmatpush1.bf16.msra.mxu0 %v961
  %1361 = vmatprep.subr.bf16.mxu0 0
  %1362 = vmatpush1.bf16.msra.mxu0 %v962
  %1363 = vmatprep.subr.bf16.mxu0 0
  %1364 = vmatpush1.bf16.msra.mxu0 %v963
  %1365 = vmatprep.subr.bf16.mxu0 0
  %1366 = vmatpush1.bf16.msra.mxu0 %v964
  %1367 = vmatprep.subr.bf16.mxu0 0
  %1368 = vmatpush1.bf16.msra.mxu0 %v965
  %1369 = vmatprep.mubr.bf16.mxu0 %v477
  %1370 = vmatmul.mubr.bf16.gmra.mrb[0].mxu0 %v476
  %v1371 = vpop.f32.mrb[0].mxu0
  %v1372 = vadd.f32 %v1275, %v1371
  %v1373 = vpop.f32.mrb[0].mxu0
  %v1374 = vpop.f32.mrb[0].mxu0
  %v1375 = vadd.f32 %v1278, %v1374
  %v1376 = vpop.f32.mrb[0].mxu0
  %1377 = vmatprep.mubr.bf16.mxu0 %v486
  %1378 = vmatmul.mubr.bf16.gmra.mrb[0].mxu0 %v485
  %v1379 = vpop.f32.mrb[0].mxu0
  %v1380 = vadd.f32 %v1283, %v1379
  %v1381 = vpop.f32.mrb[0].mxu0
  %v1382 = vpop.f32.mrb[0].mxu0
  %v1383 = vadd.f32 %v1286, %v1382
  %v1384 = vpop.f32.mrb[0].mxu0
  %1385 = vmatprep.mubr.bf16.mxu0 %v495
  %1386 = vmatmul.mubr.bf16.gmra.mrb[0].mxu0 %v494
  %v1387 = vpop.f32.mrb[0].mxu0
  %v1388 = vadd.f32 %v1291, %v1387
  %v1389 = vpop.f32.mrb[0].mxu0
  %v1390 = vpop.f32.mrb[0].mxu0
  %v1391 = vadd.f32 %v1294, %v1390
  %v1392 = vpop.f32.mrb[0].mxu0
  %1393 = vmatprep.mubr.bf16.mxu0 %v504
  %1394 = vmatmul.mubr.bf16.gmra.mrb[0].mxu0 %v503
  %v1395 = vpop.f32.mrb[0].mxu0
  %v1396 = vadd.f32 %v1299, %v1395
  %v1397 = vpop.f32.mrb[0].mxu0
  %v1398 = vpop.f32.mrb[0].mxu0
  %v1399 = vadd.f32 %v1302, %v1398
  %v1400 = vpop.f32.mrb[0].mxu0
  %1401 = vmatprep.mubr.bf16.mxu0 %v513
  %1402 = vmatmul.mubr.bf16.gmra.mrb[0].mxu0 %v512
  %v1403 = vpop.f32.mrb[0].mxu0
  %v1404 = vadd.f32 %v1307, %v1403
  %v1405 = vpop.f32.mrb[0].mxu0
  %v1406 = vpop.f32.mrb[0].mxu0
  %v1407 = vadd.f32 %v1310, %v1406
  %v1408 = vpop.f32.mrb[0].mxu0
  %1409 = vmatprep.mubr.bf16.mxu0 %v522
  %1410 = vmatmul.mubr.bf16.gmra.mrb[0].mxu0 %v521
  %v1411 = vpop.f32.mrb[0].mxu0
  %v1412 = vadd.f32 %v1315, %v1411
  %v1413 = vpop.f32.mrb[0].mxu0
  %v1414 = vpop.f32.mrb[0].mxu0
  %v1415 = vadd.f32 %v1318, %v1414
  %v1416 = vpop.f32.mrb[0].mxu0
  %1417 = vmatprep.mubr.bf16.mxu0 %v531
  %1418 = vmatmul.mubr.bf16.gmra.mrb[0].mxu0 %v530
  %v1419 = vpop.f32.mrb[0].mxu0
  %v1420 = vadd.f32 %v1323, %v1419
  %v1421 = vpop.f32.mrb[0].mxu0
  %v1422 = vpop.f32.mrb[0].mxu0
  %v1423 = vadd.f32 %v1326, %v1422
  %v1424 = vpop.f32.mrb[0].mxu0
  %1425 = vmatprep.mubr.bf16.mxu0 %v540
  %1426 = vmatmul.mubr.bf16.gmra.mrb[0].mxu0 %v539
  %v1427 = vpop.f32.mrb[0].mxu0
  %v1428 = vadd.f32 %v1331, %v1427
  %v1429 = vpop.f32.mrb[0].mxu0
  %v1430 = vpop.f32.mrb[0].mxu0
  %v1431 = vadd.f32 %v1334, %v1430
  %v1432 = vpop.f32.mrb[0].mxu0
  %1433 = vdwg.mxu0
  %1434 = vmatprep.subr.bf16.mxu0 0
  %1435 = vmatpush1.bf16.msra.mxu0 %v966
  %1436 = vmatprep.subr.bf16.mxu0 0
  %1437 = vmatpush1.bf16.msra.mxu0 %v967
  %1438 = vmatprep.subr.bf16.mxu0 0
  %1439 = vmatpush1.bf16.msra.mxu0 %v968
  %1440 = vmatprep.subr.bf16.mxu0 0
  %1441 = vmatpush1.bf16.msra.mxu0 %v969
  %1442 = vmatprep.subr.bf16.mxu0 0
  %1443 = vmatpush1.bf16.msra.mxu0 %v970
  %1444 = vmatprep.subr.bf16.mxu0 0
  %1445 = vmatpush1.bf16.msra.mxu0 %v971
  %1446 = vmatprep.subr.bf16.mxu0 0
  %1447 = vmatpush1.bf16.msra.mxu0 %v972
  %1448 = vmatprep.subr.bf16.mxu0 0
  %1449 = vmatpush1.bf16.msra.mxu0 %v973
  %1450 = vmatprep.subr.bf16.mxu0 0
  %1451 = vmatpush1.bf16.msra.mxu0 0
  %1452 = vmatprep.subr.bf16.mxu0 0
  %1453 = vmatpush1.bf16.msra.mxu0 0
  %1454 = vmatprep.subr.bf16.mxu0 0
  %1455 = vmatpush1.bf16.msra.mxu0 0
  %1456 = vmatprep.subr.bf16.mxu0 0
  %1457 = vmatpush1.bf16.msra.mxu0 0
  %1458 = vmatprep.subr.bf16.mxu0 0
  %1459 = vmatpush1.bf16.msra.mxu0 0
  %1460 = vmatprep.subr.bf16.mxu0 0
  %1461 = vmatpush1.bf16.msra.mxu0 0
  %1462 = vmatprep.subr.bf16.mxu0 0
  %1463 = vmatpush1.bf16.msra.mxu0 0
  %1464 = vmatprep.subr.bf16.mxu0 0
  %1465 = vmatpush1.bf16.msra.mxu0 0
  %1466 = vmatprep.mubr.bf16.mxu0 0
  %1467 = vmatmul.mubr.bf16.gmra.mrb[0].mxu0 %v478
  %v1468 = vpop.f32.mrb[0].mxu0
  %v1469 = vadd.f32 %v1372, %v1468
  %v1470 = vpop.f32.mrb[0].mxu0
  %v1471 = vpop.f32.mrb[0].mxu0
  %v1472 = vadd.f32 %v1375, %v1471
  %v1473 = vpop.f32.mrb[0].mxu0
  %1474 = vmatprep.mubr.bf16.mxu0 0
  %1475 = vmatmul.mubr.bf16.gmra.mrb[0].mxu0 %v487
  %v1476 = vpop.f32.mrb[0].mxu0
  %v1477 = vadd.f32 %v1380, %v1476
  %v1478 = vpop.f32.mrb[0].mxu0
  %v1479 = vpop.f32.mrb[0].mxu0
  %v1480 = vadd.f32 %v1383, %v1479
  %v1481 = vpop.f32.mrb[0].mxu0
  %1482 = vmatprep.mubr.bf16.mxu0 0
  %1483 = vmatmul.mubr.bf16.gmra.mrb[0].mxu0 %v496
  %v1484 = vpop.f32.mrb[0].mxu0
  %v1485 = vadd.f32 %v1388, %v1484
  %v1486 = vpop.f32.mrb[0].mxu0
  %v1487 = vpop.f32.mrb[0].mxu0
  %v1488 = vadd.f32 %v1391, %v1487
  %v1489 = vpop.f32.mrb[0].mxu0
  %1490 = vmatprep.mubr.bf16.mxu0 0
  %1491 = vmatmul.mubr.bf16.gmra.mrb[0].mxu0 %v505
  %v1492 = vpop.f32.mrb[0].mxu0
  %v1493 = vadd.f32 %v1396, %v1492
  %v1494 = vpop.f32.mrb[0].mxu0
  %v1495 = vpop.f32.mrb[0].mxu0
  %v1496 = vadd.f32 %v1399, %v1495
  %v1497 = vpop.f32.mrb[0].mxu0
  %1498 = vmatprep.mubr.bf16.mxu0 0
  %1499 = vmatmul.mubr.bf16.gmra.mrb[0].mxu0 %v514
  %v1500 = vpop.f32.mrb[0].mxu0
  %v1501 = vadd.f32 %v1404, %v1500
  %v1502 = vpop.f32.mrb[0].mxu0
  %v1503 = vpop.f32.mrb[0].mxu0
  %v1504 = vadd.f32 %v1407, %v1503
  %v1505 = vpop.f32.mrb[0].mxu0
  %1506 = vmatprep.mubr.bf16.mxu0 0
  %1507 = vmatmul.mubr.bf16.gmra.mrb[0].mxu0 %v523
  %v1508 = vpop.f32.mrb[0].mxu0
  %v1509 = vadd.f32 %v1412, %v1508
  %v1510 = vpop.f32.mrb[0].mxu0
  %v1511 = vpop.f32.mrb[0].mxu0
  %v1512 = vadd.f32 %v1415, %v1511
  %v1513 = vpop.f32.mrb[0].mxu0
  %1514 = vmatprep.mubr.bf16.mxu0 0
  %1515 = vmatmul.mubr.bf16.gmra.mrb[0].mxu0 %v532
  %v1516 = vpop.f32.mrb[0].mxu0
  %v1517 = vadd.f32 %v1420, %v1516
  %v1518 = vpop.f32.mrb[0].mxu0
  %v1519 = vpop.f32.mrb[0].mxu0
  %v1520 = vadd.f32 %v1423, %v1519
  %v1521 = vpop.f32.mrb[0].mxu0
  %1522 = vmatprep.mubr.bf16.mxu0 0
  %1523 = vmatmul.mubr.bf16.gmra.mrb[0].mxu0 %v541
  %v1524 = vpop.f32.mrb[0].mxu0
  %v1525 = vadd.f32 %v1428, %v1524
  %v1526 = vpop.f32.mrb[0].mxu0
  %v1527 = vpop.f32.mrb[0].mxu0
  %v1528 = vadd.f32 %v1431, %v1527
  %v1529 = vpop.f32.mrb[0].mxu0
  %1530 = vdwg.mxu0
  %v1531 = vmax.f32 %v1469, 0.0
  %v1532 = vmax.f32 %v1472, 0.0
  %v1533 = vmax.f32 %v1477, 0.0
  %v1534 = vmax.f32 %v1480, 0.0
  %v1535 = vmax.f32 %v1485, 0.0
  %v1536 = vmax.f32 %v1488, 0.0
  %v1537 = vmax.f32 %v1493, 0.0
  %v1538 = vmax.f32 %v1496, 0.0
  %v1539 = vmax.f32 %v1501, 0.0
  %v1540 = vmax.f32 %v1504, 0.0
  %v1541 = vmax.f32 %v1509, 0.0
  %v1542 = vmax.f32 %v1512, 0.0
  %v1543 = vmax.f32 %v1517, 0.0
  %v1544 = vmax.f32 %v1520, 0.0
  %v1545 = vmax.f32 %v1525, 0.0
  %v1546 = vmax.f32 %v1528, 0.0
  %v1547 = vpack.c.bf16 %v1532, %v1531
  %v1548 = vpack.c.bf16 %v1534, %v1533
  %v1549 = vpack.c.bf16 %v1536, %v1535
  %v1550 = vpack.c.bf16 %v1538, %v1537
  %v1551 = vpack.c.bf16 %v1540, %v1539
  %v1552 = vpack.c.bf16 %v1542, %v1541
  %v1553 = vpack.c.bf16 %v1544, %v1543
  %v1554 = vpack.c.bf16 %v1546, %v1545
  %v1563 = vunpack.c.l.b16 %v1547
  %v1564 = vunpack.c.h.b16 %v1547
  %v1565 = vunpack.c.l.b16 %v1548
  %v1566 = vunpack.c.h.b16 %v1548
  %v1567 = vunpack.c.l.b16 %v1549
  %v1568 = vunpack.c.h.b16 %v1549
  %v1569 = vunpack.c.l.b16 %v1550
  %v1570 = vunpack.c.h.b16 %v1550
  %v1571 = vunpack.c.l.b16 %v1551
  %v1572 = vunpack.c.h.b16 %v1551
  %v1573 = vunpack.c.l.b16 %v1552
  %v1574 = vunpack.c.h.b16 %v1552
  %v1575 = vunpack.c.l.b16 %v1553
  %v1576 = vunpack.c.h.b16 %v1553
  %v1577 = vunpack.c.l.b16 %v1554
  %v1578 = vunpack.c.h.b16 %v1554
  %v1579 = vpack.c.b16 %v1563, %v1563
  %v1580 = vpack.c.b16 %v1564, %v1564
  %v1581 = vpack.c.b16 %v1565, %v1565
  %v1582 = vpack.c.b16 %v1566, %v1566
  %v1583 = vpack.c.b16 %v1567, %v1567
  %v1584 = vpack.c.b16 %v1568, %v1568
  %v1585 = vpack.c.b16 %v1569, %v1569
  %v1586 = vpack.c.b16 %v1570, %v1570
  %v1587 = vpack.c.b16 %v1571, %v1571
  %v1588 = vpack.c.b16 %v1572, %v1572
  %v1589 = vpack.c.b16 %v1573, %v1573
  %v1590 = vpack.c.b16 %v1574, %v1574
  %v1591 = vpack.c.b16 %v1575, %v1575
  %v1592 = vpack.c.b16 %v1576, %v1576
  %v1593 = vpack.c.b16 %v1577, %v1577
  %v1594 = vpack.c.b16 %v1578, %v1578
  %1611 = vst [vmem:[%s3] sm:$0xf] %v1579
  %1612 = vst [vmem:[%s3 + $0x4] sm:$0xf] %v1580
  %1613 = vst [vmem:[%s3 + $0x8] sm:$0xf] %v1581
  %1614 = vst [vmem:[%s3 + $0xc] sm:$0xf] %v1582
  %1615 = vst [vmem:[%s3 + $0x10] sm:$0xf] %v1583
  %1616 = vst [vmem:[%s3 + $0x14] sm:$0xf] %v1584
  %1617 = vst [vmem:[%s3 + $0x18] sm:$0xf] %v1585
  %1618 = vst [vmem:[%s3 + $0x1c] sm:$0xf] %v1586
  %1619 = vst [vmem:[%s3 + $0x20] sm:$0xf] %v1587
  %1620 = vst [vmem:[%s3 + $0x24] sm:$0xf] %v1588
  %1621 = vst [vmem:[%s3 + $0x28] sm:$0xf] %v1589
  %1622 = vst [vmem:[%s3 + $0x2c] sm:$0xf] %v1590
  %1623 = vst [vmem:[%s3 + $0x30] sm:$0xf] %v1591
  %1624 = vst [vmem:[%s3 + $0x34] sm:$0xf] %v1592
  %1625 = vst [vmem:[%s3 + $0x38] sm:$0xf] %v1593
  %1626 = vst [vmem:[%s3 + $0x3c] sm:$0xf] %v1594
  // Predicated region
  $region14: #{resnet_diff_forward.10} parent=0 // pred_check
    _
  $region15: #{resnet_diff_forward.10} parent=0 // pred_check_branch
    %1628 = sbr.rel (0) target = $region17
  $region16: #{resnet_diff_forward.10} parent=0 // pred_region
    _
  $region17: #{resnet_diff_forward.10} parent=0 // pred_fallthru
    _
  // Predicated region
  $region18: #{resnet_diff_forward.10} parent=0 // pred_check
    _
  $region19: #{resnet_diff_forward.10} parent=0 // pred_check_branch
    %1630 = sbr.rel (0) target = $region21
  $region20: #{resnet_diff_forward.10} parent=0 // pred_region
    _
  $region21: #{resnet_diff_forward.10} parent=0 // pred_fallthru
    _

// kernel: resnet_diff_forward.11
$region0: #{resnet_diff_forward.11}
  #allocation0 [shape = 'u32[]', space=smem, size = 0x4, offset = 0x4, fixed_abs, tag = 'smem constant byte address 0x4 - core index']
  #allocation1 [shape = 'u32[144,128]{1,0:T(1,128)}', space=vmem, size = 0x12000, scoped, tag = 'internal scratch']
  %s0 = inlined_call_operand.vmem [shape: bf16[128,1152], index: 0, kind: input, shape index: {}]
  %s1 = inlined_call_operand.vmem [shape: bf16[1152,128], index: 1, kind: input, shape index: {}]
  %s2 = inlined_call_operand.vmem [shape: f32[1,128], index: 2, kind: input, shape index: {}]
  %s3 = inlined_call_operand.vmem [shape: bf16[128,128], index: 3, kind: input, shape index: {}]
  %s4 = inlined_call_operand.vmem [shape: bf16[128,128], index: 4, kind: output, shape index: {}]
  %s5 = sld [smem:[#allocation0]]
  $region26: #{resnet_diff_forward.11} parent=0
    _
  %s7 = ssub.s32 1, %s5
  %s8 = scalar_select 0, %s7, %s5
  // Predicated region
  $region2: #{resnet_diff_forward.11} parent=0 // pred_check
    _
  $region3: #{resnet_diff_forward.11} parent=0 // pred_check_branch
    %10 = sbr.rel (0) target = $region5
  $region4: #{resnet_diff_forward.11} parent=0 // pred_region
    _
  $region5: #{resnet_diff_forward.11} parent=0 // pred_fallthru
    _
  // Predicated region
  $region6: #{resnet_diff_forward.11} parent=0 // pred_check
    _
  $region7: #{resnet_diff_forward.11} parent=0 // pred_check_branch
    %12 = sbr.rel (0) target = $region9
  $region8: #{resnet_diff_forward.11} parent=0 // pred_region
    _
  $region9: #{resnet_diff_forward.11} parent=0 // pred_fallthru
    _
  // Predicated region
  $region10: #{resnet_diff_forward.11} parent=0 // pred_check
    _
  $region11: #{resnet_diff_forward.11} parent=0 // pred_check_branch
    %14 = sbr.rel (0) target = $region13
  $region12: #{resnet_diff_forward.11} parent=0 // pred_region
    _
  $region13: #{resnet_diff_forward.11} parent=0 // pred_fallthru
    _
  // Predicated region
  $region14: #{resnet_diff_forward.11} parent=0 // pred_check
    _
  $region15: #{resnet_diff_forward.11} parent=0 // pred_check_branch
    %16 = sbr.rel (0) target = $region17
  $region16: #{resnet_diff_forward.11} parent=0 // pred_region
    _
  $region17: #{resnet_diff_forward.11} parent=0 // pred_fallthru
    _
  %v18 = vld [vmem:[%s0] sm:$0xff]
  %v19 = vld [vmem:[%s0 + $0x8] sm:$0xff]
  %v20 = vld [vmem:[%s0 + $0x10] sm:$0xff]
  %v21 = vld [vmem:[%s0 + $0x18] sm:$0xff]
  %v22 = vld [vmem:[%s0 + $0x20] sm:$0xf]
  %v23 = vld [vmem:[%s0 + $0x24] sm:$0xff]
  %v24 = vld [vmem:[%s0 + $0x2c] sm:$0xff]
  %v25 = vld [vmem:[%s0 + $0x34] sm:$0xff]
  %v26 = vld [vmem:[%s0 + $0x3c] sm:$0xff]
  %v27 = vld [vmem:[%s0 + $0x44] sm:$0xf]
  %v28 = vld [vmem:[%s0 + $0x48] sm:$0xff]
  %v29 = vld [vmem:[%s0 + $0x50] sm:$0xff]
  %v30 = vld [vmem:[%s0 + $0x58] sm:$0xff]
  %v31 = vld [vmem:[%s0 + $0x60] sm:$0xff]
  %v32 = vld [vmem:[%s0 + $0x68] sm:$0xf]
  %v33 = vld [vmem:[%s0 + $0x6c] sm:$0xff]
  %v34 = vld [vmem:[%s0 + $0x74] sm:$0xff]
  %v35 = vld [vmem:[%s0 + $0x7c] sm:$0xff]
  %v36 = vld [vmem:[%s0 + $0x84] sm:$0xff]
  %v37 = vld [vmem:[%s0 + $0x8c] sm:$0xf]
  %v38 = vld [vmem:[%s0 + $0x90] sm:$0xff]
  %v39 = vld [vmem:[%s0 + $0x98] sm:$0xff]
  %v40 = vld [vmem:[%s0 + $0xa0] sm:$0xff]
  %v41 = vld [vmem:[%s0 + $0xa8] sm:$0xff]
  %v42 = vld [vmem:[%s0 + $0xb0] sm:$0xf]
  %v43 = vld [vmem:[%s0 + $0xb4] sm:$0xff]
  %v44 = vld [vmem:[%s0 + $0xbc] sm:$0xff]
  %v45 = vld [vmem:[%s0 + $0xc4] sm:$0xff]
  %v46 = vld [vmem:[%s0 + $0xcc] sm:$0xff]
  %v47 = vld [vmem:[%s0 + $0xd4] sm:$0xf]
  %v48 = vld [vmem:[%s0 + $0xd8] sm:$0xff]
  %v49 = vld [vmem:[%s0 + $0xe0] sm:$0xff]
  %v50 = vld [vmem:[%s0 + $0xe8] sm:$0xff]
  %v51 = vld [vmem:[%s0 + $0xf0] sm:$0xff]
  %v52 = vld [vmem:[%s0 + $0xf8] sm:$0xf]
  %v53 = vld [vmem:[%s0 + $0xfc] sm:$0xff]
  %v54 = vld [vmem:[%s0 + $0x104] sm:$0xff]
  %v55 = vld [vmem:[%s0 + $0x10c] sm:$0xff]
  %v56 = vld [vmem:[%s0 + $0x114] sm:$0xff]
  %v57 = vld [vmem:[%s0 + $0x11c] sm:$0xf]
  %v58 = vld [vmem:[%s0 + $0x120] sm:$0xff]
  %v59 = vld [vmem:[%s0 + $0x128] sm:$0xff]
  %v60 = vld [vmem:[%s0 + $0x130] sm:$0xff]
  %v61 = vld [vmem:[%s0 + $0x138] sm:$0xff]
  %v62 = vld [vmem:[%s0 + $0x140] sm:$0xf]
  %v63 = vld [vmem:[%s0 + $0x144] sm:$0xff]
  %v64 = vld [vmem:[%s0 + $0x14c] sm:$0xff]
  %v65 = vld [vmem:[%s0 + $0x154] sm:$0xff]
  %v66 = vld [vmem:[%s0 + $0x15c] sm:$0xff]
  %v67 = vld [vmem:[%s0 + $0x164] sm:$0xf]
  %v68 = vld [vmem:[%s0 + $0x168] sm:$0xff]
  %v69 = vld [vmem:[%s0 + $0x170] sm:$0xff]
  %v70 = vld [vmem:[%s0 + $0x178] sm:$0xff]
  %v71 = vld [vmem:[%s0 + $0x180] sm:$0xff]
  %v72 = vld [vmem:[%s0 + $0x188] sm:$0xf]
  %v73 = vld [vmem:[%s0 + $0x18c] sm:$0xff]
  %v74 = vld [vmem:[%s0 + $0x194] sm:$0xff]
  %v75 = vld [vmem:[%s0 + $0x19c] sm:$0xff]
  %v76 = vld [vmem:[%s0 + $0x1a4] sm:$0xff]
  %v77 = vld [vmem:[%s0 + $0x1ac] sm:$0xf]
  %v78 = vld [vmem:[%s0 + $0x1b0] sm:$0xff]
  %v79 = vld [vmem:[%s0 + $0x1b8] sm:$0xff]
  %v80 = vld [vmem:[%s0 + $0x1c0] sm:$0xff]
  %v81 = vld [vmem:[%s0 + $0x1c8] sm:$0xff]
  %v82 = vld [vmem:[%s0 + $0x1d0] sm:$0xf]
  %v83 = vld [vmem:[%s0 + $0x1d4] sm:$0xff]
  %v84 = vld [vmem:[%s0 + $0x1dc] sm:$0xff]
  %v85 = vld [vmem:[%s0 + $0x1e4] sm:$0xff]
  %v86 = vld [vmem:[%s0 + $0x1ec] sm:$0xff]
  %v87 = vld [vmem:[%s0 + $0x1f4] sm:$0xf]
  %v88 = vld [vmem:[%s0 + $0x1f8] sm:$0xff]
  %v89 = vld [vmem:[%s0 + $0x200] sm:$0xff]
  %v90 = vld [vmem:[%s0 + $0x208] sm:$0xff]
  %v91 = vld [vmem:[%s0 + $0x210] sm:$0xff]
  %v92 = vld [vmem:[%s0 + $0x218] sm:$0xf]
  %v93 = vld [vmem:[%s0 + $0x21c] sm:$0xff]
  %v94 = vld [vmem:[%s0 + $0x224] sm:$0xff]
  %v95 = vld [vmem:[%s0 + $0x22c] sm:$0xff]
  %v96 = vld [vmem:[%s0 + $0x234] sm:$0xff]
  %v97 = vld [vmem:[%s0 + $0x23c] sm:$0xf]
  %v98 = vld [vmem:[%s1] sm:$0xf]
  %v99 = vld [vmem:[%s1 + $0x4] sm:$0xf]
  %v100 = vld [vmem:[%s1 + $0x8] sm:$0xf]
  %v101 = vld [vmem:[%s1 + $0xc] sm:$0xf]
  %v102 = vld [vmem:[%s1 + $0x10] sm:$0xf]
  %v103 = vld [vmem:[%s1 + $0x14] sm:$0xf]
  %v104 = vld [vmem:[%s1 + $0x18] sm:$0xf]
  %v105 = vld [vmem:[%s1 + $0x1c] sm:$0xf]
  %v106 = vld [vmem:[%s1 + $0x20] sm:$0xf]
  %v107 = vld [vmem:[%s1 + $0x24] sm:$0xf]
  %v108 = vld [vmem:[%s1 + $0x28] sm:$0xf]
  %v109 = vld [vmem:[%s1 + $0x2c] sm:$0xf]
  %v110 = vld [vmem:[%s1 + $0x30] sm:$0xf]
  %v111 = vld [vmem:[%s1 + $0x34] sm:$0xf]
  %v112 = vld [vmem:[%s1 + $0x38] sm:$0xf]
  %v113 = vld [vmem:[%s1 + $0x3c] sm:$0xf]
  %v114 = vld [vmem:[%s1 + $0x40] sm:$0xf]
  %v115 = vld [vmem:[%s1 + $0x44] sm:$0xf]
  %v116 = vld [vmem:[%s1 + $0x48] sm:$0xf]
  %v117 = vld [vmem:[%s1 + $0x4c] sm:$0xf]
  %v118 = vld [vmem:[%s1 + $0x50] sm:$0xf]
  %v119 = vld [vmem:[%s1 + $0x54] sm:$0xf]
  %v120 = vld [vmem:[%s1 + $0x58] sm:$0xf]
  %v121 = vld [vmem:[%s1 + $0x5c] sm:$0xf]
  %v122 = vld [vmem:[%s1 + $0x60] sm:$0xf]
  %v123 = vld [vmem:[%s1 + $0x64] sm:$0xf]
  %v124 = vld [vmem:[%s1 + $0x68] sm:$0xf]
  %v125 = vld [vmem:[%s1 + $0x6c] sm:$0xf]
  %v126 = vld [vmem:[%s1 + $0x70] sm:$0xf]
  %v127 = vld [vmem:[%s1 + $0x74] sm:$0xf]
  %v128 = vld [vmem:[%s1 + $0x78] sm:$0xf]
  %v129 = vld [vmem:[%s1 + $0x7c] sm:$0xf]
  %v130 = vld [vmem:[%s1 + $0x80] sm:$0xf]
  %v131 = vld [vmem:[%s1 + $0x84] sm:$0xf]
  %v132 = vld [vmem:[%s1 + $0x88] sm:$0xf]
  %v133 = vld [vmem:[%s1 + $0x8c] sm:$0xf]
  %v134 = vld [vmem:[%s1 + $0x90] sm:$0xf]
  %v135 = vld [vmem:[%s1 + $0x94] sm:$0xf]
  %v136 = vld [vmem:[%s1 + $0x98] sm:$0xf]
  %v137 = vld [vmem:[%s1 + $0x9c] sm:$0xf]
  %v138 = vld [vmem:[%s1 + $0xa0] sm:$0xf]
  %v139 = vld [vmem:[%s1 + $0xa4] sm:$0xf]
  %v140 = vld [vmem:[%s1 + $0xa8] sm:$0xf]
  %v141 = vld [vmem:[%s1 + $0xac] sm:$0xf]
  %v142 = vld [vmem:[%s1 + $0xb0] sm:$0xf]
  %v143 = vld [vmem:[%s1 + $0xb4] sm:$0xf]
  %v144 = vld [vmem:[%s1 + $0xb8] sm:$0xf]
  %v145 = vld [vmem:[%s1 + $0xbc] sm:$0xf]
  %v146 = vld [vmem:[%s1 + $0xc0] sm:$0xf]
  %v147 = vld [vmem:[%s1 + $0xc4] sm:$0xf]
  %v148 = vld [vmem:[%s1 + $0xc8] sm:$0xf]
  %v149 = vld [vmem:[%s1 + $0xcc] sm:$0xf]
  %v150 = vld [vmem:[%s1 + $0xd0] sm:$0xf]
  %v151 = vld [vmem:[%s1 + $0xd4] sm:$0xf]
  %v152 = vld [vmem:[%s1 + $0xd8] sm:$0xf]
  %v153 = vld [vmem:[%s1 + $0xdc] sm:$0xf]
  %v154 = vld [vmem:[%s1 + $0xe0] sm:$0xf]
  %v155 = vld [vmem:[%s1 + $0xe4] sm:$0xf]
  %v156 = vld [vmem:[%s1 + $0xe8] sm:$0xf]
  %v157 = vld [vmem:[%s1 + $0xec] sm:$0xf]
  %v158 = vld [vmem:[%s1 + $0xf0] sm:$0xf]
  %v159 = vld [vmem:[%s1 + $0xf4] sm:$0xf]
  %v160 = vld [vmem:[%s1 + $0xf8] sm:$0xf]
  %v161 = vld [vmem:[%s1 + $0xfc] sm:$0xf]
  %v162 = vld [vmem:[%s1 + $0x100] sm:$0xf]
  %v163 = vld [vmem:[%s1 + $0x104] sm:$0xf]
  %v164 = vld [vmem:[%s1 + $0x108] sm:$0xf]
  %v165 = vld [vmem:[%s1 + $0x10c] sm:$0xf]
  %v166 = vld [vmem:[%s1 + $0x110] sm:$0xf]
  %v167 = vld [vmem:[%s1 + $0x114] sm:$0xf]
  %v168 = vld [vmem:[%s1 + $0x118] sm:$0xf]
  %v169 = vld [vmem:[%s1 + $0x11c] sm:$0xf]
  %v170 = vld [vmem:[%s1 + $0x120] sm:$0xf]
  %v171 = vld [vmem:[%s1 + $0x124] sm:$0xf]
  %v172 = vld [vmem:[%s1 + $0x128] sm:$0xf]
  %v173 = vld [vmem:[%s1 + $0x12c] sm:$0xf]
  %v174 = vld [vmem:[%s1 + $0x130] sm:$0xf]
  %v175 = vld [vmem:[%s1 + $0x134] sm:$0xf]
  %v176 = vld [vmem:[%s1 + $0x138] sm:$0xf]
  %v177 = vld [vmem:[%s1 + $0x13c] sm:$0xf]
  %v178 = vld [vmem:[%s1 + $0x140] sm:$0xf]
  %v179 = vld [vmem:[%s1 + $0x144] sm:$0xf]
  %v180 = vld [vmem:[%s1 + $0x148] sm:$0xf]
  %v181 = vld [vmem:[%s1 + $0x14c] sm:$0xf]
  %v182 = vld [vmem:[%s1 + $0x150] sm:$0xf]
  %v183 = vld [vmem:[%s1 + $0x154] sm:$0xf]
  %v184 = vld [vmem:[%s1 + $0x158] sm:$0xf]
  %v185 = vld [vmem:[%s1 + $0x15c] sm:$0xf]
  %v186 = vld [vmem:[%s1 + $0x160] sm:$0xf]
  %v187 = vld [vmem:[%s1 + $0x164] sm:$0xf]
  %v188 = vld [vmem:[%s1 + $0x168] sm:$0xf]
  %v189 = vld [vmem:[%s1 + $0x16c] sm:$0xf]
  %v190 = vld [vmem:[%s1 + $0x170] sm:$0xf]
  %v191 = vld [vmem:[%s1 + $0x174] sm:$0xf]
  %v192 = vld [vmem:[%s1 + $0x178] sm:$0xf]
  %v193 = vld [vmem:[%s1 + $0x17c] sm:$0xf]
  %v194 = vld [vmem:[%s1 + $0x180] sm:$0xf]
  %v195 = vld [vmem:[%s1 + $0x184] sm:$0xf]
  %v196 = vld [vmem:[%s1 + $0x188] sm:$0xf]
  %v197 = vld [vmem:[%s1 + $0x18c] sm:$0xf]
  %v198 = vld [vmem:[%s1 + $0x190] sm:$0xf]
  %v199 = vld [vmem:[%s1 + $0x194] sm:$0xf]
  %v200 = vld [vmem:[%s1 + $0x198] sm:$0xf]
  %v201 = vld [vmem:[%s1 + $0x19c] sm:$0xf]
  %v202 = vld [vmem:[%s1 + $0x1a0] sm:$0xf]
  %v203 = vld [vmem:[%s1 + $0x1a4] sm:$0xf]
  %v204 = vld [vmem:[%s1 + $0x1a8] sm:$0xf]
  %v205 = vld [vmem:[%s1 + $0x1ac] sm:$0xf]
  %v206 = vld [vmem:[%s1 + $0x1b0] sm:$0xf]
  %v207 = vld [vmem:[%s1 + $0x1b4] sm:$0xf]
  %v208 = vld [vmem:[%s1 + $0x1b8] sm:$0xf]
  %v209 = vld [vmem:[%s1 + $0x1bc] sm:$0xf]
  %v210 = vld [vmem:[%s1 + $0x1c0] sm:$0xf]
  %v211 = vld [vmem:[%s1 + $0x1c4] sm:$0xf]
  %v212 = vld [vmem:[%s1 + $0x1c8] sm:$0xf]
  %v213 = vld [vmem:[%s1 + $0x1cc] sm:$0xf]
  %v214 = vld [vmem:[%s1 + $0x1d0] sm:$0xf]
  %v215 = vld [vmem:[%s1 + $0x1d4] sm:$0xf]
  %v216 = vld [vmem:[%s1 + $0x1d8] sm:$0xf]
  %v217 = vld [vmem:[%s1 + $0x1dc] sm:$0xf]
  %v218 = vld [vmem:[%s1 + $0x1e0] sm:$0xf]
  %v219 = vld [vmem:[%s1 + $0x1e4] sm:$0xf]
  %v220 = vld [vmem:[%s1 + $0x1e8] sm:$0xf]
  %v221 = vld [vmem:[%s1 + $0x1ec] sm:$0xf]
  %v222 = vld [vmem:[%s1 + $0x1f0] sm:$0xf]
  %v223 = vld [vmem:[%s1 + $0x1f4] sm:$0xf]
  %v224 = vld [vmem:[%s1 + $0x1f8] sm:$0xf]
  %v225 = vld [vmem:[%s1 + $0x1fc] sm:$0xf]
  %v226 = vld [vmem:[%s1 + $0x200] sm:$0xf]
  %v227 = vld [vmem:[%s1 + $0x204] sm:$0xf]
  %v228 = vld [vmem:[%s1 + $0x208] sm:$0xf]
  %v229 = vld [vmem:[%s1 + $0x20c] sm:$0xf]
  %v230 = vld [vmem:[%s1 + $0x210] sm:$0xf]
  %v231 = vld [vmem:[%s1 + $0x214] sm:$0xf]
  %v232 = vld [vmem:[%s1 + $0x218] sm:$0xf]
  %v233 = vld [vmem:[%s1 + $0x21c] sm:$0xf]
  %v234 = vld [vmem:[%s1 + $0x220] sm:$0xf]
  %v235 = vld [vmem:[%s1 + $0x224] sm:$0xf]
  %v236 = vld [vmem:[%s1 + $0x228] sm:$0xf]
  %v237 = vld [vmem:[%s1 + $0x22c] sm:$0xf]
  %v238 = vld [vmem:[%s1 + $0x230] sm:$0xf]
  %v239 = vld [vmem:[%s1 + $0x234] sm:$0xf]
  %v240 = vld [vmem:[%s1 + $0x238] sm:$0xf]
  %v241 = vld [vmem:[%s1 + $0x23c] sm:$0xf]
  %v242 = vld [vmem:[%s2] sm:$0x1]
  %v244 = vlaneseq
  %v245 = vshrl.u32 %v244, 7
  %v246 = vsub.s32 0, %v245
  %v247 = vrot.slane %v242, %v246
  %v329 = vunpack.c.l.b16 %v18
  %v330 = vunpack.c.h.b16 %v18
  %v331 = vunpack.c.l.b16 %v19
  %v332 = vunpack.c.h.b16 %v19
  %v333 = vunpack.c.l.b16 %v20
  %v334 = vunpack.c.h.b16 %v20
  %v335 = vunpack.c.l.b16 %v21
  %v336 = vunpack.c.h.b16 %v21
  %v337 = vunpack.c.l.b16 %v22
  %v338 = vunpack.c.l.b16 %v23
  %v339 = vunpack.c.h.b16 %v23
  %v340 = vunpack.c.l.b16 %v24
  %v341 = vunpack.c.h.b16 %v24
  %v342 = vunpack.c.l.b16 %v25
  %v343 = vunpack.c.h.b16 %v25
  %v344 = vunpack.c.l.b16 %v26
  %v345 = vunpack.c.h.b16 %v26
  %v346 = vunpack.c.l.b16 %v27
  %v347 = vunpack.c.l.b16 %v28
  %v348 = vunpack.c.h.b16 %v28
  %v349 = vunpack.c.l.b16 %v29
  %v350 = vunpack.c.h.b16 %v29
  %v351 = vunpack.c.l.b16 %v30
  %v352 = vunpack.c.h.b16 %v30
  %v353 = vunpack.c.l.b16 %v31
  %v354 = vunpack.c.h.b16 %v31
  %v355 = vunpack.c.l.b16 %v32
  %v356 = vunpack.c.l.b16 %v33
  %v357 = vunpack.c.h.b16 %v33
  %v358 = vunpack.c.l.b16 %v34
  %v359 = vunpack.c.h.b16 %v34
  %v360 = vunpack.c.l.b16 %v35
  %v361 = vunpack.c.h.b16 %v35
  %v362 = vunpack.c.l.b16 %v36
  %v363 = vunpack.c.h.b16 %v36
  %v364 = vunpack.c.l.b16 %v37
  %v365 = vunpack.c.l.b16 %v38
  %v366 = vunpack.c.h.b16 %v38
  %v367 = vunpack.c.l.b16 %v39
  %v368 = vunpack.c.h.b16 %v39
  %v369 = vunpack.c.l.b16 %v40
  %v370 = vunpack.c.h.b16 %v40
  %v371 = vunpack.c.l.b16 %v41
  %v372 = vunpack.c.h.b16 %v41
  %v373 = vunpack.c.l.b16 %v42
  %v374 = vunpack.c.l.b16 %v43
  %v375 = vunpack.c.h.b16 %v43
  %v376 = vunpack.c.l.b16 %v44
  %v377 = vunpack.c.h.b16 %v44
  %v378 = vunpack.c.l.b16 %v45
  %v379 = vunpack.c.h.b16 %v45
  %v380 = vunpack.c.l.b16 %v46
  %v381 = vunpack.c.h.b16 %v46
  %v382 = vunpack.c.l.b16 %v47
  %v383 = vunpack.c.l.b16 %v48
  %v384 = vunpack.c.h.b16 %v48
  %v385 = vunpack.c.l.b16 %v49
  %v386 = vunpack.c.h.b16 %v49
  %v387 = vunpack.c.l.b16 %v50
  %v388 = vunpack.c.h.b16 %v50
  %v389 = vunpack.c.l.b16 %v51
  %v390 = vunpack.c.h.b16 %v51
  %v391 = vunpack.c.l.b16 %v52
  %v392 = vunpack.c.l.b16 %v53
  %v393 = vunpack.c.h.b16 %v53
  %v394 = vunpack.c.l.b16 %v54
  %v395 = vunpack.c.h.b16 %v54
  %v396 = vunpack.c.l.b16 %v55
  %v397 = vunpack.c.h.b16 %v55
  %v398 = vunpack.c.l.b16 %v56
  %v399 = vunpack.c.h.b16 %v56
  %v400 = vunpack.c.l.b16 %v57
  %v401 = vunpack.c.l.b16 %v58
  %v402 = vunpack.c.h.b16 %v58
  %v403 = vunpack.c.l.b16 %v59
  %v404 = vunpack.c.h.b16 %v59
  %v405 = vunpack.c.l.b16 %v60
  %v406 = vunpack.c.h.b16 %v60
  %v407 = vunpack.c.l.b16 %v61
  %v408 = vunpack.c.h.b16 %v61
  %v409 = vunpack.c.l.b16 %v62
  %v410 = vunpack.c.l.b16 %v63
  %v411 = vunpack.c.h.b16 %v63
  %v412 = vunpack.c.l.b16 %v64
  %v413 = vunpack.c.h.b16 %v64
  %v414 = vunpack.c.l.b16 %v65
  %v415 = vunpack.c.h.b16 %v65
  %v416 = vunpack.c.l.b16 %v66
  %v417 = vunpack.c.h.b16 %v66
  %v418 = vunpack.c.l.b16 %v67
  %v419 = vunpack.c.l.b16 %v68
  %v420 = vunpack.c.h.b16 %v68
  %v421 = vunpack.c.l.b16 %v69
  %v422 = vunpack.c.h.b16 %v69
  %v423 = vunpack.c.l.b16 %v70
  %v424 = vunpack.c.h.b16 %v70
  %v425 = vunpack.c.l.b16 %v71
  %v426 = vunpack.c.h.b16 %v71
  %v427 = vunpack.c.l.b16 %v72
  %v428 = vunpack.c.l.b16 %v73
  %v429 = vunpack.c.h.b16 %v73
  %v430 = vunpack.c.l.b16 %v74
  %v431 = vunpack.c.h.b16 %v74
  %v432 = vunpack.c.l.b16 %v75
  %v433 = vunpack.c.h.b16 %v75
  %v434 = vunpack.c.l.b16 %v76
  %v435 = vunpack.c.h.b16 %v76
  %v436 = vunpack.c.l.b16 %v77
  %v437 = vunpack.c.l.b16 %v78
  %v438 = vunpack.c.h.b16 %v78
  %v439 = vunpack.c.l.b16 %v79
  %v440 = vunpack.c.h.b16 %v79
  %v441 = vunpack.c.l.b16 %v80
  %v442 = vunpack.c.h.b16 %v80
  %v443 = vunpack.c.l.b16 %v81
  %v444 = vunpack.c.h.b16 %v81
  %v445 = vunpack.c.l.b16 %v82
  %v446 = vunpack.c.l.b16 %v83
  %v447 = vunpack.c.h.b16 %v83
  %v448 = vunpack.c.l.b16 %v84
  %v449 = vunpack.c.h.b16 %v84
  %v450 = vunpack.c.l.b16 %v85
  %v451 = vunpack.c.h.b16 %v85
  %v452 = vunpack.c.l.b16 %v86
  %v453 = vunpack.c.h.b16 %v86
  %v454 = vunpack.c.l.b16 %v87
  %v455 = vunpack.c.l.b16 %v88
  %v456 = vunpack.c.h.b16 %v88
  %v457 = vunpack.c.l.b16 %v89
  %v458 = vunpack.c.h.b16 %v89
  %v459 = vunpack.c.l.b16 %v90
  %v460 = vunpack.c.h.b16 %v90
  %v461 = vunpack.c.l.b16 %v91
  %v462 = vunpack.c.h.b16 %v91
  %v463 = vunpack.c.l.b16 %v92
  %v464 = vunpack.c.l.b16 %v93
  %v465 = vunpack.c.h.b16 %v93
  %v466 = vunpack.c.l.b16 %v94
  %v467 = vunpack.c.h.b16 %v94
  %v468 = vunpack.c.l.b16 %v95
  %v469 = vunpack.c.h.b16 %v95
  %v470 = vunpack.c.l.b16 %v96
  %v471 = vunpack.c.h.b16 %v96
  %v472 = vunpack.c.l.b16 %v97
  %v473 = vpack.c.b16 %v338, %v329
  %v474 = vpack.c.b16 %v339, %v330
  %v475 = vpack.c.b16 %v340, %v331
  %v476 = vpack.c.b16 %v341, %v332
  %v477 = vpack.c.b16 %v342, %v333
  %v478 = vpack.c.b16 %v343, %v334
  %v479 = vpack.c.b16 %v344, %v335
  %v480 = vpack.c.b16 %v345, %v336
  %v481 = vpack.c.b16 %v346, %v337
  %v482 = vpack.c.b16 %v356, %v347
  %v483 = vpack.c.b16 %v357, %v348
  %v484 = vpack.c.b16 %v358, %v349
  %v485 = vpack.c.b16 %v359, %v350
  %v486 = vpack.c.b16 %v360, %v351
  %v487 = vpack.c.b16 %v361, %v352
  %v488 = vpack.c.b16 %v362, %v353
  %v489 = vpack.c.b16 %v363, %v354
  %v490 = vpack.c.b16 %v364, %v355
  %v491 = vpack.c.b16 %v374, %v365
  %v492 = vpack.c.b16 %v375, %v366
  %v493 = vpack.c.b16 %v376, %v367
  %v494 = vpack.c.b16 %v377, %v368
  %v495 = vpack.c.b16 %v378, %v369
  %v496 = vpack.c.b16 %v379, %v370
  %v497 = vpack.c.b16 %v380, %v371
  %v498 = vpack.c.b16 %v381, %v372
  %v499 = vpack.c.b16 %v382, %v373
  %v500 = vpack.c.b16 %v392, %v383
  %v501 = vpack.c.b16 %v393, %v384
  %v502 = vpack.c.b16 %v394, %v385
  %v503 = vpack.c.b16 %v395, %v386
  %v504 = vpack.c.b16 %v396, %v387
  %v505 = vpack.c.b16 %v397, %v388
  %v506 = vpack.c.b16 %v398, %v389
  %v507 = vpack.c.b16 %v399, %v390
  %v508 = vpack.c.b16 %v400, %v391
  %v509 = vpack.c.b16 %v410, %v401
  %v510 = vpack.c.b16 %v411, %v402
  %v511 = vpack.c.b16 %v412, %v403
  %v512 = vpack.c.b16 %v413, %v404
  %v513 = vpack.c.b16 %v414, %v405
  %v514 = vpack.c.b16 %v415, %v406
  %v515 = vpack.c.b16 %v416, %v407
  %v516 = vpack.c.b16 %v417, %v408
  %v517 = vpack.c.b16 %v418, %v409
  %v518 = vpack.c.b16 %v428, %v419
  %v519 = vpack.c.b16 %v429, %v420
  %v520 = vpack.c.b16 %v430, %v421
  %v521 = vpack.c.b16 %v431, %v422
  %v522 = vpack.c.b16 %v432, %v423
  %v523 = vpack.c.b16 %v433, %v424
  %v524 = vpack.c.b16 %v434, %v425
  %v525 = vpack.c.b16 %v435, %v426
  %v526 = vpack.c.b16 %v436, %v427
  %v527 = vpack.c.b16 %v446, %v437
  %v528 = vpack.c.b16 %v447, %v438
  %v529 = vpack.c.b16 %v448, %v439
  %v530 = vpack.c.b16 %v449, %v440
  %v531 = vpack.c.b16 %v450, %v441
  %v532 = vpack.c.b16 %v451, %v442
  %v533 = vpack.c.b16 %v452, %v443
  %v534 = vpack.c.b16 %v453, %v444
  %v535 = vpack.c.b16 %v454, %v445
  %v536 = vpack.c.b16 %v464, %v455
  %v537 = vpack.c.b16 %v465, %v456
  %v538 = vpack.c.b16 %v466, %v457
  %v539 = vpack.c.b16 %v467, %v458
  %v540 = vpack.c.b16 %v468, %v459
  %v541 = vpack.c.b16 %v469, %v460
  %v542 = vpack.c.b16 %v470, %v461
  %v543 = vpack.c.b16 %v471, %v462
  %v544 = vpack.c.b16 %v472, %v463
  %v761 = vunpack.c.l.b16 %v98
  %v762 = vunpack.c.l.b16 %v99
  %v763 = vunpack.c.l.b16 %v100
  %v764 = vunpack.c.l.b16 %v101
  %v765 = vunpack.c.l.b16 %v102
  %v766 = vunpack.c.l.b16 %v103
  %v767 = vunpack.c.l.b16 %v104
  %v768 = vunpack.c.l.b16 %v105
  %v769 = vunpack.c.l.b16 %v106
  %v770 = vunpack.c.l.b16 %v107
  %v771 = vunpack.c.l.b16 %v108
  %v772 = vunpack.c.l.b16 %v109
  %v773 = vunpack.c.l.b16 %v110
  %v774 = vunpack.c.l.b16 %v111
  %v775 = vunpack.c.l.b16 %v112
  %v776 = vunpack.c.l.b16 %v113
  %v777 = vunpack.c.l.b16 %v114
  %v778 = vunpack.c.l.b16 %v115
  %v779 = vunpack.c.l.b16 %v116
  %v780 = vunpack.c.l.b16 %v117
  %v781 = vunpack.c.l.b16 %v118
  %v782 = vunpack.c.l.b16 %v119
  %v783 = vunpack.c.l.b16 %v120
  %v784 = vunpack.c.l.b16 %v121
  %v785 = vunpack.c.l.b16 %v122
  %v786 = vunpack.c.l.b16 %v123
  %v787 = vunpack.c.l.b16 %v124
  %v788 = vunpack.c.l.b16 %v125
  %v789 = vunpack.c.l.b16 %v126
  %v790 = vunpack.c.l.b16 %v127
  %v791 = vunpack.c.l.b16 %v128
  %v792 = vunpack.c.l.b16 %v129
  %v793 = vunpack.c.l.b16 %v130
  %v794 = vunpack.c.l.b16 %v131
  %v795 = vunpack.c.l.b16 %v132
  %v796 = vunpack.c.l.b16 %v133
  %v797 = vunpack.c.l.b16 %v134
  %v798 = vunpack.c.l.b16 %v135
  %v799 = vunpack.c.l.b16 %v136
  %v800 = vunpack.c.l.b16 %v137
  %v801 = vunpack.c.l.b16 %v138
  %v802 = vunpack.c.l.b16 %v139
  %v803 = vunpack.c.l.b16 %v140
  %v804 = vunpack.c.l.b16 %v141
  %v805 = vunpack.c.l.b16 %v142
  %v806 = vunpack.c.l.b16 %v143
  %v807 = vunpack.c.l.b16 %v144
  %v808 = vunpack.c.l.b16 %v145
  %v809 = vunpack.c.l.b16 %v146
  %v810 = vunpack.c.l.b16 %v147
  %v811 = vunpack.c.l.b16 %v148
  %v812 = vunpack.c.l.b16 %v149
  %v813 = vunpack.c.l.b16 %v150
  %v814 = vunpack.c.l.b16 %v151
  %v815 = vunpack.c.l.b16 %v152
  %v816 = vunpack.c.l.b16 %v153
  %v817 = vunpack.c.l.b16 %v154
  %v818 = vunpack.c.l.b16 %v155
  %v819 = vunpack.c.l.b16 %v156
  %v820 = vunpack.c.l.b16 %v157
  %v821 = vunpack.c.l.b16 %v158
  %v822 = vunpack.c.l.b16 %v159
  %v823 = vunpack.c.l.b16 %v160
  %v824 = vunpack.c.l.b16 %v161
  %v825 = vunpack.c.l.b16 %v162
  %v826 = vunpack.c.l.b16 %v163
  %v827 = vunpack.c.l.b16 %v164
  %v828 = vunpack.c.l.b16 %v165
  %v829 = vunpack.c.l.b16 %v166
  %v830 = vunpack.c.l.b16 %v167
  %v831 = vunpack.c.l.b16 %v168
  %v832 = vunpack.c.l.b16 %v169
  %v833 = vunpack.c.l.b16 %v170
  %v834 = vunpack.c.l.b16 %v171
  %v835 = vunpack.c.l.b16 %v172
  %v836 = vunpack.c.l.b16 %v173
  %v837 = vunpack.c.l.b16 %v174
  %v838 = vunpack.c.l.b16 %v175
  %v839 = vunpack.c.l.b16 %v176
  %v840 = vunpack.c.l.b16 %v177
  %v841 = vunpack.c.l.b16 %v178
  %v842 = vunpack.c.l.b16 %v179
  %v843 = vunpack.c.l.b16 %v180
  %v844 = vunpack.c.l.b16 %v181
  %v845 = vunpack.c.l.b16 %v182
  %v846 = vunpack.c.l.b16 %v183
  %v847 = vunpack.c.l.b16 %v184
  %v848 = vunpack.c.l.b16 %v185
  %v849 = vunpack.c.l.b16 %v186
  %v850 = vunpack.c.l.b16 %v187
  %v851 = vunpack.c.l.b16 %v188
  %v852 = vunpack.c.l.b16 %v189
  %v853 = vunpack.c.l.b16 %v190
  %v854 = vunpack.c.l.b16 %v191
  %v855 = vunpack.c.l.b16 %v192
  %v856 = vunpack.c.l.b16 %v193
  %v857 = vunpack.c.l.b16 %v194
  %v858 = vunpack.c.l.b16 %v195
  %v859 = vunpack.c.l.b16 %v196
  %v860 = vunpack.c.l.b16 %v197
  %v861 = vunpack.c.l.b16 %v198
  %v862 = vunpack.c.l.b16 %v199
  %v863 = vunpack.c.l.b16 %v200
  %v864 = vunpack.c.l.b16 %v201
  %v865 = vunpack.c.l.b16 %v202
  %v866 = vunpack.c.l.b16 %v203
  %v867 = vunpack.c.l.b16 %v204
  %v868 = vunpack.c.l.b16 %v205
  %v869 = vunpack.c.l.b16 %v206
  %v870 = vunpack.c.l.b16 %v207
  %v871 = vunpack.c.l.b16 %v208
  %v872 = vunpack.c.l.b16 %v209
  %v873 = vunpack.c.l.b16 %v210
  %v874 = vunpack.c.l.b16 %v211
  %v875 = vunpack.c.l.b16 %v212
  %v876 = vunpack.c.l.b16 %v213
  %v877 = vunpack.c.l.b16 %v214
  %v878 = vunpack.c.l.b16 %v215
  %v879 = vunpack.c.l.b16 %v216
  %v880 = vunpack.c.l.b16 %v217
  %v881 = vunpack.c.l.b16 %v218
  %v882 = vunpack.c.l.b16 %v219
  %v883 = vunpack.c.l.b16 %v220
  %v884 = vunpack.c.l.b16 %v221
  %v885 = vunpack.c.l.b16 %v222
  %v886 = vunpack.c.l.b16 %v223
  %v887 = vunpack.c.l.b16 %v224
  %v888 = vunpack.c.l.b16 %v225
  %v889 = vunpack.c.l.b16 %v226
  %v890 = vunpack.c.l.b16 %v227
  %v891 = vunpack.c.l.b16 %v228
  %v892 = vunpack.c.l.b16 %v229
  %v893 = vunpack.c.l.b16 %v230
  %v894 = vunpack.c.l.b16 %v231
  %v895 = vunpack.c.l.b16 %v232
  %v896 = vunpack.c.l.b16 %v233
  %v897 = vunpack.c.l.b16 %v234
  %v898 = vunpack.c.l.b16 %v235
  %v899 = vunpack.c.l.b16 %v236
  %v900 = vunpack.c.l.b16 %v237
  %v901 = vunpack.c.l.b16 %v238
  %v902 = vunpack.c.l.b16 %v239
  %v903 = vunpack.c.l.b16 %v240
  %v904 = vunpack.c.l.b16 %v241
  %v905 = vpack.c.b16 %v762, %v761
  %v906 = vpack.c.b16 %v764, %v763
  %v907 = vpack.c.b16 %v766, %v765
  %v908 = vpack.c.b16 %v768, %v767
  %v909 = vpack.c.b16 %v770, %v769
  %v910 = vpack.c.b16 %v772, %v771
  %v911 = vpack.c.b16 %v774, %v773
  %v912 = vpack.c.b16 %v776, %v775
  %v913 = vpack.c.b16 %v778, %v777
  %v914 = vpack.c.b16 %v780, %v779
  %v915 = vpack.c.b16 %v782, %v781
  %v916 = vpack.c.b16 %v784, %v783
  %v917 = vpack.c.b16 %v786, %v785
  %v918 = vpack.c.b16 %v788, %v787
  %v919 = vpack.c.b16 %v790, %v789
  %v920 = vpack.c.b16 %v792, %v791
  %v921 = vpack.c.b16 %v794, %v793
  %v922 = vpack.c.b16 %v796, %v795
  %v923 = vpack.c.b16 %v798, %v797
  %v924 = vpack.c.b16 %v800, %v799
  %v925 = vpack.c.b16 %v802, %v801
  %v926 = vpack.c.b16 %v804, %v803
  %v927 = vpack.c.b16 %v806, %v805
  %v928 = vpack.c.b16 %v808, %v807
  %v929 = vpack.c.b16 %v810, %v809
  %v930 = vpack.c.b16 %v812, %v811
  %v931 = vpack.c.b16 %v814, %v813
  %v932 = vpack.c.b16 %v816, %v815
  %v933 = vpack.c.b16 %v818, %v817
  %v934 = vpack.c.b16 %v820, %v819
  %v935 = vpack.c.b16 %v822, %v821
  %v936 = vpack.c.b16 %v824, %v823
  %v937 = vpack.c.b16 %v826, %v825
  %v938 = vpack.c.b16 %v828, %v827
  %v939 = vpack.c.b16 %v830, %v829
  %v940 = vpack.c.b16 %v832, %v831
  %v941 = vpack.c.b16 %v834, %v833
  %v942 = vpack.c.b16 %v836, %v835
  %v943 = vpack.c.b16 %v838, %v837
  %v944 = vpack.c.b16 %v840, %v839
  %v945 = vpack.c.b16 %v842, %v841
  %v946 = vpack.c.b16 %v844, %v843
  %v947 = vpack.c.b16 %v846, %v845
  %v948 = vpack.c.b16 %v848, %v847
  %v949 = vpack.c.b16 %v850, %v849
  %v950 = vpack.c.b16 %v852, %v851
  %v951 = vpack.c.b16 %v854, %v853
  %v952 = vpack.c.b16 %v856, %v855
  %v953 = vpack.c.b16 %v858, %v857
  %v954 = vpack.c.b16 %v860, %v859
  %v955 = vpack.c.b16 %v862, %v861
  %v956 = vpack.c.b16 %v864, %v863
  %v957 = vpack.c.b16 %v866, %v865
  %v958 = vpack.c.b16 %v868, %v867
  %v959 = vpack.c.b16 %v870, %v869
  %v960 = vpack.c.b16 %v872, %v871
  %v961 = vpack.c.b16 %v874, %v873
  %v962 = vpack.c.b16 %v876, %v875
  %v963 = vpack.c.b16 %v878, %v877
  %v964 = vpack.c.b16 %v880, %v879
  %v965 = vpack.c.b16 %v882, %v881
  %v966 = vpack.c.b16 %v884, %v883
  %v967 = vpack.c.b16 %v886, %v885
  %v968 = vpack.c.b16 %v888, %v887
  %v969 = vpack.c.b16 %v890, %v889
  %v970 = vpack.c.b16 %v892, %v891
  %v971 = vpack.c.b16 %v894, %v893
  %v972 = vpack.c.b16 %v896, %v895
  %v973 = vpack.c.b16 %v898, %v897
  %v974 = vpack.c.b16 %v900, %v899
  %v975 = vpack.c.b16 %v902, %v901
  %v976 = vpack.c.b16 %v904, %v903
  %1049 = vmatprep.subr.bf16.mxu0 0
  %1050 = vmatpush1.bf16.msra.mxu0 %v905
  %1051 = vmatprep.subr.bf16.mxu0 0
  %1052 = vmatpush1.bf16.msra.mxu0 %v906
  %1053 = vmatprep.subr.bf16.mxu0 0
  %1054 = vmatpush1.bf16.msra.mxu0 %v907
  %1055 = vmatprep.subr.bf16.mxu0 0
  %1056 = vmatpush1.bf16.msra.mxu0 %v908
  %1057 = vmatprep.subr.bf16.mxu0 0
  %1058 = vmatpush1.bf16.msra.mxu0 %v909
  %1059 = vmatprep.subr.bf16.mxu0 0
  %1060 = vmatpush1.bf16.msra.mxu0 %v910
  %1061 = vmatprep.subr.bf16.mxu0 0
  %1062 = vmatpush1.bf16.msra.mxu0 %v911
  %1063 = vmatprep.subr.bf16.mxu0 0
  %1064 = vmatpush1.bf16.msra.mxu0 %v912
  %1065 = vmatprep.subr.bf16.mxu0 0
  %1066 = vmatpush1.bf16.msra.mxu0 %v913
  %1067 = vmatprep.subr.bf16.mxu0 0
  %1068 = vmatpush1.bf16.msra.mxu0 %v914
  %1069 = vmatprep.subr.bf16.mxu0 0
  %1070 = vmatpush1.bf16.msra.mxu0 %v915
  %1071 = vmatprep.subr.bf16.mxu0 0
  %1072 = vmatpush1.bf16.msra.mxu0 %v916
  %1073 = vmatprep.subr.bf16.mxu0 0
  %1074 = vmatpush1.bf16.msra.mxu0 %v917
  %1075 = vmatprep.subr.bf16.mxu0 0
  %1076 = vmatpush1.bf16.msra.mxu0 %v918
  %1077 = vmatprep.subr.bf16.mxu0 0
  %1078 = vmatpush1.bf16.msra.mxu0 %v919
  %1079 = vmatprep.subr.bf16.mxu0 0
  %1080 = vmatpush1.bf16.msra.mxu0 %v920
  %1081 = vmatprep.mubr.bf16.mxu0 %v474
  %1082 = vmatmul.mubr.bf16.gmra.mrb[0].mxu0 %v473
  %v1083 = vpop.f32.mrb[0].mxu0
  %v1084 = vadd.f32 %v247, %v1083
  %v1085 = vpop.f32.mrb[0].mxu0
  %v1086 = vpop.f32.mrb[0].mxu0
  %v1087 = vadd.f32 %v247, %v1086
  %v1088 = vpop.f32.mrb[0].mxu0
  %1089 = vmatprep.mubr.bf16.mxu0 %v483
  %1090 = vmatmul.mubr.bf16.gmra.mrb[0].mxu0 %v482
  %v1091 = vpop.f32.mrb[0].mxu0
  %v1092 = vadd.f32 %v247, %v1091
  %v1093 = vpop.f32.mrb[0].mxu0
  %v1094 = vpop.f32.mrb[0].mxu0
  %v1095 = vadd.f32 %v247, %v1094
  %v1096 = vpop.f32.mrb[0].mxu0
  %1097 = vmatprep.mubr.bf16.mxu0 %v492
  %1098 = vmatmul.mubr.bf16.gmra.mrb[0].mxu0 %v491
  %v1099 = vpop.f32.mrb[0].mxu0
  %v1100 = vadd.f32 %v247, %v1099
  %v1101 = vpop.f32.mrb[0].mxu0
  %v1102 = vpop.f32.mrb[0].mxu0
  %v1103 = vadd.f32 %v247, %v1102
  %v1104 = vpop.f32.mrb[0].mxu0
  %1105 = vmatprep.mubr.bf16.mxu0 %v501
  %1106 = vmatmul.mubr.bf16.gmra.mrb[0].mxu0 %v500
  %v1107 = vpop.f32.mrb[0].mxu0
  %v1108 = vadd.f32 %v247, %v1107
  %v1109 = vpop.f32.mrb[0].mxu0
  %v1110 = vpop.f32.mrb[0].mxu0
  %v1111 = vadd.f32 %v247, %v1110
  %v1112 = vpop.f32.mrb[0].mxu0
  %1113 = vmatprep.mubr.bf16.mxu0 %v510
  %1114 = vmatmul.mubr.bf16.gmra.mrb[0].mxu0 %v509
  %v1115 = vpop.f32.mrb[0].mxu0
  %v1116 = vadd.f32 %v247, %v1115
  %v1117 = vpop.f32.mrb[0].mxu0
  %v1118 = vpop.f32.mrb[0].mxu0
  %v1119 = vadd.f32 %v247, %v1118
  %v1120 = vpop.f32.mrb[0].mxu0
  %1121 = vmatprep.mubr.bf16.mxu0 %v519
  %1122 = vmatmul.mubr.bf16.gmra.mrb[0].mxu0 %v518
  %v1123 = vpop.f32.mrb[0].mxu0
  %v1124 = vadd.f32 %v247, %v1123
  %v1125 = vpop.f32.mrb[0].mxu0
  %v1126 = vpop.f32.mrb[0].mxu0
  %v1127 = vadd.f32 %v247, %v1126
  %v1128 = vpop.f32.mrb[0].mxu0
  %1129 = vmatprep.mubr.bf16.mxu0 %v528
  %1130 = vmatmul.mubr.bf16.gmra.mrb[0].mxu0 %v527
  %v1131 = vpop.f32.mrb[0].mxu0
  %v1132 = vadd.f32 %v247, %v1131
  %v1133 = vpop.f32.mrb[0].mxu0
  %v1134 = vpop.f32.mrb[0].mxu0
  %v1135 = vadd.f32 %v247, %v1134
  %v1136 = vpop.f32.mrb[0].mxu0
  %1137 = vmatprep.mubr.bf16.mxu0 %v537
  %1138 = vmatmul.mubr.bf16.gmra.mrb[0].mxu0 %v536
  %v1139 = vpop.f32.mrb[0].mxu0
  %v1140 = vadd.f32 %v247, %v1139
  %v1141 = vpop.f32.mrb[0].mxu0
  %v1142 = vpop.f32.mrb[0].mxu0
  %v1143 = vadd.f32 %v247, %v1142
  %v1144 = vpop.f32.mrb[0].mxu0
  %1145 = vdwg.mxu0
  %1146 = vmatprep.subr.bf16.mxu0 0
  %1147 = vmatpush1.bf16.msra.mxu0 %v921
  %1148 = vmatprep.subr.bf16.mxu0 0
  %1149 = vmatpush1.bf16.msra.mxu0 %v922
  %1150 = vmatprep.subr.bf16.mxu0 0
  %1151 = vmatpush1.bf16.msra.mxu0 %v923
  %1152 = vmatprep.subr.bf16.mxu0 0
  %1153 = vmatpush1.bf16.msra.mxu0 %v924
  %1154 = vmatprep.subr.bf16.mxu0 0
  %1155 = vmatpush1.bf16.msra.mxu0 %v925
  %1156 = vmatprep.subr.bf16.mxu0 0
  %1157 = vmatpush1.bf16.msra.mxu0 %v926
  %1158 = vmatprep.subr.bf16.mxu0 0
  %1159 = vmatpush1.bf16.msra.mxu0 %v927
  %1160 = vmatprep.subr.bf16.mxu0 0
  %1161 = vmatpush1.bf16.msra.mxu0 %v928
  %1162 = vmatprep.subr.bf16.mxu0 0
  %1163 = vmatpush1.bf16.msra.mxu0 %v929
  %1164 = vmatprep.subr.bf16.mxu0 0
  %1165 = vmatpush1.bf16.msra.mxu0 %v930
  %1166 = vmatprep.subr.bf16.mxu0 0
  %1167 = vmatpush1.bf16.msra.mxu0 %v931
  %1168 = vmatprep.subr.bf16.mxu0 0
  %1169 = vmatpush1.bf16.msra.mxu0 %v932
  %1170 = vmatprep.subr.bf16.mxu0 0
  %1171 = vmatpush1.bf16.msra.mxu0 %v933
  %1172 = vmatprep.subr.bf16.mxu0 0
  %1173 = vmatpush1.bf16.msra.mxu0 %v934
  %1174 = vmatprep.subr.bf16.mxu0 0
  %1175 = vmatpush1.bf16.msra.mxu0 %v935
  %1176 = vmatprep.subr.bf16.mxu0 0
  %1177 = vmatpush1.bf16.msra.mxu0 %v936
  %1178 = vmatprep.mubr.bf16.mxu0 %v476
  %1179 = vmatmul.mubr.bf16.gmra.mrb[0].mxu0 %v475
  %v1180 = vpop.f32.mrb[0].mxu0
  %v1181 = vadd.f32 %v1084, %v1180
  %v1182 = vpop.f32.mrb[0].mxu0
  %v1183 = vpop.f32.mrb[0].mxu0
  %v1184 = vadd.f32 %v1087, %v1183
  %v1185 = vpop.f32.mrb[0].mxu0
  %1186 = vmatprep.mubr.bf16.mxu0 %v485
  %1187 = vmatmul.mubr.bf16.gmra.mrb[0].mxu0 %v484
  %v1188 = vpop.f32.mrb[0].mxu0
  %v1189 = vadd.f32 %v1092, %v1188
  %v1190 = vpop.f32.mrb[0].mxu0
  %v1191 = vpop.f32.mrb[0].mxu0
  %v1192 = vadd.f32 %v1095, %v1191
  %v1193 = vpop.f32.mrb[0].mxu0
  %1194 = vmatprep.mubr.bf16.mxu0 %v494
  %1195 = vmatmul.mubr.bf16.gmra.mrb[0].mxu0 %v493
  %v1196 = vpop.f32.mrb[0].mxu0
  %v1197 = vadd.f32 %v1100, %v1196
  %v1198 = vpop.f32.mrb[0].mxu0
  %v1199 = vpop.f32.mrb[0].mxu0
  %v1200 = vadd.f32 %v1103, %v1199
  %v1201 = vpop.f32.mrb[0].mxu0
  %1202 = vmatprep.mubr.bf16.mxu0 %v503
  %1203 = vmatmul.mubr.bf16.gmra.mrb[0].mxu0 %v502
  %v1204 = vpop.f32.mrb[0].mxu0
  %v1205 = vadd.f32 %v1108, %v1204
  %v1206 = vpop.f32.mrb[0].mxu0
  %v1207 = vpop.f32.mrb[0].mxu0
  %v1208 = vadd.f32 %v1111, %v1207
  %v1209 = vpop.f32.mrb[0].mxu0
  %1210 = vmatprep.mubr.bf16.mxu0 %v512
  %1211 = vmatmul.mubr.bf16.gmra.mrb[0].mxu0 %v511
  %v1212 = vpop.f32.mrb[0].mxu0
  %v1213 = vadd.f32 %v1116, %v1212
  %v1214 = vpop.f32.mrb[0].mxu0
  %v1215 = vpop.f32.mrb[0].mxu0
  %v1216 = vadd.f32 %v1119, %v1215
  %v1217 = vpop.f32.mrb[0].mxu0
  %1218 = vmatprep.mubr.bf16.mxu0 %v521
  %1219 = vmatmul.mubr.bf16.gmra.mrb[0].mxu0 %v520
  %v1220 = vpop.f32.mrb[0].mxu0
  %v1221 = vadd.f32 %v1124, %v1220
  %v1222 = vpop.f32.mrb[0].mxu0
  %v1223 = vpop.f32.mrb[0].mxu0
  %v1224 = vadd.f32 %v1127, %v1223
  %v1225 = vpop.f32.mrb[0].mxu0
  %1226 = vmatprep.mubr.bf16.mxu0 %v530
  %1227 = vmatmul.mubr.bf16.gmra.mrb[0].mxu0 %v529
  %v1228 = vpop.f32.mrb[0].mxu0
  %v1229 = vadd.f32 %v1132, %v1228
  %v1230 = vpop.f32.mrb[0].mxu0
  %v1231 = vpop.f32.mrb[0].mxu0
  %v1232 = vadd.f32 %v1135, %v1231
  %v1233 = vpop.f32.mrb[0].mxu0
  %1234 = vmatprep.mubr.bf16.mxu0 %v539
  %1235 = vmatmul.mubr.bf16.gmra.mrb[0].mxu0 %v538
  %v1236 = vpop.f32.mrb[0].mxu0
  %v1237 = vadd.f32 %v1140, %v1236
  %v1238 = vpop.f32.mrb[0].mxu0
  %v1239 = vpop.f32.mrb[0].mxu0
  %v1240 = vadd.f32 %v1143, %v1239
  %v1241 = vpop.f32.mrb[0].mxu0
  %1242 = vdwg.mxu0
  %1243 = vmatprep.subr.bf16.mxu0 0
  %1244 = vmatpush1.bf16.msra.mxu0 %v937
  %1245 = vmatprep.subr.bf16.mxu0 0
  %1246 = vmatpush1.bf16.msra.mxu0 %v938
  %1247 = vmatprep.subr.bf16.mxu0 0
  %1248 = vmatpush1.bf16.msra.mxu0 %v939
  %1249 = vmatprep.subr.bf16.mxu0 0
  %1250 = vmatpush1.bf16.msra.mxu0 %v940
  %1251 = vmatprep.subr.bf16.mxu0 0
  %1252 = vmatpush1.bf16.msra.mxu0 %v941
  %1253 = vmatprep.subr.bf16.mxu0 0
  %1254 = vmatpush1.bf16.msra.mxu0 %v942
  %1255 = vmatprep.subr.bf16.mxu0 0
  %1256 = vmatpush1.bf16.msra.mxu0 %v943
  %1257 = vmatprep.subr.bf16.mxu0 0
  %1258 = vmatpush1.bf16.msra.mxu0 %v944
  %1259 = vmatprep.subr.bf16.mxu0 0
  %1260 = vmatpush1.bf16.msra.mxu0 %v945
  %1261 = vmatprep.subr.bf16.mxu0 0
  %1262 = vmatpush1.bf16.msra.mxu0 %v946
  %1263 = vmatprep.subr.bf16.mxu0 0
  %1264 = vmatpush1.bf16.msra.mxu0 %v947
  %1265 = vmatprep.subr.bf16.mxu0 0
  %1266 = vmatpush1.bf16.msra.mxu0 %v948
  %1267 = vmatprep.subr.bf16.mxu0 0
  %1268 = vmatpush1.bf16.msra.mxu0 %v949
  %1269 = vmatprep.subr.bf16.mxu0 0
  %1270 = vmatpush1.bf16.msra.mxu0 %v950
  %1271 = vmatprep.subr.bf16.mxu0 0
  %1272 = vmatpush1.bf16.msra.mxu0 %v951
  %1273 = vmatprep.subr.bf16.mxu0 0
  %1274 = vmatpush1.bf16.msra.mxu0 %v952
  %1275 = vmatprep.mubr.bf16.mxu0 %v478
  %1276 = vmatmul.mubr.bf16.gmra.mrb[0].mxu0 %v477
  %v1277 = vpop.f32.mrb[0].mxu0
  %v1278 = vadd.f32 %v1181, %v1277
  %v1279 = vpop.f32.mrb[0].mxu0
  %v1280 = vpop.f32.mrb[0].mxu0
  %v1281 = vadd.f32 %v1184, %v1280
  %v1282 = vpop.f32.mrb[0].mxu0
  %1283 = vmatprep.mubr.bf16.mxu0 %v487
  %1284 = vmatmul.mubr.bf16.gmra.mrb[0].mxu0 %v486
  %v1285 = vpop.f32.mrb[0].mxu0
  %v1286 = vadd.f32 %v1189, %v1285
  %v1287 = vpop.f32.mrb[0].mxu0
  %v1288 = vpop.f32.mrb[0].mxu0
  %v1289 = vadd.f32 %v1192, %v1288
  %v1290 = vpop.f32.mrb[0].mxu0
  %1291 = vmatprep.mubr.bf16.mxu0 %v496
  %1292 = vmatmul.mubr.bf16.gmra.mrb[0].mxu0 %v495
  %v1293 = vpop.f32.mrb[0].mxu0
  %v1294 = vadd.f32 %v1197, %v1293
  %v1295 = vpop.f32.mrb[0].mxu0
  %v1296 = vpop.f32.mrb[0].mxu0
  %v1297 = vadd.f32 %v1200, %v1296
  %v1298 = vpop.f32.mrb[0].mxu0
  %1299 = vmatprep.mubr.bf16.mxu0 %v505
  %1300 = vmatmul.mubr.bf16.gmra.mrb[0].mxu0 %v504
  %v1301 = vpop.f32.mrb[0].mxu0
  %v1302 = vadd.f32 %v1205, %v1301
  %v1303 = vpop.f32.mrb[0].mxu0
  %v1304 = vpop.f32.mrb[0].mxu0
  %v1305 = vadd.f32 %v1208, %v1304
  %v1306 = vpop.f32.mrb[0].mxu0
  %1307 = vmatprep.mubr.bf16.mxu0 %v514
  %1308 = vmatmul.mubr.bf16.gmra.mrb[0].mxu0 %v513
  %v1309 = vpop.f32.mrb[0].mxu0
  %v1310 = vadd.f32 %v1213, %v1309
  %v1311 = vpop.f32.mrb[0].mxu0
  %v1312 = vpop.f32.mrb[0].mxu0
  %v1313 = vadd.f32 %v1216, %v1312
  %v1314 = vpop.f32.mrb[0].mxu0
  %1315 = vmatprep.mubr.bf16.mxu0 %v523
  %1316 = vmatmul.mubr.bf16.gmra.mrb[0].mxu0 %v522
  %v1317 = vpop.f32.mrb[0].mxu0
  %v1318 = vadd.f32 %v1221, %v1317
  %v1319 = vpop.f32.mrb[0].mxu0
  %v1320 = vpop.f32.mrb[0].mxu0
  %v1321 = vadd.f32 %v1224, %v1320
  %v1322 = vpop.f32.mrb[0].mxu0
  %1323 = vmatprep.mubr.bf16.mxu0 %v532
  %1324 = vmatmul.mubr.bf16.gmra.mrb[0].mxu0 %v531
  %v1325 = vpop.f32.mrb[0].mxu0
  %v1326 = vadd.f32 %v1229, %v1325
  %v1327 = vpop.f32.mrb[0].mxu0
  %v1328 = vpop.f32.mrb[0].mxu0
  %v1329 = vadd.f32 %v1232, %v1328
  %v1330 = vpop.f32.mrb[0].mxu0
  %1331 = vmatprep.mubr.bf16.mxu0 %v541
  %1332 = vmatmul.mubr.bf16.gmra.mrb[0].mxu0 %v540
  %v1333 = vpop.f32.mrb[0].mxu0
  %v1334 = vadd.f32 %v1237, %v1333
  %v1335 = vpop.f32.mrb[0].mxu0
  %v1336 = vpop.f32.mrb[0].mxu0
  %v1337 = vadd.f32 %v1240, %v1336
  %v1338 = vpop.f32.mrb[0].mxu0
  %1339 = vdwg.mxu0
  %1340 = vmatprep.subr.bf16.mxu0 0
  %1341 = vmatpush1.bf16.msra.mxu0 %v953
  %1342 = vmatprep.subr.bf16.mxu0 0
  %1343 = vmatpush1.bf16.msra.mxu0 %v954
  %1344 = vmatprep.subr.bf16.mxu0 0
  %1345 = vmatpush1.bf16.msra.mxu0 %v955
  %1346 = vmatprep.subr.bf16.mxu0 0
  %1347 = vmatpush1.bf16.msra.mxu0 %v956
  %1348 = vmatprep.subr.bf16.mxu0 0
  %1349 = vmatpush1.bf16.msra.mxu0 %v957
  %1350 = vmatprep.subr.bf16.mxu0 0
  %1351 = vmatpush1.bf16.msra.mxu0 %v958
  %1352 = vmatprep.subr.bf16.mxu0 0
  %1353 = vmatpush1.bf16.msra.mxu0 %v959
  %1354 = vmatprep.subr.bf16.mxu0 0
  %1355 = vmatpush1.bf16.msra.mxu0 %v960
  %1356 = vmatprep.subr.bf16.mxu0 0
  %1357 = vmatpush1.bf16.msra.mxu0 %v961
  %1358 = vmatprep.subr.bf16.mxu0 0
  %1359 = vmatpush1.bf16.msra.mxu0 %v962
  %1360 = vmatprep.subr.bf16.mxu0 0
  %1361 = vmatpush1.bf16.msra.mxu0 %v963
  %1362 = vmatprep.subr.bf16.mxu0 0
  %1363 = vmatpush1.bf16.msra.mxu0 %v964
  %1364 = vmatprep.subr.bf16.mxu0 0
  %1365 = vmatpush1.bf16.msra.mxu0 %v965
  %1366 = vmatprep.subr.bf16.mxu0 0
  %1367 = vmatpush1.bf16.msra.mxu0 %v966
  %1368 = vmatprep.subr.bf16.mxu0 0
  %1369 = vmatpush1.bf16.msra.mxu0 %v967
  %1370 = vmatprep.subr.bf16.mxu0 0
  %1371 = vmatpush1.bf16.msra.mxu0 %v968
  %1372 = vmatprep.mubr.bf16.mxu0 %v480
  %1373 = vmatmul.mubr.bf16.gmra.mrb[0].mxu0 %v479
  %v1374 = vpop.f32.mrb[0].mxu0
  %v1375 = vadd.f32 %v1278, %v1374
  %v1376 = vpop.f32.mrb[0].mxu0
  %v1377 = vpop.f32.mrb[0].mxu0
  %v1378 = vadd.f32 %v1281, %v1377
  %v1379 = vpop.f32.mrb[0].mxu0
  %1380 = vmatprep.mubr.bf16.mxu0 %v489
  %1381 = vmatmul.mubr.bf16.gmra.mrb[0].mxu0 %v488
  %v1382 = vpop.f32.mrb[0].mxu0
  %v1383 = vadd.f32 %v1286, %v1382
  %v1384 = vpop.f32.mrb[0].mxu0
  %v1385 = vpop.f32.mrb[0].mxu0
  %v1386 = vadd.f32 %v1289, %v1385
  %v1387 = vpop.f32.mrb[0].mxu0
  %1388 = vmatprep.mubr.bf16.mxu0 %v498
  %1389 = vmatmul.mubr.bf16.gmra.mrb[0].mxu0 %v497
  %v1390 = vpop.f32.mrb[0].mxu0
  %v1391 = vadd.f32 %v1294, %v1390
  %v1392 = vpop.f32.mrb[0].mxu0
  %v1393 = vpop.f32.mrb[0].mxu0
  %v1394 = vadd.f32 %v1297, %v1393
  %v1395 = vpop.f32.mrb[0].mxu0
  %1396 = vmatprep.mubr.bf16.mxu0 %v507
  %1397 = vmatmul.mubr.bf16.gmra.mrb[0].mxu0 %v506
  %v1398 = vpop.f32.mrb[0].mxu0
  %v1399 = vadd.f32 %v1302, %v1398
  %v1400 = vpop.f32.mrb[0].mxu0
  %v1401 = vpop.f32.mrb[0].mxu0
  %v1402 = vadd.f32 %v1305, %v1401
  %v1403 = vpop.f32.mrb[0].mxu0
  %1404 = vmatprep.mubr.bf16.mxu0 %v516
  %1405 = vmatmul.mubr.bf16.gmra.mrb[0].mxu0 %v515
  %v1406 = vpop.f32.mrb[0].mxu0
  %v1407 = vadd.f32 %v1310, %v1406
  %v1408 = vpop.f32.mrb[0].mxu0
  %v1409 = vpop.f32.mrb[0].mxu0
  %v1410 = vadd.f32 %v1313, %v1409
  %v1411 = vpop.f32.mrb[0].mxu0
  %1412 = vmatprep.mubr.bf16.mxu0 %v525
  %1413 = vmatmul.mubr.bf16.gmra.mrb[0].mxu0 %v524
  %v1414 = vpop.f32.mrb[0].mxu0
  %v1415 = vadd.f32 %v1318, %v1414
  %v1416 = vpop.f32.mrb[0].mxu0
  %v1417 = vpop.f32.mrb[0].mxu0
  %v1418 = vadd.f32 %v1321, %v1417
  %v1419 = vpop.f32.mrb[0].mxu0
  %1420 = vmatprep.mubr.bf16.mxu0 %v534
  %1421 = vmatmul.mubr.bf16.gmra.mrb[0].mxu0 %v533
  %v1422 = vpop.f32.mrb[0].mxu0
  %v1423 = vadd.f32 %v1326, %v1422
  %v1424 = vpop.f32.mrb[0].mxu0
  %v1425 = vpop.f32.mrb[0].mxu0
  %v1426 = vadd.f32 %v1329, %v1425
  %v1427 = vpop.f32.mrb[0].mxu0
  %1428 = vmatprep.mubr.bf16.mxu0 %v543
  %1429 = vmatmul.mubr.bf16.gmra.mrb[0].mxu0 %v542
  %v1430 = vpop.f32.mrb[0].mxu0
  %v1431 = vadd.f32 %v1334, %v1430
  %v1432 = vpop.f32.mrb[0].mxu0
  %v1433 = vpop.f32.mrb[0].mxu0
  %v1434 = vadd.f32 %v1337, %v1433
  %v1435 = vpop.f32.mrb[0].mxu0
  %1436 = vdwg.mxu0
  %1437 = vmatprep.subr.bf16.mxu0 0
  %1438 = vmatpush1.bf16.msra.mxu0 %v969
  %1439 = vmatprep.subr.bf16.mxu0 0
  %1440 = vmatpush1.bf16.msra.mxu0 %v970
  %1441 = vmatprep.subr.bf16.mxu0 0
  %1442 = vmatpush1.bf16.msra.mxu0 %v971
  %1443 = vmatprep.subr.bf16.mxu0 0
  %1444 = vmatpush1.bf16.msra.mxu0 %v972
  %1445 = vmatprep.subr.bf16.mxu0 0
  %1446 = vmatpush1.bf16.msra.mxu0 %v973
  %1447 = vmatprep.subr.bf16.mxu0 0
  %1448 = vmatpush1.bf16.msra.mxu0 %v974
  %1449 = vmatprep.subr.bf16.mxu0 0
  %1450 = vmatpush1.bf16.msra.mxu0 %v975
  %1451 = vmatprep.subr.bf16.mxu0 0
  %1452 = vmatpush1.bf16.msra.mxu0 %v976
  %1453 = vmatprep.subr.bf16.mxu0 0
  %1454 = vmatpush1.bf16.msra.mxu0 0
  %1455 = vmatprep.subr.bf16.mxu0 0
  %1456 = vmatpush1.bf16.msra.mxu0 0
  %1457 = vmatprep.subr.bf16.mxu0 0
  %1458 = vmatpush1.bf16.msra.mxu0 0
  %1459 = vmatprep.subr.bf16.mxu0 0
  %1460 = vmatpush1.bf16.msra.mxu0 0
  %1461 = vmatprep.subr.bf16.mxu0 0
  %1462 = vmatpush1.bf16.msra.mxu0 0
  %1463 = vmatprep.subr.bf16.mxu0 0
  %1464 = vmatpush1.bf16.msra.mxu0 0
  %1465 = vmatprep.subr.bf16.mxu0 0
  %1466 = vmatpush1.bf16.msra.mxu0 0
  %1467 = vmatprep.subr.bf16.mxu0 0
  %1468 = vmatpush1.bf16.msra.mxu0 0
  %1469 = vmatprep.mubr.bf16.mxu0 0
  %1470 = vmatmul.mubr.bf16.gmra.mrb[0].mxu0 %v481
  %v1471 = vpop.f32.mrb[0].mxu0
  %v1472 = vadd.f32 %v1375, %v1471
  %v1473 = vpop.f32.mrb[0].mxu0
  %v1474 = vpop.f32.mrb[0].mxu0
  %v1475 = vadd.f32 %v1378, %v1474
  %v1476 = vpop.f32.mrb[0].mxu0
  %1477 = vmatprep.mubr.bf16.mxu0 0
  %1478 = vmatmul.mubr.bf16.gmra.mrb[0].mxu0 %v490
  %v1479 = vpop.f32.mrb[0].mxu0
  %v1480 = vadd.f32 %v1383, %v1479
  %v1481 = vpop.f32.mrb[0].mxu0
  %v1482 = vpop.f32.mrb[0].mxu0
  %v1483 = vadd.f32 %v1386, %v1482
  %v1484 = vpop.f32.mrb[0].mxu0
  %1485 = vmatprep.mubr.bf16.mxu0 0
  %1486 = vmatmul.mubr.bf16.gmra.mrb[0].mxu0 %v499
  %v1487 = vpop.f32.mrb[0].mxu0
  %v1488 = vadd.f32 %v1391, %v1487
  %v1489 = vpop.f32.mrb[0].mxu0
  %v1490 = vpop.f32.mrb[0].mxu0
  %v1491 = vadd.f32 %v1394, %v1490
  %v1492 = vpop.f32.mrb[0].mxu0
  %1493 = vmatprep.mubr.bf16.mxu0 0
  %1494 = vmatmul.mubr.bf16.gmra.mrb[0].mxu0 %v508
  %v1495 = vpop.f32.mrb[0].mxu0
  %v1496 = vadd.f32 %v1399, %v1495
  %v1497 = vpop.f32.mrb[0].mxu0
  %v1498 = vpop.f32.mrb[0].mxu0
  %v1499 = vadd.f32 %v1402, %v1498
  %v1500 = vpop.f32.mrb[0].mxu0
  %1501 = vmatprep.mubr.bf16.mxu0 0
  %1502 = vmatmul.mubr.bf16.gmra.mrb[0].mxu0 %v517
  %v1503 = vpop.f32.mrb[0].mxu0
  %v1504 = vadd.f32 %v1407, %v1503
  %v1505 = vpop.f32.mrb[0].mxu0
  %v1506 = vpop.f32.mrb[0].mxu0
  %v1507 = vadd.f32 %v1410, %v1506
  %v1508 = vpop.f32.mrb[0].mxu0
  %1509 = vmatprep.mubr.bf16.mxu0 0
  %1510 = vmatmul.mubr.bf16.gmra.mrb[0].mxu0 %v526
  %v1511 = vpop.f32.mrb[0].mxu0
  %v1512 = vadd.f32 %v1415, %v1511
  %v1513 = vpop.f32.mrb[0].mxu0
  %v1514 = vpop.f32.mrb[0].mxu0
  %v1515 = vadd.f32 %v1418, %v1514
  %v1516 = vpop.f32.mrb[0].mxu0
  %1517 = vmatprep.mubr.bf16.mxu0 0
  %1518 = vmatmul.mubr.bf16.gmra.mrb[0].mxu0 %v535
  %v1519 = vpop.f32.mrb[0].mxu0
  %v1520 = vadd.f32 %v1423, %v1519
  %v1521 = vpop.f32.mrb[0].mxu0
  %v1522 = vpop.f32.mrb[0].mxu0
  %v1523 = vadd.f32 %v1426, %v1522
  %v1524 = vpop.f32.mrb[0].mxu0
  %1525 = vmatprep.mubr.bf16.mxu0 0
  %1526 = vmatmul.mubr.bf16.gmra.mrb[0].mxu0 %v544
  %v1527 = vpop.f32.mrb[0].mxu0
  %v1528 = vadd.f32 %v1431, %v1527
  %v1529 = vpop.f32.mrb[0].mxu0
  %v1530 = vpop.f32.mrb[0].mxu0
  %v1531 = vadd.f32 %v1434, %v1530
  %v1532 = vpop.f32.mrb[0].mxu0
  %1533 = vdwg.mxu0
  %v1534 = vld [vmem:[%s3] sm:$0xf]
  %v1535 = vld [vmem:[%s3 + $0x4] sm:$0xf]
  %v1536 = vld [vmem:[%s3 + $0x8] sm:$0xf]
  %v1537 = vld [vmem:[%s3 + $0xc] sm:$0xf]
  %v1538 = vld [vmem:[%s3 + $0x10] sm:$0xf]
  %v1539 = vld [vmem:[%s3 + $0x14] sm:$0xf]
  %v1540 = vld [vmem:[%s3 + $0x18] sm:$0xf]
  %v1541 = vld [vmem:[%s3 + $0x1c] sm:$0xf]
  %v1542 = vld [vmem:[%s3 + $0x20] sm:$0xf]
  %v1543 = vld [vmem:[%s3 + $0x24] sm:$0xf]
  %v1544 = vld [vmem:[%s3 + $0x28] sm:$0xf]
  %v1545 = vld [vmem:[%s3 + $0x2c] sm:$0xf]
  %v1546 = vld [vmem:[%s3 + $0x30] sm:$0xf]
  %v1547 = vld [vmem:[%s3 + $0x34] sm:$0xf]
  %v1548 = vld [vmem:[%s3 + $0x38] sm:$0xf]
  %v1549 = vld [vmem:[%s3 + $0x3c] sm:$0xf]
  %v1550 = vunpack.c.l.bf16 %v1534
  %v1551 = vunpack.c.l.bf16 %v1535
  %v1552 = vunpack.c.l.bf16 %v1536
  %v1553 = vunpack.c.l.bf16 %v1537
  %v1554 = vunpack.c.l.bf16 %v1538
  %v1555 = vunpack.c.l.bf16 %v1539
  %v1556 = vunpack.c.l.bf16 %v1540
  %v1557 = vunpack.c.l.bf16 %v1541
  %v1558 = vunpack.c.l.bf16 %v1542
  %v1559 = vunpack.c.l.bf16 %v1543
  %v1560 = vunpack.c.l.bf16 %v1544
  %v1561 = vunpack.c.l.bf16 %v1545
  %v1562 = vunpack.c.l.bf16 %v1546
  %v1563 = vunpack.c.l.bf16 %v1547
  %v1564 = vunpack.c.l.bf16 %v1548
  %v1565 = vunpack.c.l.bf16 %v1549
  %v1566 = vadd.f32 %v1472, %v1550
  %v1567 = vadd.f32 %v1475, %v1551
  %v1568 = vadd.f32 %v1480, %v1552
  %v1569 = vadd.f32 %v1483, %v1553
  %v1570 = vadd.f32 %v1488, %v1554
  %v1571 = vadd.f32 %v1491, %v1555
  %v1572 = vadd.f32 %v1496, %v1556
  %v1573 = vadd.f32 %v1499, %v1557
  %v1574 = vadd.f32 %v1504, %v1558
  %v1575 = vadd.f32 %v1507, %v1559
  %v1576 = vadd.f32 %v1512, %v1560
  %v1577 = vadd.f32 %v1515, %v1561
  %v1578 = vadd.f32 %v1520, %v1562
  %v1579 = vadd.f32 %v1523, %v1563
  %v1580 = vadd.f32 %v1528, %v1564
  %v1581 = vadd.f32 %v1531, %v1565
  %v1582 = vmax.f32 %v1566, 0.0
  %v1583 = vmax.f32 %v1567, 0.0
  %v1584 = vmax.f32 %v1568, 0.0
  %v1585 = vmax.f32 %v1569, 0.0
  %v1586 = vmax.f32 %v1570, 0.0
  %v1587 = vmax.f32 %v1571, 0.0
  %v1588 = vmax.f32 %v1572, 0.0
  %v1589 = vmax.f32 %v1573, 0.0
  %v1590 = vmax.f32 %v1574, 0.0
  %v1591 = vmax.f32 %v1575, 0.0
  %v1592 = vmax.f32 %v1576, 0.0
  %v1593 = vmax.f32 %v1577, 0.0
  %v1594 = vmax.f32 %v1578, 0.0
  %v1595 = vmax.f32 %v1579, 0.0
  %v1596 = vmax.f32 %v1580, 0.0
  %v1597 = vmax.f32 %v1581, 0.0
  %v1598 = vpack.c.bf16 %v1583, %v1582
  %v1599 = vpack.c.bf16 %v1585, %v1584
  %v1600 = vpack.c.bf16 %v1587, %v1586
  %v1601 = vpack.c.bf16 %v1589, %v1588
  %v1602 = vpack.c.bf16 %v1591, %v1590
  %v1603 = vpack.c.bf16 %v1593, %v1592
  %v1604 = vpack.c.bf16 %v1595, %v1594
  %v1605 = vpack.c.bf16 %v1597, %v1596
  %v1614 = vunpack.c.l.b16 %v1598
  %v1615 = vunpack.c.h.b16 %v1598
  %v1616 = vunpack.c.l.b16 %v1599
  %v1617 = vunpack.c.h.b16 %v1599
  %v1618 = vunpack.c.l.b16 %v1600
  %v1619 = vunpack.c.h.b16 %v1600
  %v1620 = vunpack.c.l.b16 %v1601
  %v1621 = vunpack.c.h.b16 %v1601
  %v1622 = vunpack.c.l.b16 %v1602
  %v1623 = vunpack.c.h.b16 %v1602
  %v1624 = vunpack.c.l.b16 %v1603
  %v1625 = vunpack.c.h.b16 %v1603
  %v1626 = vunpack.c.l.b16 %v1604
  %v1627 = vunpack.c.h.b16 %v1604
  %v1628 = vunpack.c.l.b16 %v1605
  %v1629 = vunpack.c.h.b16 %v1605
  %v1630 = vpack.c.b16 %v1614, %v1614
  %v1631 = vpack.c.b16 %v1615, %v1615
  %v1632 = vpack.c.b16 %v1616, %v1616
  %v1633 = vpack.c.b16 %v1617, %v1617
  %v1634 = vpack.c.b16 %v1618, %v1618
  %v1635 = vpack.c.b16 %v1619, %v1619
  %v1636 = vpack.c.b16 %v1620, %v1620
  %v1637 = vpack.c.b16 %v1621, %v1621
  %v1638 = vpack.c.b16 %v1622, %v1622
  %v1639 = vpack.c.b16 %v1623, %v1623
  %v1640 = vpack.c.b16 %v1624, %v1624
  %v1641 = vpack.c.b16 %v1625, %v1625
  %v1642 = vpack.c.b16 %v1626, %v1626
  %v1643 = vpack.c.b16 %v1627, %v1627
  %v1644 = vpack.c.b16 %v1628, %v1628
  %v1645 = vpack.c.b16 %v1629, %v1629
  %1662 = vst [vmem:[%s4] sm:$0xf] %v1630
  %1663 = vst [vmem:[%s4 + $0x4] sm:$0xf] %v1631
  %1664 = vst [vmem:[%s4 + $0x8] sm:$0xf] %v1632
  %1665 = vst [vmem:[%s4 + $0xc] sm:$0xf] %v1633
  %1666 = vst [vmem:[%s4 + $0x10] sm:$0xf] %v1634
  %1667 = vst [vmem:[%s4 + $0x14] sm:$0xf] %v1635
  %1668 = vst [vmem:[%s4 + $0x18] sm:$0xf] %v1636
  %1669 = vst [vmem:[%s4 + $0x1c] sm:$0xf] %v1637
  %1670 = vst [vmem:[%s4 + $0x20] sm:$0xf] %v1638
  %1671 = vst [vmem:[%s4 + $0x24] sm:$0xf] %v1639
  %1672 = vst [vmem:[%s4 + $0x28] sm:$0xf] %v1640
  %1673 = vst [vmem:[%s4 + $0x2c] sm:$0xf] %v1641
  %1674 = vst [vmem:[%s4 + $0x30] sm:$0xf] %v1642
  %1675 = vst [vmem:[%s4 + $0x34] sm:$0xf] %v1643
  %1676 = vst [vmem:[%s4 + $0x38] sm:$0xf] %v1644
  %1677 = vst [vmem:[%s4 + $0x3c] sm:$0xf] %v1645
  // Predicated region
  $region18: #{resnet_diff_forward.11} parent=0 // pred_check
    _
  $region19: #{resnet_diff_forward.11} parent=0 // pred_check_branch
    %1679 = sbr.rel (0) target = $region21
  $region20: #{resnet_diff_forward.11} parent=0 // pred_region
    _
  $region21: #{resnet_diff_forward.11} parent=0 // pred_fallthru
    _
  // Predicated region
  $region22: #{resnet_diff_forward.11} parent=0 // pred_check
    _
  $region23: #{resnet_diff_forward.11} parent=0 // pred_check_branch
    %1681 = sbr.rel (0) target = $region25
  $region24: #{resnet_diff_forward.11} parent=0 // pred_region
    _
  $region25: #{resnet_diff_forward.11} parent=0 // pred_fallthru
    _

// kernel: resnet_diff_forward.12
$region0: #{resnet_diff_forward.12}
  #allocation0 [shape = 'u32[]', space=smem, size = 0x4, offset = 0x4, fixed_abs, tag = 'smem constant byte address 0x4 - core index']
  #allocation1 [shape = 'u32[144,128]{1,0:T(1,128)}', space=vmem, size = 0x12000, scoped, tag = 'internal scratch']
  %s0 = inlined_call_operand.vmem [shape: bf16[32,1152], index: 0, kind: input, shape index: {}]
  %s1 = inlined_call_operand.vmem [shape: bf16[1152,128], index: 1, kind: input, shape index: {}]
  %s2 = inlined_call_operand.vmem [shape: f32[1,128], index: 2, kind: input, shape index: {}]
  %s3 = inlined_call_operand.vmem [shape: bf16[32,128], index: 3, kind: output, shape index: {}]
  %s4 = sld [smem:[#allocation0]]
  $region22: #{resnet_diff_forward.12} parent=0
    _
  %s6 = ssub.s32 1, %s4
  %s7 = scalar_select 0, %s6, %s4
  // Predicated region
  $region2: #{resnet_diff_forward.12} parent=0 // pred_check
    _
  $region3: #{resnet_diff_forward.12} parent=0 // pred_check_branch
    %9 = sbr.rel (0) target = $region5
  $region4: #{resnet_diff_forward.12} parent=0 // pred_region
    _
  $region5: #{resnet_diff_forward.12} parent=0 // pred_fallthru
    _
  // Predicated region
  $region6: #{resnet_diff_forward.12} parent=0 // pred_check
    _
  $region7: #{resnet_diff_forward.12} parent=0 // pred_check_branch
    %11 = sbr.rel (0) target = $region9
  $region8: #{resnet_diff_forward.12} parent=0 // pred_region
    _
  $region9: #{resnet_diff_forward.12} parent=0 // pred_fallthru
    _
  // Predicated region
  $region10: #{resnet_diff_forward.12} parent=0 // pred_check
    _
  $region11: #{resnet_diff_forward.12} parent=0 // pred_check_branch
    %13 = sbr.rel (0) target = $region13
  $region12: #{resnet_diff_forward.12} parent=0 // pred_region
    _
  $region13: #{resnet_diff_forward.12} parent=0 // pred_fallthru
    _
  %v15 = vld [vmem:[%s0] sm:$0xff]
  %v16 = vld [vmem:[%s0 + $0x8] sm:$0xff]
  %v17 = vld [vmem:[%s0 + $0x10] sm:$0xff]
  %v18 = vld [vmem:[%s0 + $0x18] sm:$0xff]
  %v19 = vld [vmem:[%s0 + $0x20] sm:$0xf]
  %v20 = vld [vmem:[%s0 + $0x24] sm:$0xff]
  %v21 = vld [vmem:[%s0 + $0x2c] sm:$0xff]
  %v22 = vld [vmem:[%s0 + $0x34] sm:$0xff]
  %v23 = vld [vmem:[%s0 + $0x3c] sm:$0xff]
  %v24 = vld [vmem:[%s0 + $0x44] sm:$0xf]
  %v25 = vld [vmem:[%s0 + $0x48] sm:$0xff]
  %v26 = vld [vmem:[%s0 + $0x50] sm:$0xff]
  %v27 = vld [vmem:[%s0 + $0x58] sm:$0xff]
  %v28 = vld [vmem:[%s0 + $0x60] sm:$0xff]
  %v29 = vld [vmem:[%s0 + $0x68] sm:$0xf]
  %v30 = vld [vmem:[%s0 + $0x6c] sm:$0xff]
  %v31 = vld [vmem:[%s0 + $0x74] sm:$0xff]
  %v32 = vld [vmem:[%s0 + $0x7c] sm:$0xff]
  %v33 = vld [vmem:[%s0 + $0x84] sm:$0xff]
  %v34 = vld [vmem:[%s0 + $0x8c] sm:$0xf]
  %v35 = vld [vmem:[%s1] sm:$0xf]
  %v36 = vld [vmem:[%s1 + $0x4] sm:$0xf]
  %v37 = vld [vmem:[%s1 + $0x8] sm:$0xf]
  %v38 = vld [vmem:[%s1 + $0xc] sm:$0xf]
  %v39 = vld [vmem:[%s1 + $0x10] sm:$0xf]
  %v40 = vld [vmem:[%s1 + $0x14] sm:$0xf]
  %v41 = vld [vmem:[%s1 + $0x18] sm:$0xf]
  %v42 = vld [vmem:[%s1 + $0x1c] sm:$0xf]
  %v43 = vld [vmem:[%s1 + $0x20] sm:$0xf]
  %v44 = vld [vmem:[%s1 + $0x24] sm:$0xf]
  %v45 = vld [vmem:[%s1 + $0x28] sm:$0xf]
  %v46 = vld [vmem:[%s1 + $0x2c] sm:$0xf]
  %v47 = vld [vmem:[%s1 + $0x30] sm:$0xf]
  %v48 = vld [vmem:[%s1 + $0x34] sm:$0xf]
  %v49 = vld [vmem:[%s1 + $0x38] sm:$0xf]
  %v50 = vld [vmem:[%s1 + $0x3c] sm:$0xf]
  %v51 = vld [vmem:[%s1 + $0x40] sm:$0xf]
  %v52 = vld [vmem:[%s1 + $0x44] sm:$0xf]
  %v53 = vld [vmem:[%s1 + $0x48] sm:$0xf]
  %v54 = vld [vmem:[%s1 + $0x4c] sm:$0xf]
  %v55 = vld [vmem:[%s1 + $0x50] sm:$0xf]
  %v56 = vld [vmem:[%s1 + $0x54] sm:$0xf]
  %v57 = vld [vmem:[%s1 + $0x58] sm:$0xf]
  %v58 = vld [vmem:[%s1 + $0x5c] sm:$0xf]
  %v59 = vld [vmem:[%s1 + $0x60] sm:$0xf]
  %v60 = vld [vmem:[%s1 + $0x64] sm:$0xf]
  %v61 = vld [vmem:[%s1 + $0x68] sm:$0xf]
  %v62 = vld [vmem:[%s1 + $0x6c] sm:$0xf]
  %v63 = vld [vmem:[%s1 + $0x70] sm:$0xf]
  %v64 = vld [vmem:[%s1 + $0x74] sm:$0xf]
  %v65 = vld [vmem:[%s1 + $0x78] sm:$0xf]
  %v66 = vld [vmem:[%s1 + $0x7c] sm:$0xf]
  %v67 = vld [vmem:[%s1 + $0x80] sm:$0xf]
  %v68 = vld [vmem:[%s1 + $0x84] sm:$0xf]
  %v69 = vld [vmem:[%s1 + $0x88] sm:$0xf]
  %v70 = vld [vmem:[%s1 + $0x8c] sm:$0xf]
  %v71 = vld [vmem:[%s1 + $0x90] sm:$0xf]
  %v72 = vld [vmem:[%s1 + $0x94] sm:$0xf]
  %v73 = vld [vmem:[%s1 + $0x98] sm:$0xf]
  %v74 = vld [vmem:[%s1 + $0x9c] sm:$0xf]
  %v75 = vld [vmem:[%s1 + $0xa0] sm:$0xf]
  %v76 = vld [vmem:[%s1 + $0xa4] sm:$0xf]
  %v77 = vld [vmem:[%s1 + $0xa8] sm:$0xf]
  %v78 = vld [vmem:[%s1 + $0xac] sm:$0xf]
  %v79 = vld [vmem:[%s1 + $0xb0] sm:$0xf]
  %v80 = vld [vmem:[%s1 + $0xb4] sm:$0xf]
  %v81 = vld [vmem:[%s1 + $0xb8] sm:$0xf]
  %v82 = vld [vmem:[%s1 + $0xbc] sm:$0xf]
  %v83 = vld [vmem:[%s1 + $0xc0] sm:$0xf]
  %v84 = vld [vmem:[%s1 + $0xc4] sm:$0xf]
  %v85 = vld [vmem:[%s1 + $0xc8] sm:$0xf]
  %v86 = vld [vmem:[%s1 + $0xcc] sm:$0xf]
  %v87 = vld [vmem:[%s1 + $0xd0] sm:$0xf]
  %v88 = vld [vmem:[%s1 + $0xd4] sm:$0xf]
  %v89 = vld [vmem:[%s1 + $0xd8] sm:$0xf]
  %v90 = vld [vmem:[%s1 + $0xdc] sm:$0xf]
  %v91 = vld [vmem:[%s1 + $0xe0] sm:$0xf]
  %v92 = vld [vmem:[%s1 + $0xe4] sm:$0xf]
  %v93 = vld [vmem:[%s1 + $0xe8] sm:$0xf]
  %v94 = vld [vmem:[%s1 + $0xec] sm:$0xf]
  %v95 = vld [vmem:[%s1 + $0xf0] sm:$0xf]
  %v96 = vld [vmem:[%s1 + $0xf4] sm:$0xf]
  %v97 = vld [vmem:[%s1 + $0xf8] sm:$0xf]
  %v98 = vld [vmem:[%s1 + $0xfc] sm:$0xf]
  %v99 = vld [vmem:[%s1 + $0x100] sm:$0xf]
  %v100 = vld [vmem:[%s1 + $0x104] sm:$0xf]
  %v101 = vld [vmem:[%s1 + $0x108] sm:$0xf]
  %v102 = vld [vmem:[%s1 + $0x10c] sm:$0xf]
  %v103 = vld [vmem:[%s1 + $0x110] sm:$0xf]
  %v104 = vld [vmem:[%s1 + $0x114] sm:$0xf]
  %v105 = vld [vmem:[%s1 + $0x118] sm:$0xf]
  %v106 = vld [vmem:[%s1 + $0x11c] sm:$0xf]
  %v107 = vld [vmem:[%s1 + $0x120] sm:$0xf]
  %v108 = vld [vmem:[%s1 + $0x124] sm:$0xf]
  %v109 = vld [vmem:[%s1 + $0x128] sm:$0xf]
  %v110 = vld [vmem:[%s1 + $0x12c] sm:$0xf]
  %v111 = vld [vmem:[%s1 + $0x130] sm:$0xf]
  %v112 = vld [vmem:[%s1 + $0x134] sm:$0xf]
  %v113 = vld [vmem:[%s1 + $0x138] sm:$0xf]
  %v114 = vld [vmem:[%s1 + $0x13c] sm:$0xf]
  %v115 = vld [vmem:[%s1 + $0x140] sm:$0xf]
  %v116 = vld [vmem:[%s1 + $0x144] sm:$0xf]
  %v117 = vld [vmem:[%s1 + $0x148] sm:$0xf]
  %v118 = vld [vmem:[%s1 + $0x14c] sm:$0xf]
  %v119 = vld [vmem:[%s1 + $0x150] sm:$0xf]
  %v120 = vld [vmem:[%s1 + $0x154] sm:$0xf]
  %v121 = vld [vmem:[%s1 + $0x158] sm:$0xf]
  %v122 = vld [vmem:[%s1 + $0x15c] sm:$0xf]
  %v123 = vld [vmem:[%s1 + $0x160] sm:$0xf]
  %v124 = vld [vmem:[%s1 + $0x164] sm:$0xf]
  %v125 = vld [vmem:[%s1 + $0x168] sm:$0xf]
  %v126 = vld [vmem:[%s1 + $0x16c] sm:$0xf]
  %v127 = vld [vmem:[%s1 + $0x170] sm:$0xf]
  %v128 = vld [vmem:[%s1 + $0x174] sm:$0xf]
  %v129 = vld [vmem:[%s1 + $0x178] sm:$0xf]
  %v130 = vld [vmem:[%s1 + $0x17c] sm:$0xf]
  %v131 = vld [vmem:[%s1 + $0x180] sm:$0xf]
  %v132 = vld [vmem:[%s1 + $0x184] sm:$0xf]
  %v133 = vld [vmem:[%s1 + $0x188] sm:$0xf]
  %v134 = vld [vmem:[%s1 + $0x18c] sm:$0xf]
  %v135 = vld [vmem:[%s1 + $0x190] sm:$0xf]
  %v136 = vld [vmem:[%s1 + $0x194] sm:$0xf]
  %v137 = vld [vmem:[%s1 + $0x198] sm:$0xf]
  %v138 = vld [vmem:[%s1 + $0x19c] sm:$0xf]
  %v139 = vld [vmem:[%s1 + $0x1a0] sm:$0xf]
  %v140 = vld [vmem:[%s1 + $0x1a4] sm:$0xf]
  %v141 = vld [vmem:[%s1 + $0x1a8] sm:$0xf]
  %v142 = vld [vmem:[%s1 + $0x1ac] sm:$0xf]
  %v143 = vld [vmem:[%s1 + $0x1b0] sm:$0xf]
  %v144 = vld [vmem:[%s1 + $0x1b4] sm:$0xf]
  %v145 = vld [vmem:[%s1 + $0x1b8] sm:$0xf]
  %v146 = vld [vmem:[%s1 + $0x1bc] sm:$0xf]
  %v147 = vld [vmem:[%s1 + $0x1c0] sm:$0xf]
  %v148 = vld [vmem:[%s1 + $0x1c4] sm:$0xf]
  %v149 = vld [vmem:[%s1 + $0x1c8] sm:$0xf]
  %v150 = vld [vmem:[%s1 + $0x1cc] sm:$0xf]
  %v151 = vld [vmem:[%s1 + $0x1d0] sm:$0xf]
  %v152 = vld [vmem:[%s1 + $0x1d4] sm:$0xf]
  %v153 = vld [vmem:[%s1 + $0x1d8] sm:$0xf]
  %v154 = vld [vmem:[%s1 + $0x1dc] sm:$0xf]
  %v155 = vld [vmem:[%s1 + $0x1e0] sm:$0xf]
  %v156 = vld [vmem:[%s1 + $0x1e4] sm:$0xf]
  %v157 = vld [vmem:[%s1 + $0x1e8] sm:$0xf]
  %v158 = vld [vmem:[%s1 + $0x1ec] sm:$0xf]
  %v159 = vld [vmem:[%s1 + $0x1f0] sm:$0xf]
  %v160 = vld [vmem:[%s1 + $0x1f4] sm:$0xf]
  %v161 = vld [vmem:[%s1 + $0x1f8] sm:$0xf]
  %v162 = vld [vmem:[%s1 + $0x1fc] sm:$0xf]
  %v163 = vld [vmem:[%s1 + $0x200] sm:$0xf]
  %v164 = vld [vmem:[%s1 + $0x204] sm:$0xf]
  %v165 = vld [vmem:[%s1 + $0x208] sm:$0xf]
  %v166 = vld [vmem:[%s1 + $0x20c] sm:$0xf]
  %v167 = vld [vmem:[%s1 + $0x210] sm:$0xf]
  %v168 = vld [vmem:[%s1 + $0x214] sm:$0xf]
  %v169 = vld [vmem:[%s1 + $0x218] sm:$0xf]
  %v170 = vld [vmem:[%s1 + $0x21c] sm:$0xf]
  %v171 = vld [vmem:[%s1 + $0x220] sm:$0xf]
  %v172 = vld [vmem:[%s1 + $0x224] sm:$0xf]
  %v173 = vld [vmem:[%s1 + $0x228] sm:$0xf]
  %v174 = vld [vmem:[%s1 + $0x22c] sm:$0xf]
  %v175 = vld [vmem:[%s1 + $0x230] sm:$0xf]
  %v176 = vld [vmem:[%s1 + $0x234] sm:$0xf]
  %v177 = vld [vmem:[%s1 + $0x238] sm:$0xf]
  %v178 = vld [vmem:[%s1 + $0x23c] sm:$0xf]
  %v179 = vld [vmem:[%s2] sm:$0x1]
  %v181 = vlaneseq
  %v182 = vshrl.u32 %v181, 7
  %v183 = vsub.s32 0, %v182
  %v184 = vrot.slane %v179, %v183
  %v206 = vunpack.c.l.b16 %v15
  %v207 = vunpack.c.h.b16 %v15
  %v208 = vunpack.c.l.b16 %v16
  %v209 = vunpack.c.h.b16 %v16
  %v210 = vunpack.c.l.b16 %v17
  %v211 = vunpack.c.h.b16 %v17
  %v212 = vunpack.c.l.b16 %v18
  %v213 = vunpack.c.h.b16 %v18
  %v214 = vunpack.c.l.b16 %v19
  %v215 = vunpack.c.l.b16 %v20
  %v216 = vunpack.c.h.b16 %v20
  %v217 = vunpack.c.l.b16 %v21
  %v218 = vunpack.c.h.b16 %v21
  %v219 = vunpack.c.l.b16 %v22
  %v220 = vunpack.c.h.b16 %v22
  %v221 = vunpack.c.l.b16 %v23
  %v222 = vunpack.c.h.b16 %v23
  %v223 = vunpack.c.l.b16 %v24
  %v224 = vunpack.c.l.b16 %v25
  %v225 = vunpack.c.h.b16 %v25
  %v226 = vunpack.c.l.b16 %v26
  %v227 = vunpack.c.h.b16 %v26
  %v228 = vunpack.c.l.b16 %v27
  %v229 = vunpack.c.h.b16 %v27
  %v230 = vunpack.c.l.b16 %v28
  %v231 = vunpack.c.h.b16 %v28
  %v232 = vunpack.c.l.b16 %v29
  %v233 = vunpack.c.l.b16 %v30
  %v234 = vunpack.c.h.b16 %v30
  %v235 = vunpack.c.l.b16 %v31
  %v236 = vunpack.c.h.b16 %v31
  %v237 = vunpack.c.l.b16 %v32
  %v238 = vunpack.c.h.b16 %v32
  %v239 = vunpack.c.l.b16 %v33
  %v240 = vunpack.c.h.b16 %v33
  %v241 = vunpack.c.l.b16 %v34
  %v242 = vpack.c.b16 %v215, %v206
  %v243 = vpack.c.b16 %v216, %v207
  %v244 = vpack.c.b16 %v217, %v208
  %v245 = vpack.c.b16 %v218, %v209
  %v246 = vpack.c.b16 %v219, %v210
  %v247 = vpack.c.b16 %v220, %v211
  %v248 = vpack.c.b16 %v221, %v212
  %v249 = vpack.c.b16 %v222, %v213
  %v250 = vpack.c.b16 %v223, %v214
  %v251 = vpack.c.b16 %v233, %v224
  %v252 = vpack.c.b16 %v234, %v225
  %v253 = vpack.c.b16 %v235, %v226
  %v254 = vpack.c.b16 %v236, %v227
  %v255 = vpack.c.b16 %v237, %v228
  %v256 = vpack.c.b16 %v238, %v229
  %v257 = vpack.c.b16 %v239, %v230
  %v258 = vpack.c.b16 %v240, %v231
  %v259 = vpack.c.b16 %v241, %v232
  %v422 = vunpack.c.l.b16 %v35
  %v423 = vunpack.c.l.b16 %v36
  %v424 = vunpack.c.l.b16 %v37
  %v425 = vunpack.c.l.b16 %v38
  %v426 = vunpack.c.l.b16 %v39
  %v427 = vunpack.c.l.b16 %v40
  %v428 = vunpack.c.l.b16 %v41
  %v429 = vunpack.c.l.b16 %v42
  %v430 = vunpack.c.l.b16 %v43
  %v431 = vunpack.c.l.b16 %v44
  %v432 = vunpack.c.l.b16 %v45
  %v433 = vunpack.c.l.b16 %v46
  %v434 = vunpack.c.l.b16 %v47
  %v435 = vunpack.c.l.b16 %v48
  %v436 = vunpack.c.l.b16 %v49
  %v437 = vunpack.c.l.b16 %v50
  %v438 = vunpack.c.l.b16 %v51
  %v439 = vunpack.c.l.b16 %v52
  %v440 = vunpack.c.l.b16 %v53
  %v441 = vunpack.c.l.b16 %v54
  %v442 = vunpack.c.l.b16 %v55
  %v443 = vunpack.c.l.b16 %v56
  %v444 = vunpack.c.l.b16 %v57
  %v445 = vunpack.c.l.b16 %v58
  %v446 = vunpack.c.l.b16 %v59
  %v447 = vunpack.c.l.b16 %v60
  %v448 = vunpack.c.l.b16 %v61
  %v449 = vunpack.c.l.b16 %v62
  %v450 = vunpack.c.l.b16 %v63
  %v451 = vunpack.c.l.b16 %v64
  %v452 = vunpack.c.l.b16 %v65
  %v453 = vunpack.c.l.b16 %v66
  %v454 = vunpack.c.l.b16 %v67
  %v455 = vunpack.c.l.b16 %v68
  %v456 = vunpack.c.l.b16 %v69
  %v457 = vunpack.c.l.b16 %v70
  %v458 = vunpack.c.l.b16 %v71
  %v459 = vunpack.c.l.b16 %v72
  %v460 = vunpack.c.l.b16 %v73
  %v461 = vunpack.c.l.b16 %v74
  %v462 = vunpack.c.l.b16 %v75
  %v463 = vunpack.c.l.b16 %v76
  %v464 = vunpack.c.l.b16 %v77
  %v465 = vunpack.c.l.b16 %v78
  %v466 = vunpack.c.l.b16 %v79
  %v467 = vunpack.c.l.b16 %v80
  %v468 = vunpack.c.l.b16 %v81
  %v469 = vunpack.c.l.b16 %v82
  %v470 = vunpack.c.l.b16 %v83
  %v471 = vunpack.c.l.b16 %v84
  %v472 = vunpack.c.l.b16 %v85
  %v473 = vunpack.c.l.b16 %v86
  %v474 = vunpack.c.l.b16 %v87
  %v475 = vunpack.c.l.b16 %v88
  %v476 = vunpack.c.l.b16 %v89
  %v477 = vunpack.c.l.b16 %v90
  %v478 = vunpack.c.l.b16 %v91
  %v479 = vunpack.c.l.b16 %v92
  %v480 = vunpack.c.l.b16 %v93
  %v481 = vunpack.c.l.b16 %v94
  %v482 = vunpack.c.l.b16 %v95
  %v483 = vunpack.c.l.b16 %v96
  %v484 = vunpack.c.l.b16 %v97
  %v485 = vunpack.c.l.b16 %v98
  %v486 = vunpack.c.l.b16 %v99
  %v487 = vunpack.c.l.b16 %v100
  %v488 = vunpack.c.l.b16 %v101
  %v489 = vunpack.c.l.b16 %v102
  %v490 = vunpack.c.l.b16 %v103
  %v491 = vunpack.c.l.b16 %v104
  %v492 = vunpack.c.l.b16 %v105
  %v493 = vunpack.c.l.b16 %v106
  %v494 = vunpack.c.l.b16 %v107
  %v495 = vunpack.c.l.b16 %v108
  %v496 = vunpack.c.l.b16 %v109
  %v497 = vunpack.c.l.b16 %v110
  %v498 = vunpack.c.l.b16 %v111
  %v499 = vunpack.c.l.b16 %v112
  %v500 = vunpack.c.l.b16 %v113
  %v501 = vunpack.c.l.b16 %v114
  %v502 = vunpack.c.l.b16 %v115
  %v503 = vunpack.c.l.b16 %v116
  %v504 = vunpack.c.l.b16 %v117
  %v505 = vunpack.c.l.b16 %v118
  %v506 = vunpack.c.l.b16 %v119
  %v507 = vunpack.c.l.b16 %v120
  %v508 = vunpack.c.l.b16 %v121
  %v509 = vunpack.c.l.b16 %v122
  %v510 = vunpack.c.l.b16 %v123
  %v511 = vunpack.c.l.b16 %v124
  %v512 = vunpack.c.l.b16 %v125
  %v513 = vunpack.c.l.b16 %v126
  %v514 = vunpack.c.l.b16 %v127
  %v515 = vunpack.c.l.b16 %v128
  %v516 = vunpack.c.l.b16 %v129
  %v517 = vunpack.c.l.b16 %v130
  %v518 = vunpack.c.l.b16 %v131
  %v519 = vunpack.c.l.b16 %v132
  %v520 = vunpack.c.l.b16 %v133
  %v521 = vunpack.c.l.b16 %v134
  %v522 = vunpack.c.l.b16 %v135
  %v523 = vunpack.c.l.b16 %v136
  %v524 = vunpack.c.l.b16 %v137
  %v525 = vunpack.c.l.b16 %v138
  %v526 = vunpack.c.l.b16 %v139
  %v527 = vunpack.c.l.b16 %v140
  %v528 = vunpack.c.l.b16 %v141
  %v529 = vunpack.c.l.b16 %v142
  %v530 = vunpack.c.l.b16 %v143
  %v531 = vunpack.c.l.b16 %v144
  %v532 = vunpack.c.l.b16 %v145
  %v533 = vunpack.c.l.b16 %v146
  %v534 = vunpack.c.l.b16 %v147
  %v535 = vunpack.c.l.b16 %v148
  %v536 = vunpack.c.l.b16 %v149
  %v537 = vunpack.c.l.b16 %v150
  %v538 = vunpack.c.l.b16 %v151
  %v539 = vunpack.c.l.b16 %v152
  %v540 = vunpack.c.l.b16 %v153
  %v541 = vunpack.c.l.b16 %v154
  %v542 = vunpack.c.l.b16 %v155
  %v543 = vunpack.c.l.b16 %v156
  %v544 = vunpack.c.l.b16 %v157
  %v545 = vunpack.c.l.b16 %v158
  %v546 = vunpack.c.l.b16 %v159
  %v547 = vunpack.c.l.b16 %v160
  %v548 = vunpack.c.l.b16 %v161
  %v549 = vunpack.c.l.b16 %v162
  %v550 = vunpack.c.l.b16 %v163
  %v551 = vunpack.c.l.b16 %v164
  %v552 = vunpack.c.l.b16 %v165
  %v553 = vunpack.c.l.b16 %v166
  %v554 = vunpack.c.l.b16 %v167
  %v555 = vunpack.c.l.b16 %v168
  %v556 = vunpack.c.l.b16 %v169
  %v557 = vunpack.c.l.b16 %v170
  %v558 = vunpack.c.l.b16 %v171
  %v559 = vunpack.c.l.b16 %v172
  %v560 = vunpack.c.l.b16 %v173
  %v561 = vunpack.c.l.b16 %v174
  %v562 = vunpack.c.l.b16 %v175
  %v563 = vunpack.c.l.b16 %v176
  %v564 = vunpack.c.l.b16 %v177
  %v565 = vunpack.c.l.b16 %v178
  %v566 = vpack.c.b16 %v423, %v422
  %v567 = vpack.c.b16 %v425, %v424
  %v568 = vpack.c.b16 %v427, %v426
  %v569 = vpack.c.b16 %v429, %v428
  %v570 = vpack.c.b16 %v431, %v430
  %v571 = vpack.c.b16 %v433, %v432
  %v572 = vpack.c.b16 %v435, %v434
  %v573 = vpack.c.b16 %v437, %v436
  %v574 = vpack.c.b16 %v439, %v438
  %v575 = vpack.c.b16 %v441, %v440
  %v576 = vpack.c.b16 %v443, %v442
  %v577 = vpack.c.b16 %v445, %v444
  %v578 = vpack.c.b16 %v447, %v446
  %v579 = vpack.c.b16 %v449, %v448
  %v580 = vpack.c.b16 %v451, %v450
  %v581 = vpack.c.b16 %v453, %v452
  %v582 = vpack.c.b16 %v455, %v454
  %v583 = vpack.c.b16 %v457, %v456
  %v584 = vpack.c.b16 %v459, %v458
  %v585 = vpack.c.b16 %v461, %v460
  %v586 = vpack.c.b16 %v463, %v462
  %v587 = vpack.c.b16 %v465, %v464
  %v588 = vpack.c.b16 %v467, %v466
  %v589 = vpack.c.b16 %v469, %v468
  %v590 = vpack.c.b16 %v471, %v470
  %v591 = vpack.c.b16 %v473, %v472
  %v592 = vpack.c.b16 %v475, %v474
  %v593 = vpack.c.b16 %v477, %v476
  %v594 = vpack.c.b16 %v479, %v478
  %v595 = vpack.c.b16 %v481, %v480
  %v596 = vpack.c.b16 %v483, %v482
  %v597 = vpack.c.b16 %v485, %v484
  %v598 = vpack.c.b16 %v487, %v486
  %v599 = vpack.c.b16 %v489, %v488
  %v600 = vpack.c.b16 %v491, %v490
  %v601 = vpack.c.b16 %v493, %v492
  %v602 = vpack.c.b16 %v495, %v494
  %v603 = vpack.c.b16 %v497, %v496
  %v604 = vpack.c.b16 %v499, %v498
  %v605 = vpack.c.b16 %v501, %v500
  %v606 = vpack.c.b16 %v503, %v502
  %v607 = vpack.c.b16 %v505, %v504
  %v608 = vpack.c.b16 %v507, %v506
  %v609 = vpack.c.b16 %v509, %v508
  %v610 = vpack.c.b16 %v511, %v510
  %v611 = vpack.c.b16 %v513, %v512
  %v612 = vpack.c.b16 %v515, %v514
  %v613 = vpack.c.b16 %v517, %v516
  %v614 = vpack.c.b16 %v519, %v518
  %v615 = vpack.c.b16 %v521, %v520
  %v616 = vpack.c.b16 %v523, %v522
  %v617 = vpack.c.b16 %v525, %v524
  %v618 = vpack.c.b16 %v527, %v526
  %v619 = vpack.c.b16 %v529, %v528
  %v620 = vpack.c.b16 %v531, %v530
  %v621 = vpack.c.b16 %v533, %v532
  %v622 = vpack.c.b16 %v535, %v534
  %v623 = vpack.c.b16 %v537, %v536
  %v624 = vpack.c.b16 %v539, %v538
  %v625 = vpack.c.b16 %v541, %v540
  %v626 = vpack.c.b16 %v543, %v542
  %v627 = vpack.c.b16 %v545, %v544
  %v628 = vpack.c.b16 %v547, %v546
  %v629 = vpack.c.b16 %v549, %v548
  %v630 = vpack.c.b16 %v551, %v550
  %v631 = vpack.c.b16 %v553, %v552
  %v632 = vpack.c.b16 %v555, %v554
  %v633 = vpack.c.b16 %v557, %v556
  %v634 = vpack.c.b16 %v559, %v558
  %v635 = vpack.c.b16 %v561, %v560
  %v636 = vpack.c.b16 %v563, %v562
  %v637 = vpack.c.b16 %v565, %v564
  %710 = vmatprep.subr.bf16.mxu0 0
  %711 = vmatpush1.bf16.msra.mxu0 %v566
  %712 = vmatprep.subr.bf16.mxu0 0
  %713 = vmatpush1.bf16.msra.mxu0 %v567
  %714 = vmatprep.subr.bf16.mxu0 0
  %715 = vmatpush1.bf16.msra.mxu0 %v568
  %716 = vmatprep.subr.bf16.mxu0 0
  %717 = vmatpush1.bf16.msra.mxu0 %v569
  %718 = vmatprep.subr.bf16.mxu0 0
  %719 = vmatpush1.bf16.msra.mxu0 %v570
  %720 = vmatprep.subr.bf16.mxu0 0
  %721 = vmatpush1.bf16.msra.mxu0 %v571
  %722 = vmatprep.subr.bf16.mxu0 0
  %723 = vmatpush1.bf16.msra.mxu0 %v572
  %724 = vmatprep.subr.bf16.mxu0 0
  %725 = vmatpush1.bf16.msra.mxu0 %v573
  %726 = vmatprep.subr.bf16.mxu0 0
  %727 = vmatpush1.bf16.msra.mxu0 %v574
  %728 = vmatprep.subr.bf16.mxu0 0
  %729 = vmatpush1.bf16.msra.mxu0 %v575
  %730 = vmatprep.subr.bf16.mxu0 0
  %731 = vmatpush1.bf16.msra.mxu0 %v576
  %732 = vmatprep.subr.bf16.mxu0 0
  %733 = vmatpush1.bf16.msra.mxu0 %v577
  %734 = vmatprep.subr.bf16.mxu0 0
  %735 = vmatpush1.bf16.msra.mxu0 %v578
  %736 = vmatprep.subr.bf16.mxu0 0
  %737 = vmatpush1.bf16.msra.mxu0 %v579
  %738 = vmatprep.subr.bf16.mxu0 0
  %739 = vmatpush1.bf16.msra.mxu0 %v580
  %740 = vmatprep.subr.bf16.mxu0 0
  %741 = vmatpush1.bf16.msra.mxu0 %v581
  %742 = vmatprep.mubr.bf16.mxu0 %v243
  %743 = vmatmul.mubr.bf16.gmra.mrb[0].mxu0 %v242
  %v744 = vpop.f32.mrb[0].mxu0
  %v745 = vadd.f32 %v184, %v744
  %v746 = vpop.f32.mrb[0].mxu0
  %v747 = vpop.f32.mrb[0].mxu0
  %v748 = vadd.f32 %v184, %v747
  %v749 = vpop.f32.mrb[0].mxu0
  %750 = vmatprep.mubr.bf16.mxu0 %v252
  %751 = vmatmul.mubr.bf16.gmra.mrb[0].mxu0 %v251
  %v752 = vpop.f32.mrb[0].mxu0
  %v753 = vadd.f32 %v184, %v752
  %v754 = vpop.f32.mrb[0].mxu0
  %v755 = vpop.f32.mrb[0].mxu0
  %v756 = vadd.f32 %v184, %v755
  %v757 = vpop.f32.mrb[0].mxu0
  %758 = vdwg.mxu0
  %759 = vmatprep.subr.bf16.mxu0 0
  %760 = vmatpush1.bf16.msra.mxu0 %v582
  %761 = vmatprep.subr.bf16.mxu0 0
  %762 = vmatpush1.bf16.msra.mxu0 %v583
  %763 = vmatprep.subr.bf16.mxu0 0
  %764 = vmatpush1.bf16.msra.mxu0 %v584
  %765 = vmatprep.subr.bf16.mxu0 0
  %766 = vmatpush1.bf16.msra.mxu0 %v585
  %767 = vmatprep.subr.bf16.mxu0 0
  %768 = vmatpush1.bf16.msra.mxu0 %v586
  %769 = vmatprep.subr.bf16.mxu0 0
  %770 = vmatpush1.bf16.msra.mxu0 %v587
  %771 = vmatprep.subr.bf16.mxu0 0
  %772 = vmatpush1.bf16.msra.mxu0 %v588
  %773 = vmatprep.subr.bf16.mxu0 0
  %774 = vmatpush1.bf16.msra.mxu0 %v589
  %775 = vmatprep.subr.bf16.mxu0 0
  %776 = vmatpush1.bf16.msra.mxu0 %v590
  %777 = vmatprep.subr.bf16.mxu0 0
  %778 = vmatpush1.bf16.msra.mxu0 %v591
  %779 = vmatprep.subr.bf16.mxu0 0
  %780 = vmatpush1.bf16.msra.mxu0 %v592
  %781 = vmatprep.subr.bf16.mxu0 0
  %782 = vmatpush1.bf16.msra.mxu0 %v593
  %783 = vmatprep.subr.bf16.mxu0 0
  %784 = vmatpush1.bf16.msra.mxu0 %v594
  %785 = vmatprep.subr.bf16.mxu0 0
  %786 = vmatpush1.bf16.msra.mxu0 %v595
  %787 = vmatprep.subr.bf16.mxu0 0
  %788 = vmatpush1.bf16.msra.mxu0 %v596
  %789 = vmatprep.subr.bf16.mxu0 0
  %790 = vmatpush1.bf16.msra.mxu0 %v597
  %791 = vmatprep.mubr.bf16.mxu0 %v245
  %792 = vmatmul.mubr.bf16.gmra.mrb[0].mxu0 %v244
  %v793 = vpop.f32.mrb[0].mxu0
  %v794 = vadd.f32 %v745, %v793
  %v795 = vpop.f32.mrb[0].mxu0
  %v796 = vpop.f32.mrb[0].mxu0
  %v797 = vadd.f32 %v748, %v796
  %v798 = vpop.f32.mrb[0].mxu0
  %799 = vmatprep.mubr.bf16.mxu0 %v254
  %800 = vmatmul.mubr.bf16.gmra.mrb[0].mxu0 %v253
  %v801 = vpop.f32.mrb[0].mxu0
  %v802 = vadd.f32 %v753, %v801
  %v803 = vpop.f32.mrb[0].mxu0
  %v804 = vpop.f32.mrb[0].mxu0
  %v805 = vadd.f32 %v756, %v804
  %v806 = vpop.f32.mrb[0].mxu0
  %807 = vdwg.mxu0
  %808 = vmatprep.subr.bf16.mxu0 0
  %809 = vmatpush1.bf16.msra.mxu0 %v598
  %810 = vmatprep.subr.bf16.mxu0 0
  %811 = vmatpush1.bf16.msra.mxu0 %v599
  %812 = vmatprep.subr.bf16.mxu0 0
  %813 = vmatpush1.bf16.msra.mxu0 %v600
  %814 = vmatprep.subr.bf16.mxu0 0
  %815 = vmatpush1.bf16.msra.mxu0 %v601
  %816 = vmatprep.subr.bf16.mxu0 0
  %817 = vmatpush1.bf16.msra.mxu0 %v602
  %818 = vmatprep.subr.bf16.mxu0 0
  %819 = vmatpush1.bf16.msra.mxu0 %v603
  %820 = vmatprep.subr.bf16.mxu0 0
  %821 = vmatpush1.bf16.msra.mxu0 %v604
  %822 = vmatprep.subr.bf16.mxu0 0
  %823 = vmatpush1.bf16.msra.mxu0 %v605
  %824 = vmatprep.subr.bf16.mxu0 0
  %825 = vmatpush1.bf16.msra.mxu0 %v606
  %826 = vmatprep.subr.bf16.mxu0 0
  %827 = vmatpush1.bf16.msra.mxu0 %v607
  %828 = vmatprep.subr.bf16.mxu0 0
  %829 = vmatpush1.bf16.msra.mxu0 %v608
  %830 = vmatprep.subr.bf16.mxu0 0
  %831 = vmatpush1.bf16.msra.mxu0 %v609
  %832 = vmatprep.subr.bf16.mxu0 0
  %833 = vmatpush1.bf16.msra.mxu0 %v610
  %834 = vmatprep.subr.bf16.mxu0 0
  %835 = vmatpush1.bf16.msra.mxu0 %v611
  %836 = vmatprep.subr.bf16.mxu0 0
  %837 = vmatpush1.bf16.msra.mxu0 %v612
  %838 = vmatprep.subr.bf16.mxu0 0
  %839 = vmatpush1.bf16.msra.mxu0 %v613
  %840 = vmatprep.mubr.bf16.mxu0 %v247
  %841 = vmatmul.mubr.bf16.gmra.mrb[0].mxu0 %v246
  %v842 = vpop.f32.mrb[0].mxu0
  %v843 = vadd.f32 %v794, %v842
  %v844 = vpop.f32.mrb[0].mxu0
  %v845 = vpop.f32.mrb[0].mxu0
  %v846 = vadd.f32 %v797, %v845
  %v847 = vpop.f32.mrb[0].mxu0
  %848 = vmatprep.mubr.bf16.mxu0 %v256
  %849 = vmatmul.mubr.bf16.gmra.mrb[0].mxu0 %v255
  %v850 = vpop.f32.mrb[0].mxu0
  %v851 = vadd.f32 %v802, %v850
  %v852 = vpop.f32.mrb[0].mxu0
  %v853 = vpop.f32.mrb[0].mxu0
  %v854 = vadd.f32 %v805, %v853
  %v855 = vpop.f32.mrb[0].mxu0
  %856 = vdwg.mxu0
  %857 = vmatprep.subr.bf16.mxu0 0
  %858 = vmatpush1.bf16.msra.mxu0 %v614
  %859 = vmatprep.subr.bf16.mxu0 0
  %860 = vmatpush1.bf16.msra.mxu0 %v615
  %861 = vmatprep.subr.bf16.mxu0 0
  %862 = vmatpush1.bf16.msra.mxu0 %v616
  %863 = vmatprep.subr.bf16.mxu0 0
  %864 = vmatpush1.bf16.msra.mxu0 %v617
  %865 = vmatprep.subr.bf16.mxu0 0
  %866 = vmatpush1.bf16.msra.mxu0 %v618
  %867 = vmatprep.subr.bf16.mxu0 0
  %868 = vmatpush1.bf16.msra.mxu0 %v619
  %869 = vmatprep.subr.bf16.mxu0 0
  %870 = vmatpush1.bf16.msra.mxu0 %v620
  %871 = vmatprep.subr.bf16.mxu0 0
  %872 = vmatpush1.bf16.msra.mxu0 %v621
  %873 = vmatprep.subr.bf16.mxu0 0
  %874 = vmatpush1.bf16.msra.mxu0 %v622
  %875 = vmatprep.subr.bf16.mxu0 0
  %876 = vmatpush1.bf16.msra.mxu0 %v623
  %877 = vmatprep.subr.bf16.mxu0 0
  %878 = vmatpush1.bf16.msra.mxu0 %v624
  %879 = vmatprep.subr.bf16.mxu0 0
  %880 = vmatpush1.bf16.msra.mxu0 %v625
  %881 = vmatprep.subr.bf16.mxu0 0
  %882 = vmatpush1.bf16.msra.mxu0 %v626
  %883 = vmatprep.subr.bf16.mxu0 0
  %884 = vmatpush1.bf16.msra.mxu0 %v627
  %885 = vmatprep.subr.bf16.mxu0 0
  %886 = vmatpush1.bf16.msra.mxu0 %v628
  %887 = vmatprep.subr.bf16.mxu0 0
  %888 = vmatpush1.bf16.msra.mxu0 %v629
  %889 = vmatprep.mubr.bf16.mxu0 %v249
  %890 = vmatmul.mubr.bf16.gmra.mrb[0].mxu0 %v248
  %v891 = vpop.f32.mrb[0].mxu0
  %v892 = vadd.f32 %v843, %v891
  %v893 = vpop.f32.mrb[0].mxu0
  %v894 = vpop.f32.mrb[0].mxu0
  %v895 = vadd.f32 %v846, %v894
  %v896 = vpop.f32.mrb[0].mxu0
  %897 = vmatprep.mubr.bf16.mxu0 %v258
  %898 = vmatmul.mubr.bf16.gmra.mrb[0].mxu0 %v257
  %v899 = vpop.f32.mrb[0].mxu0
  %v900 = vadd.f32 %v851, %v899
  %v901 = vpop.f32.mrb[0].mxu0
  %v902 = vpop.f32.mrb[0].mxu0
  %v903 = vadd.f32 %v854, %v902
  %v904 = vpop.f32.mrb[0].mxu0
  %905 = vdwg.mxu0
  %906 = vmatprep.subr.bf16.mxu0 0
  %907 = vmatpush1.bf16.msra.mxu0 %v630
  %908 = vmatprep.subr.bf16.mxu0 0
  %909 = vmatpush1.bf16.msra.mxu0 %v631
  %910 = vmatprep.subr.bf16.mxu0 0
  %911 = vmatpush1.bf16.msra.mxu0 %v632
  %912 = vmatprep.subr.bf16.mxu0 0
  %913 = vmatpush1.bf16.msra.mxu0 %v633
  %914 = vmatprep.subr.bf16.mxu0 0
  %915 = vmatpush1.bf16.msra.mxu0 %v634
  %916 = vmatprep.subr.bf16.mxu0 0
  %917 = vmatpush1.bf16.msra.mxu0 %v635
  %918 = vmatprep.subr.bf16.mxu0 0
  %919 = vmatpush1.bf16.msra.mxu0 %v636
  %920 = vmatprep.subr.bf16.mxu0 0
  %921 = vmatpush1.bf16.msra.mxu0 %v637
  %922 = vmatprep.subr.bf16.mxu0 0
  %923 = vmatpush1.bf16.msra.mxu0 0
  %924 = vmatprep.subr.bf16.mxu0 0
  %925 = vmatpush1.bf16.msra.mxu0 0
  %926 = vmatprep.subr.bf16.mxu0 0
  %927 = vmatpush1.bf16.msra.mxu0 0
  %928 = vmatprep.subr.bf16.mxu0 0
  %929 = vmatpush1.bf16.msra.mxu0 0
  %930 = vmatprep.subr.bf16.mxu0 0
  %931 = vmatpush1.bf16.msra.mxu0 0
  %932 = vmatprep.subr.bf16.mxu0 0
  %933 = vmatpush1.bf16.msra.mxu0 0
  %934 = vmatprep.subr.bf16.mxu0 0
  %935 = vmatpush1.bf16.msra.mxu0 0
  %936 = vmatprep.subr.bf16.mxu0 0
  %937 = vmatpush1.bf16.msra.mxu0 0
  %938 = vmatprep.mubr.bf16.mxu0 0
  %939 = vmatmul.mubr.bf16.gmra.mrb[0].mxu0 %v250
  %v940 = vpop.f32.mrb[0].mxu0
  %v941 = vadd.f32 %v892, %v940
  %v942 = vpop.f32.mrb[0].mxu0
  %v943 = vpop.f32.mrb[0].mxu0
  %v944 = vadd.f32 %v895, %v943
  %v945 = vpop.f32.mrb[0].mxu0
  %946 = vmatprep.mubr.bf16.mxu0 0
  %947 = vmatmul.mubr.bf16.gmra.mrb[0].mxu0 %v259
  %v948 = vpop.f32.mrb[0].mxu0
  %v949 = vadd.f32 %v900, %v948
  %v950 = vpop.f32.mrb[0].mxu0
  %v951 = vpop.f32.mrb[0].mxu0
  %v952 = vadd.f32 %v903, %v951
  %v953 = vpop.f32.mrb[0].mxu0
  %954 = vdwg.mxu0
  %v955 = vmax.f32 %v941, 0.0
  %v956 = vmax.f32 %v944, 0.0
  %v957 = vmax.f32 %v949, 0.0
  %v958 = vmax.f32 %v952, 0.0
  %v959 = vpack.c.bf16 %v956, %v955
  %v960 = vpack.c.bf16 %v958, %v957
  %v963 = vunpack.c.l.b16 %v959
  %v964 = vunpack.c.h.b16 %v959
  %v965 = vunpack.c.l.b16 %v960
  %v966 = vunpack.c.h.b16 %v960
  %v967 = vpack.c.b16 %v963, %v963
  %v968 = vpack.c.b16 %v964, %v964
  %v969 = vpack.c.b16 %v965, %v965
  %v970 = vpack.c.b16 %v966, %v966
  %975 = vst [vmem:[%s3] sm:$0xf] %v967
  %976 = vst [vmem:[%s3 + $0x4] sm:$0xf] %v968
  %977 = vst [vmem:[%s3 + $0x8] sm:$0xf] %v969
  %978 = vst [vmem:[%s3 + $0xc] sm:$0xf] %v970
  // Predicated region
  $region14: #{resnet_diff_forward.12} parent=0 // pred_check
    _
  $region15: #{resnet_diff_forward.12} parent=0 // pred_check_branch
    %980 = sbr.rel (0) target = $region17
  $region16: #{resnet_diff_forward.12} parent=0 // pred_region
    _
  $region17: #{resnet_diff_forward.12} parent=0 // pred_fallthru
    _
  // Predicated region
  $region18: #{resnet_diff_forward.12} parent=0 // pred_check
    _
  $region19: #{resnet_diff_forward.12} parent=0 // pred_check_branch
    %982 = sbr.rel (0) target = $region21
  $region20: #{resnet_diff_forward.12} parent=0 // pred_region
    _
  $region21: #{resnet_diff_forward.12} parent=0 // pred_fallthru
    _

// kernel: resnet_diff_forward.13
$region0: #{resnet_diff_forward.13}
  #allocation0 [shape = 'u32[]', space=smem, size = 0x4, offset = 0x4, fixed_abs, tag = 'smem constant byte address 0x4 - core index']
  #allocation1 [shape = 'u32[144,128]{1,0:T(1,128)}', space=vmem, size = 0x12000, scoped, tag = 'internal scratch']
  %s0 = inlined_call_operand.vmem [shape: bf16[32,128], index: 0, kind: input, shape index: {}]
  %s1 = inlined_call_operand.vmem [shape: bf16[128,128], index: 1, kind: input, shape index: {}]
  %s2 = inlined_call_operand.vmem [shape: f32[1,128], index: 2, kind: input, shape index: {}]
  %s3 = inlined_call_operand.vmem [shape: bf16[32,128], index: 3, kind: output, shape index: {}]
  %s4 = sld [smem:[#allocation0]]
  $region22: #{resnet_diff_forward.13} parent=0
    _
  %s6 = ssub.s32 1, %s4
  %s7 = scalar_select 0, %s6, %s4
  // Predicated region
  $region2: #{resnet_diff_forward.13} parent=0 // pred_check
    _
  $region3: #{resnet_diff_forward.13} parent=0 // pred_check_branch
    %9 = sbr.rel (0) target = $region5
  $region4: #{resnet_diff_forward.13} parent=0 // pred_region
    _
  $region5: #{resnet_diff_forward.13} parent=0 // pred_fallthru
    _
  // Predicated region
  $region6: #{resnet_diff_forward.13} parent=0 // pred_check
    _
  $region7: #{resnet_diff_forward.13} parent=0 // pred_check_branch
    %11 = sbr.rel (0) target = $region9
  $region8: #{resnet_diff_forward.13} parent=0 // pred_region
    _
  $region9: #{resnet_diff_forward.13} parent=0 // pred_fallthru
    _
  // Predicated region
  $region10: #{resnet_diff_forward.13} parent=0 // pred_check
    _
  $region11: #{resnet_diff_forward.13} parent=0 // pred_check_branch
    %13 = sbr.rel (0) target = $region13
  $region12: #{resnet_diff_forward.13} parent=0 // pred_region
    _
  $region13: #{resnet_diff_forward.13} parent=0 // pred_fallthru
    _
  %v15 = vld [vmem:[%s0] sm:$0xf]
  %v16 = vld [vmem:[%s0 + $0x4] sm:$0xf]
  %v17 = vld [vmem:[%s0 + $0x8] sm:$0xf]
  %v18 = vld [vmem:[%s0 + $0xc] sm:$0xf]
  %v19 = vld [vmem:[%s1] sm:$0xf]
  %v20 = vld [vmem:[%s1 + $0x4] sm:$0xf]
  %v21 = vld [vmem:[%s1 + $0x8] sm:$0xf]
  %v22 = vld [vmem:[%s1 + $0xc] sm:$0xf]
  %v23 = vld [vmem:[%s1 + $0x10] sm:$0xf]
  %v24 = vld [vmem:[%s1 + $0x14] sm:$0xf]
  %v25 = vld [vmem:[%s1 + $0x18] sm:$0xf]
  %v26 = vld [vmem:[%s1 + $0x1c] sm:$0xf]
  %v27 = vld [vmem:[%s1 + $0x20] sm:$0xf]
  %v28 = vld [vmem:[%s1 + $0x24] sm:$0xf]
  %v29 = vld [vmem:[%s1 + $0x28] sm:$0xf]
  %v30 = vld [vmem:[%s1 + $0x2c] sm:$0xf]
  %v31 = vld [vmem:[%s1 + $0x30] sm:$0xf]
  %v32 = vld [vmem:[%s1 + $0x34] sm:$0xf]
  %v33 = vld [vmem:[%s1 + $0x38] sm:$0xf]
  %v34 = vld [vmem:[%s1 + $0x3c] sm:$0xf]
  %v35 = vld [vmem:[%s2] sm:$0x1]
  %v37 = vlaneseq
  %v38 = vshrl.u32 %v37, 7
  %v39 = vsub.s32 0, %v38
  %v40 = vrot.slane %v35, %v39
  %v46 = vunpack.c.l.b16 %v15
  %v47 = vunpack.c.l.b16 %v16
  %v48 = vunpack.c.l.b16 %v17
  %v49 = vunpack.c.l.b16 %v18
  %v50 = vpack.c.b16 %v47, %v46
  %v51 = vpack.c.b16 %v49, %v48
  %v70 = vunpack.c.l.b16 %v19
  %v71 = vunpack.c.l.b16 %v20
  %v72 = vunpack.c.l.b16 %v21
  %v73 = vunpack.c.l.b16 %v22
  %v74 = vunpack.c.l.b16 %v23
  %v75 = vunpack.c.l.b16 %v24
  %v76 = vunpack.c.l.b16 %v25
  %v77 = vunpack.c.l.b16 %v26
  %v78 = vunpack.c.l.b16 %v27
  %v79 = vunpack.c.l.b16 %v28
  %v80 = vunpack.c.l.b16 %v29
  %v81 = vunpack.c.l.b16 %v30
  %v82 = vunpack.c.l.b16 %v31
  %v83 = vunpack.c.l.b16 %v32
  %v84 = vunpack.c.l.b16 %v33
  %v85 = vunpack.c.l.b16 %v34
  %v86 = vpack.c.b16 %v71, %v70
  %v87 = vpack.c.b16 %v73, %v72
  %v88 = vpack.c.b16 %v75, %v74
  %v89 = vpack.c.b16 %v77, %v76
  %v90 = vpack.c.b16 %v79, %v78
  %v91 = vpack.c.b16 %v81, %v80
  %v92 = vpack.c.b16 %v83, %v82
  %v93 = vpack.c.b16 %v85, %v84
  %102 = vmatprep.subr.bf16.mxu0 0
  %103 = vmatpush1.bf16.msra.mxu0 %v86
  %104 = vmatprep.subr.bf16.mxu0 0
  %105 = vmatpush1.bf16.msra.mxu0 %v87
  %106 = vmatprep.subr.bf16.mxu0 0
  %107 = vmatpush1.bf16.msra.mxu0 %v88
  %108 = vmatprep.subr.bf16.mxu0 0
  %109 = vmatpush1.bf16.msra.mxu0 %v89
  %110 = vmatprep.subr.bf16.mxu0 0
  %111 = vmatpush1.bf16.msra.mxu0 %v90
  %112 = vmatprep.subr.bf16.mxu0 0
  %113 = vmatpush1.bf16.msra.mxu0 %v91
  %114 = vmatprep.subr.bf16.mxu0 0
  %115 = vmatpush1.bf16.msra.mxu0 %v92
  %116 = vmatprep.subr.bf16.mxu0 0
  %117 = vmatpush1.bf16.msra.mxu0 %v93
  %118 = vmatprep.subr.bf16.mxu0 0
  %119 = vmatpush1.bf16.msra.mxu0 0
  %120 = vmatprep.subr.bf16.mxu0 0
  %121 = vmatpush1.bf16.msra.mxu0 0
  %122 = vmatprep.subr.bf16.mxu0 0
  %123 = vmatpush1.bf16.msra.mxu0 0
  %124 = vmatprep.subr.bf16.mxu0 0
  %125 = vmatpush1.bf16.msra.mxu0 0
  %126 = vmatprep.subr.bf16.mxu0 0
  %127 = vmatpush1.bf16.msra.mxu0 0
  %128 = vmatprep.subr.bf16.mxu0 0
  %129 = vmatpush1.bf16.msra.mxu0 0
  %130 = vmatprep.subr.bf16.mxu0 0
  %131 = vmatpush1.bf16.msra.mxu0 0
  %132 = vmatprep.subr.bf16.mxu0 0
  %133 = vmatpush1.bf16.msra.mxu0 0
  %134 = vmatprep.mubr.bf16.mxu0 0
  %135 = vmatmul.mubr.bf16.gmra.mrb[0].mxu0 %v50
  %v136 = vpop.f32.mrb[0].mxu0
  %v137 = vadd.f32 %v40, %v136
  %v138 = vpop.f32.mrb[0].mxu0
  %v139 = vpop.f32.mrb[0].mxu0
  %v140 = vadd.f32 %v40, %v139
  %v141 = vpop.f32.mrb[0].mxu0
  %142 = vmatprep.mubr.bf16.mxu0 0
  %143 = vmatmul.mubr.bf16.gmra.mrb[0].mxu0 %v51
  %v144 = vpop.f32.mrb[0].mxu0
  %v145 = vadd.f32 %v40, %v144
  %v146 = vpop.f32.mrb[0].mxu0
  %v147 = vpop.f32.mrb[0].mxu0
  %v148 = vadd.f32 %v40, %v147
  %v149 = vpop.f32.mrb[0].mxu0
  %150 = vdwg.mxu0
  %v151 = vpack.c.bf16 %v140, %v137
  %v152 = vpack.c.bf16 %v148, %v145
  %v155 = vunpack.c.l.b16 %v151
  %v156 = vunpack.c.h.b16 %v151
  %v157 = vunpack.c.l.b16 %v152
  %v158 = vunpack.c.h.b16 %v152
  %v159 = vpack.c.b16 %v155, %v155
  %v160 = vpack.c.b16 %v156, %v156
  %v161 = vpack.c.b16 %v157, %v157
  %v162 = vpack.c.b16 %v158, %v158
  %167 = vst [vmem:[%s3] sm:$0xf] %v159
  %168 = vst [vmem:[%s3 + $0x4] sm:$0xf] %v160
  %169 = vst [vmem:[%s3 + $0x8] sm:$0xf] %v161
  %170 = vst [vmem:[%s3 + $0xc] sm:$0xf] %v162
  // Predicated region
  $region14: #{resnet_diff_forward.13} parent=0 // pred_check
    _
  $region15: #{resnet_diff_forward.13} parent=0 // pred_check_branch
    %172 = sbr.rel (0) target = $region17
  $region16: #{resnet_diff_forward.13} parent=0 // pred_region
    _
  $region17: #{resnet_diff_forward.13} parent=0 // pred_fallthru
    _
  // Predicated region
  $region18: #{resnet_diff_forward.13} parent=0 // pred_check
    _
  $region19: #{resnet_diff_forward.13} parent=0 // pred_check_branch
    %174 = sbr.rel (0) target = $region21
  $region20: #{resnet_diff_forward.13} parent=0 // pred_region
    _
  $region21: #{resnet_diff_forward.13} parent=0 // pred_fallthru
    _

// kernel: resnet_diff_forward.14
$region0: #{resnet_diff_forward.14}
  #allocation0 [shape = 'u32[]', space=smem, size = 0x4, offset = 0x4, fixed_abs, tag = 'smem constant byte address 0x4 - core index']
  #allocation1 [shape = 'u32[144,128]{1,0:T(1,128)}', space=vmem, size = 0x12000, scoped, tag = 'internal scratch']
  %s0 = inlined_call_operand.vmem [shape: bf16[32,1152], index: 0, kind: input, shape index: {}]
  %s1 = inlined_call_operand.vmem [shape: bf16[1152,128], index: 1, kind: input, shape index: {}]
  %s2 = inlined_call_operand.vmem [shape: f32[1,128], index: 2, kind: input, shape index: {}]
  %s3 = inlined_call_operand.vmem [shape: bf16[32,128], index: 3, kind: input, shape index: {}]
  %s4 = inlined_call_operand.vmem [shape: bf16[32,128], index: 4, kind: output, shape index: {}]
  %s5 = sld [smem:[#allocation0]]
  $region26: #{resnet_diff_forward.14} parent=0
    _
  %s7 = ssub.s32 1, %s5
  %s8 = scalar_select 0, %s7, %s5
  // Predicated region
  $region2: #{resnet_diff_forward.14} parent=0 // pred_check
    _
  $region3: #{resnet_diff_forward.14} parent=0 // pred_check_branch
    %10 = sbr.rel (0) target = $region5
  $region4: #{resnet_diff_forward.14} parent=0 // pred_region
    _
  $region5: #{resnet_diff_forward.14} parent=0 // pred_fallthru
    _
  // Predicated region
  $region6: #{resnet_diff_forward.14} parent=0 // pred_check
    _
  $region7: #{resnet_diff_forward.14} parent=0 // pred_check_branch
    %12 = sbr.rel (0) target = $region9
  $region8: #{resnet_diff_forward.14} parent=0 // pred_region
    _
  $region9: #{resnet_diff_forward.14} parent=0 // pred_fallthru
    _
  // Predicated region
  $region10: #{resnet_diff_forward.14} parent=0 // pred_check
    _
  $region11: #{resnet_diff_forward.14} parent=0 // pred_check_branch
    %14 = sbr.rel (0) target = $region13
  $region12: #{resnet_diff_forward.14} parent=0 // pred_region
    _
  $region13: #{resnet_diff_forward.14} parent=0 // pred_fallthru
    _
  // Predicated region
  $region14: #{resnet_diff_forward.14} parent=0 // pred_check
    _
  $region15: #{resnet_diff_forward.14} parent=0 // pred_check_branch
    %16 = sbr.rel (0) target = $region17
  $region16: #{resnet_diff_forward.14} parent=0 // pred_region
    _
  $region17: #{resnet_diff_forward.14} parent=0 // pred_fallthru
    _
  %v18 = vld [vmem:[%s0] sm:$0xff]
  %v19 = vld [vmem:[%s0 + $0x8] sm:$0xff]
  %v20 = vld [vmem:[%s0 + $0x10] sm:$0xff]
  %v21 = vld [vmem:[%s0 + $0x18] sm:$0xff]
  %v22 = vld [vmem:[%s0 + $0x20] sm:$0xf]
  %v23 = vld [vmem:[%s0 + $0x24] sm:$0xff]
  %v24 = vld [vmem:[%s0 + $0x2c] sm:$0xff]
  %v25 = vld [vmem:[%s0 + $0x34] sm:$0xff]
  %v26 = vld [vmem:[%s0 + $0x3c] sm:$0xff]
  %v27 = vld [vmem:[%s0 + $0x44] sm:$0xf]
  %v28 = vld [vmem:[%s0 + $0x48] sm:$0xff]
  %v29 = vld [vmem:[%s0 + $0x50] sm:$0xff]
  %v30 = vld [vmem:[%s0 + $0x58] sm:$0xff]
  %v31 = vld [vmem:[%s0 + $0x60] sm:$0xff]
  %v32 = vld [vmem:[%s0 + $0x68] sm:$0xf]
  %v33 = vld [vmem:[%s0 + $0x6c] sm:$0xff]
  %v34 = vld [vmem:[%s0 + $0x74] sm:$0xff]
  %v35 = vld [vmem:[%s0 + $0x7c] sm:$0xff]
  %v36 = vld [vmem:[%s0 + $0x84] sm:$0xff]
  %v37 = vld [vmem:[%s0 + $0x8c] sm:$0xf]
  %v38 = vld [vmem:[%s1] sm:$0xf]
  %v39 = vld [vmem:[%s1 + $0x4] sm:$0xf]
  %v40 = vld [vmem:[%s1 + $0x8] sm:$0xf]
  %v41 = vld [vmem:[%s1 + $0xc] sm:$0xf]
  %v42 = vld [vmem:[%s1 + $0x10] sm:$0xf]
  %v43 = vld [vmem:[%s1 + $0x14] sm:$0xf]
  %v44 = vld [vmem:[%s1 + $0x18] sm:$0xf]
  %v45 = vld [vmem:[%s1 + $0x1c] sm:$0xf]
  %v46 = vld [vmem:[%s1 + $0x20] sm:$0xf]
  %v47 = vld [vmem:[%s1 + $0x24] sm:$0xf]
  %v48 = vld [vmem:[%s1 + $0x28] sm:$0xf]
  %v49 = vld [vmem:[%s1 + $0x2c] sm:$0xf]
  %v50 = vld [vmem:[%s1 + $0x30] sm:$0xf]
  %v51 = vld [vmem:[%s1 + $0x34] sm:$0xf]
  %v52 = vld [vmem:[%s1 + $0x38] sm:$0xf]
  %v53 = vld [vmem:[%s1 + $0x3c] sm:$0xf]
  %v54 = vld [vmem:[%s1 + $0x40] sm:$0xf]
  %v55 = vld [vmem:[%s1 + $0x44] sm:$0xf]
  %v56 = vld [vmem:[%s1 + $0x48] sm:$0xf]
  %v57 = vld [vmem:[%s1 + $0x4c] sm:$0xf]
  %v58 = vld [vmem:[%s1 + $0x50] sm:$0xf]
  %v59 = vld [vmem:[%s1 + $0x54] sm:$0xf]
  %v60 = vld [vmem:[%s1 + $0x58] sm:$0xf]
  %v61 = vld [vmem:[%s1 + $0x5c] sm:$0xf]
  %v62 = vld [vmem:[%s1 + $0x60] sm:$0xf]
  %v63 = vld [vmem:[%s1 + $0x64] sm:$0xf]
  %v64 = vld [vmem:[%s1 + $0x68] sm:$0xf]
  %v65 = vld [vmem:[%s1 + $0x6c] sm:$0xf]
  %v66 = vld [vmem:[%s1 + $0x70] sm:$0xf]
  %v67 = vld [vmem:[%s1 + $0x74] sm:$0xf]
  %v68 = vld [vmem:[%s1 + $0x78] sm:$0xf]
  %v69 = vld [vmem:[%s1 + $0x7c] sm:$0xf]
  %v70 = vld [vmem:[%s1 + $0x80] sm:$0xf]
  %v71 = vld [vmem:[%s1 + $0x84] sm:$0xf]
  %v72 = vld [vmem:[%s1 + $0x88] sm:$0xf]
  %v73 = vld [vmem:[%s1 + $0x8c] sm:$0xf]
  %v74 = vld [vmem:[%s1 + $0x90] sm:$0xf]
  %v75 = vld [vmem:[%s1 + $0x94] sm:$0xf]
  %v76 = vld [vmem:[%s1 + $0x98] sm:$0xf]
  %v77 = vld [vmem:[%s1 + $0x9c] sm:$0xf]
  %v78 = vld [vmem:[%s1 + $0xa0] sm:$0xf]
  %v79 = vld [vmem:[%s1 + $0xa4] sm:$0xf]
  %v80 = vld [vmem:[%s1 + $0xa8] sm:$0xf]
  %v81 = vld [vmem:[%s1 + $0xac] sm:$0xf]
  %v82 = vld [vmem:[%s1 + $0xb0] sm:$0xf]
  %v83 = vld [vmem:[%s1 + $0xb4] sm:$0xf]
  %v84 = vld [vmem:[%s1 + $0xb8] sm:$0xf]
  %v85 = vld [vmem:[%s1 + $0xbc] sm:$0xf]
  %v86 = vld [vmem:[%s1 + $0xc0] sm:$0xf]
  %v87 = vld [vmem:[%s1 + $0xc4] sm:$0xf]
  %v88 = vld [vmem:[%s1 + $0xc8] sm:$0xf]
  %v89 = vld [vmem:[%s1 + $0xcc] sm:$0xf]
  %v90 = vld [vmem:[%s1 + $0xd0] sm:$0xf]
  %v91 = vld [vmem:[%s1 + $0xd4] sm:$0xf]
  %v92 = vld [vmem:[%s1 + $0xd8] sm:$0xf]
  %v93 = vld [vmem:[%s1 + $0xdc] sm:$0xf]
  %v94 = vld [vmem:[%s1 + $0xe0] sm:$0xf]
  %v95 = vld [vmem:[%s1 + $0xe4] sm:$0xf]
  %v96 = vld [vmem:[%s1 + $0xe8] sm:$0xf]
  %v97 = vld [vmem:[%s1 + $0xec] sm:$0xf]
  %v98 = vld [vmem:[%s1 + $0xf0] sm:$0xf]
  %v99 = vld [vmem:[%s1 + $0xf4] sm:$0xf]
  %v100 = vld [vmem:[%s1 + $0xf8] sm:$0xf]
  %v101 = vld [vmem:[%s1 + $0xfc] sm:$0xf]
  %v102 = vld [vmem:[%s1 + $0x100] sm:$0xf]
  %v103 = vld [vmem:[%s1 + $0x104] sm:$0xf]
  %v104 = vld [vmem:[%s1 + $0x108] sm:$0xf]
  %v105 = vld [vmem:[%s1 + $0x10c] sm:$0xf]
  %v106 = vld [vmem:[%s1 + $0x110] sm:$0xf]
  %v107 = vld [vmem:[%s1 + $0x114] sm:$0xf]
  %v108 = vld [vmem:[%s1 + $0x118] sm:$0xf]
  %v109 = vld [vmem:[%s1 + $0x11c] sm:$0xf]
  %v110 = vld [vmem:[%s1 + $0x120] sm:$0xf]
  %v111 = vld [vmem:[%s1 + $0x124] sm:$0xf]
  %v112 = vld [vmem:[%s1 + $0x128] sm:$0xf]
  %v113 = vld [vmem:[%s1 + $0x12c] sm:$0xf]
  %v114 = vld [vmem:[%s1 + $0x130] sm:$0xf]
  %v115 = vld [vmem:[%s1 + $0x134] sm:$0xf]
  %v116 = vld [vmem:[%s1 + $0x138] sm:$0xf]
  %v117 = vld [vmem:[%s1 + $0x13c] sm:$0xf]
  %v118 = vld [vmem:[%s1 + $0x140] sm:$0xf]
  %v119 = vld [vmem:[%s1 + $0x144] sm:$0xf]
  %v120 = vld [vmem:[%s1 + $0x148] sm:$0xf]
  %v121 = vld [vmem:[%s1 + $0x14c] sm:$0xf]
  %v122 = vld [vmem:[%s1 + $0x150] sm:$0xf]
  %v123 = vld [vmem:[%s1 + $0x154] sm:$0xf]
  %v124 = vld [vmem:[%s1 + $0x158] sm:$0xf]
  %v125 = vld [vmem:[%s1 + $0x15c] sm:$0xf]
  %v126 = vld [vmem:[%s1 + $0x160] sm:$0xf]
  %v127 = vld [vmem:[%s1 + $0x164] sm:$0xf]
  %v128 = vld [vmem:[%s1 + $0x168] sm:$0xf]
  %v129 = vld [vmem:[%s1 + $0x16c] sm:$0xf]
  %v130 = vld [vmem:[%s1 + $0x170] sm:$0xf]
  %v131 = vld [vmem:[%s1 + $0x174] sm:$0xf]
  %v132 = vld [vmem:[%s1 + $0x178] sm:$0xf]
  %v133 = vld [vmem:[%s1 + $0x17c] sm:$0xf]
  %v134 = vld [vmem:[%s1 + $0x180] sm:$0xf]
  %v135 = vld [vmem:[%s1 + $0x184] sm:$0xf]
  %v136 = vld [vmem:[%s1 + $0x188] sm:$0xf]
  %v137 = vld [vmem:[%s1 + $0x18c] sm:$0xf]
  %v138 = vld [vmem:[%s1 + $0x190] sm:$0xf]
  %v139 = vld [vmem:[%s1 + $0x194] sm:$0xf]
  %v140 = vld [vmem:[%s1 + $0x198] sm:$0xf]
  %v141 = vld [vmem:[%s1 + $0x19c] sm:$0xf]
  %v142 = vld [vmem:[%s1 + $0x1a0] sm:$0xf]
  %v143 = vld [vmem:[%s1 + $0x1a4] sm:$0xf]
  %v144 = vld [vmem:[%s1 + $0x1a8] sm:$0xf]
  %v145 = vld [vmem:[%s1 + $0x1ac] sm:$0xf]
  %v146 = vld [vmem:[%s1 + $0x1b0] sm:$0xf]
  %v147 = vld [vmem:[%s1 + $0x1b4] sm:$0xf]
  %v148 = vld [vmem:[%s1 + $0x1b8] sm:$0xf]
  %v149 = vld [vmem:[%s1 + $0x1bc] sm:$0xf]
  %v150 = vld [vmem:[%s1 + $0x1c0] sm:$0xf]
  %v151 = vld [vmem:[%s1 + $0x1c4] sm:$0xf]
  %v152 = vld [vmem:[%s1 + $0x1c8] sm:$0xf]
  %v153 = vld [vmem:[%s1 + $0x1cc] sm:$0xf]
  %v154 = vld [vmem:[%s1 + $0x1d0] sm:$0xf]
  %v155 = vld [vmem:[%s1 + $0x1d4] sm:$0xf]
  %v156 = vld [vmem:[%s1 + $0x1d8] sm:$0xf]
  %v157 = vld [vmem:[%s1 + $0x1dc] sm:$0xf]
  %v158 = vld [vmem:[%s1 + $0x1e0] sm:$0xf]
  %v159 = vld [vmem:[%s1 + $0x1e4] sm:$0xf]
  %v160 = vld [vmem:[%s1 + $0x1e8] sm:$0xf]
  %v161 = vld [vmem:[%s1 + $0x1ec] sm:$0xf]
  %v162 = vld [vmem:[%s1 + $0x1f0] sm:$0xf]
  %v163 = vld [vmem:[%s1 + $0x1f4] sm:$0xf]
  %v164 = vld [vmem:[%s1 + $0x1f8] sm:$0xf]
  %v165 = vld [vmem:[%s1 + $0x1fc] sm:$0xf]
  %v166 = vld [vmem:[%s1 + $0x200] sm:$0xf]
  %v167 = vld [vmem:[%s1 + $0x204] sm:$0xf]
  %v168 = vld [vmem:[%s1 + $0x208] sm:$0xf]
  %v169 = vld [vmem:[%s1 + $0x20c] sm:$0xf]
  %v170 = vld [vmem:[%s1 + $0x210] sm:$0xf]
  %v171 = vld [vmem:[%s1 + $0x214] sm:$0xf]
  %v172 = vld [vmem:[%s1 + $0x218] sm:$0xf]
  %v173 = vld [vmem:[%s1 + $0x21c] sm:$0xf]
  %v174 = vld [vmem:[%s1 + $0x220] sm:$0xf]
  %v175 = vld [vmem:[%s1 + $0x224] sm:$0xf]
  %v176 = vld [vmem:[%s1 + $0x228] sm:$0xf]
  %v177 = vld [vmem:[%s1 + $0x22c] sm:$0xf]
  %v178 = vld [vmem:[%s1 + $0x230] sm:$0xf]
  %v179 = vld [vmem:[%s1 + $0x234] sm:$0xf]
  %v180 = vld [vmem:[%s1 + $0x238] sm:$0xf]
  %v181 = vld [vmem:[%s1 + $0x23c] sm:$0xf]
  %v182 = vld [vmem:[%s2] sm:$0x1]
  %v184 = vlaneseq
  %v185 = vshrl.u32 %v184, 7
  %v186 = vsub.s32 0, %v185
  %v187 = vrot.slane %v182, %v186
  %v209 = vunpack.c.l.b16 %v18
  %v210 = vunpack.c.h.b16 %v18
  %v211 = vunpack.c.l.b16 %v19
  %v212 = vunpack.c.h.b16 %v19
  %v213 = vunpack.c.l.b16 %v20
  %v214 = vunpack.c.h.b16 %v20
  %v215 = vunpack.c.l.b16 %v21
  %v216 = vunpack.c.h.b16 %v21
  %v217 = vunpack.c.l.b16 %v22
  %v218 = vunpack.c.l.b16 %v23
  %v219 = vunpack.c.h.b16 %v23
  %v220 = vunpack.c.l.b16 %v24
  %v221 = vunpack.c.h.b16 %v24
  %v222 = vunpack.c.l.b16 %v25
  %v223 = vunpack.c.h.b16 %v25
  %v224 = vunpack.c.l.b16 %v26
  %v225 = vunpack.c.h.b16 %v26
  %v226 = vunpack.c.l.b16 %v27
  %v227 = vunpack.c.l.b16 %v28
  %v228 = vunpack.c.h.b16 %v28
  %v229 = vunpack.c.l.b16 %v29
  %v230 = vunpack.c.h.b16 %v29
  %v231 = vunpack.c.l.b16 %v30
  %v232 = vunpack.c.h.b16 %v30
  %v233 = vunpack.c.l.b16 %v31
  %v234 = vunpack.c.h.b16 %v31
  %v235 = vunpack.c.l.b16 %v32
  %v236 = vunpack.c.l.b16 %v33
  %v237 = vunpack.c.h.b16 %v33
  %v238 = vunpack.c.l.b16 %v34
  %v239 = vunpack.c.h.b16 %v34
  %v240 = vunpack.c.l.b16 %v35
  %v241 = vunpack.c.h.b16 %v35
  %v242 = vunpack.c.l.b16 %v36
  %v243 = vunpack.c.h.b16 %v36
  %v244 = vunpack.c.l.b16 %v37
  %v245 = vpack.c.b16 %v218, %v209
  %v246 = vpack.c.b16 %v219, %v210
  %v247 = vpack.c.b16 %v220, %v211
  %v248 = vpack.c.b16 %v221, %v212
  %v249 = vpack.c.b16 %v222, %v213
  %v250 = vpack.c.b16 %v223, %v214
  %v251 = vpack.c.b16 %v224, %v215
  %v252 = vpack.c.b16 %v225, %v216
  %v253 = vpack.c.b16 %v226, %v217
  %v254 = vpack.c.b16 %v236, %v227
  %v255 = vpack.c.b16 %v237, %v228
  %v256 = vpack.c.b16 %v238, %v229
  %v257 = vpack.c.b16 %v239, %v230
  %v258 = vpack.c.b16 %v240, %v231
  %v259 = vpack.c.b16 %v241, %v232
  %v260 = vpack.c.b16 %v242, %v233
  %v261 = vpack.c.b16 %v243, %v234
  %v262 = vpack.c.b16 %v244, %v235
  %v425 = vunpack.c.l.b16 %v38
  %v426 = vunpack.c.l.b16 %v39
  %v427 = vunpack.c.l.b16 %v40
  %v428 = vunpack.c.l.b16 %v41
  %v429 = vunpack.c.l.b16 %v42
  %v430 = vunpack.c.l.b16 %v43
  %v431 = vunpack.c.l.b16 %v44
  %v432 = vunpack.c.l.b16 %v45
  %v433 = vunpack.c.l.b16 %v46
  %v434 = vunpack.c.l.b16 %v47
  %v435 = vunpack.c.l.b16 %v48
  %v436 = vunpack.c.l.b16 %v49
  %v437 = vunpack.c.l.b16 %v50
  %v438 = vunpack.c.l.b16 %v51
  %v439 = vunpack.c.l.b16 %v52
  %v440 = vunpack.c.l.b16 %v53
  %v441 = vunpack.c.l.b16 %v54
  %v442 = vunpack.c.l.b16 %v55
  %v443 = vunpack.c.l.b16 %v56
  %v444 = vunpack.c.l.b16 %v57
  %v445 = vunpack.c.l.b16 %v58
  %v446 = vunpack.c.l.b16 %v59
  %v447 = vunpack.c.l.b16 %v60
  %v448 = vunpack.c.l.b16 %v61
  %v449 = vunpack.c.l.b16 %v62
  %v450 = vunpack.c.l.b16 %v63
  %v451 = vunpack.c.l.b16 %v64
  %v452 = vunpack.c.l.b16 %v65
  %v453 = vunpack.c.l.b16 %v66
  %v454 = vunpack.c.l.b16 %v67
  %v455 = vunpack.c.l.b16 %v68
  %v456 = vunpack.c.l.b16 %v69
  %v457 = vunpack.c.l.b16 %v70
  %v458 = vunpack.c.l.b16 %v71
  %v459 = vunpack.c.l.b16 %v72
  %v460 = vunpack.c.l.b16 %v73
  %v461 = vunpack.c.l.b16 %v74
  %v462 = vunpack.c.l.b16 %v75
  %v463 = vunpack.c.l.b16 %v76
  %v464 = vunpack.c.l.b16 %v77
  %v465 = vunpack.c.l.b16 %v78
  %v466 = vunpack.c.l.b16 %v79
  %v467 = vunpack.c.l.b16 %v80
  %v468 = vunpack.c.l.b16 %v81
  %v469 = vunpack.c.l.b16 %v82
  %v470 = vunpack.c.l.b16 %v83
  %v471 = vunpack.c.l.b16 %v84
  %v472 = vunpack.c.l.b16 %v85
  %v473 = vunpack.c.l.b16 %v86
  %v474 = vunpack.c.l.b16 %v87
  %v475 = vunpack.c.l.b16 %v88
  %v476 = vunpack.c.l.b16 %v89
  %v477 = vunpack.c.l.b16 %v90
  %v478 = vunpack.c.l.b16 %v91
  %v479 = vunpack.c.l.b16 %v92
  %v480 = vunpack.c.l.b16 %v93
  %v481 = vunpack.c.l.b16 %v94
  %v482 = vunpack.c.l.b16 %v95
  %v483 = vunpack.c.l.b16 %v96
  %v484 = vunpack.c.l.b16 %v97
  %v485 = vunpack.c.l.b16 %v98
  %v486 = vunpack.c.l.b16 %v99
  %v487 = vunpack.c.l.b16 %v100
  %v488 = vunpack.c.l.b16 %v101
  %v489 = vunpack.c.l.b16 %v102
  %v490 = vunpack.c.l.b16 %v103
  %v491 = vunpack.c.l.b16 %v104
  %v492 = vunpack.c.l.b16 %v105
  %v493 = vunpack.c.l.b16 %v106
  %v494 = vunpack.c.l.b16 %v107
  %v495 = vunpack.c.l.b16 %v108
  %v496 = vunpack.c.l.b16 %v109
  %v497 = vunpack.c.l.b16 %v110
  %v498 = vunpack.c.l.b16 %v111
  %v499 = vunpack.c.l.b16 %v112
  %v500 = vunpack.c.l.b16 %v113
  %v501 = vunpack.c.l.b16 %v114
  %v502 = vunpack.c.l.b16 %v115
  %v503 = vunpack.c.l.b16 %v116
  %v504 = vunpack.c.l.b16 %v117
  %v505 = vunpack.c.l.b16 %v118
  %v506 = vunpack.c.l.b16 %v119
  %v507 = vunpack.c.l.b16 %v120
  %v508 = vunpack.c.l.b16 %v121
  %v509 = vunpack.c.l.b16 %v122
  %v510 = vunpack.c.l.b16 %v123
  %v511 = vunpack.c.l.b16 %v124
  %v512 = vunpack.c.l.b16 %v125
  %v513 = vunpack.c.l.b16 %v126
  %v514 = vunpack.c.l.b16 %v127
  %v515 = vunpack.c.l.b16 %v128
  %v516 = vunpack.c.l.b16 %v129
  %v517 = vunpack.c.l.b16 %v130
  %v518 = vunpack.c.l.b16 %v131
  %v519 = vunpack.c.l.b16 %v132
  %v520 = vunpack.c.l.b16 %v133
  %v521 = vunpack.c.l.b16 %v134
  %v522 = vunpack.c.l.b16 %v135
  %v523 = vunpack.c.l.b16 %v136
  %v524 = vunpack.c.l.b16 %v137
  %v525 = vunpack.c.l.b16 %v138
  %v526 = vunpack.c.l.b16 %v139
  %v527 = vunpack.c.l.b16 %v140
  %v528 = vunpack.c.l.b16 %v141
  %v529 = vunpack.c.l.b16 %v142
  %v530 = vunpack.c.l.b16 %v143
  %v531 = vunpack.c.l.b16 %v144
  %v532 = vunpack.c.l.b16 %v145
  %v533 = vunpack.c.l.b16 %v146
  %v534 = vunpack.c.l.b16 %v147
  %v535 = vunpack.c.l.b16 %v148
  %v536 = vunpack.c.l.b16 %v149
  %v537 = vunpack.c.l.b16 %v150
  %v538 = vunpack.c.l.b16 %v151
  %v539 = vunpack.c.l.b16 %v152
  %v540 = vunpack.c.l.b16 %v153
  %v541 = vunpack.c.l.b16 %v154
  %v542 = vunpack.c.l.b16 %v155
  %v543 = vunpack.c.l.b16 %v156
  %v544 = vunpack.c.l.b16 %v157
  %v545 = vunpack.c.l.b16 %v158
  %v546 = vunpack.c.l.b16 %v159
  %v547 = vunpack.c.l.b16 %v160
  %v548 = vunpack.c.l.b16 %v161
  %v549 = vunpack.c.l.b16 %v162
  %v550 = vunpack.c.l.b16 %v163
  %v551 = vunpack.c.l.b16 %v164
  %v552 = vunpack.c.l.b16 %v165
  %v553 = vunpack.c.l.b16 %v166
  %v554 = vunpack.c.l.b16 %v167
  %v555 = vunpack.c.l.b16 %v168
  %v556 = vunpack.c.l.b16 %v169
  %v557 = vunpack.c.l.b16 %v170
  %v558 = vunpack.c.l.b16 %v171
  %v559 = vunpack.c.l.b16 %v172
  %v560 = vunpack.c.l.b16 %v173
  %v561 = vunpack.c.l.b16 %v174
  %v562 = vunpack.c.l.b16 %v175
  %v563 = vunpack.c.l.b16 %v176
  %v564 = vunpack.c.l.b16 %v177
  %v565 = vunpack.c.l.b16 %v178
  %v566 = vunpack.c.l.b16 %v179
  %v567 = vunpack.c.l.b16 %v180
  %v568 = vunpack.c.l.b16 %v181
  %v569 = vpack.c.b16 %v426, %v425
  %v570 = vpack.c.b16 %v428, %v427
  %v571 = vpack.c.b16 %v430, %v429
  %v572 = vpack.c.b16 %v432, %v431
  %v573 = vpack.c.b16 %v434, %v433
  %v574 = vpack.c.b16 %v436, %v435
  %v575 = vpack.c.b16 %v438, %v437
  %v576 = vpack.c.b16 %v440, %v439
  %v577 = vpack.c.b16 %v442, %v441
  %v578 = vpack.c.b16 %v444, %v443
  %v579 = vpack.c.b16 %v446, %v445
  %v580 = vpack.c.b16 %v448, %v447
  %v581 = vpack.c.b16 %v450, %v449
  %v582 = vpack.c.b16 %v452, %v451
  %v583 = vpack.c.b16 %v454, %v453
  %v584 = vpack.c.b16 %v456, %v455
  %v585 = vpack.c.b16 %v458, %v457
  %v586 = vpack.c.b16 %v460, %v459
  %v587 = vpack.c.b16 %v462, %v461
  %v588 = vpack.c.b16 %v464, %v463
  %v589 = vpack.c.b16 %v466, %v465
  %v590 = vpack.c.b16 %v468, %v467
  %v591 = vpack.c.b16 %v470, %v469
  %v592 = vpack.c.b16 %v472, %v471
  %v593 = vpack.c.b16 %v474, %v473
  %v594 = vpack.c.b16 %v476, %v475
  %v595 = vpack.c.b16 %v478, %v477
  %v596 = vpack.c.b16 %v480, %v479
  %v597 = vpack.c.b16 %v482, %v481
  %v598 = vpack.c.b16 %v484, %v483
  %v599 = vpack.c.b16 %v486, %v485
  %v600 = vpack.c.b16 %v488, %v487
  %v601 = vpack.c.b16 %v490, %v489
  %v602 = vpack.c.b16 %v492, %v491
  %v603 = vpack.c.b16 %v494, %v493
  %v604 = vpack.c.b16 %v496, %v495
  %v605 = vpack.c.b16 %v498, %v497
  %v606 = vpack.c.b16 %v500, %v499
  %v607 = vpack.c.b16 %v502, %v501
  %v608 = vpack.c.b16 %v504, %v503
  %v609 = vpack.c.b16 %v506, %v505
  %v610 = vpack.c.b16 %v508, %v507
  %v611 = vpack.c.b16 %v510, %v509
  %v612 = vpack.c.b16 %v512, %v511
  %v613 = vpack.c.b16 %v514, %v513
  %v614 = vpack.c.b16 %v516, %v515
  %v615 = vpack.c.b16 %v518, %v517
  %v616 = vpack.c.b16 %v520, %v519
  %v617 = vpack.c.b16 %v522, %v521
  %v618 = vpack.c.b16 %v524, %v523
  %v619 = vpack.c.b16 %v526, %v525
  %v620 = vpack.c.b16 %v528, %v527
  %v621 = vpack.c.b16 %v530, %v529
  %v622 = vpack.c.b16 %v532, %v531
  %v623 = vpack.c.b16 %v534, %v533
  %v624 = vpack.c.b16 %v536, %v535
  %v625 = vpack.c.b16 %v538, %v537
  %v626 = vpack.c.b16 %v540, %v539
  %v627 = vpack.c.b16 %v542, %v541
  %v628 = vpack.c.b16 %v544, %v543
  %v629 = vpack.c.b16 %v546, %v545
  %v630 = vpack.c.b16 %v548, %v547
  %v631 = vpack.c.b16 %v550, %v549
  %v632 = vpack.c.b16 %v552, %v551
  %v633 = vpack.c.b16 %v554, %v553
  %v634 = vpack.c.b16 %v556, %v555
  %v635 = vpack.c.b16 %v558, %v557
  %v636 = vpack.c.b16 %v560, %v559
  %v637 = vpack.c.b16 %v562, %v561
  %v638 = vpack.c.b16 %v564, %v563
  %v639 = vpack.c.b16 %v566, %v565
  %v640 = vpack.c.b16 %v568, %v567
  %713 = vmatprep.subr.bf16.mxu0 0
  %714 = vmatpush1.bf16.msra.mxu0 %v569
  %715 = vmatprep.subr.bf16.mxu0 0
  %716 = vmatpush1.bf16.msra.mxu0 %v570
  %717 = vmatprep.subr.bf16.mxu0 0
  %718 = vmatpush1.bf16.msra.mxu0 %v571
  %719 = vmatprep.subr.bf16.mxu0 0
  %720 = vmatpush1.bf16.msra.mxu0 %v572
  %721 = vmatprep.subr.bf16.mxu0 0
  %722 = vmatpush1.bf16.msra.mxu0 %v573
  %723 = vmatprep.subr.bf16.mxu0 0
  %724 = vmatpush1.bf16.msra.mxu0 %v574
  %725 = vmatprep.subr.bf16.mxu0 0
  %726 = vmatpush1.bf16.msra.mxu0 %v575
  %727 = vmatprep.subr.bf16.mxu0 0
  %728 = vmatpush1.bf16.msra.mxu0 %v576
  %729 = vmatprep.subr.bf16.mxu0 0
  %730 = vmatpush1.bf16.msra.mxu0 %v577
  %731 = vmatprep.subr.bf16.mxu0 0
  %732 = vmatpush1.bf16.msra.mxu0 %v578
  %733 = vmatprep.subr.bf16.mxu0 0
  %734 = vmatpush1.bf16.msra.mxu0 %v579
  %735 = vmatprep.subr.bf16.mxu0 0
  %736 = vmatpush1.bf16.msra.mxu0 %v580
  %737 = vmatprep.subr.bf16.mxu0 0
  %738 = vmatpush1.bf16.msra.mxu0 %v581
  %739 = vmatprep.subr.bf16.mxu0 0
  %740 = vmatpush1.bf16.msra.mxu0 %v582
  %741 = vmatprep.subr.bf16.mxu0 0
  %742 = vmatpush1.bf16.msra.mxu0 %v583
  %743 = vmatprep.subr.bf16.mxu0 0
  %744 = vmatpush1.bf16.msra.mxu0 %v584
  %745 = vmatprep.mubr.bf16.mxu0 %v246
  %746 = vmatmul.mubr.bf16.gmra.mrb[0].mxu0 %v245
  %v747 = vpop.f32.mrb[0].mxu0
  %v748 = vadd.f32 %v187, %v747
  %v749 = vpop.f32.mrb[0].mxu0
  %v750 = vpop.f32.mrb[0].mxu0
  %v751 = vadd.f32 %v187, %v750
  %v752 = vpop.f32.mrb[0].mxu0
  %753 = vmatprep.mubr.bf16.mxu0 %v255
  %754 = vmatmul.mubr.bf16.gmra.mrb[0].mxu0 %v254
  %v755 = vpop.f32.mrb[0].mxu0
  %v756 = vadd.f32 %v187, %v755
  %v757 = vpop.f32.mrb[0].mxu0
  %v758 = vpop.f32.mrb[0].mxu0
  %v759 = vadd.f32 %v187, %v758
  %v760 = vpop.f32.mrb[0].mxu0
  %761 = vdwg.mxu0
  %762 = vmatprep.subr.bf16.mxu0 0
  %763 = vmatpush1.bf16.msra.mxu0 %v585
  %764 = vmatprep.subr.bf16.mxu0 0
  %765 = vmatpush1.bf16.msra.mxu0 %v586
  %766 = vmatprep.subr.bf16.mxu0 0
  %767 = vmatpush1.bf16.msra.mxu0 %v587
  %768 = vmatprep.subr.bf16.mxu0 0
  %769 = vmatpush1.bf16.msra.mxu0 %v588
  %770 = vmatprep.subr.bf16.mxu0 0
  %771 = vmatpush1.bf16.msra.mxu0 %v589
  %772 = vmatprep.subr.bf16.mxu0 0
  %773 = vmatpush1.bf16.msra.mxu0 %v590
  %774 = vmatprep.subr.bf16.mxu0 0
  %775 = vmatpush1.bf16.msra.mxu0 %v591
  %776 = vmatprep.subr.bf16.mxu0 0
  %777 = vmatpush1.bf16.msra.mxu0 %v592
  %778 = vmatprep.subr.bf16.mxu0 0
  %779 = vmatpush1.bf16.msra.mxu0 %v593
  %780 = vmatprep.subr.bf16.mxu0 0
  %781 = vmatpush1.bf16.msra.mxu0 %v594
  %782 = vmatprep.subr.bf16.mxu0 0
  %783 = vmatpush1.bf16.msra.mxu0 %v595
  %784 = vmatprep.subr.bf16.mxu0 0
  %785 = vmatpush1.bf16.msra.mxu0 %v596
  %786 = vmatprep.subr.bf16.mxu0 0
  %787 = vmatpush1.bf16.msra.mxu0 %v597
  %788 = vmatprep.subr.bf16.mxu0 0
  %789 = vmatpush1.bf16.msra.mxu0 %v598
  %790 = vmatprep.subr.bf16.mxu0 0
  %791 = vmatpush1.bf16.msra.mxu0 %v599
  %792 = vmatprep.subr.bf16.mxu0 0
  %793 = vmatpush1.bf16.msra.mxu0 %v600
  %794 = vmatprep.mubr.bf16.mxu0 %v248
  %795 = vmatmul.mubr.bf16.gmra.mrb[0].mxu0 %v247
  %v796 = vpop.f32.mrb[0].mxu0
  %v797 = vadd.f32 %v748, %v796
  %v798 = vpop.f32.mrb[0].mxu0
  %v799 = vpop.f32.mrb[0].mxu0
  %v800 = vadd.f32 %v751, %v799
  %v801 = vpop.f32.mrb[0].mxu0
  %802 = vmatprep.mubr.bf16.mxu0 %v257
  %803 = vmatmul.mubr.bf16.gmra.mrb[0].mxu0 %v256
  %v804 = vpop.f32.mrb[0].mxu0
  %v805 = vadd.f32 %v756, %v804
  %v806 = vpop.f32.mrb[0].mxu0
  %v807 = vpop.f32.mrb[0].mxu0
  %v808 = vadd.f32 %v759, %v807
  %v809 = vpop.f32.mrb[0].mxu0
  %810 = vdwg.mxu0
  %811 = vmatprep.subr.bf16.mxu0 0
  %812 = vmatpush1.bf16.msra.mxu0 %v601
  %813 = vmatprep.subr.bf16.mxu0 0
  %814 = vmatpush1.bf16.msra.mxu0 %v602
  %815 = vmatprep.subr.bf16.mxu0 0
  %816 = vmatpush1.bf16.msra.mxu0 %v603
  %817 = vmatprep.subr.bf16.mxu0 0
  %818 = vmatpush1.bf16.msra.mxu0 %v604
  %819 = vmatprep.subr.bf16.mxu0 0
  %820 = vmatpush1.bf16.msra.mxu0 %v605
  %821 = vmatprep.subr.bf16.mxu0 0
  %822 = vmatpush1.bf16.msra.mxu0 %v606
  %823 = vmatprep.subr.bf16.mxu0 0
  %824 = vmatpush1.bf16.msra.mxu0 %v607
  %825 = vmatprep.subr.bf16.mxu0 0
  %826 = vmatpush1.bf16.msra.mxu0 %v608
  %827 = vmatprep.subr.bf16.mxu0 0
  %828 = vmatpush1.bf16.msra.mxu0 %v609
  %829 = vmatprep.subr.bf16.mxu0 0
  %830 = vmatpush1.bf16.msra.mxu0 %v610
  %831 = vmatprep.subr.bf16.mxu0 0
  %832 = vmatpush1.bf16.msra.mxu0 %v611
  %833 = vmatprep.subr.bf16.mxu0 0
  %834 = vmatpush1.bf16.msra.mxu0 %v612
  %835 = vmatprep.subr.bf16.mxu0 0
  %836 = vmatpush1.bf16.msra.mxu0 %v613
  %837 = vmatprep.subr.bf16.mxu0 0
  %838 = vmatpush1.bf16.msra.mxu0 %v614
  %839 = vmatprep.subr.bf16.mxu0 0
  %840 = vmatpush1.bf16.msra.mxu0 %v615
  %841 = vmatprep.subr.bf16.mxu0 0
  %842 = vmatpush1.bf16.msra.mxu0 %v616
  %843 = vmatprep.mubr.bf16.mxu0 %v250
  %844 = vmatmul.mubr.bf16.gmra.mrb[0].mxu0 %v249
  %v845 = vpop.f32.mrb[0].mxu0
  %v846 = vadd.f32 %v797, %v845
  %v847 = vpop.f32.mrb[0].mxu0
  %v848 = vpop.f32.mrb[0].mxu0
  %v849 = vadd.f32 %v800, %v848
  %v850 = vpop.f32.mrb[0].mxu0
  %851 = vmatprep.mubr.bf16.mxu0 %v259
  %852 = vmatmul.mubr.bf16.gmra.mrb[0].mxu0 %v258
  %v853 = vpop.f32.mrb[0].mxu0
  %v854 = vadd.f32 %v805, %v853
  %v855 = vpop.f32.mrb[0].mxu0
  %v856 = vpop.f32.mrb[0].mxu0
  %v857 = vadd.f32 %v808, %v856
  %v858 = vpop.f32.mrb[0].mxu0
  %859 = vdwg.mxu0
  %860 = vmatprep.subr.bf16.mxu0 0
  %861 = vmatpush1.bf16.msra.mxu0 %v617
  %862 = vmatprep.subr.bf16.mxu0 0
  %863 = vmatpush1.bf16.msra.mxu0 %v618
  %864 = vmatprep.subr.bf16.mxu0 0
  %865 = vmatpush1.bf16.msra.mxu0 %v619
  %866 = vmatprep.subr.bf16.mxu0 0
  %867 = vmatpush1.bf16.msra.mxu0 %v620
  %868 = vmatprep.subr.bf16.mxu0 0
  %869 = vmatpush1.bf16.msra.mxu0 %v621
  %870 = vmatprep.subr.bf16.mxu0 0
  %871 = vmatpush1.bf16.msra.mxu0 %v622
  %872 = vmatprep.subr.bf16.mxu0 0
  %873 = vmatpush1.bf16.msra.mxu0 %v623
  %874 = vmatprep.subr.bf16.mxu0 0
  %875 = vmatpush1.bf16.msra.mxu0 %v624
  %876 = vmatprep.subr.bf16.mxu0 0
  %877 = vmatpush1.bf16.msra.mxu0 %v625
  %878 = vmatprep.subr.bf16.mxu0 0
  %879 = vmatpush1.bf16.msra.mxu0 %v626
  %880 = vmatprep.subr.bf16.mxu0 0
  %881 = vmatpush1.bf16.msra.mxu0 %v627
  %882 = vmatprep.subr.bf16.mxu0 0
  %883 = vmatpush1.bf16.msra.mxu0 %v628
  %884 = vmatprep.subr.bf16.mxu0 0
  %885 = vmatpush1.bf16.msra.mxu0 %v629
  %886 = vmatprep.subr.bf16.mxu0 0
  %887 = vmatpush1.bf16.msra.mxu0 %v630
  %888 = vmatprep.subr.bf16.mxu0 0
  %889 = vmatpush1.bf16.msra.mxu0 %v631
  %890 = vmatprep.subr.bf16.mxu0 0
  %891 = vmatpush1.bf16.msra.mxu0 %v632
  %892 = vmatprep.mubr.bf16.mxu0 %v252
  %893 = vmatmul.mubr.bf16.gmra.mrb[0].mxu0 %v251
  %v894 = vpop.f32.mrb[0].mxu0
  %v895 = vadd.f32 %v846, %v894
  %v896 = vpop.f32.mrb[0].mxu0
  %v897 = vpop.f32.mrb[0].mxu0
  %v898 = vadd.f32 %v849, %v897
  %v899 = vpop.f32.mrb[0].mxu0
  %900 = vmatprep.mubr.bf16.mxu0 %v261
  %901 = vmatmul.mubr.bf16.gmra.mrb[0].mxu0 %v260
  %v902 = vpop.f32.mrb[0].mxu0
  %v903 = vadd.f32 %v854, %v902
  %v904 = vpop.f32.mrb[0].mxu0
  %v905 = vpop.f32.mrb[0].mxu0
  %v906 = vadd.f32 %v857, %v905
  %v907 = vpop.f32.mrb[0].mxu0
  %908 = vdwg.mxu0
  %909 = vmatprep.subr.bf16.mxu0 0
  %910 = vmatpush1.bf16.msra.mxu0 %v633
  %911 = vmatprep.subr.bf16.mxu0 0
  %912 = vmatpush1.bf16.msra.mxu0 %v634
  %913 = vmatprep.subr.bf16.mxu0 0
  %914 = vmatpush1.bf16.msra.mxu0 %v635
  %915 = vmatprep.subr.bf16.mxu0 0
  %916 = vmatpush1.bf16.msra.mxu0 %v636
  %917 = vmatprep.subr.bf16.mxu0 0
  %918 = vmatpush1.bf16.msra.mxu0 %v637
  %919 = vmatprep.subr.bf16.mxu0 0
  %920 = vmatpush1.bf16.msra.mxu0 %v638
  %921 = vmatprep.subr.bf16.mxu0 0
  %922 = vmatpush1.bf16.msra.mxu0 %v639
  %923 = vmatprep.subr.bf16.mxu0 0
  %924 = vmatpush1.bf16.msra.mxu0 %v640
  %925 = vmatprep.subr.bf16.mxu0 0
  %926 = vmatpush1.bf16.msra.mxu0 0
  %927 = vmatprep.subr.bf16.mxu0 0
  %928 = vmatpush1.bf16.msra.mxu0 0
  %929 = vmatprep.subr.bf16.mxu0 0
  %930 = vmatpush1.bf16.msra.mxu0 0
  %931 = vmatprep.subr.bf16.mxu0 0
  %932 = vmatpush1.bf16.msra.mxu0 0
  %933 = vmatprep.subr.bf16.mxu0 0
  %934 = vmatpush1.bf16.msra.mxu0 0
  %935 = vmatprep.subr.bf16.mxu0 0
  %936 = vmatpush1.bf16.msra.mxu0 0
  %937 = vmatprep.subr.bf16.mxu0 0
  %938 = vmatpush1.bf16.msra.mxu0 0
  %939 = vmatprep.subr.bf16.mxu0 0
  %940 = vmatpush1.bf16.msra.mxu0 0
  %941 = vmatprep.mubr.bf16.mxu0 0
  %942 = vmatmul.mubr.bf16.gmra.mrb[0].mxu0 %v253
  %v943 = vpop.f32.mrb[0].mxu0
  %v944 = vadd.f32 %v895, %v943
  %v945 = vpop.f32.mrb[0].mxu0
  %v946 = vpop.f32.mrb[0].mxu0
  %v947 = vadd.f32 %v898, %v946
  %v948 = vpop.f32.mrb[0].mxu0
  %949 = vmatprep.mubr.bf16.mxu0 0
  %950 = vmatmul.mubr.bf16.gmra.mrb[0].mxu0 %v262
  %v951 = vpop.f32.mrb[0].mxu0
  %v952 = vadd.f32 %v903, %v951
  %v953 = vpop.f32.mrb[0].mxu0
  %v954 = vpop.f32.mrb[0].mxu0
  %v955 = vadd.f32 %v906, %v954
  %v956 = vpop.f32.mrb[0].mxu0
  %957 = vdwg.mxu0
  %v958 = vld [vmem:[%s3] sm:$0xf]
  %v959 = vld [vmem:[%s3 + $0x4] sm:$0xf]
  %v960 = vld [vmem:[%s3 + $0x8] sm:$0xf]
  %v961 = vld [vmem:[%s3 + $0xc] sm:$0xf]
  %v962 = vunpack.c.l.bf16 %v958
  %v963 = vunpack.c.l.bf16 %v959
  %v964 = vunpack.c.l.bf16 %v960
  %v965 = vunpack.c.l.bf16 %v961
  %v966 = vadd.f32 %v944, %v962
  %v967 = vadd.f32 %v947, %v963
  %v968 = vadd.f32 %v952, %v964
  %v969 = vadd.f32 %v955, %v965
  %v970 = vmax.f32 %v966, 0.0
  %v971 = vmax.f32 %v967, 0.0
  %v972 = vmax.f32 %v968, 0.0
  %v973 = vmax.f32 %v969, 0.0
  %v974 = vpack.c.bf16 %v971, %v970
  %v975 = vpack.c.bf16 %v973, %v972
  %v978 = vunpack.c.l.b16 %v974
  %v979 = vunpack.c.h.b16 %v974
  %v980 = vunpack.c.l.b16 %v975
  %v981 = vunpack.c.h.b16 %v975
  %v982 = vpack.c.b16 %v978, %v978
  %v983 = vpack.c.b16 %v979, %v979
  %v984 = vpack.c.b16 %v980, %v980
  %v985 = vpack.c.b16 %v981, %v981
  %990 = vst [vmem:[%s4] sm:$0xf] %v982
  %991 = vst [vmem:[%s4 + $0x4] sm:$0xf] %v983
  %992 = vst [vmem:[%s4 + $0x8] sm:$0xf] %v984
  %993 = vst [vmem:[%s4 + $0xc] sm:$0xf] %v985
  // Predicated region
  $region18: #{resnet_diff_forward.14} parent=0 // pred_check
    _
  $region19: #{resnet_diff_forward.14} parent=0 // pred_check_branch
    %995 = sbr.rel (0) target = $region21
  $region20: #{resnet_diff_forward.14} parent=0 // pred_region
    _
  $region21: #{resnet_diff_forward.14} parent=0 // pred_fallthru
    _
  // Predicated region
  $region22: #{resnet_diff_forward.14} parent=0 // pred_check
    _
  $region23: #{resnet_diff_forward.14} parent=0 // pred_check_branch
    %997 = sbr.rel (0) target = $region25
  $region24: #{resnet_diff_forward.14} parent=0 // pred_region
    _
  $region25: #{resnet_diff_forward.14} parent=0 // pred_fallthru
    _

// kernel: resnet_diff_forward.16
$region0: #{resnet_diff_forward.16}
  #allocation0 [shape = 'u32[]', space=smem, size = 0x4, offset = 0x4, fixed_abs, tag = 'smem constant byte address 0x4 - core index']
  #allocation1 [shape = 'u32[144,128]{1,0:T(1,128)}', space=vmem, size = 0x12000, scoped, tag = 'internal scratch']
  %s0 = inlined_call_operand.vmem [shape: bf16[32,128], index: 0, kind: input, shape index: {}]
  %s1 = inlined_call_operand.vmem [shape: bf16[128,256], index: 1, kind: input, shape index: {}]
  %s2 = inlined_call_operand.vmem [shape: f32[1,256], index: 2, kind: input, shape index: {}]
  %s3 = inlined_call_operand.vmem [shape: bf16[32,256], index: 3, kind: output, shape index: {}]
  %s4 = sld [smem:[#allocation0]]
  $region22: #{resnet_diff_forward.16} parent=0
    _
  %s6 = ssub.s32 1, %s4
  %s7 = scalar_select 0, %s6, %s4
  // Predicated region
  $region2: #{resnet_diff_forward.16} parent=0 // pred_check
    _
  $region3: #{resnet_diff_forward.16} parent=0 // pred_check_branch
    %9 = sbr.rel (0) target = $region5
  $region4: #{resnet_diff_forward.16} parent=0 // pred_region
    _
  $region5: #{resnet_diff_forward.16} parent=0 // pred_fallthru
    _
  // Predicated region
  $region6: #{resnet_diff_forward.16} parent=0 // pred_check
    _
  $region7: #{resnet_diff_forward.16} parent=0 // pred_check_branch
    %11 = sbr.rel (0) target = $region9
  $region8: #{resnet_diff_forward.16} parent=0 // pred_region
    _
  $region9: #{resnet_diff_forward.16} parent=0 // pred_fallthru
    _
  // Predicated region
  $region10: #{resnet_diff_forward.16} parent=0 // pred_check
    _
  $region11: #{resnet_diff_forward.16} parent=0 // pred_check_branch
    %13 = sbr.rel (0) target = $region13
  $region12: #{resnet_diff_forward.16} parent=0 // pred_region
    _
  $region13: #{resnet_diff_forward.16} parent=0 // pred_fallthru
    _
  %v15 = vld [vmem:[%s0] sm:$0xf]
  %v16 = vld [vmem:[%s0 + $0x4] sm:$0xf]
  %v17 = vld [vmem:[%s0 + $0x8] sm:$0xf]
  %v18 = vld [vmem:[%s0 + $0xc] sm:$0xf]
  %v19 = vld [vmem:[%s1] sm:$0xff]
  %v20 = vld [vmem:[%s1 + $0x8] sm:$0xff]
  %v21 = vld [vmem:[%s1 + $0x10] sm:$0xff]
  %v22 = vld [vmem:[%s1 + $0x18] sm:$0xff]
  %v23 = vld [vmem:[%s1 + $0x20] sm:$0xff]
  %v24 = vld [vmem:[%s1 + $0x28] sm:$0xff]
  %v25 = vld [vmem:[%s1 + $0x30] sm:$0xff]
  %v26 = vld [vmem:[%s1 + $0x38] sm:$0xff]
  %v27 = vld [vmem:[%s1 + $0x40] sm:$0xff]
  %v28 = vld [vmem:[%s1 + $0x48] sm:$0xff]
  %v29 = vld [vmem:[%s1 + $0x50] sm:$0xff]
  %v30 = vld [vmem:[%s1 + $0x58] sm:$0xff]
  %v31 = vld [vmem:[%s1 + $0x60] sm:$0xff]
  %v32 = vld [vmem:[%s1 + $0x68] sm:$0xff]
  %v33 = vld [vmem:[%s1 + $0x70] sm:$0xff]
  %v34 = vld [vmem:[%s1 + $0x78] sm:$0xff]
  %v35 = vld [vmem:[%s2] sm:$0x3]
  %v37 = vlaneseq
  %v38 = vshrl.u32 %v37, 7
  %v39 = vsub.s32 0, %v38
  %v40 = vrot.slane %v35, %v39
  %v41 = vlaneseq
  %v42 = vshrl.u32 %v41, 7
  %v43 = vsub.s32 1, %v42
  %v44 = vrot.slane %v35, %v43
  %v51 = vunpack.c.l.b16 %v15
  %v52 = vunpack.c.l.b16 %v16
  %v53 = vunpack.c.l.b16 %v17
  %v54 = vunpack.c.l.b16 %v18
  %v55 = vpack.c.b16 %v52, %v51
  %v56 = vpack.c.b16 %v54, %v53
  %v75 = vunpack.c.l.b16 %v19
  %v76 = vunpack.c.h.b16 %v19
  %v77 = vunpack.c.l.b16 %v20
  %v78 = vunpack.c.h.b16 %v20
  %v79 = vunpack.c.l.b16 %v21
  %v80 = vunpack.c.h.b16 %v21
  %v81 = vunpack.c.l.b16 %v22
  %v82 = vunpack.c.h.b16 %v22
  %v83 = vunpack.c.l.b16 %v23
  %v84 = vunpack.c.h.b16 %v23
  %v85 = vunpack.c.l.b16 %v24
  %v86 = vunpack.c.h.b16 %v24
  %v87 = vunpack.c.l.b16 %v25
  %v88 = vunpack.c.h.b16 %v25
  %v89 = vunpack.c.l.b16 %v26
  %v90 = vunpack.c.h.b16 %v26
  %v91 = vunpack.c.l.b16 %v27
  %v92 = vunpack.c.h.b16 %v27
  %v93 = vunpack.c.l.b16 %v28
  %v94 = vunpack.c.h.b16 %v28
  %v95 = vunpack.c.l.b16 %v29
  %v96 = vunpack.c.h.b16 %v29
  %v97 = vunpack.c.l.b16 %v30
  %v98 = vunpack.c.h.b16 %v30
  %v99 = vunpack.c.l.b16 %v31
  %v100 = vunpack.c.h.b16 %v31
  %v101 = vunpack.c.l.b16 %v32
  %v102 = vunpack.c.h.b16 %v32
  %v103 = vunpack.c.l.b16 %v33
  %v104 = vunpack.c.h.b16 %v33
  %v105 = vunpack.c.l.b16 %v34
  %v106 = vunpack.c.h.b16 %v34
  %v107 = vpack.c.b16 %v77, %v75
  %v108 = vpack.c.b16 %v78, %v76
  %v109 = vpack.c.b16 %v81, %v79
  %v110 = vpack.c.b16 %v82, %v80
  %v111 = vpack.c.b16 %v85, %v83
  %v112 = vpack.c.b16 %v86, %v84
  %v113 = vpack.c.b16 %v89, %v87
  %v114 = vpack.c.b16 %v90, %v88
  %v115 = vpack.c.b16 %v93, %v91
  %v116 = vpack.c.b16 %v94, %v92
  %v117 = vpack.c.b16 %v97, %v95
  %v118 = vpack.c.b16 %v98, %v96
  %v119 = vpack.c.b16 %v101, %v99
  %v120 = vpack.c.b16 %v102, %v100
  %v121 = vpack.c.b16 %v105, %v103
  %v122 = vpack.c.b16 %v106, %v104
  %139 = vmatprep.subr.bf16.mxu0 %v108
  %140 = vmatpush1.bf16.msra.mxu0 %v107
  %141 = vmatprep.subr.bf16.mxu0 %v110
  %142 = vmatpush1.bf16.msra.mxu0 %v109
  %143 = vmatprep.subr.bf16.mxu0 %v112
  %144 = vmatpush1.bf16.msra.mxu0 %v111
  %145 = vmatprep.subr.bf16.mxu0 %v114
  %146 = vmatpush1.bf16.msra.mxu0 %v113
  %147 = vmatprep.subr.bf16.mxu0 %v116
  %148 = vmatpush1.bf16.msra.mxu0 %v115
  %149 = vmatprep.subr.bf16.mxu0 %v118
  %150 = vmatpush1.bf16.msra.mxu0 %v117
  %151 = vmatprep.subr.bf16.mxu0 %v120
  %152 = vmatpush1.bf16.msra.mxu0 %v119
  %153 = vmatprep.subr.bf16.mxu0 %v122
  %154 = vmatpush1.bf16.msra.mxu0 %v121
  %155 = vmatprep.subr.bf16.mxu0 0
  %156 = vmatpush1.bf16.msra.mxu0 0
  %157 = vmatprep.subr.bf16.mxu0 0
  %158 = vmatpush1.bf16.msra.mxu0 0
  %159 = vmatprep.subr.bf16.mxu0 0
  %160 = vmatpush1.bf16.msra.mxu0 0
  %161 = vmatprep.subr.bf16.mxu0 0
  %162 = vmatpush1.bf16.msra.mxu0 0
  %163 = vmatprep.subr.bf16.mxu0 0
  %164 = vmatpush1.bf16.msra.mxu0 0
  %165 = vmatprep.subr.bf16.mxu0 0
  %166 = vmatpush1.bf16.msra.mxu0 0
  %167 = vmatprep.subr.bf16.mxu0 0
  %168 = vmatpush1.bf16.msra.mxu0 0
  %169 = vmatprep.subr.bf16.mxu0 0
  %170 = vmatpush1.bf16.msra.mxu0 0
  %171 = vmatprep.mubr.bf16.mxu0 0
  %172 = vmatmul.mubr.bf16.gmra.mrb[0].mxu0 %v55
  %v173 = vpop.f32.mrb[0].mxu0
  %v174 = vadd.f32 %v40, %v173
  %v175 = vpop.f32.mrb[0].mxu0
  %v176 = vadd.f32 %v44, %v175
  %v177 = vpop.f32.mrb[0].mxu0
  %v178 = vadd.f32 %v40, %v177
  %v179 = vpop.f32.mrb[0].mxu0
  %v180 = vadd.f32 %v44, %v179
  %181 = vmatprep.mubr.bf16.mxu0 0
  %182 = vmatmul.mubr.bf16.gmra.mrb[0].mxu0 %v56
  %v183 = vpop.f32.mrb[0].mxu0
  %v184 = vadd.f32 %v40, %v183
  %v185 = vpop.f32.mrb[0].mxu0
  %v186 = vadd.f32 %v44, %v185
  %v187 = vpop.f32.mrb[0].mxu0
  %v188 = vadd.f32 %v40, %v187
  %v189 = vpop.f32.mrb[0].mxu0
  %v190 = vadd.f32 %v44, %v189
  %191 = vdwg.mxu0
  %v192 = vpack.c.bf16 %v178, %v174
  %v193 = vpack.c.bf16 %v180, %v176
  %v194 = vpack.c.bf16 %v188, %v184
  %v195 = vpack.c.bf16 %v190, %v186
  %v200 = vunpack.c.l.b16 %v192
  %v201 = vunpack.c.l.b16 %v193
  %v202 = vunpack.c.h.b16 %v192
  %v203 = vunpack.c.h.b16 %v193
  %v204 = vunpack.c.l.b16 %v194
  %v205 = vunpack.c.l.b16 %v195
  %v206 = vunpack.c.h.b16 %v194
  %v207 = vunpack.c.h.b16 %v195
  %v208 = vpack.c.b16 %v201, %v200
  %v209 = vpack.c.b16 %v203, %v202
  %v210 = vpack.c.b16 %v205, %v204
  %v211 = vpack.c.b16 %v207, %v206
  %216 = vst [vmem:[%s3] sm:$0xff] %v208
  %217 = vst [vmem:[%s3 + $0x8] sm:$0xff] %v209
  %218 = vst [vmem:[%s3 + $0x10] sm:$0xff] %v210
  %219 = vst [vmem:[%s3 + $0x18] sm:$0xff] %v211
  // Predicated region
  $region14: #{resnet_diff_forward.16} parent=0 // pred_check
    _
  $region15: #{resnet_diff_forward.16} parent=0 // pred_check_branch
    %221 = sbr.rel (0) target = $region17
  $region16: #{resnet_diff_forward.16} parent=0 // pred_region
    _
  $region17: #{resnet_diff_forward.16} parent=0 // pred_fallthru
    _
  // Predicated region
  $region18: #{resnet_diff_forward.16} parent=0 // pred_check
    _
  $region19: #{resnet_diff_forward.16} parent=0 // pred_check_branch
    %223 = sbr.rel (0) target = $region21
  $region20: #{resnet_diff_forward.16} parent=0 // pred_region
    _
  $region21: #{resnet_diff_forward.16} parent=0 // pred_fallthru
    _

// kernel: resnet_diff_forward.15
$region0: #{resnet_diff_forward.15}
  #allocation0 [shape = 'u32[]', space=smem, size = 0x4, offset = 0x4, fixed_abs, tag = 'smem constant byte address 0x4 - core index']
  #allocation1 [shape = 'u32[144,128]{1,0:T(1,128)}', space=vmem, size = 0x12000, scoped, tag = 'internal scratch']
  %s0 = inlined_call_operand.vmem [shape: bf16[32,1152], index: 0, kind: input, shape index: {}]
  %s1 = inlined_call_operand.vmem [shape: bf16[1152,256], index: 1, kind: input, shape index: {}]
  %s2 = inlined_call_operand.vmem [shape: f32[1,256], index: 2, kind: input, shape index: {}]
  %s3 = inlined_call_operand.vmem [shape: bf16[32,256], index: 3, kind: output, shape index: {}]
  %s4 = sld [smem:[#allocation0]]
  $region22: #{resnet_diff_forward.15} parent=0
    _
  %s6 = ssub.s32 1, %s4
  %s7 = scalar_select 0, %s6, %s4
  // Predicated region
  $region2: #{resnet_diff_forward.15} parent=0 // pred_check
    _
  $region3: #{resnet_diff_forward.15} parent=0 // pred_check_branch
    %9 = sbr.rel (0) target = $region5
  $region4: #{resnet_diff_forward.15} parent=0 // pred_region
    _
  $region5: #{resnet_diff_forward.15} parent=0 // pred_fallthru
    _
  // Predicated region
  $region6: #{resnet_diff_forward.15} parent=0 // pred_check
    _
  $region7: #{resnet_diff_forward.15} parent=0 // pred_check_branch
    %11 = sbr.rel (0) target = $region9
  $region8: #{resnet_diff_forward.15} parent=0 // pred_region
    _
  $region9: #{resnet_diff_forward.15} parent=0 // pred_fallthru
    _
  // Predicated region
  $region10: #{resnet_diff_forward.15} parent=0 // pred_check
    _
  $region11: #{resnet_diff_forward.15} parent=0 // pred_check_branch
    %13 = sbr.rel (0) target = $region13
  $region12: #{resnet_diff_forward.15} parent=0 // pred_region
    _
  $region13: #{resnet_diff_forward.15} parent=0 // pred_fallthru
    _
  %v15 = vld [vmem:[%s0] sm:$0xff]
  %v16 = vld [vmem:[%s0 + $0x8] sm:$0xff]
  %v17 = vld [vmem:[%s0 + $0x10] sm:$0xff]
  %v18 = vld [vmem:[%s0 + $0x18] sm:$0xff]
  %v19 = vld [vmem:[%s0 + $0x20] sm:$0xf]
  %v20 = vld [vmem:[%s0 + $0x24] sm:$0xff]
  %v21 = vld [vmem:[%s0 + $0x2c] sm:$0xff]
  %v22 = vld [vmem:[%s0 + $0x34] sm:$0xff]
  %v23 = vld [vmem:[%s0 + $0x3c] sm:$0xff]
  %v24 = vld [vmem:[%s0 + $0x44] sm:$0xf]
  %v25 = vld [vmem:[%s0 + $0x48] sm:$0xff]
  %v26 = vld [vmem:[%s0 + $0x50] sm:$0xff]
  %v27 = vld [vmem:[%s0 + $0x58] sm:$0xff]
  %v28 = vld [vmem:[%s0 + $0x60] sm:$0xff]
  %v29 = vld [vmem:[%s0 + $0x68] sm:$0xf]
  %v30 = vld [vmem:[%s0 + $0x6c] sm:$0xff]
  %v31 = vld [vmem:[%s0 + $0x74] sm:$0xff]
  %v32 = vld [vmem:[%s0 + $0x7c] sm:$0xff]
  %v33 = vld [vmem:[%s0 + $0x84] sm:$0xff]
  %v34 = vld [vmem:[%s0 + $0x8c] sm:$0xf]
  %v35 = vld [vmem:[%s1] sm:$0xff]
  %v36 = vld [vmem:[%s1 + $0x8] sm:$0xff]
  %v37 = vld [vmem:[%s1 + $0x10] sm:$0xff]
  %v38 = vld [vmem:[%s1 + $0x18] sm:$0xff]
  %v39 = vld [vmem:[%s1 + $0x20] sm:$0xff]
  %v40 = vld [vmem:[%s1 + $0x28] sm:$0xff]
  %v41 = vld [vmem:[%s1 + $0x30] sm:$0xff]
  %v42 = vld [vmem:[%s1 + $0x38] sm:$0xff]
  %v43 = vld [vmem:[%s1 + $0x40] sm:$0xff]
  %v44 = vld [vmem:[%s1 + $0x48] sm:$0xff]
  %v45 = vld [vmem:[%s1 + $0x50] sm:$0xff]
  %v46 = vld [vmem:[%s1 + $0x58] sm:$0xff]
  %v47 = vld [vmem:[%s1 + $0x60] sm:$0xff]
  %v48 = vld [vmem:[%s1 + $0x68] sm:$0xff]
  %v49 = vld [vmem:[%s1 + $0x70] sm:$0xff]
  %v50 = vld [vmem:[%s1 + $0x78] sm:$0xff]
  %v51 = vld [vmem:[%s1 + $0x80] sm:$0xff]
  %v52 = vld [vmem:[%s1 + $0x88] sm:$0xff]
  %v53 = vld [vmem:[%s1 + $0x90] sm:$0xff]
  %v54 = vld [vmem:[%s1 + $0x98] sm:$0xff]
  %v55 = vld [vmem:[%s1 + $0xa0] sm:$0xff]
  %v56 = vld [vmem:[%s1 + $0xa8] sm:$0xff]
  %v57 = vld [vmem:[%s1 + $0xb0] sm:$0xff]
  %v58 = vld [vmem:[%s1 + $0xb8] sm:$0xff]
  %v59 = vld [vmem:[%s1 + $0xc0] sm:$0xff]
  %v60 = vld [vmem:[%s1 + $0xc8] sm:$0xff]
  %v61 = vld [vmem:[%s1 + $0xd0] sm:$0xff]
  %v62 = vld [vmem:[%s1 + $0xd8] sm:$0xff]
  %v63 = vld [vmem:[%s1 + $0xe0] sm:$0xff]
  %v64 = vld [vmem:[%s1 + $0xe8] sm:$0xff]
  %v65 = vld [vmem:[%s1 + $0xf0] sm:$0xff]
  %v66 = vld [vmem:[%s1 + $0xf8] sm:$0xff]
  %v67 = vld [vmem:[%s1 + $0x100] sm:$0xff]
  %v68 = vld [vmem:[%s1 + $0x108] sm:$0xff]
  %v69 = vld [vmem:[%s1 + $0x110] sm:$0xff]
  %v70 = vld [vmem:[%s1 + $0x118] sm:$0xff]
  %v71 = vld [vmem:[%s1 + $0x120] sm:$0xff]
  %v72 = vld [vmem:[%s1 + $0x128] sm:$0xff]
  %v73 = vld [vmem:[%s1 + $0x130] sm:$0xff]
  %v74 = vld [vmem:[%s1 + $0x138] sm:$0xff]
  %v75 = vld [vmem:[%s1 + $0x140] sm:$0xff]
  %v76 = vld [vmem:[%s1 + $0x148] sm:$0xff]
  %v77 = vld [vmem:[%s1 + $0x150] sm:$0xff]
  %v78 = vld [vmem:[%s1 + $0x158] sm:$0xff]
  %v79 = vld [vmem:[%s1 + $0x160] sm:$0xff]
  %v80 = vld [vmem:[%s1 + $0x168] sm:$0xff]
  %v81 = vld [vmem:[%s1 + $0x170] sm:$0xff]
  %v82 = vld [vmem:[%s1 + $0x178] sm:$0xff]
  %v83 = vld [vmem:[%s1 + $0x180] sm:$0xff]
  %v84 = vld [vmem:[%s1 + $0x188] sm:$0xff]
  %v85 = vld [vmem:[%s1 + $0x190] sm:$0xff]
  %v86 = vld [vmem:[%s1 + $0x198] sm:$0xff]
  %v87 = vld [vmem:[%s1 + $0x1a0] sm:$0xff]
  %v88 = vld [vmem:[%s1 + $0x1a8] sm:$0xff]
  %v89 = vld [vmem:[%s1 + $0x1b0] sm:$0xff]
  %v90 = vld [vmem:[%s1 + $0x1b8] sm:$0xff]
  %v91 = vld [vmem:[%s1 + $0x1c0] sm:$0xff]
  %v92 = vld [vmem:[%s1 + $0x1c8] sm:$0xff]
  %v93 = vld [vmem:[%s1 + $0x1d0] sm:$0xff]
  %v94 = vld [vmem:[%s1 + $0x1d8] sm:$0xff]
  %v95 = vld [vmem:[%s1 + $0x1e0] sm:$0xff]
  %v96 = vld [vmem:[%s1 + $0x1e8] sm:$0xff]
  %v97 = vld [vmem:[%s1 + $0x1f0] sm:$0xff]
  %v98 = vld [vmem:[%s1 + $0x1f8] sm:$0xff]
  %v99 = vld [vmem:[%s1 + $0x200] sm:$0xff]
  %v100 = vld [vmem:[%s1 + $0x208] sm:$0xff]
  %v101 = vld [vmem:[%s1 + $0x210] sm:$0xff]
  %v102 = vld [vmem:[%s1 + $0x218] sm:$0xff]
  %v103 = vld [vmem:[%s1 + $0x220] sm:$0xff]
  %v104 = vld [vmem:[%s1 + $0x228] sm:$0xff]
  %v105 = vld [vmem:[%s1 + $0x230] sm:$0xff]
  %v106 = vld [vmem:[%s1 + $0x238] sm:$0xff]
  %v107 = vld [vmem:[%s1 + $0x240] sm:$0xff]
  %v108 = vld [vmem:[%s1 + $0x248] sm:$0xff]
  %v109 = vld [vmem:[%s1 + $0x250] sm:$0xff]
  %v110 = vld [vmem:[%s1 + $0x258] sm:$0xff]
  %v111 = vld [vmem:[%s1 + $0x260] sm:$0xff]
  %v112 = vld [vmem:[%s1 + $0x268] sm:$0xff]
  %v113 = vld [vmem:[%s1 + $0x270] sm:$0xff]
  %v114 = vld [vmem:[%s1 + $0x278] sm:$0xff]
  %v115 = vld [vmem:[%s1 + $0x280] sm:$0xff]
  %v116 = vld [vmem:[%s1 + $0x288] sm:$0xff]
  %v117 = vld [vmem:[%s1 + $0x290] sm:$0xff]
  %v118 = vld [vmem:[%s1 + $0x298] sm:$0xff]
  %v119 = vld [vmem:[%s1 + $0x2a0] sm:$0xff]
  %v120 = vld [vmem:[%s1 + $0x2a8] sm:$0xff]
  %v121 = vld [vmem:[%s1 + $0x2b0] sm:$0xff]
  %v122 = vld [vmem:[%s1 + $0x2b8] sm:$0xff]
  %v123 = vld [vmem:[%s1 + $0x2c0] sm:$0xff]
  %v124 = vld [vmem:[%s1 + $0x2c8] sm:$0xff]
  %v125 = vld [vmem:[%s1 + $0x2d0] sm:$0xff]
  %v126 = vld [vmem:[%s1 + $0x2d8] sm:$0xff]
  %v127 = vld [vmem:[%s1 + $0x2e0] sm:$0xff]
  %v128 = vld [vmem:[%s1 + $0x2e8] sm:$0xff]
  %v129 = vld [vmem:[%s1 + $0x2f0] sm:$0xff]
  %v130 = vld [vmem:[%s1 + $0x2f8] sm:$0xff]
  %v131 = vld [vmem:[%s1 + $0x300] sm:$0xff]
  %v132 = vld [vmem:[%s1 + $0x308] sm:$0xff]
  %v133 = vld [vmem:[%s1 + $0x310] sm:$0xff]
  %v134 = vld [vmem:[%s1 + $0x318] sm:$0xff]
  %v135 = vld [vmem:[%s1 + $0x320] sm:$0xff]
  %v136 = vld [vmem:[%s1 + $0x328] sm:$0xff]
  %v137 = vld [vmem:[%s1 + $0x330] sm:$0xff]
  %v138 = vld [vmem:[%s1 + $0x338] sm:$0xff]
  %v139 = vld [vmem:[%s1 + $0x340] sm:$0xff]
  %v140 = vld [vmem:[%s1 + $0x348] sm:$0xff]
  %v141 = vld [vmem:[%s1 + $0x350] sm:$0xff]
  %v142 = vld [vmem:[%s1 + $0x358] sm:$0xff]
  %v143 = vld [vmem:[%s1 + $0x360] sm:$0xff]
  %v144 = vld [vmem:[%s1 + $0x368] sm:$0xff]
  %v145 = vld [vmem:[%s1 + $0x370] sm:$0xff]
  %v146 = vld [vmem:[%s1 + $0x378] sm:$0xff]
  %v147 = vld [vmem:[%s1 + $0x380] sm:$0xff]
  %v148 = vld [vmem:[%s1 + $0x388] sm:$0xff]
  %v149 = vld [vmem:[%s1 + $0x390] sm:$0xff]
  %v150 = vld [vmem:[%s1 + $0x398] sm:$0xff]
  %v151 = vld [vmem:[%s1 + $0x3a0] sm:$0xff]
  %v152 = vld [vmem:[%s1 + $0x3a8] sm:$0xff]
  %v153 = vld [vmem:[%s1 + $0x3b0] sm:$0xff]
  %v154 = vld [vmem:[%s1 + $0x3b8] sm:$0xff]
  %v155 = vld [vmem:[%s1 + $0x3c0] sm:$0xff]
  %v156 = vld [vmem:[%s1 + $0x3c8] sm:$0xff]
  %v157 = vld [vmem:[%s1 + $0x3d0] sm:$0xff]
  %v158 = vld [vmem:[%s1 + $0x3d8] sm:$0xff]
  %v159 = vld [vmem:[%s1 + $0x3e0] sm:$0xff]
  %v160 = vld [vmem:[%s1 + $0x3e8] sm:$0xff]
  %v161 = vld [vmem:[%s1 + $0x3f0] sm:$0xff]
  %v162 = vld [vmem:[%s1 + $0x3f8] sm:$0xff]
  %v163 = vld [vmem:[%s1 + $0x400] sm:$0xff]
  %v164 = vld [vmem:[%s1 + $0x408] sm:$0xff]
  %v165 = vld [vmem:[%s1 + $0x410] sm:$0xff]
  %v166 = vld [vmem:[%s1 + $0x418] sm:$0xff]
  %v167 = vld [vmem:[%s1 + $0x420] sm:$0xff]
  %v168 = vld [vmem:[%s1 + $0x428] sm:$0xff]
  %v169 = vld [vmem:[%s1 + $0x430] sm:$0xff]
  %v170 = vld [vmem:[%s1 + $0x438] sm:$0xff]
  %v171 = vld [vmem:[%s1 + $0x440] sm:$0xff]
  %v172 = vld [vmem:[%s1 + $0x448] sm:$0xff]
  %v173 = vld [vmem:[%s1 + $0x450] sm:$0xff]
  %v174 = vld [vmem:[%s1 + $0x458] sm:$0xff]
  %v175 = vld [vmem:[%s1 + $0x460] sm:$0xff]
  %v176 = vld [vmem:[%s1 + $0x468] sm:$0xff]
  %v177 = vld [vmem:[%s1 + $0x470] sm:$0xff]
  %v178 = vld [vmem:[%s1 + $0x478] sm:$0xff]
  %v179 = vld [vmem:[%s2] sm:$0x3]
  %v181 = vlaneseq
  %v182 = vshrl.u32 %v181, 7
  %v183 = vsub.s32 0, %v182
  %v184 = vrot.slane %v179, %v183
  %v185 = vlaneseq
  %v186 = vshrl.u32 %v185, 7
  %v187 = vsub.s32 1, %v186
  %v188 = vrot.slane %v179, %v187
  %v211 = vunpack.c.l.b16 %v15
  %v212 = vunpack.c.h.b16 %v15
  %v213 = vunpack.c.l.b16 %v16
  %v214 = vunpack.c.h.b16 %v16
  %v215 = vunpack.c.l.b16 %v17
  %v216 = vunpack.c.h.b16 %v17
  %v217 = vunpack.c.l.b16 %v18
  %v218 = vunpack.c.h.b16 %v18
  %v219 = vunpack.c.l.b16 %v19
  %v220 = vunpack.c.l.b16 %v20
  %v221 = vunpack.c.h.b16 %v20
  %v222 = vunpack.c.l.b16 %v21
  %v223 = vunpack.c.h.b16 %v21
  %v224 = vunpack.c.l.b16 %v22
  %v225 = vunpack.c.h.b16 %v22
  %v226 = vunpack.c.l.b16 %v23
  %v227 = vunpack.c.h.b16 %v23
  %v228 = vunpack.c.l.b16 %v24
  %v229 = vunpack.c.l.b16 %v25
  %v230 = vunpack.c.h.b16 %v25
  %v231 = vunpack.c.l.b16 %v26
  %v232 = vunpack.c.h.b16 %v26
  %v233 = vunpack.c.l.b16 %v27
  %v234 = vunpack.c.h.b16 %v27
  %v235 = vunpack.c.l.b16 %v28
  %v236 = vunpack.c.h.b16 %v28
  %v237 = vunpack.c.l.b16 %v29
  %v238 = vunpack.c.l.b16 %v30
  %v239 = vunpack.c.h.b16 %v30
  %v240 = vunpack.c.l.b16 %v31
  %v241 = vunpack.c.h.b16 %v31
  %v242 = vunpack.c.l.b16 %v32
  %v243 = vunpack.c.h.b16 %v32
  %v244 = vunpack.c.l.b16 %v33
  %v245 = vunpack.c.h.b16 %v33
  %v246 = vunpack.c.l.b16 %v34
  %v247 = vpack.c.b16 %v220, %v211
  %v248 = vpack.c.b16 %v221, %v212
  %v249 = vpack.c.b16 %v222, %v213
  %v250 = vpack.c.b16 %v223, %v214
  %v251 = vpack.c.b16 %v224, %v215
  %v252 = vpack.c.b16 %v225, %v216
  %v253 = vpack.c.b16 %v226, %v217
  %v254 = vpack.c.b16 %v227, %v218
  %v255 = vpack.c.b16 %v228, %v219
  %v256 = vpack.c.b16 %v238, %v229
  %v257 = vpack.c.b16 %v239, %v230
  %v258 = vpack.c.b16 %v240, %v231
  %v259 = vpack.c.b16 %v241, %v232
  %v260 = vpack.c.b16 %v242, %v233
  %v261 = vpack.c.b16 %v243, %v234
  %v262 = vpack.c.b16 %v244, %v235
  %v263 = vpack.c.b16 %v245, %v236
  %v264 = vpack.c.b16 %v246, %v237
  %v427 = vunpack.c.l.b16 %v35
  %v428 = vunpack.c.h.b16 %v35
  %v429 = vunpack.c.l.b16 %v36
  %v430 = vunpack.c.h.b16 %v36
  %v431 = vunpack.c.l.b16 %v37
  %v432 = vunpack.c.h.b16 %v37
  %v433 = vunpack.c.l.b16 %v38
  %v434 = vunpack.c.h.b16 %v38
  %v435 = vunpack.c.l.b16 %v39
  %v436 = vunpack.c.h.b16 %v39
  %v437 = vunpack.c.l.b16 %v40
  %v438 = vunpack.c.h.b16 %v40
  %v439 = vunpack.c.l.b16 %v41
  %v440 = vunpack.c.h.b16 %v41
  %v441 = vunpack.c.l.b16 %v42
  %v442 = vunpack.c.h.b16 %v42
  %v443 = vunpack.c.l.b16 %v43
  %v444 = vunpack.c.h.b16 %v43
  %v445 = vunpack.c.l.b16 %v44
  %v446 = vunpack.c.h.b16 %v44
  %v447 = vunpack.c.l.b16 %v45
  %v448 = vunpack.c.h.b16 %v45
  %v449 = vunpack.c.l.b16 %v46
  %v450 = vunpack.c.h.b16 %v46
  %v451 = vunpack.c.l.b16 %v47
  %v452 = vunpack.c.h.b16 %v47
  %v453 = vunpack.c.l.b16 %v48
  %v454 = vunpack.c.h.b16 %v48
  %v455 = vunpack.c.l.b16 %v49
  %v456 = vunpack.c.h.b16 %v49
  %v457 = vunpack.c.l.b16 %v50
  %v458 = vunpack.c.h.b16 %v50
  %v459 = vunpack.c.l.b16 %v51
  %v460 = vunpack.c.h.b16 %v51
  %v461 = vunpack.c.l.b16 %v52
  %v462 = vunpack.c.h.b16 %v52
  %v463 = vunpack.c.l.b16 %v53
  %v464 = vunpack.c.h.b16 %v53
  %v465 = vunpack.c.l.b16 %v54
  %v466 = vunpack.c.h.b16 %v54
  %v467 = vunpack.c.l.b16 %v55
  %v468 = vunpack.c.h.b16 %v55
  %v469 = vunpack.c.l.b16 %v56
  %v470 = vunpack.c.h.b16 %v56
  %v471 = vunpack.c.l.b16 %v57
  %v472 = vunpack.c.h.b16 %v57
  %v473 = vunpack.c.l.b16 %v58
  %v474 = vunpack.c.h.b16 %v58
  %v475 = vunpack.c.l.b16 %v59
  %v476 = vunpack.c.h.b16 %v59
  %v477 = vunpack.c.l.b16 %v60
  %v478 = vunpack.c.h.b16 %v60
  %v479 = vunpack.c.l.b16 %v61
  %v480 = vunpack.c.h.b16 %v61
  %v481 = vunpack.c.l.b16 %v62
  %v482 = vunpack.c.h.b16 %v62
  %v483 = vunpack.c.l.b16 %v63
  %v484 = vunpack.c.h.b16 %v63
  %v485 = vunpack.c.l.b16 %v64
  %v486 = vunpack.c.h.b16 %v64
  %v487 = vunpack.c.l.b16 %v65
  %v488 = vunpack.c.h.b16 %v65
  %v489 = vunpack.c.l.b16 %v66
  %v490 = vunpack.c.h.b16 %v66
  %v491 = vunpack.c.l.b16 %v67
  %v492 = vunpack.c.h.b16 %v67
  %v493 = vunpack.c.l.b16 %v68
  %v494 = vunpack.c.h.b16 %v68
  %v495 = vunpack.c.l.b16 %v69
  %v496 = vunpack.c.h.b16 %v69
  %v497 = vunpack.c.l.b16 %v70
  %v498 = vunpack.c.h.b16 %v70
  %v499 = vunpack.c.l.b16 %v71
  %v500 = vunpack.c.h.b16 %v71
  %v501 = vunpack.c.l.b16 %v72
  %v502 = vunpack.c.h.b16 %v72
  %v503 = vunpack.c.l.b16 %v73
  %v504 = vunpack.c.h.b16 %v73
  %v505 = vunpack.c.l.b16 %v74
  %v506 = vunpack.c.h.b16 %v74
  %v507 = vunpack.c.l.b16 %v75
  %v508 = vunpack.c.h.b16 %v75
  %v509 = vunpack.c.l.b16 %v76
  %v510 = vunpack.c.h.b16 %v76
  %v511 = vunpack.c.l.b16 %v77
  %v512 = vunpack.c.h.b16 %v77
  %v513 = vunpack.c.l.b16 %v78
  %v514 = vunpack.c.h.b16 %v78
  %v515 = vunpack.c.l.b16 %v79
  %v516 = vunpack.c.h.b16 %v79
  %v517 = vunpack.c.l.b16 %v80
  %v518 = vunpack.c.h.b16 %v80
  %v519 = vunpack.c.l.b16 %v81
  %v520 = vunpack.c.h.b16 %v81
  %v521 = vunpack.c.l.b16 %v82
  %v522 = vunpack.c.h.b16 %v82
  %v523 = vunpack.c.l.b16 %v83
  %v524 = vunpack.c.h.b16 %v83
  %v525 = vunpack.c.l.b16 %v84
  %v526 = vunpack.c.h.b16 %v84
  %v527 = vunpack.c.l.b16 %v85
  %v528 = vunpack.c.h.b16 %v85
  %v529 = vunpack.c.l.b16 %v86
  %v530 = vunpack.c.h.b16 %v86
  %v531 = vunpack.c.l.b16 %v87
  %v532 = vunpack.c.h.b16 %v87
  %v533 = vunpack.c.l.b16 %v88
  %v534 = vunpack.c.h.b16 %v88
  %v535 = vunpack.c.l.b16 %v89
  %v536 = vunpack.c.h.b16 %v89
  %v537 = vunpack.c.l.b16 %v90
  %v538 = vunpack.c.h.b16 %v90
  %v539 = vunpack.c.l.b16 %v91
  %v540 = vunpack.c.h.b16 %v91
  %v541 = vunpack.c.l.b16 %v92
  %v542 = vunpack.c.h.b16 %v92
  %v543 = vunpack.c.l.b16 %v93
  %v544 = vunpack.c.h.b16 %v93
  %v545 = vunpack.c.l.b16 %v94
  %v546 = vunpack.c.h.b16 %v94
  %v547 = vunpack.c.l.b16 %v95
  %v548 = vunpack.c.h.b16 %v95
  %v549 = vunpack.c.l.b16 %v96
  %v550 = vunpack.c.h.b16 %v96
  %v551 = vunpack.c.l.b16 %v97
  %v552 = vunpack.c.h.b16 %v97
  %v553 = vunpack.c.l.b16 %v98
  %v554 = vunpack.c.h.b16 %v98
  %v555 = vunpack.c.l.b16 %v99
  %v556 = vunpack.c.h.b16 %v99
  %v557 = vunpack.c.l.b16 %v100
  %v558 = vunpack.c.h.b16 %v100
  %v559 = vunpack.c.l.b16 %v101
  %v560 = vunpack.c.h.b16 %v101
  %v561 = vunpack.c.l.b16 %v102
  %v562 = vunpack.c.h.b16 %v102
  %v563 = vunpack.c.l.b16 %v103
  %v564 = vunpack.c.h.b16 %v103
  %v565 = vunpack.c.l.b16 %v104
  %v566 = vunpack.c.h.b16 %v104
  %v567 = vunpack.c.l.b16 %v105
  %v568 = vunpack.c.h.b16 %v105
  %v569 = vunpack.c.l.b16 %v106
  %v570 = vunpack.c.h.b16 %v106
  %v571 = vunpack.c.l.b16 %v107
  %v572 = vunpack.c.h.b16 %v107
  %v573 = vunpack.c.l.b16 %v108
  %v574 = vunpack.c.h.b16 %v108
  %v575 = vunpack.c.l.b16 %v109
  %v576 = vunpack.c.h.b16 %v109
  %v577 = vunpack.c.l.b16 %v110
  %v578 = vunpack.c.h.b16 %v110
  %v579 = vunpack.c.l.b16 %v111
  %v580 = vunpack.c.h.b16 %v111
  %v581 = vunpack.c.l.b16 %v112
  %v582 = vunpack.c.h.b16 %v112
  %v583 = vunpack.c.l.b16 %v113
  %v584 = vunpack.c.h.b16 %v113
  %v585 = vunpack.c.l.b16 %v114
  %v586 = vunpack.c.h.b16 %v114
  %v587 = vunpack.c.l.b16 %v115
  %v588 = vunpack.c.h.b16 %v115
  %v589 = vunpack.c.l.b16 %v116
  %v590 = vunpack.c.h.b16 %v116
  %v591 = vunpack.c.l.b16 %v117
  %v592 = vunpack.c.h.b16 %v117
  %v593 = vunpack.c.l.b16 %v118
  %v594 = vunpack.c.h.b16 %v118
  %v595 = vunpack.c.l.b16 %v119
  %v596 = vunpack.c.h.b16 %v119
  %v597 = vunpack.c.l.b16 %v120
  %v598 = vunpack.c.h.b16 %v120
  %v599 = vunpack.c.l.b16 %v121
  %v600 = vunpack.c.h.b16 %v121
  %v601 = vunpack.c.l.b16 %v122
  %v602 = vunpack.c.h.b16 %v122
  %v603 = vunpack.c.l.b16 %v123
  %v604 = vunpack.c.h.b16 %v123
  %v605 = vunpack.c.l.b16 %v124
  %v606 = vunpack.c.h.b16 %v124
  %v607 = vunpack.c.l.b16 %v125
  %v608 = vunpack.c.h.b16 %v125
  %v609 = vunpack.c.l.b16 %v126
  %v610 = vunpack.c.h.b16 %v126
  %v611 = vunpack.c.l.b16 %v127
  %v612 = vunpack.c.h.b16 %v127
  %v613 = vunpack.c.l.b16 %v128
  %v614 = vunpack.c.h.b16 %v128
  %v615 = vunpack.c.l.b16 %v129
  %v616 = vunpack.c.h.b16 %v129
  %v617 = vunpack.c.l.b16 %v130
  %v618 = vunpack.c.h.b16 %v130
  %v619 = vunpack.c.l.b16 %v131
  %v620 = vunpack.c.h.b16 %v131
  %v621 = vunpack.c.l.b16 %v132
  %v622 = vunpack.c.h.b16 %v132
  %v623 = vunpack.c.l.b16 %v133
  %v624 = vunpack.c.h.b16 %v133
  %v625 = vunpack.c.l.b16 %v134
  %v626 = vunpack.c.h.b16 %v134
  %v627 = vunpack.c.l.b16 %v135
  %v628 = vunpack.c.h.b16 %v135
  %v629 = vunpack.c.l.b16 %v136
  %v630 = vunpack.c.h.b16 %v136
  %v631 = vunpack.c.l.b16 %v137
  %v632 = vunpack.c.h.b16 %v137
  %v633 = vunpack.c.l.b16 %v138
  %v634 = vunpack.c.h.b16 %v138
  %v635 = vunpack.c.l.b16 %v139
  %v636 = vunpack.c.h.b16 %v139
  %v637 = vunpack.c.l.b16 %v140
  %v638 = vunpack.c.h.b16 %v140
  %v639 = vunpack.c.l.b16 %v141
  %v640 = vunpack.c.h.b16 %v141
  %v641 = vunpack.c.l.b16 %v142
  %v642 = vunpack.c.h.b16 %v142
  %v643 = vunpack.c.l.b16 %v143
  %v644 = vunpack.c.h.b16 %v143
  %v645 = vunpack.c.l.b16 %v144
  %v646 = vunpack.c.h.b16 %v144
  %v647 = vunpack.c.l.b16 %v145
  %v648 = vunpack.c.h.b16 %v145
  %v649 = vunpack.c.l.b16 %v146
  %v650 = vunpack.c.h.b16 %v146
  %v651 = vunpack.c.l.b16 %v147
  %v652 = vunpack.c.h.b16 %v147
  %v653 = vunpack.c.l.b16 %v148
  %v654 = vunpack.c.h.b16 %v148
  %v655 = vunpack.c.l.b16 %v149
  %v656 = vunpack.c.h.b16 %v149
  %v657 = vunpack.c.l.b16 %v150
  %v658 = vunpack.c.h.b16 %v150
  %v659 = vunpack.c.l.b16 %v151
  %v660 = vunpack.c.h.b16 %v151
  %v661 = vunpack.c.l.b16 %v152
  %v662 = vunpack.c.h.b16 %v152
  %v663 = vunpack.c.l.b16 %v153
  %v664 = vunpack.c.h.b16 %v153
  %v665 = vunpack.c.l.b16 %v154
  %v666 = vunpack.c.h.b16 %v154
  %v667 = vunpack.c.l.b16 %v155
  %v668 = vunpack.c.h.b16 %v155
  %v669 = vunpack.c.l.b16 %v156
  %v670 = vunpack.c.h.b16 %v156
  %v671 = vunpack.c.l.b16 %v157
  %v672 = vunpack.c.h.b16 %v157
  %v673 = vunpack.c.l.b16 %v158
  %v674 = vunpack.c.h.b16 %v158
  %v675 = vunpack.c.l.b16 %v159
  %v676 = vunpack.c.h.b16 %v159
  %v677 = vunpack.c.l.b16 %v160
  %v678 = vunpack.c.h.b16 %v160
  %v679 = vunpack.c.l.b16 %v161
  %v680 = vunpack.c.h.b16 %v161
  %v681 = vunpack.c.l.b16 %v162
  %v682 = vunpack.c.h.b16 %v162
  %v683 = vunpack.c.l.b16 %v163
  %v684 = vunpack.c.h.b16 %v163
  %v685 = vunpack.c.l.b16 %v164
  %v686 = vunpack.c.h.b16 %v164
  %v687 = vunpack.c.l.b16 %v165
  %v688 = vunpack.c.h.b16 %v165
  %v689 = vunpack.c.l.b16 %v166
  %v690 = vunpack.c.h.b16 %v166
  %v691 = vunpack.c.l.b16 %v167
  %v692 = vunpack.c.h.b16 %v167
  %v693 = vunpack.c.l.b16 %v168
  %v694 = vunpack.c.h.b16 %v168
  %v695 = vunpack.c.l.b16 %v169
  %v696 = vunpack.c.h.b16 %v169
  %v697 = vunpack.c.l.b16 %v170
  %v698 = vunpack.c.h.b16 %v170
  %v699 = vunpack.c.l.b16 %v171
  %v700 = vunpack.c.h.b16 %v171
  %v701 = vunpack.c.l.b16 %v172
  %v702 = vunpack.c.h.b16 %v172
  %v703 = vunpack.c.l.b16 %v173
  %v704 = vunpack.c.h.b16 %v173
  %v705 = vunpack.c.l.b16 %v174
  %v706 = vunpack.c.h.b16 %v174
  %v707 = vunpack.c.l.b16 %v175
  %v708 = vunpack.c.h.b16 %v175
  %v709 = vunpack.c.l.b16 %v176
  %v710 = vunpack.c.h.b16 %v176
  %v711 = vunpack.c.l.b16 %v177
  %v712 = vunpack.c.h.b16 %v177
  %v713 = vunpack.c.l.b16 %v178
  %v714 = vunpack.c.h.b16 %v178
  %v715 = vpack.c.b16 %v429, %v427
  %v716 = vpack.c.b16 %v430, %v428
  %v717 = vpack.c.b16 %v433, %v431
  %v718 = vpack.c.b16 %v434, %v432
  %v719 = vpack.c.b16 %v437, %v435
  %v720 = vpack.c.b16 %v438, %v436
  %v721 = vpack.c.b16 %v441, %v439
  %v722 = vpack.c.b16 %v442, %v440
  %v723 = vpack.c.b16 %v445, %v443
  %v724 = vpack.c.b16 %v446, %v444
  %v725 = vpack.c.b16 %v449, %v447
  %v726 = vpack.c.b16 %v450, %v448
  %v727 = vpack.c.b16 %v453, %v451
  %v728 = vpack.c.b16 %v454, %v452
  %v729 = vpack.c.b16 %v457, %v455
  %v730 = vpack.c.b16 %v458, %v456
  %v731 = vpack.c.b16 %v461, %v459
  %v732 = vpack.c.b16 %v462, %v460
  %v733 = vpack.c.b16 %v465, %v463
  %v734 = vpack.c.b16 %v466, %v464
  %v735 = vpack.c.b16 %v469, %v467
  %v736 = vpack.c.b16 %v470, %v468
  %v737 = vpack.c.b16 %v473, %v471
  %v738 = vpack.c.b16 %v474, %v472
  %v739 = vpack.c.b16 %v477, %v475
  %v740 = vpack.c.b16 %v478, %v476
  %v741 = vpack.c.b16 %v481, %v479
  %v742 = vpack.c.b16 %v482, %v480
  %v743 = vpack.c.b16 %v485, %v483
  %v744 = vpack.c.b16 %v486, %v484
  %v745 = vpack.c.b16 %v489, %v487
  %v746 = vpack.c.b16 %v490, %v488
  %v747 = vpack.c.b16 %v493, %v491
  %v748 = vpack.c.b16 %v494, %v492
  %v749 = vpack.c.b16 %v497, %v495
  %v750 = vpack.c.b16 %v498, %v496
  %v751 = vpack.c.b16 %v501, %v499
  %v752 = vpack.c.b16 %v502, %v500
  %v753 = vpack.c.b16 %v505, %v503
  %v754 = vpack.c.b16 %v506, %v504
  %v755 = vpack.c.b16 %v509, %v507
  %v756 = vpack.c.b16 %v510, %v508
  %v757 = vpack.c.b16 %v513, %v511
  %v758 = vpack.c.b16 %v514, %v512
  %v759 = vpack.c.b16 %v517, %v515
  %v760 = vpack.c.b16 %v518, %v516
  %v761 = vpack.c.b16 %v521, %v519
  %v762 = vpack.c.b16 %v522, %v520
  %v763 = vpack.c.b16 %v525, %v523
  %v764 = vpack.c.b16 %v526, %v524
  %v765 = vpack.c.b16 %v529, %v527
  %v766 = vpack.c.b16 %v530, %v528
  %v767 = vpack.c.b16 %v533, %v531
  %v768 = vpack.c.b16 %v534, %v532
  %v769 = vpack.c.b16 %v537, %v535
  %v770 = vpack.c.b16 %v538, %v536
  %v771 = vpack.c.b16 %v541, %v539
  %v772 = vpack.c.b16 %v542, %v540
  %v773 = vpack.c.b16 %v545, %v543
  %v774 = vpack.c.b16 %v546, %v544
  %v775 = vpack.c.b16 %v549, %v547
  %v776 = vpack.c.b16 %v550, %v548
  %v777 = vpack.c.b16 %v553, %v551
  %v778 = vpack.c.b16 %v554, %v552
  %v779 = vpack.c.b16 %v557, %v555
  %v780 = vpack.c.b16 %v558, %v556
  %v781 = vpack.c.b16 %v561, %v559
  %v782 = vpack.c.b16 %v562, %v560
  %v783 = vpack.c.b16 %v565, %v563
  %v784 = vpack.c.b16 %v566, %v564
  %v785 = vpack.c.b16 %v569, %v567
  %v786 = vpack.c.b16 %v570, %v568
  %v787 = vpack.c.b16 %v573, %v571
  %v788 = vpack.c.b16 %v574, %v572
  %v789 = vpack.c.b16 %v577, %v575
  %v790 = vpack.c.b16 %v578, %v576
  %v791 = vpack.c.b16 %v581, %v579
  %v792 = vpack.c.b16 %v582, %v580
  %v793 = vpack.c.b16 %v585, %v583
  %v794 = vpack.c.b16 %v586, %v584
  %v795 = vpack.c.b16 %v589, %v587
  %v796 = vpack.c.b16 %v590, %v588
  %v797 = vpack.c.b16 %v593, %v591
  %v798 = vpack.c.b16 %v594, %v592
  %v799 = vpack.c.b16 %v597, %v595
  %v800 = vpack.c.b16 %v598, %v596
  %v801 = vpack.c.b16 %v601, %v599
  %v802 = vpack.c.b16 %v602, %v600
  %v803 = vpack.c.b16 %v605, %v603
  %v804 = vpack.c.b16 %v606, %v604
  %v805 = vpack.c.b16 %v609, %v607
  %v806 = vpack.c.b16 %v610, %v608
  %v807 = vpack.c.b16 %v613, %v611
  %v808 = vpack.c.b16 %v614, %v612
  %v809 = vpack.c.b16 %v617, %v615
  %v810 = vpack.c.b16 %v618, %v616
  %v811 = vpack.c.b16 %v621, %v619
  %v812 = vpack.c.b16 %v622, %v620
  %v813 = vpack.c.b16 %v625, %v623
  %v814 = vpack.c.b16 %v626, %v624
  %v815 = vpack.c.b16 %v629, %v627
  %v816 = vpack.c.b16 %v630, %v628
  %v817 = vpack.c.b16 %v633, %v631
  %v818 = vpack.c.b16 %v634, %v632
  %v819 = vpack.c.b16 %v637, %v635
  %v820 = vpack.c.b16 %v638, %v636
  %v821 = vpack.c.b16 %v641, %v639
  %v822 = vpack.c.b16 %v642, %v640
  %v823 = vpack.c.b16 %v645, %v643
  %v824 = vpack.c.b16 %v646, %v644
  %v825 = vpack.c.b16 %v649, %v647
  %v826 = vpack.c.b16 %v650, %v648
  %v827 = vpack.c.b16 %v653, %v651
  %v828 = vpack.c.b16 %v654, %v652
  %v829 = vpack.c.b16 %v657, %v655
  %v830 = vpack.c.b16 %v658, %v656
  %v831 = vpack.c.b16 %v661, %v659
  %v832 = vpack.c.b16 %v662, %v660
  %v833 = vpack.c.b16 %v665, %v663
  %v834 = vpack.c.b16 %v666, %v664
  %v835 = vpack.c.b16 %v669, %v667
  %v836 = vpack.c.b16 %v670, %v668
  %v837 = vpack.c.b16 %v673, %v671
  %v838 = vpack.c.b16 %v674, %v672
  %v839 = vpack.c.b16 %v677, %v675
  %v840 = vpack.c.b16 %v678, %v676
  %v841 = vpack.c.b16 %v681, %v679
  %v842 = vpack.c.b16 %v682, %v680
  %v843 = vpack.c.b16 %v685, %v683
  %v844 = vpack.c.b16 %v686, %v684
  %v845 = vpack.c.b16 %v689, %v687
  %v846 = vpack.c.b16 %v690, %v688
  %v847 = vpack.c.b16 %v693, %v691
  %v848 = vpack.c.b16 %v694, %v692
  %v849 = vpack.c.b16 %v697, %v695
  %v850 = vpack.c.b16 %v698, %v696
  %v851 = vpack.c.b16 %v701, %v699
  %v852 = vpack.c.b16 %v702, %v700
  %v853 = vpack.c.b16 %v705, %v703
  %v854 = vpack.c.b16 %v706, %v704
  %v855 = vpack.c.b16 %v709, %v707
  %v856 = vpack.c.b16 %v710, %v708
  %v857 = vpack.c.b16 %v713, %v711
  %v858 = vpack.c.b16 %v714, %v712
  %1003 = vmatprep.subr.bf16.mxu0 %v716
  %1004 = vmatpush1.bf16.msra.mxu0 %v715
  %1005 = vmatprep.subr.bf16.mxu0 %v718
  %1006 = vmatpush1.bf16.msra.mxu0 %v717
  %1007 = vmatprep.subr.bf16.mxu0 %v720
  %1008 = vmatpush1.bf16.msra.mxu0 %v719
  %1009 = vmatprep.subr.bf16.mxu0 %v722
  %1010 = vmatpush1.bf16.msra.mxu0 %v721
  %1011 = vmatprep.subr.bf16.mxu0 %v724
  %1012 = vmatpush1.bf16.msra.mxu0 %v723
  %1013 = vmatprep.subr.bf16.mxu0 %v726
  %1014 = vmatpush1.bf16.msra.mxu0 %v725
  %1015 = vmatprep.subr.bf16.mxu0 %v728
  %1016 = vmatpush1.bf16.msra.mxu0 %v727
  %1017 = vmatprep.subr.bf16.mxu0 %v730
  %1018 = vmatpush1.bf16.msra.mxu0 %v729
  %1019 = vmatprep.subr.bf16.mxu0 %v732
  %1020 = vmatpush1.bf16.msra.mxu0 %v731
  %1021 = vmatprep.subr.bf16.mxu0 %v734
  %1022 = vmatpush1.bf16.msra.mxu0 %v733
  %1023 = vmatprep.subr.bf16.mxu0 %v736
  %1024 = vmatpush1.bf16.msra.mxu0 %v735
  %1025 = vmatprep.subr.bf16.mxu0 %v738
  %1026 = vmatpush1.bf16.msra.mxu0 %v737
  %1027 = vmatprep.subr.bf16.mxu0 %v740
  %1028 = vmatpush1.bf16.msra.mxu0 %v739
  %1029 = vmatprep.subr.bf16.mxu0 %v742
  %1030 = vmatpush1.bf16.msra.mxu0 %v741
  %1031 = vmatprep.subr.bf16.mxu0 %v744
  %1032 = vmatpush1.bf16.msra.mxu0 %v743
  %1033 = vmatprep.subr.bf16.mxu0 %v746
  %1034 = vmatpush1.bf16.msra.mxu0 %v745
  %1035 = vmatprep.mubr.bf16.mxu0 %v248
  %1036 = vmatmul.mubr.bf16.gmra.mrb[0].mxu0 %v247
  %v1037 = vpop.f32.mrb[0].mxu0
  %v1038 = vadd.f32 %v184, %v1037
  %v1039 = vpop.f32.mrb[0].mxu0
  %v1040 = vadd.f32 %v188, %v1039
  %v1041 = vpop.f32.mrb[0].mxu0
  %v1042 = vadd.f32 %v184, %v1041
  %v1043 = vpop.f32.mrb[0].mxu0
  %v1044 = vadd.f32 %v188, %v1043
  %1045 = vmatprep.mubr.bf16.mxu0 %v257
  %1046 = vmatmul.mubr.bf16.gmra.mrb[0].mxu0 %v256
  %v1047 = vpop.f32.mrb[0].mxu0
  %v1048 = vadd.f32 %v184, %v1047
  %v1049 = vpop.f32.mrb[0].mxu0
  %v1050 = vadd.f32 %v188, %v1049
  %v1051 = vpop.f32.mrb[0].mxu0
  %v1052 = vadd.f32 %v184, %v1051
  %v1053 = vpop.f32.mrb[0].mxu0
  %v1054 = vadd.f32 %v188, %v1053
  %1055 = vdwg.mxu0
  %1056 = vmatprep.subr.bf16.mxu0 %v748
  %1057 = vmatpush1.bf16.msra.mxu0 %v747
  %1058 = vmatprep.subr.bf16.mxu0 %v750
  %1059 = vmatpush1.bf16.msra.mxu0 %v749
  %1060 = vmatprep.subr.bf16.mxu0 %v752
  %1061 = vmatpush1.bf16.msra.mxu0 %v751
  %1062 = vmatprep.subr.bf16.mxu0 %v754
  %1063 = vmatpush1.bf16.msra.mxu0 %v753
  %1064 = vmatprep.subr.bf16.mxu0 %v756
  %1065 = vmatpush1.bf16.msra.mxu0 %v755
  %1066 = vmatprep.subr.bf16.mxu0 %v758
  %1067 = vmatpush1.bf16.msra.mxu0 %v757
  %1068 = vmatprep.subr.bf16.mxu0 %v760
  %1069 = vmatpush1.bf16.msra.mxu0 %v759
  %1070 = vmatprep.subr.bf16.mxu0 %v762
  %1071 = vmatpush1.bf16.msra.mxu0 %v761
  %1072 = vmatprep.subr.bf16.mxu0 %v764
  %1073 = vmatpush1.bf16.msra.mxu0 %v763
  %1074 = vmatprep.subr.bf16.mxu0 %v766
  %1075 = vmatpush1.bf16.msra.mxu0 %v765
  %1076 = vmatprep.subr.bf16.mxu0 %v768
  %1077 = vmatpush1.bf16.msra.mxu0 %v767
  %1078 = vmatprep.subr.bf16.mxu0 %v770
  %1079 = vmatpush1.bf16.msra.mxu0 %v769
  %1080 = vmatprep.subr.bf16.mxu0 %v772
  %1081 = vmatpush1.bf16.msra.mxu0 %v771
  %1082 = vmatprep.subr.bf16.mxu0 %v774
  %1083 = vmatpush1.bf16.msra.mxu0 %v773
  %1084 = vmatprep.subr.bf16.mxu0 %v776
  %1085 = vmatpush1.bf16.msra.mxu0 %v775
  %1086 = vmatprep.subr.bf16.mxu0 %v778
  %1087 = vmatpush1.bf16.msra.mxu0 %v777
  %1088 = vmatprep.mubr.bf16.mxu0 %v250
  %1089 = vmatmul.mubr.bf16.gmra.mrb[0].mxu0 %v249
  %v1090 = vpop.f32.mrb[0].mxu0
  %v1091 = vadd.f32 %v1038, %v1090
  %v1092 = vpop.f32.mrb[0].mxu0
  %v1093 = vadd.f32 %v1040, %v1092
  %v1094 = vpop.f32.mrb[0].mxu0
  %v1095 = vadd.f32 %v1042, %v1094
  %v1096 = vpop.f32.mrb[0].mxu0
  %v1097 = vadd.f32 %v1044, %v1096
  %1098 = vmatprep.mubr.bf16.mxu0 %v259
  %1099 = vmatmul.mubr.bf16.gmra.mrb[0].mxu0 %v258
  %v1100 = vpop.f32.mrb[0].mxu0
  %v1101 = vadd.f32 %v1048, %v1100
  %v1102 = vpop.f32.mrb[0].mxu0
  %v1103 = vadd.f32 %v1050, %v1102
  %v1104 = vpop.f32.mrb[0].mxu0
  %v1105 = vadd.f32 %v1052, %v1104
  %v1106 = vpop.f32.mrb[0].mxu0
  %v1107 = vadd.f32 %v1054, %v1106
  %1108 = vdwg.mxu0
  %1109 = vmatprep.subr.bf16.mxu0 %v780
  %1110 = vmatpush1.bf16.msra.mxu0 %v779
  %1111 = vmatprep.subr.bf16.mxu0 %v782
  %1112 = vmatpush1.bf16.msra.mxu0 %v781
  %1113 = vmatprep.subr.bf16.mxu0 %v784
  %1114 = vmatpush1.bf16.msra.mxu0 %v783
  %1115 = vmatprep.subr.bf16.mxu0 %v786
  %1116 = vmatpush1.bf16.msra.mxu0 %v785
  %1117 = vmatprep.subr.bf16.mxu0 %v788
  %1118 = vmatpush1.bf16.msra.mxu0 %v787
  %1119 = vmatprep.subr.bf16.mxu0 %v790
  %1120 = vmatpush1.bf16.msra.mxu0 %v789
  %1121 = vmatprep.subr.bf16.mxu0 %v792
  %1122 = vmatpush1.bf16.msra.mxu0 %v791
  %1123 = vmatprep.subr.bf16.mxu0 %v794
  %1124 = vmatpush1.bf16.msra.mxu0 %v793
  %1125 = vmatprep.subr.bf16.mxu0 %v796
  %1126 = vmatpush1.bf16.msra.mxu0 %v795
  %1127 = vmatprep.subr.bf16.mxu0 %v798
  %1128 = vmatpush1.bf16.msra.mxu0 %v797
  %1129 = vmatprep.subr.bf16.mxu0 %v800
  %1130 = vmatpush1.bf16.msra.mxu0 %v799
  %1131 = vmatprep.subr.bf16.mxu0 %v802
  %1132 = vmatpush1.bf16.msra.mxu0 %v801
  %1133 = vmatprep.subr.bf16.mxu0 %v804
  %1134 = vmatpush1.bf16.msra.mxu0 %v803
  %1135 = vmatprep.subr.bf16.mxu0 %v806
  %1136 = vmatpush1.bf16.msra.mxu0 %v805
  %1137 = vmatprep.subr.bf16.mxu0 %v808
  %1138 = vmatpush1.bf16.msra.mxu0 %v807
  %1139 = vmatprep.subr.bf16.mxu0 %v810
  %1140 = vmatpush1.bf16.msra.mxu0 %v809
  %1141 = vmatprep.mubr.bf16.mxu0 %v252
  %1142 = vmatmul.mubr.bf16.gmra.mrb[0].mxu0 %v251
  %v1143 = vpop.f32.mrb[0].mxu0
  %v1144 = vadd.f32 %v1091, %v1143
  %v1145 = vpop.f32.mrb[0].mxu0
  %v1146 = vadd.f32 %v1093, %v1145
  %v1147 = vpop.f32.mrb[0].mxu0
  %v1148 = vadd.f32 %v1095, %v1147
  %v1149 = vpop.f32.mrb[0].mxu0
  %v1150 = vadd.f32 %v1097, %v1149
  %1151 = vmatprep.mubr.bf16.mxu0 %v261
  %1152 = vmatmul.mubr.bf16.gmra.mrb[0].mxu0 %v260
  %v1153 = vpop.f32.mrb[0].mxu0
  %v1154 = vadd.f32 %v1101, %v1153
  %v1155 = vpop.f32.mrb[0].mxu0
  %v1156 = vadd.f32 %v1103, %v1155
  %v1157 = vpop.f32.mrb[0].mxu0
  %v1158 = vadd.f32 %v1105, %v1157
  %v1159 = vpop.f32.mrb[0].mxu0
  %v1160 = vadd.f32 %v1107, %v1159
  %1161 = vdwg.mxu0
  %1162 = vmatprep.subr.bf16.mxu0 %v812
  %1163 = vmatpush1.bf16.msra.mxu0 %v811
  %1164 = vmatprep.subr.bf16.mxu0 %v814
  %1165 = vmatpush1.bf16.msra.mxu0 %v813
  %1166 = vmatprep.subr.bf16.mxu0 %v816
  %1167 = vmatpush1.bf16.msra.mxu0 %v815
  %1168 = vmatprep.subr.bf16.mxu0 %v818
  %1169 = vmatpush1.bf16.msra.mxu0 %v817
  %1170 = vmatprep.subr.bf16.mxu0 %v820
  %1171 = vmatpush1.bf16.msra.mxu0 %v819
  %1172 = vmatprep.subr.bf16.mxu0 %v822
  %1173 = vmatpush1.bf16.msra.mxu0 %v821
  %1174 = vmatprep.subr.bf16.mxu0 %v824
  %1175 = vmatpush1.bf16.msra.mxu0 %v823
  %1176 = vmatprep.subr.bf16.mxu0 %v826
  %1177 = vmatpush1.bf16.msra.mxu0 %v825
  %1178 = vmatprep.subr.bf16.mxu0 %v828
  %1179 = vmatpush1.bf16.msra.mxu0 %v827
  %1180 = vmatprep.subr.bf16.mxu0 %v830
  %1181 = vmatpush1.bf16.msra.mxu0 %v829
  %1182 = vmatprep.subr.bf16.mxu0 %v832
  %1183 = vmatpush1.bf16.msra.mxu0 %v831
  %1184 = vmatprep.subr.bf16.mxu0 %v834
  %1185 = vmatpush1.bf16.msra.mxu0 %v833
  %1186 = vmatprep.subr.bf16.mxu0 %v836
  %1187 = vmatpush1.bf16.msra.mxu0 %v835
  %1188 = vmatprep.subr.bf16.mxu0 %v838
  %1189 = vmatpush1.bf16.msra.mxu0 %v837
  %1190 = vmatprep.subr.bf16.mxu0 %v840
  %1191 = vmatpush1.bf16.msra.mxu0 %v839
  %1192 = vmatprep.subr.bf16.mxu0 %v842
  %1193 = vmatpush1.bf16.msra.mxu0 %v841
  %1194 = vmatprep.mubr.bf16.mxu0 %v254
  %1195 = vmatmul.mubr.bf16.gmra.mrb[0].mxu0 %v253
  %v1196 = vpop.f32.mrb[0].mxu0
  %v1197 = vadd.f32 %v1144, %v1196
  %v1198 = vpop.f32.mrb[0].mxu0
  %v1199 = vadd.f32 %v1146, %v1198
  %v1200 = vpop.f32.mrb[0].mxu0
  %v1201 = vadd.f32 %v1148, %v1200
  %v1202 = vpop.f32.mrb[0].mxu0
  %v1203 = vadd.f32 %v1150, %v1202
  %1204 = vmatprep.mubr.bf16.mxu0 %v263
  %1205 = vmatmul.mubr.bf16.gmra.mrb[0].mxu0 %v262
  %v1206 = vpop.f32.mrb[0].mxu0
  %v1207 = vadd.f32 %v1154, %v1206
  %v1208 = vpop.f32.mrb[0].mxu0
  %v1209 = vadd.f32 %v1156, %v1208
  %v1210 = vpop.f32.mrb[0].mxu0
  %v1211 = vadd.f32 %v1158, %v1210
  %v1212 = vpop.f32.mrb[0].mxu0
  %v1213 = vadd.f32 %v1160, %v1212
  %1214 = vdwg.mxu0
  %1215 = vmatprep.subr.bf16.mxu0 %v844
  %1216 = vmatpush1.bf16.msra.mxu0 %v843
  %1217 = vmatprep.subr.bf16.mxu0 %v846
  %1218 = vmatpush1.bf16.msra.mxu0 %v845
  %1219 = vmatprep.subr.bf16.mxu0 %v848
  %1220 = vmatpush1.bf16.msra.mxu0 %v847
  %1221 = vmatprep.subr.bf16.mxu0 %v850
  %1222 = vmatpush1.bf16.msra.mxu0 %v849
  %1223 = vmatprep.subr.bf16.mxu0 %v852
  %1224 = vmatpush1.bf16.msra.mxu0 %v851
  %1225 = vmatprep.subr.bf16.mxu0 %v854
  %1226 = vmatpush1.bf16.msra.mxu0 %v853
  %1227 = vmatprep.subr.bf16.mxu0 %v856
  %1228 = vmatpush1.bf16.msra.mxu0 %v855
  %1229 = vmatprep.subr.bf16.mxu0 %v858
  %1230 = vmatpush1.bf16.msra.mxu0 %v857
  %1231 = vmatprep.subr.bf16.mxu0 0
  %1232 = vmatpush1.bf16.msra.mxu0 0
  %1233 = vmatprep.subr.bf16.mxu0 0
  %1234 = vmatpush1.bf16.msra.mxu0 0
  %1235 = vmatprep.subr.bf16.mxu0 0
  %1236 = vmatpush1.bf16.msra.mxu0 0
  %1237 = vmatprep.subr.bf16.mxu0 0
  %1238 = vmatpush1.bf16.msra.mxu0 0
  %1239 = vmatprep.subr.bf16.mxu0 0
  %1240 = vmatpush1.bf16.msra.mxu0 0
  %1241 = vmatprep.subr.bf16.mxu0 0
  %1242 = vmatpush1.bf16.msra.mxu0 0
  %1243 = vmatprep.subr.bf16.mxu0 0
  %1244 = vmatpush1.bf16.msra.mxu0 0
  %1245 = vmatprep.subr.bf16.mxu0 0
  %1246 = vmatpush1.bf16.msra.mxu0 0
  %1247 = vmatprep.mubr.bf16.mxu0 0
  %1248 = vmatmul.mubr.bf16.gmra.mrb[0].mxu0 %v255
  %v1249 = vpop.f32.mrb[0].mxu0
  %v1250 = vadd.f32 %v1197, %v1249
  %v1251 = vpop.f32.mrb[0].mxu0
  %v1252 = vadd.f32 %v1199, %v1251
  %v1253 = vpop.f32.mrb[0].mxu0
  %v1254 = vadd.f32 %v1201, %v1253
  %v1255 = vpop.f32.mrb[0].mxu0
  %v1256 = vadd.f32 %v1203, %v1255
  %1257 = vmatprep.mubr.bf16.mxu0 0
  %1258 = vmatmul.mubr.bf16.gmra.mrb[0].mxu0 %v264
  %v1259 = vpop.f32.mrb[0].mxu0
  %v1260 = vadd.f32 %v1207, %v1259
  %v1261 = vpop.f32.mrb[0].mxu0
  %v1262 = vadd.f32 %v1209, %v1261
  %v1263 = vpop.f32.mrb[0].mxu0
  %v1264 = vadd.f32 %v1211, %v1263
  %v1265 = vpop.f32.mrb[0].mxu0
  %v1266 = vadd.f32 %v1213, %v1265
  %1267 = vdwg.mxu0
  %v1268 = vmax.f32 %v1250, 0.0
  %v1269 = vmax.f32 %v1252, 0.0
  %v1270 = vmax.f32 %v1254, 0.0
  %v1271 = vmax.f32 %v1256, 0.0
  %v1272 = vmax.f32 %v1260, 0.0
  %v1273 = vmax.f32 %v1262, 0.0
  %v1274 = vmax.f32 %v1264, 0.0
  %v1275 = vmax.f32 %v1266, 0.0
  %v1276 = vpack.c.bf16 %v1270, %v1268
  %v1277 = vpack.c.bf16 %v1271, %v1269
  %v1278 = vpack.c.bf16 %v1274, %v1272
  %v1279 = vpack.c.bf16 %v1275, %v1273
  %v1284 = vunpack.c.l.b16 %v1276
  %v1285 = vunpack.c.l.b16 %v1277
  %v1286 = vunpack.c.h.b16 %v1276
  %v1287 = vunpack.c.h.b16 %v1277
  %v1288 = vunpack.c.l.b16 %v1278
  %v1289 = vunpack.c.l.b16 %v1279
  %v1290 = vunpack.c.h.b16 %v1278
  %v1291 = vunpack.c.h.b16 %v1279
  %v1292 = vpack.c.b16 %v1285, %v1284
  %v1293 = vpack.c.b16 %v1287, %v1286
  %v1294 = vpack.c.b16 %v1289, %v1288
  %v1295 = vpack.c.b16 %v1291, %v1290
  %1300 = vst [vmem:[%s3] sm:$0xff] %v1292
  %1301 = vst [vmem:[%s3 + $0x8] sm:$0xff] %v1293
  %1302 = vst [vmem:[%s3 + $0x10] sm:$0xff] %v1294
  %1303 = vst [vmem:[%s3 + $0x18] sm:$0xff] %v1295
  // Predicated region
  $region14: #{resnet_diff_forward.15} parent=0 // pred_check
    _
  $region15: #{resnet_diff_forward.15} parent=0 // pred_check_branch
    %1305 = sbr.rel (0) target = $region17
  $region16: #{resnet_diff_forward.15} parent=0 // pred_region
    _
  $region17: #{resnet_diff_forward.15} parent=0 // pred_fallthru
    _
  // Predicated region
  $region18: #{resnet_diff_forward.15} parent=0 // pred_check
    _
  $region19: #{resnet_diff_forward.15} parent=0 // pred_check_branch
    %1307 = sbr.rel (0) target = $region21
  $region20: #{resnet_diff_forward.15} parent=0 // pred_region
    _
  $region21: #{resnet_diff_forward.15} parent=0 // pred_fallthru
    _

// kernel: resnet_diff_forward.17
$region0: #{resnet_diff_forward.17}
  #allocation0 [shape = 'u32[]', space=smem, size = 0x4, offset = 0x4, fixed_abs, tag = 'smem constant byte address 0x4 - core index']
  #allocation1 [shape = 'u32[144,128]{1,0:T(1,128)}', space=vmem, size = 0x12000, scoped, tag = 'internal scratch']
  %s0 = inlined_call_operand.vmem [shape: bf16[32,2304], index: 0, kind: input, shape index: {}]
  %s1 = inlined_call_operand.vmem [shape: bf16[2304,256], index: 1, kind: input, shape index: {}]
  %s2 = inlined_call_operand.vmem [shape: f32[1,256], index: 2, kind: input, shape index: {}]
  %s3 = inlined_call_operand.vmem [shape: bf16[32,256], index: 3, kind: input, shape index: {}]
  %s4 = inlined_call_operand.vmem [shape: bf16[32,256], index: 4, kind: output, shape index: {}]
  %s5 = sld [smem:[#allocation0]]
  $region26: #{resnet_diff_forward.17} parent=0
    _
  %s7 = ssub.s32 1, %s5
  %s8 = scalar_select 0, %s7, %s5
  // Predicated region
  $region2: #{resnet_diff_forward.17} parent=0 // pred_check
    _
  $region3: #{resnet_diff_forward.17} parent=0 // pred_check_branch
    %10 = sbr.rel (0) target = $region5
  $region4: #{resnet_diff_forward.17} parent=0 // pred_region
    _
  $region5: #{resnet_diff_forward.17} parent=0 // pred_fallthru
    _
  // Predicated region
  $region6: #{resnet_diff_forward.17} parent=0 // pred_check
    _
  $region7: #{resnet_diff_forward.17} parent=0 // pred_check_branch
    %12 = sbr.rel (0) target = $region9
  $region8: #{resnet_diff_forward.17} parent=0 // pred_region
    _
  $region9: #{resnet_diff_forward.17} parent=0 // pred_fallthru
    _
  // Predicated region
  $region10: #{resnet_diff_forward.17} parent=0 // pred_check
    _
  $region11: #{resnet_diff_forward.17} parent=0 // pred_check_branch
    %14 = sbr.rel (0) target = $region13
  $region12: #{resnet_diff_forward.17} parent=0 // pred_region
    _
  $region13: #{resnet_diff_forward.17} parent=0 // pred_fallthru
    _
  // Predicated region
  $region14: #{resnet_diff_forward.17} parent=0 // pred_check
    _
  $region15: #{resnet_diff_forward.17} parent=0 // pred_check_branch
    %16 = sbr.rel (0) target = $region17
  $region16: #{resnet_diff_forward.17} parent=0 // pred_region
    _
  $region17: #{resnet_diff_forward.17} parent=0 // pred_fallthru
    _
  %v17 = vld [vmem:[%s0] sm:$0xff]
  %v18 = vld [vmem:[%s0 + $0x8] sm:$0xff]
  %v19 = vld [vmem:[%s0 + $0x10] sm:$0xff]
  %v20 = vld [vmem:[%s0 + $0x18] sm:$0xff]
  %v21 = vld [vmem:[%s0 + $0x20] sm:$0xff]
  %v22 = vld [vmem:[%s0 + $0x28] sm:$0xff]
  %v23 = vld [vmem:[%s0 + $0x30] sm:$0xff]
  %v24 = vld [vmem:[%s0 + $0x38] sm:$0xff]
  %v25 = vld [vmem:[%s0 + $0x40] sm:$0xff]
  %v26 = vld [vmem:[%s0 + $0x48] sm:$0xff]
  %v27 = vld [vmem:[%s0 + $0x50] sm:$0xff]
  %v28 = vld [vmem:[%s0 + $0x58] sm:$0xff]
  %v29 = vld [vmem:[%s0 + $0x60] sm:$0xff]
  %v30 = vld [vmem:[%s0 + $0x68] sm:$0xff]
  %v31 = vld [vmem:[%s0 + $0x70] sm:$0xff]
  %v32 = vld [vmem:[%s0 + $0x78] sm:$0xff]
  %v33 = vld [vmem:[%s0 + $0x80] sm:$0xff]
  %v34 = vld [vmem:[%s0 + $0x88] sm:$0xff]
  %v35 = vld [vmem:[%s0 + $0x90] sm:$0xff]
  %v36 = vld [vmem:[%s0 + $0x98] sm:$0xff]
  %v37 = vld [vmem:[%s0 + $0xa0] sm:$0xff]
  %v38 = vld [vmem:[%s0 + $0xa8] sm:$0xff]
  %v39 = vld [vmem:[%s0 + $0xb0] sm:$0xff]
  %v40 = vld [vmem:[%s0 + $0xb8] sm:$0xff]
  %v41 = vld [vmem:[%s0 + $0xc0] sm:$0xff]
  %v42 = vld [vmem:[%s0 + $0xc8] sm:$0xff]
  %v43 = vld [vmem:[%s0 + $0xd0] sm:$0xff]
  %v44 = vld [vmem:[%s0 + $0xd8] sm:$0xff]
  %v45 = vld [vmem:[%s0 + $0xe0] sm:$0xff]
  %v46 = vld [vmem:[%s0 + $0xe8] sm:$0xff]
  %v47 = vld [vmem:[%s0 + $0xf0] sm:$0xff]
  %v48 = vld [vmem:[%s0 + $0xf8] sm:$0xff]
  %v49 = vld [vmem:[%s0 + $0x100] sm:$0xff]
  %v50 = vld [vmem:[%s0 + $0x108] sm:$0xff]
  %v51 = vld [vmem:[%s0 + $0x110] sm:$0xff]
  %v52 = vld [vmem:[%s0 + $0x118] sm:$0xff]
  %v53 = vld [vmem:[%s1] sm:$0xff]
  %v54 = vld [vmem:[%s1 + $0x8] sm:$0xff]
  %v55 = vld [vmem:[%s1 + $0x10] sm:$0xff]
  %v56 = vld [vmem:[%s1 + $0x18] sm:$0xff]
  %v57 = vld [vmem:[%s1 + $0x20] sm:$0xff]
  %v58 = vld [vmem:[%s1 + $0x28] sm:$0xff]
  %v59 = vld [vmem:[%s1 + $0x30] sm:$0xff]
  %v60 = vld [vmem:[%s1 + $0x38] sm:$0xff]
  %v61 = vld [vmem:[%s1 + $0x40] sm:$0xff]
  %v62 = vld [vmem:[%s1 + $0x48] sm:$0xff]
  %v63 = vld [vmem:[%s1 + $0x50] sm:$0xff]
  %v64 = vld [vmem:[%s1 + $0x58] sm:$0xff]
  %v65 = vld [vmem:[%s1 + $0x60] sm:$0xff]
  %v66 = vld [vmem:[%s1 + $0x68] sm:$0xff]
  %v67 = vld [vmem:[%s1 + $0x70] sm:$0xff]
  %v68 = vld [vmem:[%s1 + $0x78] sm:$0xff]
  %v69 = vld [vmem:[%s1 + $0x80] sm:$0xff]
  %v70 = vld [vmem:[%s1 + $0x88] sm:$0xff]
  %v71 = vld [vmem:[%s1 + $0x90] sm:$0xff]
  %v72 = vld [vmem:[%s1 + $0x98] sm:$0xff]
  %v73 = vld [vmem:[%s1 + $0xa0] sm:$0xff]
  %v74 = vld [vmem:[%s1 + $0xa8] sm:$0xff]
  %v75 = vld [vmem:[%s1 + $0xb0] sm:$0xff]
  %v76 = vld [vmem:[%s1 + $0xb8] sm:$0xff]
  %v77 = vld [vmem:[%s1 + $0xc0] sm:$0xff]
  %v78 = vld [vmem:[%s1 + $0xc8] sm:$0xff]
  %v79 = vld [vmem:[%s1 + $0xd0] sm:$0xff]
  %v80 = vld [vmem:[%s1 + $0xd8] sm:$0xff]
  %v81 = vld [vmem:[%s1 + $0xe0] sm:$0xff]
  %v82 = vld [vmem:[%s1 + $0xe8] sm:$0xff]
  %v83 = vld [vmem:[%s1 + $0xf0] sm:$0xff]
  %v84 = vld [vmem:[%s1 + $0xf8] sm:$0xff]
  %v85 = vld [vmem:[%s1 + $0x100] sm:$0xff]
  %v86 = vld [vmem:[%s1 + $0x108] sm:$0xff]
  %v87 = vld [vmem:[%s1 + $0x110] sm:$0xff]
  %v88 = vld [vmem:[%s1 + $0x118] sm:$0xff]
  %v89 = vld [vmem:[%s1 + $0x120] sm:$0xff]
  %v90 = vld [vmem:[%s1 + $0x128] sm:$0xff]
  %v91 = vld [vmem:[%s1 + $0x130] sm:$0xff]
  %v92 = vld [vmem:[%s1 + $0x138] sm:$0xff]
  %v93 = vld [vmem:[%s1 + $0x140] sm:$0xff]
  %v94 = vld [vmem:[%s1 + $0x148] sm:$0xff]
  %v95 = vld [vmem:[%s1 + $0x150] sm:$0xff]
  %v96 = vld [vmem:[%s1 + $0x158] sm:$0xff]
  %v97 = vld [vmem:[%s1 + $0x160] sm:$0xff]
  %v98 = vld [vmem:[%s1 + $0x168] sm:$0xff]
  %v99 = vld [vmem:[%s1 + $0x170] sm:$0xff]
  %v100 = vld [vmem:[%s1 + $0x178] sm:$0xff]
  %v101 = vld [vmem:[%s1 + $0x180] sm:$0xff]
  %v102 = vld [vmem:[%s1 + $0x188] sm:$0xff]
  %v103 = vld [vmem:[%s1 + $0x190] sm:$0xff]
  %v104 = vld [vmem:[%s1 + $0x198] sm:$0xff]
  %v105 = vld [vmem:[%s1 + $0x1a0] sm:$0xff]
  %v106 = vld [vmem:[%s1 + $0x1a8] sm:$0xff]
  %v107 = vld [vmem:[%s1 + $0x1b0] sm:$0xff]
  %v108 = vld [vmem:[%s1 + $0x1b8] sm:$0xff]
  %v109 = vld [vmem:[%s1 + $0x1c0] sm:$0xff]
  %v110 = vld [vmem:[%s1 + $0x1c8] sm:$0xff]
  %v111 = vld [vmem:[%s1 + $0x1d0] sm:$0xff]
  %v112 = vld [vmem:[%s1 + $0x1d8] sm:$0xff]
  %v113 = vld [vmem:[%s1 + $0x1e0] sm:$0xff]
  %v114 = vld [vmem:[%s1 + $0x1e8] sm:$0xff]
  %v115 = vld [vmem:[%s1 + $0x1f0] sm:$0xff]
  %v116 = vld [vmem:[%s1 + $0x1f8] sm:$0xff]
  %v117 = vld [vmem:[%s1 + $0x200] sm:$0xff]
  %v118 = vld [vmem:[%s1 + $0x208] sm:$0xff]
  %v119 = vld [vmem:[%s1 + $0x210] sm:$0xff]
  %v120 = vld [vmem:[%s1 + $0x218] sm:$0xff]
  %v121 = vld [vmem:[%s1 + $0x220] sm:$0xff]
  %v122 = vld [vmem:[%s1 + $0x228] sm:$0xff]
  %v123 = vld [vmem:[%s1 + $0x230] sm:$0xff]
  %v124 = vld [vmem:[%s1 + $0x238] sm:$0xff]
  %v125 = vld [vmem:[%s1 + $0x240] sm:$0xff]
  %v126 = vld [vmem:[%s1 + $0x248] sm:$0xff]
  %v127 = vld [vmem:[%s1 + $0x250] sm:$0xff]
  %v128 = vld [vmem:[%s1 + $0x258] sm:$0xff]
  %v129 = vld [vmem:[%s1 + $0x260] sm:$0xff]
  %v130 = vld [vmem:[%s1 + $0x268] sm:$0xff]
  %v131 = vld [vmem:[%s1 + $0x270] sm:$0xff]
  %v132 = vld [vmem:[%s1 + $0x278] sm:$0xff]
  %v133 = vld [vmem:[%s1 + $0x280] sm:$0xff]
  %v134 = vld [vmem:[%s1 + $0x288] sm:$0xff]
  %v135 = vld [vmem:[%s1 + $0x290] sm:$0xff]
  %v136 = vld [vmem:[%s1 + $0x298] sm:$0xff]
  %v137 = vld [vmem:[%s1 + $0x2a0] sm:$0xff]
  %v138 = vld [vmem:[%s1 + $0x2a8] sm:$0xff]
  %v139 = vld [vmem:[%s1 + $0x2b0] sm:$0xff]
  %v140 = vld [vmem:[%s1 + $0x2b8] sm:$0xff]
  %v141 = vld [vmem:[%s1 + $0x2c0] sm:$0xff]
  %v142 = vld [vmem:[%s1 + $0x2c8] sm:$0xff]
  %v143 = vld [vmem:[%s1 + $0x2d0] sm:$0xff]
  %v144 = vld [vmem:[%s1 + $0x2d8] sm:$0xff]
  %v145 = vld [vmem:[%s1 + $0x2e0] sm:$0xff]
  %v146 = vld [vmem:[%s1 + $0x2e8] sm:$0xff]
  %v147 = vld [vmem:[%s1 + $0x2f0] sm:$0xff]
  %v148 = vld [vmem:[%s1 + $0x2f8] sm:$0xff]
  %v149 = vld [vmem:[%s1 + $0x300] sm:$0xff]
  %v150 = vld [vmem:[%s1 + $0x308] sm:$0xff]
  %v151 = vld [vmem:[%s1 + $0x310] sm:$0xff]
  %v152 = vld [vmem:[%s1 + $0x318] sm:$0xff]
  %v153 = vld [vmem:[%s1 + $0x320] sm:$0xff]
  %v154 = vld [vmem:[%s1 + $0x328] sm:$0xff]
  %v155 = vld [vmem:[%s1 + $0x330] sm:$0xff]
  %v156 = vld [vmem:[%s1 + $0x338] sm:$0xff]
  %v157 = vld [vmem:[%s1 + $0x340] sm:$0xff]
  %v158 = vld [vmem:[%s1 + $0x348] sm:$0xff]
  %v159 = vld [vmem:[%s1 + $0x350] sm:$0xff]
  %v160 = vld [vmem:[%s1 + $0x358] sm:$0xff]
  %v161 = vld [vmem:[%s1 + $0x360] sm:$0xff]
  %v162 = vld [vmem:[%s1 + $0x368] sm:$0xff]
  %v163 = vld [vmem:[%s1 + $0x370] sm:$0xff]
  %v164 = vld [vmem:[%s1 + $0x378] sm:$0xff]
  %v165 = vld [vmem:[%s1 + $0x380] sm:$0xff]
  %v166 = vld [vmem:[%s1 + $0x388] sm:$0xff]
  %v167 = vld [vmem:[%s1 + $0x390] sm:$0xff]
  %v168 = vld [vmem:[%s1 + $0x398] sm:$0xff]
  %v169 = vld [vmem:[%s1 + $0x3a0] sm:$0xff]
  %v170 = vld [vmem:[%s1 + $0x3a8] sm:$0xff]
  %v171 = vld [vmem:[%s1 + $0x3b0] sm:$0xff]
  %v172 = vld [vmem:[%s1 + $0x3b8] sm:$0xff]
  %v173 = vld [vmem:[%s1 + $0x3c0] sm:$0xff]
  %v174 = vld [vmem:[%s1 + $0x3c8] sm:$0xff]
  %v175 = vld [vmem:[%s1 + $0x3d0] sm:$0xff]
  %v176 = vld [vmem:[%s1 + $0x3d8] sm:$0xff]
  %v177 = vld [vmem:[%s1 + $0x3e0] sm:$0xff]
  %v178 = vld [vmem:[%s1 + $0x3e8] sm:$0xff]
  %v179 = vld [vmem:[%s1 + $0x3f0] sm:$0xff]
  %v180 = vld [vmem:[%s1 + $0x3f8] sm:$0xff]
  %v181 = vld [vmem:[%s1 + $0x400] sm:$0xff]
  %v182 = vld [vmem:[%s1 + $0x408] sm:$0xff]
  %v183 = vld [vmem:[%s1 + $0x410] sm:$0xff]
  %v184 = vld [vmem:[%s1 + $0x418] sm:$0xff]
  %v185 = vld [vmem:[%s1 + $0x420] sm:$0xff]
  %v186 = vld [vmem:[%s1 + $0x428] sm:$0xff]
  %v187 = vld [vmem:[%s1 + $0x430] sm:$0xff]
  %v188 = vld [vmem:[%s1 + $0x438] sm:$0xff]
  %v189 = vld [vmem:[%s1 + $0x440] sm:$0xff]
  %v190 = vld [vmem:[%s1 + $0x448] sm:$0xff]
  %v191 = vld [vmem:[%s1 + $0x450] sm:$0xff]
  %v192 = vld [vmem:[%s1 + $0x458] sm:$0xff]
  %v193 = vld [vmem:[%s1 + $0x460] sm:$0xff]
  %v194 = vld [vmem:[%s1 + $0x468] sm:$0xff]
  %v195 = vld [vmem:[%s1 + $0x470] sm:$0xff]
  %v196 = vld [vmem:[%s1 + $0x478] sm:$0xff]
  %v197 = vld [vmem:[%s1 + $0x480] sm:$0xff]
  %v198 = vld [vmem:[%s1 + $0x488] sm:$0xff]
  %v199 = vld [vmem:[%s1 + $0x490] sm:$0xff]
  %v200 = vld [vmem:[%s1 + $0x498] sm:$0xff]
  %v201 = vld [vmem:[%s1 + $0x4a0] sm:$0xff]
  %v202 = vld [vmem:[%s1 + $0x4a8] sm:$0xff]
  %v203 = vld [vmem:[%s1 + $0x4b0] sm:$0xff]
  %v204 = vld [vmem:[%s1 + $0x4b8] sm:$0xff]
  %v205 = vld [vmem:[%s1 + $0x4c0] sm:$0xff]
  %v206 = vld [vmem:[%s1 + $0x4c8] sm:$0xff]
  %v207 = vld [vmem:[%s1 + $0x4d0] sm:$0xff]
  %v208 = vld [vmem:[%s1 + $0x4d8] sm:$0xff]
  %v209 = vld [vmem:[%s1 + $0x4e0] sm:$0xff]
  %v210 = vld [vmem:[%s1 + $0x4e8] sm:$0xff]
  %v211 = vld [vmem:[%s1 + $0x4f0] sm:$0xff]
  %v212 = vld [vmem:[%s1 + $0x4f8] sm:$0xff]
  %v213 = vld [vmem:[%s1 + $0x500] sm:$0xff]
  %v214 = vld [vmem:[%s1 + $0x508] sm:$0xff]
  %v215 = vld [vmem:[%s1 + $0x510] sm:$0xff]
  %v216 = vld [vmem:[%s1 + $0x518] sm:$0xff]
  %v217 = vld [vmem:[%s1 + $0x520] sm:$0xff]
  %v218 = vld [vmem:[%s1 + $0x528] sm:$0xff]
  %v219 = vld [vmem:[%s1 + $0x530] sm:$0xff]
  %v220 = vld [vmem:[%s1 + $0x538] sm:$0xff]
  %v221 = vld [vmem:[%s1 + $0x540] sm:$0xff]
  %v222 = vld [vmem:[%s1 + $0x548] sm:$0xff]
  %v223 = vld [vmem:[%s1 + $0x550] sm:$0xff]
  %v224 = vld [vmem:[%s1 + $0x558] sm:$0xff]
  %v225 = vld [vmem:[%s1 + $0x560] sm:$0xff]
  %v226 = vld [vmem:[%s1 + $0x568] sm:$0xff]
  %v227 = vld [vmem:[%s1 + $0x570] sm:$0xff]
  %v228 = vld [vmem:[%s1 + $0x578] sm:$0xff]
  %v229 = vld [vmem:[%s1 + $0x580] sm:$0xff]
  %v230 = vld [vmem:[%s1 + $0x588] sm:$0xff]
  %v231 = vld [vmem:[%s1 + $0x590] sm:$0xff]
  %v232 = vld [vmem:[%s1 + $0x598] sm:$0xff]
  %v233 = vld [vmem:[%s1 + $0x5a0] sm:$0xff]
  %v234 = vld [vmem:[%s1 + $0x5a8] sm:$0xff]
  %v235 = vld [vmem:[%s1 + $0x5b0] sm:$0xff]
  %v236 = vld [vmem:[%s1 + $0x5b8] sm:$0xff]
  %v237 = vld [vmem:[%s1 + $0x5c0] sm:$0xff]
  %v238 = vld [vmem:[%s1 + $0x5c8] sm:$0xff]
  %v239 = vld [vmem:[%s1 + $0x5d0] sm:$0xff]
  %v240 = vld [vmem:[%s1 + $0x5d8] sm:$0xff]
  %v241 = vld [vmem:[%s1 + $0x5e0] sm:$0xff]
  %v242 = vld [vmem:[%s1 + $0x5e8] sm:$0xff]
  %v243 = vld [vmem:[%s1 + $0x5f0] sm:$0xff]
  %v244 = vld [vmem:[%s1 + $0x5f8] sm:$0xff]
  %v245 = vld [vmem:[%s1 + $0x600] sm:$0xff]
  %v246 = vld [vmem:[%s1 + $0x608] sm:$0xff]
  %v247 = vld [vmem:[%s1 + $0x610] sm:$0xff]
  %v248 = vld [vmem:[%s1 + $0x618] sm:$0xff]
  %v249 = vld [vmem:[%s1 + $0x620] sm:$0xff]
  %v250 = vld [vmem:[%s1 + $0x628] sm:$0xff]
  %v251 = vld [vmem:[%s1 + $0x630] sm:$0xff]
  %v252 = vld [vmem:[%s1 + $0x638] sm:$0xff]
  %v253 = vld [vmem:[%s1 + $0x640] sm:$0xff]
  %v254 = vld [vmem:[%s1 + $0x648] sm:$0xff]
  %v255 = vld [vmem:[%s1 + $0x650] sm:$0xff]
  %v256 = vld [vmem:[%s1 + $0x658] sm:$0xff]
  %v257 = vld [vmem:[%s1 + $0x660] sm:$0xff]
  %v258 = vld [vmem:[%s1 + $0x668] sm:$0xff]
  %v259 = vld [vmem:[%s1 + $0x670] sm:$0xff]
  %v260 = vld [vmem:[%s1 + $0x678] sm:$0xff]
  %v261 = vld [vmem:[%s1 + $0x680] sm:$0xff]
  %v262 = vld [vmem:[%s1 + $0x688] sm:$0xff]
  %v263 = vld [vmem:[%s1 + $0x690] sm:$0xff]
  %v264 = vld [vmem:[%s1 + $0x698] sm:$0xff]
  %v265 = vld [vmem:[%s1 + $0x6a0] sm:$0xff]
  %v266 = vld [vmem:[%s1 + $0x6a8] sm:$0xff]
  %v267 = vld [vmem:[%s1 + $0x6b0] sm:$0xff]
  %v268 = vld [vmem:[%s1 + $0x6b8] sm:$0xff]
  %v269 = vld [vmem:[%s1 + $0x6c0] sm:$0xff]
  %v270 = vld [vmem:[%s1 + $0x6c8] sm:$0xff]
  %v271 = vld [vmem:[%s1 + $0x6d0] sm:$0xff]
  %v272 = vld [vmem:[%s1 + $0x6d8] sm:$0xff]
  %v273 = vld [vmem:[%s1 + $0x6e0] sm:$0xff]
  %v274 = vld [vmem:[%s1 + $0x6e8] sm:$0xff]
  %v275 = vld [vmem:[%s1 + $0x6f0] sm:$0xff]
  %v276 = vld [vmem:[%s1 + $0x6f8] sm:$0xff]
  %v277 = vld [vmem:[%s1 + $0x700] sm:$0xff]
  %v278 = vld [vmem:[%s1 + $0x708] sm:$0xff]
  %v279 = vld [vmem:[%s1 + $0x710] sm:$0xff]
  %v280 = vld [vmem:[%s1 + $0x718] sm:$0xff]
  %v281 = vld [vmem:[%s1 + $0x720] sm:$0xff]
  %v282 = vld [vmem:[%s1 + $0x728] sm:$0xff]
  %v283 = vld [vmem:[%s1 + $0x730] sm:$0xff]
  %v284 = vld [vmem:[%s1 + $0x738] sm:$0xff]
  %v285 = vld [vmem:[%s1 + $0x740] sm:$0xff]
  %v286 = vld [vmem:[%s1 + $0x748] sm:$0xff]
  %v287 = vld [vmem:[%s1 + $0x750] sm:$0xff]
  %v288 = vld [vmem:[%s1 + $0x758] sm:$0xff]
  %v289 = vld [vmem:[%s1 + $0x760] sm:$0xff]
  %v290 = vld [vmem:[%s1 + $0x768] sm:$0xff]
  %v291 = vld [vmem:[%s1 + $0x770] sm:$0xff]
  %v292 = vld [vmem:[%s1 + $0x778] sm:$0xff]
  %v293 = vld [vmem:[%s1 + $0x780] sm:$0xff]
  %v294 = vld [vmem:[%s1 + $0x788] sm:$0xff]
  %v295 = vld [vmem:[%s1 + $0x790] sm:$0xff]
  %v296 = vld [vmem:[%s1 + $0x798] sm:$0xff]
  %v297 = vld [vmem:[%s1 + $0x7a0] sm:$0xff]
  %v298 = vld [vmem:[%s1 + $0x7a8] sm:$0xff]
  %v299 = vld [vmem:[%s1 + $0x7b0] sm:$0xff]
  %v300 = vld [vmem:[%s1 + $0x7b8] sm:$0xff]
  %v301 = vld [vmem:[%s1 + $0x7c0] sm:$0xff]
  %v302 = vld [vmem:[%s1 + $0x7c8] sm:$0xff]
  %v303 = vld [vmem:[%s1 + $0x7d0] sm:$0xff]
  %v304 = vld [vmem:[%s1 + $0x7d8] sm:$0xff]
  %v305 = vld [vmem:[%s1 + $0x7e0] sm:$0xff]
  %v306 = vld [vmem:[%s1 + $0x7e8] sm:$0xff]
  %v307 = vld [vmem:[%s1 + $0x7f0] sm:$0xff]
  %v308 = vld [vmem:[%s1 + $0x7f8] sm:$0xff]
  %v309 = vld [vmem:[%s1 + $0x800] sm:$0xff]
  %v310 = vld [vmem:[%s1 + $0x808] sm:$0xff]
  %v311 = vld [vmem:[%s1 + $0x810] sm:$0xff]
  %v312 = vld [vmem:[%s1 + $0x818] sm:$0xff]
  %v313 = vld [vmem:[%s1 + $0x820] sm:$0xff]
  %v314 = vld [vmem:[%s1 + $0x828] sm:$0xff]
  %v315 = vld [vmem:[%s1 + $0x830] sm:$0xff]
  %v316 = vld [vmem:[%s1 + $0x838] sm:$0xff]
  %v317 = vld [vmem:[%s1 + $0x840] sm:$0xff]
  %v318 = vld [vmem:[%s1 + $0x848] sm:$0xff]
  %v319 = vld [vmem:[%s1 + $0x850] sm:$0xff]
  %v320 = vld [vmem:[%s1 + $0x858] sm:$0xff]
  %v321 = vld [vmem:[%s1 + $0x860] sm:$0xff]
  %v322 = vld [vmem:[%s1 + $0x868] sm:$0xff]
  %v323 = vld [vmem:[%s1 + $0x870] sm:$0xff]
  %v324 = vld [vmem:[%s1 + $0x878] sm:$0xff]
  %v325 = vld [vmem:[%s1 + $0x880] sm:$0xff]
  %v326 = vld [vmem:[%s1 + $0x888] sm:$0xff]
  %v327 = vld [vmem:[%s1 + $0x890] sm:$0xff]
  %v328 = vld [vmem:[%s1 + $0x898] sm:$0xff]
  %v329 = vld [vmem:[%s1 + $0x8a0] sm:$0xff]
  %v330 = vld [vmem:[%s1 + $0x8a8] sm:$0xff]
  %v331 = vld [vmem:[%s1 + $0x8b0] sm:$0xff]
  %v332 = vld [vmem:[%s1 + $0x8b8] sm:$0xff]
  %v333 = vld [vmem:[%s1 + $0x8c0] sm:$0xff]
  %v334 = vld [vmem:[%s1 + $0x8c8] sm:$0xff]
  %v335 = vld [vmem:[%s1 + $0x8d0] sm:$0xff]
  %v336 = vld [vmem:[%s1 + $0x8d8] sm:$0xff]
  %v337 = vld [vmem:[%s1 + $0x8e0] sm:$0xff]
  %v338 = vld [vmem:[%s1 + $0x8e8] sm:$0xff]
  %v339 = vld [vmem:[%s1 + $0x8f0] sm:$0xff]
  %v340 = vld [vmem:[%s1 + $0x8f8] sm:$0xff]
  %v341 = vld [vmem:[%s2] sm:$0x3]
  %v343 = vlaneseq
  %v344 = vshrl.u32 %v343, 7
  %v345 = vsub.s32 0, %v344
  %v346 = vrot.slane %v341, %v345
  %v347 = vlaneseq
  %v348 = vshrl.u32 %v347, 7
  %v349 = vsub.s32 1, %v348
  %v350 = vrot.slane %v341, %v349
  %v389 = vunpack.c.l.b16 %v17
  %v390 = vunpack.c.h.b16 %v17
  %v391 = vunpack.c.l.b16 %v18
  %v392 = vunpack.c.h.b16 %v18
  %v393 = vunpack.c.l.b16 %v19
  %v394 = vunpack.c.h.b16 %v19
  %v395 = vunpack.c.l.b16 %v20
  %v396 = vunpack.c.h.b16 %v20
  %v397 = vunpack.c.l.b16 %v21
  %v398 = vunpack.c.h.b16 %v21
  %v399 = vunpack.c.l.b16 %v22
  %v400 = vunpack.c.h.b16 %v22
  %v401 = vunpack.c.l.b16 %v23
  %v402 = vunpack.c.h.b16 %v23
  %v403 = vunpack.c.l.b16 %v24
  %v404 = vunpack.c.h.b16 %v24
  %v405 = vunpack.c.l.b16 %v25
  %v406 = vunpack.c.h.b16 %v25
  %v407 = vunpack.c.l.b16 %v26
  %v408 = vunpack.c.h.b16 %v26
  %v409 = vunpack.c.l.b16 %v27
  %v410 = vunpack.c.h.b16 %v27
  %v411 = vunpack.c.l.b16 %v28
  %v412 = vunpack.c.h.b16 %v28
  %v413 = vunpack.c.l.b16 %v29
  %v414 = vunpack.c.h.b16 %v29
  %v415 = vunpack.c.l.b16 %v30
  %v416 = vunpack.c.h.b16 %v30
  %v417 = vunpack.c.l.b16 %v31
  %v418 = vunpack.c.h.b16 %v31
  %v419 = vunpack.c.l.b16 %v32
  %v420 = vunpack.c.h.b16 %v32
  %v421 = vunpack.c.l.b16 %v33
  %v422 = vunpack.c.h.b16 %v33
  %v423 = vunpack.c.l.b16 %v34
  %v424 = vunpack.c.h.b16 %v34
  %v425 = vunpack.c.l.b16 %v35
  %v426 = vunpack.c.h.b16 %v35
  %v427 = vunpack.c.l.b16 %v36
  %v428 = vunpack.c.h.b16 %v36
  %v429 = vunpack.c.l.b16 %v37
  %v430 = vunpack.c.h.b16 %v37
  %v431 = vunpack.c.l.b16 %v38
  %v432 = vunpack.c.h.b16 %v38
  %v433 = vunpack.c.l.b16 %v39
  %v434 = vunpack.c.h.b16 %v39
  %v435 = vunpack.c.l.b16 %v40
  %v436 = vunpack.c.h.b16 %v40
  %v437 = vunpack.c.l.b16 %v41
  %v438 = vunpack.c.h.b16 %v41
  %v439 = vunpack.c.l.b16 %v42
  %v440 = vunpack.c.h.b16 %v42
  %v441 = vunpack.c.l.b16 %v43
  %v442 = vunpack.c.h.b16 %v43
  %v443 = vunpack.c.l.b16 %v44
  %v444 = vunpack.c.h.b16 %v44
  %v445 = vunpack.c.l.b16 %v45
  %v446 = vunpack.c.h.b16 %v45
  %v447 = vunpack.c.l.b16 %v46
  %v448 = vunpack.c.h.b16 %v46
  %v449 = vunpack.c.l.b16 %v47
  %v450 = vunpack.c.h.b16 %v47
  %v451 = vunpack.c.l.b16 %v48
  %v452 = vunpack.c.h.b16 %v48
  %v453 = vunpack.c.l.b16 %v49
  %v454 = vunpack.c.h.b16 %v49
  %v455 = vunpack.c.l.b16 %v50
  %v456 = vunpack.c.h.b16 %v50
  %v457 = vunpack.c.l.b16 %v51
  %v458 = vunpack.c.h.b16 %v51
  %v459 = vunpack.c.l.b16 %v52
  %v460 = vunpack.c.h.b16 %v52
  %v461 = vpack.c.b16 %v407, %v389
  %v462 = vpack.c.b16 %v408, %v390
  %v463 = vpack.c.b16 %v409, %v391
  %v464 = vpack.c.b16 %v410, %v392
  %v465 = vpack.c.b16 %v411, %v393
  %v466 = vpack.c.b16 %v412, %v394
  %v467 = vpack.c.b16 %v413, %v395
  %v468 = vpack.c.b16 %v414, %v396
  %v469 = vpack.c.b16 %v415, %v397
  %v470 = vpack.c.b16 %v416, %v398
  %v471 = vpack.c.b16 %v417, %v399
  %v472 = vpack.c.b16 %v418, %v400
  %v473 = vpack.c.b16 %v419, %v401
  %v474 = vpack.c.b16 %v420, %v402
  %v475 = vpack.c.b16 %v421, %v403
  %v476 = vpack.c.b16 %v422, %v404
  %v477 = vpack.c.b16 %v423, %v405
  %v478 = vpack.c.b16 %v424, %v406
  %v479 = vpack.c.b16 %v443, %v425
  %v480 = vpack.c.b16 %v444, %v426
  %v481 = vpack.c.b16 %v445, %v427
  %v482 = vpack.c.b16 %v446, %v428
  %v483 = vpack.c.b16 %v447, %v429
  %v484 = vpack.c.b16 %v448, %v430
  %v485 = vpack.c.b16 %v449, %v431
  %v486 = vpack.c.b16 %v450, %v432
  %v487 = vpack.c.b16 %v451, %v433
  %v488 = vpack.c.b16 %v452, %v434
  %v489 = vpack.c.b16 %v453, %v435
  %v490 = vpack.c.b16 %v454, %v436
  %v491 = vpack.c.b16 %v455, %v437
  %v492 = vpack.c.b16 %v456, %v438
  %v493 = vpack.c.b16 %v457, %v439
  %v494 = vpack.c.b16 %v458, %v440
  %v495 = vpack.c.b16 %v459, %v441
  %v496 = vpack.c.b16 %v460, %v442
  %v821 = vunpack.c.l.b16 %v53
  %v822 = vunpack.c.h.b16 %v53
  %v823 = vunpack.c.l.b16 %v54
  %v824 = vunpack.c.h.b16 %v54
  %v825 = vunpack.c.l.b16 %v55
  %v826 = vunpack.c.h.b16 %v55
  %v827 = vunpack.c.l.b16 %v56
  %v828 = vunpack.c.h.b16 %v56
  %v829 = vunpack.c.l.b16 %v57
  %v830 = vunpack.c.h.b16 %v57
  %v831 = vunpack.c.l.b16 %v58
  %v832 = vunpack.c.h.b16 %v58
  %v833 = vunpack.c.l.b16 %v59
  %v834 = vunpack.c.h.b16 %v59
  %v835 = vunpack.c.l.b16 %v60
  %v836 = vunpack.c.h.b16 %v60
  %v837 = vunpack.c.l.b16 %v61
  %v838 = vunpack.c.h.b16 %v61
  %v839 = vunpack.c.l.b16 %v62
  %v840 = vunpack.c.h.b16 %v62
  %v841 = vunpack.c.l.b16 %v63
  %v842 = vunpack.c.h.b16 %v63
  %v843 = vunpack.c.l.b16 %v64
  %v844 = vunpack.c.h.b16 %v64
  %v845 = vunpack.c.l.b16 %v65
  %v846 = vunpack.c.h.b16 %v65
  %v847 = vunpack.c.l.b16 %v66
  %v848 = vunpack.c.h.b16 %v66
  %v849 = vunpack.c.l.b16 %v67
  %v850 = vunpack.c.h.b16 %v67
  %v851 = vunpack.c.l.b16 %v68
  %v852 = vunpack.c.h.b16 %v68
  %v853 = vunpack.c.l.b16 %v69
  %v854 = vunpack.c.h.b16 %v69
  %v855 = vunpack.c.l.b16 %v70
  %v856 = vunpack.c.h.b16 %v70
  %v857 = vunpack.c.l.b16 %v71
  %v858 = vunpack.c.h.b16 %v71
  %v859 = vunpack.c.l.b16 %v72
  %v860 = vunpack.c.h.b16 %v72
  %v861 = vunpack.c.l.b16 %v73
  %v862 = vunpack.c.h.b16 %v73
  %v863 = vunpack.c.l.b16 %v74
  %v864 = vunpack.c.h.b16 %v74
  %v865 = vunpack.c.l.b16 %v75
  %v866 = vunpack.c.h.b16 %v75
  %v867 = vunpack.c.l.b16 %v76
  %v868 = vunpack.c.h.b16 %v76
  %v869 = vunpack.c.l.b16 %v77
  %v870 = vunpack.c.h.b16 %v77
  %v871 = vunpack.c.l.b16 %v78
  %v872 = vunpack.c.h.b16 %v78
  %v873 = vunpack.c.l.b16 %v79
  %v874 = vunpack.c.h.b16 %v79
  %v875 = vunpack.c.l.b16 %v80
  %v876 = vunpack.c.h.b16 %v80
  %v877 = vunpack.c.l.b16 %v81
  %v878 = vunpack.c.h.b16 %v81
  %v879 = vunpack.c.l.b16 %v82
  %v880 = vunpack.c.h.b16 %v82
  %v881 = vunpack.c.l.b16 %v83
  %v882 = vunpack.c.h.b16 %v83
  %v883 = vunpack.c.l.b16 %v84
  %v884 = vunpack.c.h.b16 %v84
  %v885 = vunpack.c.l.b16 %v85
  %v886 = vunpack.c.h.b16 %v85
  %v887 = vunpack.c.l.b16 %v86
  %v888 = vunpack.c.h.b16 %v86
  %v889 = vunpack.c.l.b16 %v87
  %v890 = vunpack.c.h.b16 %v87
  %v891 = vunpack.c.l.b16 %v88
  %v892 = vunpack.c.h.b16 %v88
  %v893 = vunpack.c.l.b16 %v89
  %v894 = vunpack.c.h.b16 %v89
  %v895 = vunpack.c.l.b16 %v90
  %v896 = vunpack.c.h.b16 %v90
  %v897 = vunpack.c.l.b16 %v91
  %v898 = vunpack.c.h.b16 %v91
  %v899 = vunpack.c.l.b16 %v92
  %v900 = vunpack.c.h.b16 %v92
  %v901 = vunpack.c.l.b16 %v93
  %v902 = vunpack.c.h.b16 %v93
  %v903 = vunpack.c.l.b16 %v94
  %v904 = vunpack.c.h.b16 %v94
  %v905 = vunpack.c.l.b16 %v95
  %v906 = vunpack.c.h.b16 %v95
  %v907 = vunpack.c.l.b16 %v96
  %v908 = vunpack.c.h.b16 %v96
  %v909 = vunpack.c.l.b16 %v97
  %v910 = vunpack.c.h.b16 %v97
  %v911 = vunpack.c.l.b16 %v98
  %v912 = vunpack.c.h.b16 %v98
  %v913 = vunpack.c.l.b16 %v99
  %v914 = vunpack.c.h.b16 %v99
  %v915 = vunpack.c.l.b16 %v100
  %v916 = vunpack.c.h.b16 %v100
  %v917 = vunpack.c.l.b16 %v101
  %v918 = vunpack.c.h.b16 %v101
  %v919 = vunpack.c.l.b16 %v102
  %v920 = vunpack.c.h.b16 %v102
  %v921 = vunpack.c.l.b16 %v103
  %v922 = vunpack.c.h.b16 %v103
  %v923 = vunpack.c.l.b16 %v104
  %v924 = vunpack.c.h.b16 %v104
  %v925 = vunpack.c.l.b16 %v105
  %v926 = vunpack.c.h.b16 %v105
  %v927 = vunpack.c.l.b16 %v106
  %v928 = vunpack.c.h.b16 %v106
  %v929 = vunpack.c.l.b16 %v107
  %v930 = vunpack.c.h.b16 %v107
  %v931 = vunpack.c.l.b16 %v108
  %v932 = vunpack.c.h.b16 %v108
  %v933 = vunpack.c.l.b16 %v109
  %v934 = vunpack.c.h.b16 %v109
  %v935 = vunpack.c.l.b16 %v110
  %v936 = vunpack.c.h.b16 %v110
  %v937 = vunpack.c.l.b16 %v111
  %v938 = vunpack.c.h.b16 %v111
  %v939 = vunpack.c.l.b16 %v112
  %v940 = vunpack.c.h.b16 %v112
  %v941 = vunpack.c.l.b16 %v113
  %v942 = vunpack.c.h.b16 %v113
  %v943 = vunpack.c.l.b16 %v114
  %v944 = vunpack.c.h.b16 %v114
  %v945 = vunpack.c.l.b16 %v115
  %v946 = vunpack.c.h.b16 %v115
  %v947 = vunpack.c.l.b16 %v116
  %v948 = vunpack.c.h.b16 %v116
  %v949 = vunpack.c.l.b16 %v117
  %v950 = vunpack.c.h.b16 %v117
  %v951 = vunpack.c.l.b16 %v118
  %v952 = vunpack.c.h.b16 %v118
  %v953 = vunpack.c.l.b16 %v119
  %v954 = vunpack.c.h.b16 %v119
  %v955 = vunpack.c.l.b16 %v120
  %v956 = vunpack.c.h.b16 %v120
  %v957 = vunpack.c.l.b16 %v121
  %v958 = vunpack.c.h.b16 %v121
  %v959 = vunpack.c.l.b16 %v122
  %v960 = vunpack.c.h.b16 %v122
  %v961 = vunpack.c.l.b16 %v123
  %v962 = vunpack.c.h.b16 %v123
  %v963 = vunpack.c.l.b16 %v124
  %v964 = vunpack.c.h.b16 %v124
  %v965 = vunpack.c.l.b16 %v125
  %v966 = vunpack.c.h.b16 %v125
  %v967 = vunpack.c.l.b16 %v126
  %v968 = vunpack.c.h.b16 %v126
  %v969 = vunpack.c.l.b16 %v127
  %v970 = vunpack.c.h.b16 %v127
  %v971 = vunpack.c.l.b16 %v128
  %v972 = vunpack.c.h.b16 %v128
  %v973 = vunpack.c.l.b16 %v129
  %v974 = vunpack.c.h.b16 %v129
  %v975 = vunpack.c.l.b16 %v130
  %v976 = vunpack.c.h.b16 %v130
  %v977 = vunpack.c.l.b16 %v131
  %v978 = vunpack.c.h.b16 %v131
  %v979 = vunpack.c.l.b16 %v132
  %v980 = vunpack.c.h.b16 %v132
  %v981 = vunpack.c.l.b16 %v133
  %v982 = vunpack.c.h.b16 %v133
  %v983 = vunpack.c.l.b16 %v134
  %v984 = vunpack.c.h.b16 %v134
  %v985 = vunpack.c.l.b16 %v135
  %v986 = vunpack.c.h.b16 %v135
  %v987 = vunpack.c.l.b16 %v136
  %v988 = vunpack.c.h.b16 %v136
  %v989 = vunpack.c.l.b16 %v137
  %v990 = vunpack.c.h.b16 %v137
  %v991 = vunpack.c.l.b16 %v138
  %v992 = vunpack.c.h.b16 %v138
  %v993 = vunpack.c.l.b16 %v139
  %v994 = vunpack.c.h.b16 %v139
  %v995 = vunpack.c.l.b16 %v140
  %v996 = vunpack.c.h.b16 %v140
  %v997 = vunpack.c.l.b16 %v141
  %v998 = vunpack.c.h.b16 %v141
  %v999 = vunpack.c.l.b16 %v142
  %v1000 = vunpack.c.h.b16 %v142
  %v1001 = vunpack.c.l.b16 %v143
  %v1002 = vunpack.c.h.b16 %v143
  %v1003 = vunpack.c.l.b16 %v144
  %v1004 = vunpack.c.h.b16 %v144
  %v1005 = vunpack.c.l.b16 %v145
  %v1006 = vunpack.c.h.b16 %v145
  %v1007 = vunpack.c.l.b16 %v146
  %v1008 = vunpack.c.h.b16 %v146
  %v1009 = vunpack.c.l.b16 %v147
  %v1010 = vunpack.c.h.b16 %v147
  %v1011 = vunpack.c.l.b16 %v148
  %v1012 = vunpack.c.h.b16 %v148
  %v1013 = vunpack.c.l.b16 %v149
  %v1014 = vunpack.c.h.b16 %v149
  %v1015 = vunpack.c.l.b16 %v150
  %v1016 = vunpack.c.h.b16 %v150
  %v1017 = vunpack.c.l.b16 %v151
  %v1018 = vunpack.c.h.b16 %v151
  %v1019 = vunpack.c.l.b16 %v152
  %v1020 = vunpack.c.h.b16 %v152
  %v1021 = vunpack.c.l.b16 %v153
  %v1022 = vunpack.c.h.b16 %v153
  %v1023 = vunpack.c.l.b16 %v154
  %v1024 = vunpack.c.h.b16 %v154
  %v1025 = vunpack.c.l.b16 %v155
  %v1026 = vunpack.c.h.b16 %v155
  %v1027 = vunpack.c.l.b16 %v156
  %v1028 = vunpack.c.h.b16 %v156
  %v1029 = vunpack.c.l.b16 %v157
  %v1030 = vunpack.c.h.b16 %v157
  %v1031 = vunpack.c.l.b16 %v158
  %v1032 = vunpack.c.h.b16 %v158
  %v1033 = vunpack.c.l.b16 %v159
  %v1034 = vunpack.c.h.b16 %v159
  %v1035 = vunpack.c.l.b16 %v160
  %v1036 = vunpack.c.h.b16 %v160
  %v1037 = vunpack.c.l.b16 %v161
  %v1038 = vunpack.c.h.b16 %v161
  %v1039 = vunpack.c.l.b16 %v162
  %v1040 = vunpack.c.h.b16 %v162
  %v1041 = vunpack.c.l.b16 %v163
  %v1042 = vunpack.c.h.b16 %v163
  %v1043 = vunpack.c.l.b16 %v164
  %v1044 = vunpack.c.h.b16 %v164
  %v1045 = vunpack.c.l.b16 %v165
  %v1046 = vunpack.c.h.b16 %v165
  %v1047 = vunpack.c.l.b16 %v166
  %v1048 = vunpack.c.h.b16 %v166
  %v1049 = vunpack.c.l.b16 %v167
  %v1050 = vunpack.c.h.b16 %v167
  %v1051 = vunpack.c.l.b16 %v168
  %v1052 = vunpack.c.h.b16 %v168
  %v1053 = vunpack.c.l.b16 %v169
  %v1054 = vunpack.c.h.b16 %v169
  %v1055 = vunpack.c.l.b16 %v170
  %v1056 = vunpack.c.h.b16 %v170
  %v1057 = vunpack.c.l.b16 %v171
  %v1058 = vunpack.c.h.b16 %v171
  %v1059 = vunpack.c.l.b16 %v172
  %v1060 = vunpack.c.h.b16 %v172
  %v1061 = vunpack.c.l.b16 %v173
  %v1062 = vunpack.c.h.b16 %v173
  %v1063 = vunpack.c.l.b16 %v174
  %v1064 = vunpack.c.h.b16 %v174
  %v1065 = vunpack.c.l.b16 %v175
  %v1066 = vunpack.c.h.b16 %v175
  %v1067 = vunpack.c.l.b16 %v176
  %v1068 = vunpack.c.h.b16 %v176
  %v1069 = vunpack.c.l.b16 %v177
  %v1070 = vunpack.c.h.b16 %v177
  %v1071 = vunpack.c.l.b16 %v178
  %v1072 = vunpack.c.h.b16 %v178
  %v1073 = vunpack.c.l.b16 %v179
  %v1074 = vunpack.c.h.b16 %v179
  %v1075 = vunpack.c.l.b16 %v180
  %v1076 = vunpack.c.h.b16 %v180
  %v1077 = vunpack.c.l.b16 %v181
  %v1078 = vunpack.c.h.b16 %v181
  %v1079 = vunpack.c.l.b16 %v182
  %v1080 = vunpack.c.h.b16 %v182
  %v1081 = vunpack.c.l.b16 %v183
  %v1082 = vunpack.c.h.b16 %v183
  %v1083 = vunpack.c.l.b16 %v184
  %v1084 = vunpack.c.h.b16 %v184
  %v1085 = vunpack.c.l.b16 %v185
  %v1086 = vunpack.c.h.b16 %v185
  %v1087 = vunpack.c.l.b16 %v186
  %v1088 = vunpack.c.h.b16 %v186
  %v1089 = vunpack.c.l.b16 %v187
  %v1090 = vunpack.c.h.b16 %v187
  %v1091 = vunpack.c.l.b16 %v188
  %v1092 = vunpack.c.h.b16 %v188
  %v1093 = vunpack.c.l.b16 %v189
  %v1094 = vunpack.c.h.b16 %v189
  %v1095 = vunpack.c.l.b16 %v190
  %v1096 = vunpack.c.h.b16 %v190
  %v1097 = vunpack.c.l.b16 %v191
  %v1098 = vunpack.c.h.b16 %v191
  %v1099 = vunpack.c.l.b16 %v192
  %v1100 = vunpack.c.h.b16 %v192
  %v1101 = vunpack.c.l.b16 %v193
  %v1102 = vunpack.c.h.b16 %v193
  %v1103 = vunpack.c.l.b16 %v194
  %v1104 = vunpack.c.h.b16 %v194
  %v1105 = vunpack.c.l.b16 %v195
  %v1106 = vunpack.c.h.b16 %v195
  %v1107 = vunpack.c.l.b16 %v196
  %v1108 = vunpack.c.h.b16 %v196
  %v1109 = vunpack.c.l.b16 %v197
  %v1110 = vunpack.c.h.b16 %v197
  %v1111 = vunpack.c.l.b16 %v198
  %v1112 = vunpack.c.h.b16 %v198
  %v1113 = vunpack.c.l.b16 %v199
  %v1114 = vunpack.c.h.b16 %v199
  %v1115 = vunpack.c.l.b16 %v200
  %v1116 = vunpack.c.h.b16 %v200
  %v1117 = vunpack.c.l.b16 %v201
  %v1118 = vunpack.c.h.b16 %v201
  %v1119 = vunpack.c.l.b16 %v202
  %v1120 = vunpack.c.h.b16 %v202
  %v1121 = vunpack.c.l.b16 %v203
  %v1122 = vunpack.c.h.b16 %v203
  %v1123 = vunpack.c.l.b16 %v204
  %v1124 = vunpack.c.h.b16 %v204
  %v1125 = vunpack.c.l.b16 %v205
  %v1126 = vunpack.c.h.b16 %v205
  %v1127 = vunpack.c.l.b16 %v206
  %v1128 = vunpack.c.h.b16 %v206
  %v1129 = vunpack.c.l.b16 %v207
  %v1130 = vunpack.c.h.b16 %v207
  %v1131 = vunpack.c.l.b16 %v208
  %v1132 = vunpack.c.h.b16 %v208
  %v1133 = vunpack.c.l.b16 %v209
  %v1134 = vunpack.c.h.b16 %v209
  %v1135 = vunpack.c.l.b16 %v210
  %v1136 = vunpack.c.h.b16 %v210
  %v1137 = vunpack.c.l.b16 %v211
  %v1138 = vunpack.c.h.b16 %v211
  %v1139 = vunpack.c.l.b16 %v212
  %v1140 = vunpack.c.h.b16 %v212
  %v1141 = vunpack.c.l.b16 %v213
  %v1142 = vunpack.c.h.b16 %v213
  %v1143 = vunpack.c.l.b16 %v214
  %v1144 = vunpack.c.h.b16 %v214
  %v1145 = vunpack.c.l.b16 %v215
  %v1146 = vunpack.c.h.b16 %v215
  %v1147 = vunpack.c.l.b16 %v216
  %v1148 = vunpack.c.h.b16 %v216
  %v1149 = vunpack.c.l.b16 %v217
  %v1150 = vunpack.c.h.b16 %v217
  %v1151 = vunpack.c.l.b16 %v218
  %v1152 = vunpack.c.h.b16 %v218
  %v1153 = vunpack.c.l.b16 %v219
  %v1154 = vunpack.c.h.b16 %v219
  %v1155 = vunpack.c.l.b16 %v220
  %v1156 = vunpack.c.h.b16 %v220
  %v1157 = vunpack.c.l.b16 %v221
  %v1158 = vunpack.c.h.b16 %v221
  %v1159 = vunpack.c.l.b16 %v222
  %v1160 = vunpack.c.h.b16 %v222
  %v1161 = vunpack.c.l.b16 %v223
  %v1162 = vunpack.c.h.b16 %v223
  %v1163 = vunpack.c.l.b16 %v224
  %v1164 = vunpack.c.h.b16 %v224
  %v1165 = vunpack.c.l.b16 %v225
  %v1166 = vunpack.c.h.b16 %v225
  %v1167 = vunpack.c.l.b16 %v226
  %v1168 = vunpack.c.h.b16 %v226
  %v1169 = vunpack.c.l.b16 %v227
  %v1170 = vunpack.c.h.b16 %v227
  %v1171 = vunpack.c.l.b16 %v228
  %v1172 = vunpack.c.h.b16 %v228
  %v1173 = vunpack.c.l.b16 %v229
  %v1174 = vunpack.c.h.b16 %v229
  %v1175 = vunpack.c.l.b16 %v230
  %v1176 = vunpack.c.h.b16 %v230
  %v1177 = vunpack.c.l.b16 %v231
  %v1178 = vunpack.c.h.b16 %v231
  %v1179 = vunpack.c.l.b16 %v232
  %v1180 = vunpack.c.h.b16 %v232
  %v1181 = vunpack.c.l.b16 %v233
  %v1182 = vunpack.c.h.b16 %v233
  %v1183 = vunpack.c.l.b16 %v234
  %v1184 = vunpack.c.h.b16 %v234
  %v1185 = vunpack.c.l.b16 %v235
  %v1186 = vunpack.c.h.b16 %v235
  %v1187 = vunpack.c.l.b16 %v236
  %v1188 = vunpack.c.h.b16 %v236
  %v1189 = vunpack.c.l.b16 %v237
  %v1190 = vunpack.c.h.b16 %v237
  %v1191 = vunpack.c.l.b16 %v238
  %v1192 = vunpack.c.h.b16 %v238
  %v1193 = vunpack.c.l.b16 %v239
  %v1194 = vunpack.c.h.b16 %v239
  %v1195 = vunpack.c.l.b16 %v240
  %v1196 = vunpack.c.h.b16 %v240
  %v1197 = vunpack.c.l.b16 %v241
  %v1198 = vunpack.c.h.b16 %v241
  %v1199 = vunpack.c.l.b16 %v242
  %v1200 = vunpack.c.h.b16 %v242
  %v1201 = vunpack.c.l.b16 %v243
  %v1202 = vunpack.c.h.b16 %v243
  %v1203 = vunpack.c.l.b16 %v244
  %v1204 = vunpack.c.h.b16 %v244
  %v1205 = vunpack.c.l.b16 %v245
  %v1206 = vunpack.c.h.b16 %v245
  %v1207 = vunpack.c.l.b16 %v246
  %v1208 = vunpack.c.h.b16 %v246
  %v1209 = vunpack.c.l.b16 %v247
  %v1210 = vunpack.c.h.b16 %v247
  %v1211 = vunpack.c.l.b16 %v248
  %v1212 = vunpack.c.h.b16 %v248
  %v1213 = vunpack.c.l.b16 %v249
  %v1214 = vunpack.c.h.b16 %v249
  %v1215 = vunpack.c.l.b16 %v250
  %v1216 = vunpack.c.h.b16 %v250
  %v1217 = vunpack.c.l.b16 %v251
  %v1218 = vunpack.c.h.b16 %v251
  %v1219 = vunpack.c.l.b16 %v252
  %v1220 = vunpack.c.h.b16 %v252
  %v1221 = vunpack.c.l.b16 %v253
  %v1222 = vunpack.c.h.b16 %v253
  %v1223 = vunpack.c.l.b16 %v254
  %v1224 = vunpack.c.h.b16 %v254
  %v1225 = vunpack.c.l.b16 %v255
  %v1226 = vunpack.c.h.b16 %v255
  %v1227 = vunpack.c.l.b16 %v256
  %v1228 = vunpack.c.h.b16 %v256
  %v1229 = vunpack.c.l.b16 %v257
  %v1230 = vunpack.c.h.b16 %v257
  %v1231 = vunpack.c.l.b16 %v258
  %v1232 = vunpack.c.h.b16 %v258
  %v1233 = vunpack.c.l.b16 %v259
  %v1234 = vunpack.c.h.b16 %v259
  %v1235 = vunpack.c.l.b16 %v260
  %v1236 = vunpack.c.h.b16 %v260
  %v1237 = vunpack.c.l.b16 %v261
  %v1238 = vunpack.c.h.b16 %v261
  %v1239 = vunpack.c.l.b16 %v262
  %v1240 = vunpack.c.h.b16 %v262
  %v1241 = vunpack.c.l.b16 %v263
  %v1242 = vunpack.c.h.b16 %v263
  %v1243 = vunpack.c.l.b16 %v264
  %v1244 = vunpack.c.h.b16 %v264
  %v1245 = vunpack.c.l.b16 %v265
  %v1246 = vunpack.c.h.b16 %v265
  %v1247 = vunpack.c.l.b16 %v266
  %v1248 = vunpack.c.h.b16 %v266
  %v1249 = vunpack.c.l.b16 %v267
  %v1250 = vunpack.c.h.b16 %v267
  %v1251 = vunpack.c.l.b16 %v268
  %v1252 = vunpack.c.h.b16 %v268
  %v1253 = vunpack.c.l.b16 %v269
  %v1254 = vunpack.c.h.b16 %v269
  %v1255 = vunpack.c.l.b16 %v270
  %v1256 = vunpack.c.h.b16 %v270
  %v1257 = vunpack.c.l.b16 %v271
  %v1258 = vunpack.c.h.b16 %v271
  %v1259 = vunpack.c.l.b16 %v272
  %v1260 = vunpack.c.h.b16 %v272
  %v1261 = vunpack.c.l.b16 %v273
  %v1262 = vunpack.c.h.b16 %v273
  %v1263 = vunpack.c.l.b16 %v274
  %v1264 = vunpack.c.h.b16 %v274
  %v1265 = vunpack.c.l.b16 %v275
  %v1266 = vunpack.c.h.b16 %v275
  %v1267 = vunpack.c.l.b16 %v276
  %v1268 = vunpack.c.h.b16 %v276
  %v1269 = vunpack.c.l.b16 %v277
  %v1270 = vunpack.c.h.b16 %v277
  %v1271 = vunpack.c.l.b16 %v278
  %v1272 = vunpack.c.h.b16 %v278
  %v1273 = vunpack.c.l.b16 %v279
  %v1274 = vunpack.c.h.b16 %v279
  %v1275 = vunpack.c.l.b16 %v280
  %v1276 = vunpack.c.h.b16 %v280
  %v1277 = vunpack.c.l.b16 %v281
  %v1278 = vunpack.c.h.b16 %v281
  %v1279 = vunpack.c.l.b16 %v282
  %v1280 = vunpack.c.h.b16 %v282
  %v1281 = vunpack.c.l.b16 %v283
  %v1282 = vunpack.c.h.b16 %v283
  %v1283 = vunpack.c.l.b16 %v284
  %v1284 = vunpack.c.h.b16 %v284
  %v1285 = vunpack.c.l.b16 %v285
  %v1286 = vunpack.c.h.b16 %v285
  %v1287 = vunpack.c.l.b16 %v286
  %v1288 = vunpack.c.h.b16 %v286
  %v1289 = vunpack.c.l.b16 %v287
  %v1290 = vunpack.c.h.b16 %v287
  %v1291 = vunpack.c.l.b16 %v288
  %v1292 = vunpack.c.h.b16 %v288
  %v1293 = vunpack.c.l.b16 %v289
  %v1294 = vunpack.c.h.b16 %v289
  %v1295 = vunpack.c.l.b16 %v290
  %v1296 = vunpack.c.h.b16 %v290
  %v1297 = vunpack.c.l.b16 %v291
  %v1298 = vunpack.c.h.b16 %v291
  %v1299 = vunpack.c.l.b16 %v292
  %v1300 = vunpack.c.h.b16 %v292
  %v1301 = vunpack.c.l.b16 %v293
  %v1302 = vunpack.c.h.b16 %v293
  %v1303 = vunpack.c.l.b16 %v294
  %v1304 = vunpack.c.h.b16 %v294
  %v1305 = vunpack.c.l.b16 %v295
  %v1306 = vunpack.c.h.b16 %v295
  %v1307 = vunpack.c.l.b16 %v296
  %v1308 = vunpack.c.h.b16 %v296
  %v1309 = vunpack.c.l.b16 %v297
  %v1310 = vunpack.c.h.b16 %v297
  %v1311 = vunpack.c.l.b16 %v298
  %v1312 = vunpack.c.h.b16 %v298
  %v1313 = vunpack.c.l.b16 %v299
  %v1314 = vunpack.c.h.b16 %v299
  %v1315 = vunpack.c.l.b16 %v300
  %v1316 = vunpack.c.h.b16 %v300
  %v1317 = vunpack.c.l.b16 %v301
  %v1318 = vunpack.c.h.b16 %v301
  %v1319 = vunpack.c.l.b16 %v302
  %v1320 = vunpack.c.h.b16 %v302
  %v1321 = vunpack.c.l.b16 %v303
  %v1322 = vunpack.c.h.b16 %v303
  %v1323 = vunpack.c.l.b16 %v304
  %v1324 = vunpack.c.h.b16 %v304
  %v1325 = vunpack.c.l.b16 %v305
  %v1326 = vunpack.c.h.b16 %v305
  %v1327 = vunpack.c.l.b16 %v306
  %v1328 = vunpack.c.h.b16 %v306
  %v1329 = vunpack.c.l.b16 %v307
  %v1330 = vunpack.c.h.b16 %v307
  %v1331 = vunpack.c.l.b16 %v308
  %v1332 = vunpack.c.h.b16 %v308
  %v1333 = vunpack.c.l.b16 %v309
  %v1334 = vunpack.c.h.b16 %v309
  %v1335 = vunpack.c.l.b16 %v310
  %v1336 = vunpack.c.h.b16 %v310
  %v1337 = vunpack.c.l.b16 %v311
  %v1338 = vunpack.c.h.b16 %v311
  %v1339 = vunpack.c.l.b16 %v312
  %v1340 = vunpack.c.h.b16 %v312
  %v1341 = vunpack.c.l.b16 %v313
  %v1342 = vunpack.c.h.b16 %v313
  %v1343 = vunpack.c.l.b16 %v314
  %v1344 = vunpack.c.h.b16 %v314
  %v1345 = vunpack.c.l.b16 %v315
  %v1346 = vunpack.c.h.b16 %v315
  %v1347 = vunpack.c.l.b16 %v316
  %v1348 = vunpack.c.h.b16 %v316
  %v1349 = vunpack.c.l.b16 %v317
  %v1350 = vunpack.c.h.b16 %v317
  %v1351 = vunpack.c.l.b16 %v318
  %v1352 = vunpack.c.h.b16 %v318
  %v1353 = vunpack.c.l.b16 %v319
  %v1354 = vunpack.c.h.b16 %v319
  %v1355 = vunpack.c.l.b16 %v320
  %v1356 = vunpack.c.h.b16 %v320
  %v1357 = vunpack.c.l.b16 %v321
  %v1358 = vunpack.c.h.b16 %v321
  %v1359 = vunpack.c.l.b16 %v322
  %v1360 = vunpack.c.h.b16 %v322
  %v1361 = vunpack.c.l.b16 %v323
  %v1362 = vunpack.c.h.b16 %v323
  %v1363 = vunpack.c.l.b16 %v324
  %v1364 = vunpack.c.h.b16 %v324
  %v1365 = vunpack.c.l.b16 %v325
  %v1366 = vunpack.c.h.b16 %v325
  %v1367 = vunpack.c.l.b16 %v326
  %v1368 = vunpack.c.h.b16 %v326
  %v1369 = vunpack.c.l.b16 %v327
  %v1370 = vunpack.c.h.b16 %v327
  %v1371 = vunpack.c.l.b16 %v328
  %v1372 = vunpack.c.h.b16 %v328
  %v1373 = vunpack.c.l.b16 %v329
  %v1374 = vunpack.c.h.b16 %v329
  %v1375 = vunpack.c.l.b16 %v330
  %v1376 = vunpack.c.h.b16 %v330
  %v1377 = vunpack.c.l.b16 %v331
  %v1378 = vunpack.c.h.b16 %v331
  %v1379 = vunpack.c.l.b16 %v332
  %v1380 = vunpack.c.h.b16 %v332
  %v1381 = vunpack.c.l.b16 %v333
  %v1382 = vunpack.c.h.b16 %v333
  %v1383 = vunpack.c.l.b16 %v334
  %v1384 = vunpack.c.h.b16 %v334
  %v1385 = vunpack.c.l.b16 %v335
  %v1386 = vunpack.c.h.b16 %v335
  %v1387 = vunpack.c.l.b16 %v336
  %v1388 = vunpack.c.h.b16 %v336
  %v1389 = vunpack.c.l.b16 %v337
  %v1390 = vunpack.c.h.b16 %v337
  %v1391 = vunpack.c.l.b16 %v338
  %v1392 = vunpack.c.h.b16 %v338
  %v1393 = vunpack.c.l.b16 %v339
  %v1394 = vunpack.c.h.b16 %v339
  %v1395 = vunpack.c.l.b16 %v340
  %v1396 = vunpack.c.h.b16 %v340
  %v1397 = vpack.c.b16 %v823, %v821
  %v1398 = vpack.c.b16 %v824, %v822
  %v1399 = vpack.c.b16 %v827, %v825
  %v1400 = vpack.c.b16 %v828, %v826
  %v1401 = vpack.c.b16 %v831, %v829
  %v1402 = vpack.c.b16 %v832, %v830
  %v1403 = vpack.c.b16 %v835, %v833
  %v1404 = vpack.c.b16 %v836, %v834
  %v1405 = vpack.c.b16 %v839, %v837
  %v1406 = vpack.c.b16 %v840, %v838
  %v1407 = vpack.c.b16 %v843, %v841
  %v1408 = vpack.c.b16 %v844, %v842
  %v1409 = vpack.c.b16 %v847, %v845
  %v1410 = vpack.c.b16 %v848, %v846
  %v1411 = vpack.c.b16 %v851, %v849
  %v1412 = vpack.c.b16 %v852, %v850
  %v1413 = vpack.c.b16 %v855, %v853
  %v1414 = vpack.c.b16 %v856, %v854
  %v1415 = vpack.c.b16 %v859, %v857
  %v1416 = vpack.c.b16 %v860, %v858
  %v1417 = vpack.c.b16 %v863, %v861
  %v1418 = vpack.c.b16 %v864, %v862
  %v1419 = vpack.c.b16 %v867, %v865
  %v1420 = vpack.c.b16 %v868, %v866
  %v1421 = vpack.c.b16 %v871, %v869
  %v1422 = vpack.c.b16 %v872, %v870
  %v1423 = vpack.c.b16 %v875, %v873
  %v1424 = vpack.c.b16 %v876, %v874
  %v1425 = vpack.c.b16 %v879, %v877
  %v1426 = vpack.c.b16 %v880, %v878
  %v1427 = vpack.c.b16 %v883, %v881
  %v1428 = vpack.c.b16 %v884, %v882
  %v1429 = vpack.c.b16 %v887, %v885
  %v1430 = vpack.c.b16 %v888, %v886
  %v1431 = vpack.c.b16 %v891, %v889
  %v1432 = vpack.c.b16 %v892, %v890
  %v1433 = vpack.c.b16 %v895, %v893
  %v1434 = vpack.c.b16 %v896, %v894
  %v1435 = vpack.c.b16 %v899, %v897
  %v1436 = vpack.c.b16 %v900, %v898
  %v1437 = vpack.c.b16 %v903, %v901
  %v1438 = vpack.c.b16 %v904, %v902
  %v1439 = vpack.c.b16 %v907, %v905
  %v1440 = vpack.c.b16 %v908, %v906
  %v1441 = vpack.c.b16 %v911, %v909
  %v1442 = vpack.c.b16 %v912, %v910
  %v1443 = vpack.c.b16 %v915, %v913
  %v1444 = vpack.c.b16 %v916, %v914
  %v1445 = vpack.c.b16 %v919, %v917
  %v1446 = vpack.c.b16 %v920, %v918
  %v1447 = vpack.c.b16 %v923, %v921
  %v1448 = vpack.c.b16 %v924, %v922
  %v1449 = vpack.c.b16 %v927, %v925
  %v1450 = vpack.c.b16 %v928, %v926
  %v1451 = vpack.c.b16 %v931, %v929
  %v1452 = vpack.c.b16 %v932, %v930
  %v1453 = vpack.c.b16 %v935, %v933
  %v1454 = vpack.c.b16 %v936, %v934
  %v1455 = vpack.c.b16 %v939, %v937
  %v1456 = vpack.c.b16 %v940, %v938
  %v1457 = vpack.c.b16 %v943, %v941
  %v1458 = vpack.c.b16 %v944, %v942
  %v1459 = vpack.c.b16 %v947, %v945
  %v1460 = vpack.c.b16 %v948, %v946
  %v1461 = vpack.c.b16 %v951, %v949
  %v1462 = vpack.c.b16 %v952, %v950
  %v1463 = vpack.c.b16 %v955, %v953
  %v1464 = vpack.c.b16 %v956, %v954
  %v1465 = vpack.c.b16 %v959, %v957
  %v1466 = vpack.c.b16 %v960, %v958
  %v1467 = vpack.c.b16 %v963, %v961
  %v1468 = vpack.c.b16 %v964, %v962
  %v1469 = vpack.c.b16 %v967, %v965
  %v1470 = vpack.c.b16 %v968, %v966
  %v1471 = vpack.c.b16 %v971, %v969
  %v1472 = vpack.c.b16 %v972, %v970
  %v1473 = vpack.c.b16 %v975, %v973
  %v1474 = vpack.c.b16 %v976, %v974
  %v1475 = vpack.c.b16 %v979, %v977
  %v1476 = vpack.c.b16 %v980, %v978
  %v1477 = vpack.c.b16 %v983, %v981
  %v1478 = vpack.c.b16 %v984, %v982
  %v1479 = vpack.c.b16 %v987, %v985
  %v1480 = vpack.c.b16 %v988, %v986
  %v1481 = vpack.c.b16 %v991, %v989
  %v1482 = vpack.c.b16 %v992, %v990
  %v1483 = vpack.c.b16 %v995, %v993
  %v1484 = vpack.c.b16 %v996, %v994
  %v1485 = vpack.c.b16 %v999, %v997
  %v1486 = vpack.c.b16 %v1000, %v998
  %v1487 = vpack.c.b16 %v1003, %v1001
  %v1488 = vpack.c.b16 %v1004, %v1002
  %v1489 = vpack.c.b16 %v1007, %v1005
  %v1490 = vpack.c.b16 %v1008, %v1006
  %v1491 = vpack.c.b16 %v1011, %v1009
  %v1492 = vpack.c.b16 %v1012, %v1010
  %v1493 = vpack.c.b16 %v1015, %v1013
  %v1494 = vpack.c.b16 %v1016, %v1014
  %v1495 = vpack.c.b16 %v1019, %v1017
  %v1496 = vpack.c.b16 %v1020, %v1018
  %v1497 = vpack.c.b16 %v1023, %v1021
  %v1498 = vpack.c.b16 %v1024, %v1022
  %v1499 = vpack.c.b16 %v1027, %v1025
  %v1500 = vpack.c.b16 %v1028, %v1026
  %v1501 = vpack.c.b16 %v1031, %v1029
  %v1502 = vpack.c.b16 %v1032, %v1030
  %v1503 = vpack.c.b16 %v1035, %v1033
  %v1504 = vpack.c.b16 %v1036, %v1034
  %v1505 = vpack.c.b16 %v1039, %v1037
  %v1506 = vpack.c.b16 %v1040, %v1038
  %v1507 = vpack.c.b16 %v1043, %v1041
  %v1508 = vpack.c.b16 %v1044, %v1042
  %v1509 = vpack.c.b16 %v1047, %v1045
  %v1510 = vpack.c.b16 %v1048, %v1046
  %v1511 = vpack.c.b16 %v1051, %v1049
  %v1512 = vpack.c.b16 %v1052, %v1050
  %v1513 = vpack.c.b16 %v1055, %v1053
  %v1514 = vpack.c.b16 %v1056, %v1054
  %v1515 = vpack.c.b16 %v1059, %v1057
  %v1516 = vpack.c.b16 %v1060, %v1058
  %v1517 = vpack.c.b16 %v1063, %v1061
  %v1518 = vpack.c.b16 %v1064, %v1062
  %v1519 = vpack.c.b16 %v1067, %v1065
  %v1520 = vpack.c.b16 %v1068, %v1066
  %v1521 = vpack.c.b16 %v1071, %v1069
  %v1522 = vpack.c.b16 %v1072, %v1070
  %v1523 = vpack.c.b16 %v1075, %v1073
  %v1524 = vpack.c.b16 %v1076, %v1074
  %v1525 = vpack.c.b16 %v1079, %v1077
  %v1526 = vpack.c.b16 %v1080, %v1078
  %v1527 = vpack.c.b16 %v1083, %v1081
  %v1528 = vpack.c.b16 %v1084, %v1082
  %v1529 = vpack.c.b16 %v1087, %v1085
  %v1530 = vpack.c.b16 %v1088, %v1086
  %v1531 = vpack.c.b16 %v1091, %v1089
  %v1532 = vpack.c.b16 %v1092, %v1090
  %v1533 = vpack.c.b16 %v1095, %v1093
  %v1534 = vpack.c.b16 %v1096, %v1094
  %v1535 = vpack.c.b16 %v1099, %v1097
  %v1536 = vpack.c.b16 %v1100, %v1098
  %v1537 = vpack.c.b16 %v1103, %v1101
  %v1538 = vpack.c.b16 %v1104, %v1102
  %v1539 = vpack.c.b16 %v1107, %v1105
  %v1540 = vpack.c.b16 %v1108, %v1106
  %v1541 = vpack.c.b16 %v1111, %v1109
  %v1542 = vpack.c.b16 %v1112, %v1110
  %v1543 = vpack.c.b16 %v1115, %v1113
  %v1544 = vpack.c.b16 %v1116, %v1114
  %v1545 = vpack.c.b16 %v1119, %v1117
  %v1546 = vpack.c.b16 %v1120, %v1118
  %v1547 = vpack.c.b16 %v1123, %v1121
  %v1548 = vpack.c.b16 %v1124, %v1122
  %v1549 = vpack.c.b16 %v1127, %v1125
  %v1550 = vpack.c.b16 %v1128, %v1126
  %v1551 = vpack.c.b16 %v1131, %v1129
  %v1552 = vpack.c.b16 %v1132, %v1130
  %v1553 = vpack.c.b16 %v1135, %v1133
  %v1554 = vpack.c.b16 %v1136, %v1134
  %v1555 = vpack.c.b16 %v1139, %v1137
  %v1556 = vpack.c.b16 %v1140, %v1138
  %v1557 = vpack.c.b16 %v1143, %v1141
  %v1558 = vpack.c.b16 %v1144, %v1142
  %v1559 = vpack.c.b16 %v1147, %v1145
  %v1560 = vpack.c.b16 %v1148, %v1146
  %v1561 = vpack.c.b16 %v1151, %v1149
  %v1562 = vpack.c.b16 %v1152, %v1150
  %v1563 = vpack.c.b16 %v1155, %v1153
  %v1564 = vpack.c.b16 %v1156, %v1154
  %v1565 = vpack.c.b16 %v1159, %v1157
  %v1566 = vpack.c.b16 %v1160, %v1158
  %v1567 = vpack.c.b16 %v1163, %v1161
  %v1568 = vpack.c.b16 %v1164, %v1162
  %v1569 = vpack.c.b16 %v1167, %v1165
  %v1570 = vpack.c.b16 %v1168, %v1166
  %v1571 = vpack.c.b16 %v1171, %v1169
  %v1572 = vpack.c.b16 %v1172, %v1170
  %v1573 = vpack.c.b16 %v1175, %v1173
  %v1574 = vpack.c.b16 %v1176, %v1174
  %v1575 = vpack.c.b16 %v1179, %v1177
  %v1576 = vpack.c.b16 %v1180, %v1178
  %v1577 = vpack.c.b16 %v1183, %v1181
  %v1578 = vpack.c.b16 %v1184, %v1182
  %v1579 = vpack.c.b16 %v1187, %v1185
  %v1580 = vpack.c.b16 %v1188, %v1186
  %v1581 = vpack.c.b16 %v1191, %v1189
  %v1582 = vpack.c.b16 %v1192, %v1190
  %v1583 = vpack.c.b16 %v1195, %v1193
  %v1584 = vpack.c.b16 %v1196, %v1194
  %v1585 = vpack.c.b16 %v1199, %v1197
  %v1586 = vpack.c.b16 %v1200, %v1198
  %v1587 = vpack.c.b16 %v1203, %v1201
  %v1588 = vpack.c.b16 %v1204, %v1202
  %v1589 = vpack.c.b16 %v1207, %v1205
  %v1590 = vpack.c.b16 %v1208, %v1206
  %v1591 = vpack.c.b16 %v1211, %v1209
  %v1592 = vpack.c.b16 %v1212, %v1210
  %v1593 = vpack.c.b16 %v1215, %v1213
  %v1594 = vpack.c.b16 %v1216, %v1214
  %v1595 = vpack.c.b16 %v1219, %v1217
  %v1596 = vpack.c.b16 %v1220, %v1218
  %v1597 = vpack.c.b16 %v1223, %v1221
  %v1598 = vpack.c.b16 %v1224, %v1222
  %v1599 = vpack.c.b16 %v1227, %v1225
  %v1600 = vpack.c.b16 %v1228, %v1226
  %v1601 = vpack.c.b16 %v1231, %v1229
  %v1602 = vpack.c.b16 %v1232, %v1230
  %v1603 = vpack.c.b16 %v1235, %v1233
  %v1604 = vpack.c.b16 %v1236, %v1234
  %v1605 = vpack.c.b16 %v1239, %v1237
  %v1606 = vpack.c.b16 %v1240, %v1238
  %v1607 = vpack.c.b16 %v1243, %v1241
  %v1608 = vpack.c.b16 %v1244, %v1242
  %v1609 = vpack.c.b16 %v1247, %v1245
  %v1610 = vpack.c.b16 %v1248, %v1246
  %v1611 = vpack.c.b16 %v1251, %v1249
  %v1612 = vpack.c.b16 %v1252, %v1250
  %v1613 = vpack.c.b16 %v1255, %v1253
  %v1614 = vpack.c.b16 %v1256, %v1254
  %v1615 = vpack.c.b16 %v1259, %v1257
  %v1616 = vpack.c.b16 %v1260, %v1258
  %v1617 = vpack.c.b16 %v1263, %v1261
  %v1618 = vpack.c.b16 %v1264, %v1262
  %v1619 = vpack.c.b16 %v1267, %v1265
  %v1620 = vpack.c.b16 %v1268, %v1266
  %v1621 = vpack.c.b16 %v1271, %v1269
  %v1622 = vpack.c.b16 %v1272, %v1270
  %v1623 = vpack.c.b16 %v1275, %v1273
  %v1624 = vpack.c.b16 %v1276, %v1274
  %v1625 = vpack.c.b16 %v1279, %v1277
  %v1626 = vpack.c.b16 %v1280, %v1278
  %v1627 = vpack.c.b16 %v1283, %v1281
  %v1628 = vpack.c.b16 %v1284, %v1282
  %v1629 = vpack.c.b16 %v1287, %v1285
  %v1630 = vpack.c.b16 %v1288, %v1286
  %v1631 = vpack.c.b16 %v1291, %v1289
  %v1632 = vpack.c.b16 %v1292, %v1290
  %v1633 = vpack.c.b16 %v1295, %v1293
  %v1634 = vpack.c.b16 %v1296, %v1294
  %v1635 = vpack.c.b16 %v1299, %v1297
  %v1636 = vpack.c.b16 %v1300, %v1298
  %v1637 = vpack.c.b16 %v1303, %v1301
  %v1638 = vpack.c.b16 %v1304, %v1302
  %v1639 = vpack.c.b16 %v1307, %v1305
  %v1640 = vpack.c.b16 %v1308, %v1306
  %v1641 = vpack.c.b16 %v1311, %v1309
  %v1642 = vpack.c.b16 %v1312, %v1310
  %v1643 = vpack.c.b16 %v1315, %v1313
  %v1644 = vpack.c.b16 %v1316, %v1314
  %v1645 = vpack.c.b16 %v1319, %v1317
  %v1646 = vpack.c.b16 %v1320, %v1318
  %v1647 = vpack.c.b16 %v1323, %v1321
  %v1648 = vpack.c.b16 %v1324, %v1322
  %v1649 = vpack.c.b16 %v1327, %v1325
  %v1650 = vpack.c.b16 %v1328, %v1326
  %v1651 = vpack.c.b16 %v1331, %v1329
  %v1652 = vpack.c.b16 %v1332, %v1330
  %v1653 = vpack.c.b16 %v1335, %v1333
  %v1654 = vpack.c.b16 %v1336, %v1334
  %v1655 = vpack.c.b16 %v1339, %v1337
  %v1656 = vpack.c.b16 %v1340, %v1338
  %v1657 = vpack.c.b16 %v1343, %v1341
  %v1658 = vpack.c.b16 %v1344, %v1342
  %v1659 = vpack.c.b16 %v1347, %v1345
  %v1660 = vpack.c.b16 %v1348, %v1346
  %v1661 = vpack.c.b16 %v1351, %v1349
  %v1662 = vpack.c.b16 %v1352, %v1350
  %v1663 = vpack.c.b16 %v1355, %v1353
  %v1664 = vpack.c.b16 %v1356, %v1354
  %v1665 = vpack.c.b16 %v1359, %v1357
  %v1666 = vpack.c.b16 %v1360, %v1358
  %v1667 = vpack.c.b16 %v1363, %v1361
  %v1668 = vpack.c.b16 %v1364, %v1362
  %v1669 = vpack.c.b16 %v1367, %v1365
  %v1670 = vpack.c.b16 %v1368, %v1366
  %v1671 = vpack.c.b16 %v1371, %v1369
  %v1672 = vpack.c.b16 %v1372, %v1370
  %v1673 = vpack.c.b16 %v1375, %v1373
  %v1674 = vpack.c.b16 %v1376, %v1374
  %v1675 = vpack.c.b16 %v1379, %v1377
  %v1676 = vpack.c.b16 %v1380, %v1378
  %v1677 = vpack.c.b16 %v1383, %v1381
  %v1678 = vpack.c.b16 %v1384, %v1382
  %v1679 = vpack.c.b16 %v1387, %v1385
  %v1680 = vpack.c.b16 %v1388, %v1386
  %v1681 = vpack.c.b16 %v1391, %v1389
  %v1682 = vpack.c.b16 %v1392, %v1390
  %v1683 = vpack.c.b16 %v1395, %v1393
  %v1684 = vpack.c.b16 %v1396, %v1394
  %1973 = vmatprep.subr.bf16.mxu0 %v1398
  %1974 = vmatpush1.bf16.msra.mxu0 %v1397
  %1975 = vmatprep.subr.bf16.mxu0 %v1400
  %1976 = vmatpush1.bf16.msra.mxu0 %v1399
  %1977 = vmatprep.subr.bf16.mxu0 %v1402
  %1978 = vmatpush1.bf16.msra.mxu0 %v1401
  %1979 = vmatprep.subr.bf16.mxu0 %v1404
  %1980 = vmatpush1.bf16.msra.mxu0 %v1403
  %1981 = vmatprep.subr.bf16.mxu0 %v1406
  %1982 = vmatpush1.bf16.msra.mxu0 %v1405
  %1983 = vmatprep.subr.bf16.mxu0 %v1408
  %1984 = vmatpush1.bf16.msra.mxu0 %v1407
  %1985 = vmatprep.subr.bf16.mxu0 %v1410
  %1986 = vmatpush1.bf16.msra.mxu0 %v1409
  %1987 = vmatprep.subr.bf16.mxu0 %v1412
  %1988 = vmatpush1.bf16.msra.mxu0 %v1411
  %1989 = vmatprep.subr.bf16.mxu0 %v1414
  %1990 = vmatpush1.bf16.msra.mxu0 %v1413
  %1991 = vmatprep.subr.bf16.mxu0 %v1416
  %1992 = vmatpush1.bf16.msra.mxu0 %v1415
  %1993 = vmatprep.subr.bf16.mxu0 %v1418
  %1994 = vmatpush1.bf16.msra.mxu0 %v1417
  %1995 = vmatprep.subr.bf16.mxu0 %v1420
  %1996 = vmatpush1.bf16.msra.mxu0 %v1419
  %1997 = vmatprep.subr.bf16.mxu0 %v1422
  %1998 = vmatpush1.bf16.msra.mxu0 %v1421
  %1999 = vmatprep.subr.bf16.mxu0 %v1424
  %2000 = vmatpush1.bf16.msra.mxu0 %v1423
  %2001 = vmatprep.subr.bf16.mxu0 %v1426
  %2002 = vmatpush1.bf16.msra.mxu0 %v1425
  %2003 = vmatprep.subr.bf16.mxu0 %v1428
  %2004 = vmatpush1.bf16.msra.mxu0 %v1427
  %2005 = vmatprep.mubr.bf16.mxu0 %v462
  %2006 = vmatmul.mubr.bf16.gmra.mrb[0].mxu0 %v461
  %v2007 = vpop.f32.mrb[0].mxu0
  %v2008 = vadd.f32 %v346, %v2007
  %v2009 = vpop.f32.mrb[0].mxu0
  %v2010 = vadd.f32 %v350, %v2009
  %v2011 = vpop.f32.mrb[0].mxu0
  %v2012 = vadd.f32 %v346, %v2011
  %v2013 = vpop.f32.mrb[0].mxu0
  %v2014 = vadd.f32 %v350, %v2013
  %2015 = vmatprep.mubr.bf16.mxu0 %v480
  %2016 = vmatmul.mubr.bf16.gmra.mrb[0].mxu0 %v479
  %v2017 = vpop.f32.mrb[0].mxu0
  %v2018 = vadd.f32 %v346, %v2017
  %v2019 = vpop.f32.mrb[0].mxu0
  %v2020 = vadd.f32 %v350, %v2019
  %v2021 = vpop.f32.mrb[0].mxu0
  %v2022 = vadd.f32 %v346, %v2021
  %v2023 = vpop.f32.mrb[0].mxu0
  %v2024 = vadd.f32 %v350, %v2023
  %2025 = vdwg.mxu0
  %2026 = vmatprep.subr.bf16.mxu0 %v1430
  %2027 = vmatpush1.bf16.msra.mxu0 %v1429
  %2028 = vmatprep.subr.bf16.mxu0 %v1432
  %2029 = vmatpush1.bf16.msra.mxu0 %v1431
  %2030 = vmatprep.subr.bf16.mxu0 %v1434
  %2031 = vmatpush1.bf16.msra.mxu0 %v1433
  %2032 = vmatprep.subr.bf16.mxu0 %v1436
  %2033 = vmatpush1.bf16.msra.mxu0 %v1435
  %2034 = vmatprep.subr.bf16.mxu0 %v1438
  %2035 = vmatpush1.bf16.msra.mxu0 %v1437
  %2036 = vmatprep.subr.bf16.mxu0 %v1440
  %2037 = vmatpush1.bf16.msra.mxu0 %v1439
  %2038 = vmatprep.subr.bf16.mxu0 %v1442
  %2039 = vmatpush1.bf16.msra.mxu0 %v1441
  %2040 = vmatprep.subr.bf16.mxu0 %v1444
  %2041 = vmatpush1.bf16.msra.mxu0 %v1443
  %2042 = vmatprep.subr.bf16.mxu0 %v1446
  %2043 = vmatpush1.bf16.msra.mxu0 %v1445
  %2044 = vmatprep.subr.bf16.mxu0 %v1448
  %2045 = vmatpush1.bf16.msra.mxu0 %v1447
  %2046 = vmatprep.subr.bf16.mxu0 %v1450
  %2047 = vmatpush1.bf16.msra.mxu0 %v1449
  %2048 = vmatprep.subr.bf16.mxu0 %v1452
  %2049 = vmatpush1.bf16.msra.mxu0 %v1451
  %2050 = vmatprep.subr.bf16.mxu0 %v1454
  %2051 = vmatpush1.bf16.msra.mxu0 %v1453
  %2052 = vmatprep.subr.bf16.mxu0 %v1456
  %2053 = vmatpush1.bf16.msra.mxu0 %v1455
  %2054 = vmatprep.subr.bf16.mxu0 %v1458
  %2055 = vmatpush1.bf16.msra.mxu0 %v1457
  %2056 = vmatprep.subr.bf16.mxu0 %v1460
  %2057 = vmatpush1.bf16.msra.mxu0 %v1459
  %2058 = vmatprep.mubr.bf16.mxu0 %v464
  %2059 = vmatmul.mubr.bf16.gmra.mrb[0].mxu0 %v463
  %v2060 = vpop.f32.mrb[0].mxu0
  %v2061 = vadd.f32 %v2008, %v2060
  %v2062 = vpop.f32.mrb[0].mxu0
  %v2063 = vadd.f32 %v2010, %v2062
  %v2064 = vpop.f32.mrb[0].mxu0
  %v2065 = vadd.f32 %v2012, %v2064
  %v2066 = vpop.f32.mrb[0].mxu0
  %v2067 = vadd.f32 %v2014, %v2066
  %2068 = vmatprep.mubr.bf16.mxu0 %v482
  %2069 = vmatmul.mubr.bf16.gmra.mrb[0].mxu0 %v481
  %v2070 = vpop.f32.mrb[0].mxu0
  %v2071 = vadd.f32 %v2018, %v2070
  %v2072 = vpop.f32.mrb[0].mxu0
  %v2073 = vadd.f32 %v2020, %v2072
  %v2074 = vpop.f32.mrb[0].mxu0
  %v2075 = vadd.f32 %v2022, %v2074
  %v2076 = vpop.f32.mrb[0].mxu0
  %v2077 = vadd.f32 %v2024, %v2076
  %2078 = vdwg.mxu0
  %2079 = vmatprep.subr.bf16.mxu0 %v1462
  %2080 = vmatpush1.bf16.msra.mxu0 %v1461
  %2081 = vmatprep.subr.bf16.mxu0 %v1464
  %2082 = vmatpush1.bf16.msra.mxu0 %v1463
  %2083 = vmatprep.subr.bf16.mxu0 %v1466
  %2084 = vmatpush1.bf16.msra.mxu0 %v1465
  %2085 = vmatprep.subr.bf16.mxu0 %v1468
  %2086 = vmatpush1.bf16.msra.mxu0 %v1467
  %2087 = vmatprep.subr.bf16.mxu0 %v1470
  %2088 = vmatpush1.bf16.msra.mxu0 %v1469
  %2089 = vmatprep.subr.bf16.mxu0 %v1472
  %2090 = vmatpush1.bf16.msra.mxu0 %v1471
  %2091 = vmatprep.subr.bf16.mxu0 %v1474
  %2092 = vmatpush1.bf16.msra.mxu0 %v1473
  %2093 = vmatprep.subr.bf16.mxu0 %v1476
  %2094 = vmatpush1.bf16.msra.mxu0 %v1475
  %2095 = vmatprep.subr.bf16.mxu0 %v1478
  %2096 = vmatpush1.bf16.msra.mxu0 %v1477
  %2097 = vmatprep.subr.bf16.mxu0 %v1480
  %2098 = vmatpush1.bf16.msra.mxu0 %v1479
  %2099 = vmatprep.subr.bf16.mxu0 %v1482
  %2100 = vmatpush1.bf16.msra.mxu0 %v1481
  %2101 = vmatprep.subr.bf16.mxu0 %v1484
  %2102 = vmatpush1.bf16.msra.mxu0 %v1483
  %2103 = vmatprep.subr.bf16.mxu0 %v1486
  %2104 = vmatpush1.bf16.msra.mxu0 %v1485
  %2105 = vmatprep.subr.bf16.mxu0 %v1488
  %2106 = vmatpush1.bf16.msra.mxu0 %v1487
  %2107 = vmatprep.subr.bf16.mxu0 %v1490
  %2108 = vmatpush1.bf16.msra.mxu0 %v1489
  %2109 = vmatprep.subr.bf16.mxu0 %v1492
  %2110 = vmatpush1.bf16.msra.mxu0 %v1491
  %2111 = vmatprep.mubr.bf16.mxu0 %v466
  %2112 = vmatmul.mubr.bf16.gmra.mrb[0].mxu0 %v465
  %v2113 = vpop.f32.mrb[0].mxu0
  %v2114 = vadd.f32 %v2061, %v2113
  %v2115 = vpop.f32.mrb[0].mxu0
  %v2116 = vadd.f32 %v2063, %v2115
  %v2117 = vpop.f32.mrb[0].mxu0
  %v2118 = vadd.f32 %v2065, %v2117
  %v2119 = vpop.f32.mrb[0].mxu0
  %v2120 = vadd.f32 %v2067, %v2119
  %2121 = vmatprep.mubr.bf16.mxu0 %v484
  %2122 = vmatmul.mubr.bf16.gmra.mrb[0].mxu0 %v483
  %v2123 = vpop.f32.mrb[0].mxu0
  %v2124 = vadd.f32 %v2071, %v2123
  %v2125 = vpop.f32.mrb[0].mxu0
  %v2126 = vadd.f32 %v2073, %v2125
  %v2127 = vpop.f32.mrb[0].mxu0
  %v2128 = vadd.f32 %v2075, %v2127
  %v2129 = vpop.f32.mrb[0].mxu0
  %v2130 = vadd.f32 %v2077, %v2129
  %2131 = vdwg.mxu0
  %2132 = vmatprep.subr.bf16.mxu0 %v1494
  %2133 = vmatpush1.bf16.msra.mxu0 %v1493
  %2134 = vmatprep.subr.bf16.mxu0 %v1496
  %2135 = vmatpush1.bf16.msra.mxu0 %v1495
  %2136 = vmatprep.subr.bf16.mxu0 %v1498
  %2137 = vmatpush1.bf16.msra.mxu0 %v1497
  %2138 = vmatprep.subr.bf16.mxu0 %v1500
  %2139 = vmatpush1.bf16.msra.mxu0 %v1499
  %2140 = vmatprep.subr.bf16.mxu0 %v1502
  %2141 = vmatpush1.bf16.msra.mxu0 %v1501
  %2142 = vmatprep.subr.bf16.mxu0 %v1504
  %2143 = vmatpush1.bf16.msra.mxu0 %v1503
  %2144 = vmatprep.subr.bf16.mxu0 %v1506
  %2145 = vmatpush1.bf16.msra.mxu0 %v1505
  %2146 = vmatprep.subr.bf16.mxu0 %v1508
  %2147 = vmatpush1.bf16.msra.mxu0 %v1507
  %2148 = vmatprep.subr.bf16.mxu0 %v1510
  %2149 = vmatpush1.bf16.msra.mxu0 %v1509
  %2150 = vmatprep.subr.bf16.mxu0 %v1512
  %2151 = vmatpush1.bf16.msra.mxu0 %v1511
  %2152 = vmatprep.subr.bf16.mxu0 %v1514
  %2153 = vmatpush1.bf16.msra.mxu0 %v1513
  %2154 = vmatprep.subr.bf16.mxu0 %v1516
  %2155 = vmatpush1.bf16.msra.mxu0 %v1515
  %2156 = vmatprep.subr.bf16.mxu0 %v1518
  %2157 = vmatpush1.bf16.msra.mxu0 %v1517
  %2158 = vmatprep.subr.bf16.mxu0 %v1520
  %2159 = vmatpush1.bf16.msra.mxu0 %v1519
  %2160 = vmatprep.subr.bf16.mxu0 %v1522
  %2161 = vmatpush1.bf16.msra.mxu0 %v1521
  %2162 = vmatprep.subr.bf16.mxu0 %v1524
  %2163 = vmatpush1.bf16.msra.mxu0 %v1523
  %2164 = vmatprep.mubr.bf16.mxu0 %v468
  %2165 = vmatmul.mubr.bf16.gmra.mrb[0].mxu0 %v467
  %v2166 = vpop.f32.mrb[0].mxu0
  %v2167 = vadd.f32 %v2114, %v2166
  %v2168 = vpop.f32.mrb[0].mxu0
  %v2169 = vadd.f32 %v2116, %v2168
  %v2170 = vpop.f32.mrb[0].mxu0
  %v2171 = vadd.f32 %v2118, %v2170
  %v2172 = vpop.f32.mrb[0].mxu0
  %v2173 = vadd.f32 %v2120, %v2172
  %2174 = vmatprep.mubr.bf16.mxu0 %v486
  %2175 = vmatmul.mubr.bf16.gmra.mrb[0].mxu0 %v485
  %v2176 = vpop.f32.mrb[0].mxu0
  %v2177 = vadd.f32 %v2124, %v2176
  %v2178 = vpop.f32.mrb[0].mxu0
  %v2179 = vadd.f32 %v2126, %v2178
  %v2180 = vpop.f32.mrb[0].mxu0
  %v2181 = vadd.f32 %v2128, %v2180
  %v2182 = vpop.f32.mrb[0].mxu0
  %v2183 = vadd.f32 %v2130, %v2182
  %2184 = vdwg.mxu0
  %2185 = vmatprep.subr.bf16.mxu0 %v1526
  %2186 = vmatpush1.bf16.msra.mxu0 %v1525
  %2187 = vmatprep.subr.bf16.mxu0 %v1528
  %2188 = vmatpush1.bf16.msra.mxu0 %v1527
  %2189 = vmatprep.subr.bf16.mxu0 %v1530
  %2190 = vmatpush1.bf16.msra.mxu0 %v1529
  %2191 = vmatprep.subr.bf16.mxu0 %v1532
  %2192 = vmatpush1.bf16.msra.mxu0 %v1531
  %2193 = vmatprep.subr.bf16.mxu0 %v1534
  %2194 = vmatpush1.bf16.msra.mxu0 %v1533
  %2195 = vmatprep.subr.bf16.mxu0 %v1536
  %2196 = vmatpush1.bf16.msra.mxu0 %v1535
  %2197 = vmatprep.subr.bf16.mxu0 %v1538
  %2198 = vmatpush1.bf16.msra.mxu0 %v1537
  %2199 = vmatprep.subr.bf16.mxu0 %v1540
  %2200 = vmatpush1.bf16.msra.mxu0 %v1539
  %2201 = vmatprep.subr.bf16.mxu0 %v1542
  %2202 = vmatpush1.bf16.msra.mxu0 %v1541
  %2203 = vmatprep.subr.bf16.mxu0 %v1544
  %2204 = vmatpush1.bf16.msra.mxu0 %v1543
  %2205 = vmatprep.subr.bf16.mxu0 %v1546
  %2206 = vmatpush1.bf16.msra.mxu0 %v1545
  %2207 = vmatprep.subr.bf16.mxu0 %v1548
  %2208 = vmatpush1.bf16.msra.mxu0 %v1547
  %2209 = vmatprep.subr.bf16.mxu0 %v1550
  %2210 = vmatpush1.bf16.msra.mxu0 %v1549
  %2211 = vmatprep.subr.bf16.mxu0 %v1552
  %2212 = vmatpush1.bf16.msra.mxu0 %v1551
  %2213 = vmatprep.subr.bf16.mxu0 %v1554
  %2214 = vmatpush1.bf16.msra.mxu0 %v1553
  %2215 = vmatprep.subr.bf16.mxu0 %v1556
  %2216 = vmatpush1.bf16.msra.mxu0 %v1555
  %2217 = vmatprep.mubr.bf16.mxu0 %v470
  %2218 = vmatmul.mubr.bf16.gmra.mrb[0].mxu0 %v469
  %v2219 = vpop.f32.mrb[0].mxu0
  %v2220 = vadd.f32 %v2167, %v2219
  %v2221 = vpop.f32.mrb[0].mxu0
  %v2222 = vadd.f32 %v2169, %v2221
  %v2223 = vpop.f32.mrb[0].mxu0
  %v2224 = vadd.f32 %v2171, %v2223
  %v2225 = vpop.f32.mrb[0].mxu0
  %v2226 = vadd.f32 %v2173, %v2225
  %2227 = vmatprep.mubr.bf16.mxu0 %v488
  %2228 = vmatmul.mubr.bf16.gmra.mrb[0].mxu0 %v487
  %v2229 = vpop.f32.mrb[0].mxu0
  %v2230 = vadd.f32 %v2177, %v2229
  %v2231 = vpop.f32.mrb[0].mxu0
  %v2232 = vadd.f32 %v2179, %v2231
  %v2233 = vpop.f32.mrb[0].mxu0
  %v2234 = vadd.f32 %v2181, %v2233
  %v2235 = vpop.f32.mrb[0].mxu0
  %v2236 = vadd.f32 %v2183, %v2235
  %2237 = vdwg.mxu0
  %2238 = vmatprep.subr.bf16.mxu0 %v1558
  %2239 = vmatpush1.bf16.msra.mxu0 %v1557
  %2240 = vmatprep.subr.bf16.mxu0 %v1560
  %2241 = vmatpush1.bf16.msra.mxu0 %v1559
  %2242 = vmatprep.subr.bf16.mxu0 %v1562
  %2243 = vmatpush1.bf16.msra.mxu0 %v1561
  %2244 = vmatprep.subr.bf16.mxu0 %v1564
  %2245 = vmatpush1.bf16.msra.mxu0 %v1563
  %2246 = vmatprep.subr.bf16.mxu0 %v1566
  %2247 = vmatpush1.bf16.msra.mxu0 %v1565
  %2248 = vmatprep.subr.bf16.mxu0 %v1568
  %2249 = vmatpush1.bf16.msra.mxu0 %v1567
  %2250 = vmatprep.subr.bf16.mxu0 %v1570
  %2251 = vmatpush1.bf16.msra.mxu0 %v1569
  %2252 = vmatprep.subr.bf16.mxu0 %v1572
  %2253 = vmatpush1.bf16.msra.mxu0 %v1571
  %2254 = vmatprep.subr.bf16.mxu0 %v1574
  %2255 = vmatpush1.bf16.msra.mxu0 %v1573
  %2256 = vmatprep.subr.bf16.mxu0 %v1576
  %2257 = vmatpush1.bf16.msra.mxu0 %v1575
  %2258 = vmatprep.subr.bf16.mxu0 %v1578
  %2259 = vmatpush1.bf16.msra.mxu0 %v1577
  %2260 = vmatprep.subr.bf16.mxu0 %v1580
  %2261 = vmatpush1.bf16.msra.mxu0 %v1579
  %2262 = vmatprep.subr.bf16.mxu0 %v1582
  %2263 = vmatpush1.bf16.msra.mxu0 %v1581
  %2264 = vmatprep.subr.bf16.mxu0 %v1584
  %2265 = vmatpush1.bf16.msra.mxu0 %v1583
  %2266 = vmatprep.subr.bf16.mxu0 %v1586
  %2267 = vmatpush1.bf16.msra.mxu0 %v1585
  %2268 = vmatprep.subr.bf16.mxu0 %v1588
  %2269 = vmatpush1.bf16.msra.mxu0 %v1587
  %2270 = vmatprep.mubr.bf16.mxu0 %v472
  %2271 = vmatmul.mubr.bf16.gmra.mrb[0].mxu0 %v471
  %v2272 = vpop.f32.mrb[0].mxu0
  %v2273 = vadd.f32 %v2220, %v2272
  %v2274 = vpop.f32.mrb[0].mxu0
  %v2275 = vadd.f32 %v2222, %v2274
  %v2276 = vpop.f32.mrb[0].mxu0
  %v2277 = vadd.f32 %v2224, %v2276
  %v2278 = vpop.f32.mrb[0].mxu0
  %v2279 = vadd.f32 %v2226, %v2278
  %2280 = vmatprep.mubr.bf16.mxu0 %v490
  %2281 = vmatmul.mubr.bf16.gmra.mrb[0].mxu0 %v489
  %v2282 = vpop.f32.mrb[0].mxu0
  %v2283 = vadd.f32 %v2230, %v2282
  %v2284 = vpop.f32.mrb[0].mxu0
  %v2285 = vadd.f32 %v2232, %v2284
  %v2286 = vpop.f32.mrb[0].mxu0
  %v2287 = vadd.f32 %v2234, %v2286
  %v2288 = vpop.f32.mrb[0].mxu0
  %v2289 = vadd.f32 %v2236, %v2288
  %2290 = vdwg.mxu0
  %2291 = vmatprep.subr.bf16.mxu0 %v1590
  %2292 = vmatpush1.bf16.msra.mxu0 %v1589
  %2293 = vmatprep.subr.bf16.mxu0 %v1592
  %2294 = vmatpush1.bf16.msra.mxu0 %v1591
  %2295 = vmatprep.subr.bf16.mxu0 %v1594
  %2296 = vmatpush1.bf16.msra.mxu0 %v1593
  %2297 = vmatprep.subr.bf16.mxu0 %v1596
  %2298 = vmatpush1.bf16.msra.mxu0 %v1595
  %2299 = vmatprep.subr.bf16.mxu0 %v1598
  %2300 = vmatpush1.bf16.msra.mxu0 %v1597
  %2301 = vmatprep.subr.bf16.mxu0 %v1600
  %2302 = vmatpush1.bf16.msra.mxu0 %v1599
  %2303 = vmatprep.subr.bf16.mxu0 %v1602
  %2304 = vmatpush1.bf16.msra.mxu0 %v1601
  %2305 = vmatprep.subr.bf16.mxu0 %v1604
  %2306 = vmatpush1.bf16.msra.mxu0 %v1603
  %2307 = vmatprep.subr.bf16.mxu0 %v1606
  %2308 = vmatpush1.bf16.msra.mxu0 %v1605
  %2309 = vmatprep.subr.bf16.mxu0 %v1608
  %2310 = vmatpush1.bf16.msra.mxu0 %v1607
  %2311 = vmatprep.subr.bf16.mxu0 %v1610
  %2312 = vmatpush1.bf16.msra.mxu0 %v1609
  %2313 = vmatprep.subr.bf16.mxu0 %v1612
  %2314 = vmatpush1.bf16.msra.mxu0 %v1611
  %2315 = vmatprep.subr.bf16.mxu0 %v1614
  %2316 = vmatpush1.bf16.msra.mxu0 %v1613
  %2317 = vmatprep.subr.bf16.mxu0 %v1616
  %2318 = vmatpush1.bf16.msra.mxu0 %v1615
  %2319 = vmatprep.subr.bf16.mxu0 %v1618
  %2320 = vmatpush1.bf16.msra.mxu0 %v1617
  %2321 = vmatprep.subr.bf16.mxu0 %v1620
  %2322 = vmatpush1.bf16.msra.mxu0 %v1619
  %2323 = vmatprep.mubr.bf16.mxu0 %v474
  %2324 = vmatmul.mubr.bf16.gmra.mrb[0].mxu0 %v473
  %v2325 = vpop.f32.mrb[0].mxu0
  %v2326 = vadd.f32 %v2273, %v2325
  %v2327 = vpop.f32.mrb[0].mxu0
  %v2328 = vadd.f32 %v2275, %v2327
  %v2329 = vpop.f32.mrb[0].mxu0
  %v2330 = vadd.f32 %v2277, %v2329
  %v2331 = vpop.f32.mrb[0].mxu0
  %v2332 = vadd.f32 %v2279, %v2331
  %2333 = vmatprep.mubr.bf16.mxu0 %v492
  %2334 = vmatmul.mubr.bf16.gmra.mrb[0].mxu0 %v491
  %v2335 = vpop.f32.mrb[0].mxu0
  %v2336 = vadd.f32 %v2283, %v2335
  %v2337 = vpop.f32.mrb[0].mxu0
  %v2338 = vadd.f32 %v2285, %v2337
  %v2339 = vpop.f32.mrb[0].mxu0
  %v2340 = vadd.f32 %v2287, %v2339
  %v2341 = vpop.f32.mrb[0].mxu0
  %v2342 = vadd.f32 %v2289, %v2341
  %2343 = vdwg.mxu0
  %2344 = vmatprep.subr.bf16.mxu0 %v1622
  %2345 = vmatpush1.bf16.msra.mxu0 %v1621
  %2346 = vmatprep.subr.bf16.mxu0 %v1624
  %2347 = vmatpush1.bf16.msra.mxu0 %v1623
  %2348 = vmatprep.subr.bf16.mxu0 %v1626
  %2349 = vmatpush1.bf16.msra.mxu0 %v1625
  %2350 = vmatprep.subr.bf16.mxu0 %v1628
  %2351 = vmatpush1.bf16.msra.mxu0 %v1627
  %2352 = vmatprep.subr.bf16.mxu0 %v1630
  %2353 = vmatpush1.bf16.msra.mxu0 %v1629
  %2354 = vmatprep.subr.bf16.mxu0 %v1632
  %2355 = vmatpush1.bf16.msra.mxu0 %v1631
  %2356 = vmatprep.subr.bf16.mxu0 %v1634
  %2357 = vmatpush1.bf16.msra.mxu0 %v1633
  %2358 = vmatprep.subr.bf16.mxu0 %v1636
  %2359 = vmatpush1.bf16.msra.mxu0 %v1635
  %2360 = vmatprep.subr.bf16.mxu0 %v1638
  %2361 = vmatpush1.bf16.msra.mxu0 %v1637
  %2362 = vmatprep.subr.bf16.mxu0 %v1640
  %2363 = vmatpush1.bf16.msra.mxu0 %v1639
  %2364 = vmatprep.subr.bf16.mxu0 %v1642
  %2365 = vmatpush1.bf16.msra.mxu0 %v1641
  %2366 = vmatprep.subr.bf16.mxu0 %v1644
  %2367 = vmatpush1.bf16.msra.mxu0 %v1643
  %2368 = vmatprep.subr.bf16.mxu0 %v1646
  %2369 = vmatpush1.bf16.msra.mxu0 %v1645
  %2370 = vmatprep.subr.bf16.mxu0 %v1648
  %2371 = vmatpush1.bf16.msra.mxu0 %v1647
  %2372 = vmatprep.subr.bf16.mxu0 %v1650
  %2373 = vmatpush1.bf16.msra.mxu0 %v1649
  %2374 = vmatprep.subr.bf16.mxu0 %v1652
  %2375 = vmatpush1.bf16.msra.mxu0 %v1651
  %2376 = vmatprep.mubr.bf16.mxu0 %v476
  %2377 = vmatmul.mubr.bf16.gmra.mrb[0].mxu0 %v475
  %v2378 = vpop.f32.mrb[0].mxu0
  %v2379 = vadd.f32 %v2326, %v2378
  %v2380 = vpop.f32.mrb[0].mxu0
  %v2381 = vadd.f32 %v2328, %v2380
  %v2382 = vpop.f32.mrb[0].mxu0
  %v2383 = vadd.f32 %v2330, %v2382
  %v2384 = vpop.f32.mrb[0].mxu0
  %v2385 = vadd.f32 %v2332, %v2384
  %2386 = vmatprep.mubr.bf16.mxu0 %v494
  %2387 = vmatmul.mubr.bf16.gmra.mrb[0].mxu0 %v493
  %v2388 = vpop.f32.mrb[0].mxu0
  %v2389 = vadd.f32 %v2336, %v2388
  %v2390 = vpop.f32.mrb[0].mxu0
  %v2391 = vadd.f32 %v2338, %v2390
  %v2392 = vpop.f32.mrb[0].mxu0
  %v2393 = vadd.f32 %v2340, %v2392
  %v2394 = vpop.f32.mrb[0].mxu0
  %v2395 = vadd.f32 %v2342, %v2394
  %2396 = vdwg.mxu0
  %2397 = vmatprep.subr.bf16.mxu0 %v1654
  %2398 = vmatpush1.bf16.msra.mxu0 %v1653
  %2399 = vmatprep.subr.bf16.mxu0 %v1656
  %2400 = vmatpush1.bf16.msra.mxu0 %v1655
  %2401 = vmatprep.subr.bf16.mxu0 %v1658
  %2402 = vmatpush1.bf16.msra.mxu0 %v1657
  %2403 = vmatprep.subr.bf16.mxu0 %v1660
  %2404 = vmatpush1.bf16.msra.mxu0 %v1659
  %2405 = vmatprep.subr.bf16.mxu0 %v1662
  %2406 = vmatpush1.bf16.msra.mxu0 %v1661
  %2407 = vmatprep.subr.bf16.mxu0 %v1664
  %2408 = vmatpush1.bf16.msra.mxu0 %v1663
  %2409 = vmatprep.subr.bf16.mxu0 %v1666
  %2410 = vmatpush1.bf16.msra.mxu0 %v1665
  %2411 = vmatprep.subr.bf16.mxu0 %v1668
  %2412 = vmatpush1.bf16.msra.mxu0 %v1667
  %2413 = vmatprep.subr.bf16.mxu0 %v1670
  %2414 = vmatpush1.bf16.msra.mxu0 %v1669
  %2415 = vmatprep.subr.bf16.mxu0 %v1672
  %2416 = vmatpush1.bf16.msra.mxu0 %v1671
  %2417 = vmatprep.subr.bf16.mxu0 %v1674
  %2418 = vmatpush1.bf16.msra.mxu0 %v1673
  %2419 = vmatprep.subr.bf16.mxu0 %v1676
  %2420 = vmatpush1.bf16.msra.mxu0 %v1675
  %2421 = vmatprep.subr.bf16.mxu0 %v1678
  %2422 = vmatpush1.bf16.msra.mxu0 %v1677
  %2423 = vmatprep.subr.bf16.mxu0 %v1680
  %2424 = vmatpush1.bf16.msra.mxu0 %v1679
  %2425 = vmatprep.subr.bf16.mxu0 %v1682
  %2426 = vmatpush1.bf16.msra.mxu0 %v1681
  %2427 = vmatprep.subr.bf16.mxu0 %v1684
  %2428 = vmatpush1.bf16.msra.mxu0 %v1683
  %2429 = vmatprep.mubr.bf16.mxu0 %v478
  %2430 = vmatmul.mubr.bf16.gmra.mrb[0].mxu0 %v477
  %v2431 = vpop.f32.mrb[0].mxu0
  %v2432 = vadd.f32 %v2379, %v2431
  %v2433 = vpop.f32.mrb[0].mxu0
  %v2434 = vadd.f32 %v2381, %v2433
  %v2435 = vpop.f32.mrb[0].mxu0
  %v2436 = vadd.f32 %v2383, %v2435
  %v2437 = vpop.f32.mrb[0].mxu0
  %v2438 = vadd.f32 %v2385, %v2437
  %2439 = vmatprep.mubr.bf16.mxu0 %v496
  %2440 = vmatmul.mubr.bf16.gmra.mrb[0].mxu0 %v495
  %v2441 = vpop.f32.mrb[0].mxu0
  %v2442 = vadd.f32 %v2389, %v2441
  %v2443 = vpop.f32.mrb[0].mxu0
  %v2444 = vadd.f32 %v2391, %v2443
  %v2445 = vpop.f32.mrb[0].mxu0
  %v2446 = vadd.f32 %v2393, %v2445
  %v2447 = vpop.f32.mrb[0].mxu0
  %v2448 = vadd.f32 %v2395, %v2447
  %2449 = vdwg.mxu0
  %v2450 = vld [vmem:[%s3] sm:$0xff]
  %v2451 = vld [vmem:[%s3 + $0x8] sm:$0xff]
  %v2452 = vld [vmem:[%s3 + $0x10] sm:$0xff]
  %v2453 = vld [vmem:[%s3 + $0x18] sm:$0xff]
  %v2454 = vunpack.c.l.bf16 %v2450
  %v2455 = vunpack.c.h.bf16 %v2450
  %v2456 = vunpack.c.l.bf16 %v2451
  %v2457 = vunpack.c.h.bf16 %v2451
  %v2458 = vunpack.c.l.bf16 %v2452
  %v2459 = vunpack.c.h.bf16 %v2452
  %v2460 = vunpack.c.l.bf16 %v2453
  %v2461 = vunpack.c.h.bf16 %v2453
  %v2462 = vadd.f32 %v2432, %v2454
  %v2463 = vadd.f32 %v2434, %v2455
  %v2464 = vadd.f32 %v2436, %v2456
  %v2465 = vadd.f32 %v2438, %v2457
  %v2466 = vadd.f32 %v2442, %v2458
  %v2467 = vadd.f32 %v2444, %v2459
  %v2468 = vadd.f32 %v2446, %v2460
  %v2469 = vadd.f32 %v2448, %v2461
  %v2470 = vmax.f32 %v2462, 0.0
  %v2471 = vmax.f32 %v2463, 0.0
  %v2472 = vmax.f32 %v2464, 0.0
  %v2473 = vmax.f32 %v2465, 0.0
  %v2474 = vmax.f32 %v2466, 0.0
  %v2475 = vmax.f32 %v2467, 0.0
  %v2476 = vmax.f32 %v2468, 0.0
  %v2477 = vmax.f32 %v2469, 0.0
  %v2478 = vpack.c.bf16 %v2472, %v2470
  %v2479 = vpack.c.bf16 %v2473, %v2471
  %v2480 = vpack.c.bf16 %v2476, %v2474
  %v2481 = vpack.c.bf16 %v2477, %v2475
  %v2486 = vunpack.c.l.b16 %v2478
  %v2487 = vunpack.c.l.b16 %v2479
  %v2488 = vunpack.c.h.b16 %v2478
  %v2489 = vunpack.c.h.b16 %v2479
  %v2490 = vunpack.c.l.b16 %v2480
  %v2491 = vunpack.c.l.b16 %v2481
  %v2492 = vunpack.c.h.b16 %v2480
  %v2493 = vunpack.c.h.b16 %v2481
  %v2494 = vpack.c.b16 %v2487, %v2486
  %v2495 = vpack.c.b16 %v2489, %v2488
  %v2496 = vpack.c.b16 %v2491, %v2490
  %v2497 = vpack.c.b16 %v2493, %v2492
  %2502 = vst [vmem:[%s4] sm:$0xff] %v2494
  %2503 = vst [vmem:[%s4 + $0x8] sm:$0xff] %v2495
  %2504 = vst [vmem:[%s4 + $0x10] sm:$0xff] %v2496
  %2505 = vst [vmem:[%s4 + $0x18] sm:$0xff] %v2497
  // Predicated region
  $region18: #{resnet_diff_forward.17} parent=0 // pred_check
    _
  $region19: #{resnet_diff_forward.17} parent=0 // pred_check_branch
    %2507 = sbr.rel (0) target = $region21
  $region20: #{resnet_diff_forward.17} parent=0 // pred_region
    _
  $region21: #{resnet_diff_forward.17} parent=0 // pred_fallthru
    _
  // Predicated region
  $region22: #{resnet_diff_forward.17} parent=0 // pred_check
    _
  $region23: #{resnet_diff_forward.17} parent=0 // pred_check_branch
    %2509 = sbr.rel (0) target = $region25
  $region24: #{resnet_diff_forward.17} parent=0 // pred_region
    _
  $region25: #{resnet_diff_forward.17} parent=0 // pred_fallthru
    _

</llo_original>
